<compile_context>
chip_gen: v7x
topology: tpu7x:2x2x1
jax: 0.10.0
libtpu: 0.0.40
codegen_flags: <defaults>
</compile_context>

<pallas_src>
import functools

import jax
import jax.numpy as jnp
from jax.experimental import pallas as pl
from jax.experimental.pallas import tpu as pltpu

IGNORE_INDEX = -100
_NEG_BIG = -1e30  # finite "-inf" for masking out-of-range vocab columns


def _round_up(a, b):
    return (a + b - 1) // b * b


def _device_defaults():
    """Return (tile_n, tile_v, vmem_capacity_bytes) tuned per TPU generation."""
    try:
        kind = jax.devices()[0].device_kind.lower()
    except Exception:
        kind = ""
    try:
        vmem_cap = int(pltpu.get_tpu_info().vmem_capacity_bytes)
    except Exception:
        # Conservative fallback: 128 MiB on v5/v6, 64 MiB otherwise (v7x).
        vmem_cap = (128 << 20) if ("v5" in kind or "v6" in kind) else (64 << 20)
    if "v6" in kind:
        # 128 MiB VMEM, ~680 FLOP/B roofline: big tiles move us MXU-bound.
        return 1024, 1024, vmem_cap
    if "v5" in kind:
        # 128 MiB VMEM, weaker MXU/HBM: 512 already crosses the roofline.
        return 512, 512, vmem_cap
    # v7x (64 MiB VMEM per TC, 3.2 TB/s HBM) or unknown: modest tiles.
    return 512, 512, vmem_cap


def _pick_tile_v(v, want):
    """Vocab tile: multiple of 128; prefer an exact divisor of v (no ragged
    tail -> no per-step masking), else the requested size + in-kernel mask."""
    want = max(128, min(want, _round_up(v, 128)))
    want -= want % 128
    if v % 128 == 0:
        cand = want
        while cand >= 128 and v % cand != 0:
            cand -= 128
        if cand >= max(256, want // 2):
            return cand
    return want


def _lm_head_ce_kernel(tgt_ref, x_ref, w_ref, loss_ref,
                       m_sc, l_sc, t_sc, *, tile_v, num_valid_v,
                       needs_v_mask, ignore_index):
    j = pl.program_id(1)

    @pl.when(j == 0)
    def _():
        m_sc[...] = jnp.full_like(m_sc, -jnp.inf)
        l_sc[...] = jnp.zeros_like(l_sc)
        t_sc[...] = jnp.zeros_like(t_sc)

    # (TN, H) contracted with (TV, H) on H -> (TN, TV) logits tile.  The MXU
    # consumes the A @ B^T contraction natively (flash-attention QK^T form),
    # so no transposed weight copy / per-tile relayout is needed.
    logits = jax.lax.dot_general(
        x_ref[...], w_ref[...],
        dimension_numbers=(((1,), (1,)), ((), ())),
        preferred_element_type=jnp.float32)

    # Tile-local vocab column index; the j*tile_v offset is folded into the
    # cheap (TN,1)/scalar operands instead of a full-tile iota add.
    col = jax.lax.broadcasted_iota(jnp.int32, logits.shape, 1)

    if needs_v_mask:
        # Columns past the true vocab size (only present in the last, partial
        # vocab tile; a no-op select elsewhere) must not reach the logsumexp.
        logits = jnp.where(col < (num_valid_v - j * tile_v), logits, _NEG_BIG)

    # Online logsumexp over the vocab axis.
    m_new = jnp.maximum(m_sc[...], logits.max(axis=-1, keepdims=True))
    alpha = jnp.exp(m_sc[...] - m_new)
    l_sc[...] = alpha * l_sc[...] + jnp.exp(logits - m_new).sum(
        axis=-1, keepdims=True)
    m_sc[...] = m_new

    # Pick up the target-class logit if it lies in this vocab tile.
    tgt_local = tgt_ref[...] - j * tile_v          # (TN, 1) int32
    t_sc[...] += jnp.sum(jnp.where(col == tgt_local, logits, 0.0),
                         axis=-1, keepdims=True)

    @pl.when(j == pl.num_programs(1) - 1)
    def _():
        lse = m_sc[...] + jnp.log(l_sc[...])
        valid = tgt_ref[...] != ignore_index
        loss_ref[...] = jnp.where(valid, lse - t_sc[...], 0.0)


def lm_head_ce(x, weight, target, *, tile_n=None, tile_v=None,
               compute_dtype=None, ignore_index=IGNORE_INDEX):
    """Fused linear + cross-entropy, mean over targets != ignore_index."""
    n, h = x.shape
    v, h2 = weight.shape
    assert h == h2, (x.shape, weight.shape)

    dflt_tn, dflt_tv, vmem_cap = _device_defaults()
    tile_n = dflt_tn if tile_n is None else tile_n
    tile_v = dflt_tv if tile_v is None else tile_v

    if compute_dtype is not None:
        x = x.astype(compute_dtype)
        weight = weight.astype(compute_dtype)

    # ---- tile selection ----------------------------------------------------
    tile_n = max(8, min(tile_n, _round_up(n, 8)))
    if n >= 512:
        # Keep >= 2 token tiles so the 'parallel' axis can feed both
        # TensorCores on megacore parts (v7x).
        tile_n = min(tile_n, _round_up((n + 1) // 2, 8))
    tile_v = _pick_tile_v(v, tile_v)

    # Fit the working set in device VMEM: x tile single-buffered, weight tile
    # double-buffered, f32 logits + softmax temporaries.
    opnd_bytes = jnp.dtype(x.dtype).itemsize

    def _est(tn, tv):
        return (tn * h * opnd_bytes            # x tile (Buffered(1))
                + 2 * tv * h * opnd_bytes      # weight tile, double buffered
                + 3 * tn * tv * 4              # logits + exp temporaries
                + 32 * tn * 4)                 # target / loss / scratch cols

    budget = max(vmem_cap - (8 << 20), 24 << 20)
    while _est(tile_n, tile_v) > budget and tile_v > 256:
        tile_v = max(128, _round_up(tile_v // 2, 128))
    while _est(tile_n, tile_v) > budget and tile_n > 64:
        tile_n = max(8, _round_up(tile_n // 2, 8))

    needs_v_mask = (v % tile_v) != 0
    num_v_tiles = pl.cdiv(v, tile_v)

    # ---- pad only the (cheap) token axis; the weight is never copied --------
    tgt1d = target.astype(jnp.int32)
    n_pad = _round_up(n, tile_n)
    if n_pad != n:
        x = jnp.pad(x, ((0, n_pad - n), (0, 0)))
        tgt1d = jnp.pad(tgt1d, (0, n_pad - n), constant_values=ignore_index)
    tgt2d = tgt1d.reshape(n_pad, 1)

    vmem_limit = int(_est(tile_n, tile_v) * 1.5) + (4 << 20)
    vmem_limit = max(vmem_limit, 32 << 20)
    vmem_limit = min(vmem_limit, vmem_cap - (6 << 20))   # never exceed physical

    kernel = functools.partial(_lm_head_ce_kernel, tile_v=tile_v,
                               num_valid_v=v, needs_v_mask=needs_v_mask,
                               ignore_index=ignore_index)

    def _run(single_buffer_x):
        x_kwargs = {}
        if single_buffer_x:
            # x only changes at token-tile boundaries: one buffer is enough,
            # freeing tile_n*H*itemsize of VMEM for bigger tiles.
            x_kwargs = dict(pipeline_mode=pl.Buffered(1))
        return pl.pallas_call(
            kernel,
            out_shape=jax.ShapeDtypeStruct((n_pad, 1), jnp.float32),
            grid_spec=pltpu.PrefetchScalarGridSpec(
                num_scalar_prefetch=0,
                grid=(n_pad // tile_n, num_v_tiles),
                in_specs=[
                    pl.BlockSpec((tile_n, 1), lambda i, j: (i, 0)),    # target
                    pl.BlockSpec((tile_n, h), lambda i, j: (i, 0),     # input
                                 **x_kwargs),
                    pl.BlockSpec((tile_v, h), lambda i, j: (j, 0)),    # weight
                ],
                out_specs=pl.BlockSpec((tile_n, 1), lambda i, j: (i, 0)),
                scratch_shapes=[
                    pltpu.VMEM((tile_n, 1), jnp.float32),  # running max
                    pltpu.VMEM((tile_n, 1), jnp.float32),  # running sum(exp)
                    pltpu.VMEM((tile_n, 1), jnp.float32),  # target logit
                ],
            ),
            compiler_params=pltpu.CompilerParams(
                dimension_semantics=("parallel", "arbitrary"),
                vmem_limit_bytes=vmem_limit),
        )(tgt2d, x, weight)

    try:
        per_token_loss = _run(single_buffer_x=True)
    except Exception:
        # Fallback for jax versions without pipeline_mode=pl.Buffered support.
        per_token_loss = _run(single_buffer_x=False)

    # reduction='mean' over non-ignored targets (padded rows contribute 0).
    valid = (target != ignore_index).astype(jnp.float32)
    n_valid = jnp.maximum(valid.sum(), 1.0)
    return per_token_loss[:, 0].sum() / n_valid


def _reference(x, weight, target, ignore_index=IGNORE_INDEX, compute_dtype=None):
    if compute_dtype is not None:
        x = x.astype(compute_dtype)
        weight = weight.astype(compute_dtype)
    logits = jax.lax.dot_general(
        x, weight, dimension_numbers=(((1,), (1,)), ((), ())),
        preferred_element_type=jnp.float32)
    lse = jax.scipy.special.logsumexp(logits, axis=-1)
    safe_tgt = jnp.where(target == ignore_index, 0, target)
    tgt_logit = jnp.take_along_axis(logits, safe_tgt[:, None], axis=-1)[:, 0]
    per_tok = jnp.where(target == ignore_index, 0.0, lse - tgt_logit)
    n_valid = jnp.maximum((target != ignore_index).sum(), 1)
    return per_tok.sum() / n_valid


if __name__ == "__main__":
    key = jax.random.PRNGKey(0)

    # Case 1: aligned shapes, fp32 operands (matches fp32 torch semantics).
    k1, k2, k3 = jax.random.split(key, 3)
    N, H, V = 512, 256, 2048
    x = jax.random.normal(k1, (N, H), dtype=jnp.float32)
    w = jax.random.normal(k2, (V, H), dtype=jnp.float32) * 0.05
    tgt = jax.random.randint(k3, (N,), 0, V, dtype=jnp.int32)
    tgt = tgt.at[0].set(IGNORE_INDEX)  # exercise ignore_index path
    loss = jax.block_until_ready(lm_head_ce(x, w, tgt, compute_dtype=None))
    ref = _reference(x, w, tgt, compute_dtype=None)
    assert jnp.allclose(loss, ref, atol=2e-3, rtol=2e-3), (loss, ref)

    # Case 2: ragged N / V (partial vocab tile + in-kernel mask), bf16 operands.
    k4, k5, k6 = jax.random.split(jax.random.PRNGKey(1), 3)
    N2, H2, V2 = 100, 96, 1000
    x2 = jax.random.normal(k4, (N2, H2), dtype=jnp.float32)
    w2 = jax.random.normal(k5, (V2, H2), dtype=jnp.float32) * 0.05
    tgt2 = jax.random.randint(k6, (N2,), 0, V2, dtype=jnp.int32)
    tgt2 = tgt2.at[3].set(IGNORE_INDEX)
    loss2 = jax.block_until_ready(
        lm_head_ce(x2, w2, tgt2, compute_dtype=jnp.bfloat16))
    ref2 = _reference(x2, w2, tgt2, compute_dtype=jnp.bfloat16)
    assert jnp.allclose(loss2, ref2, atol=3e-2, rtol=3e-2), (loss2, ref2)

    print("KERNEL_OK")
</pallas_src>

<mosaic_0001>
module attributes {stable_mosaic.version = 11 : i64} {
  func.func @_lm_head_ce_kernel(%arg0: i32, %arg1: i32, %arg2: memref<256x1xi32, #tpu.memory_space<vmem>>, %arg3: memref<256x256xf32, #tpu.memory_space<vmem>>, %arg4: memref<512x256xf32, #tpu.memory_space<vmem>>, %arg5: memref<256x1xf32, #tpu.memory_space<vmem>>, %arg6: memref<256x1xf32, #tpu.memory_space<vmem>>, %arg7: memref<256x1xf32, #tpu.memory_space<vmem>>, %arg8: memref<256x1xf32, #tpu.memory_space<vmem>>) attributes {dimension_semantics = [#tpu.dimension_semantics<parallel>, #tpu.dimension_semantics<arbitrary>], iteration_bounds = array<i64: 2, 4>, scalar_prefetch = 0 : i64, scratch_operands = 3 : i64, tpu.core_type = #tpu.core_type<tc>, window_params = [{transform_indices = @transform_0, window_bounds = array<i64: 256, 1>}, {pipeline_mode = #tpu.pipeline_mode<synchronous>, transform_indices = @transform_1, window_bounds = array<i64: 256, 256>}, {transform_indices = @transform_2, window_bounds = array<i64: 512, 256>}, {transform_indices = @transform_3, window_bounds = array<i64: 256, 1>}]} {
    %c0_i32 = arith.constant 0 : i32
    %0 = arith.cmpi eq, %arg1, %c0_i32 : i32
    %1 = arith.extui %0 : i1 to i32
    %c0_i32_0 = arith.constant 0 : i32
    %2 = arith.cmpi ne, %1, %c0_i32_0 : i32
    scf.if %2 {
      %cst_25 = arith.constant 0xFF800000 : f32
      %40 = vector.broadcast %cst_25 : f32 to vector<256x1xf32>
      %c0_26 = arith.constant 0 : index
      %c0_27 = arith.constant 0 : index
      %41 = vector.load %arg6[%c0_26, %c0_27] : memref<256x1xf32, #tpu.memory_space<vmem>>, vector<256x1xf32>
      tpu.vector_store %arg6[%c0_26, %c0_27], %40 {strides = array<i32>} : memref<256x1xf32, #tpu.memory_space<vmem>>, vector<256x1xf32>,
      %cst_28 = arith.constant 0.000000e+00 : f32
      %42 = vector.broadcast %cst_28 : f32 to vector<256x1xf32>
      %c0_29 = arith.constant 0 : index
      %c0_30 = arith.constant 0 : index
      %43 = vector.load %arg7[%c0_29, %c0_30] : memref<256x1xf32, #tpu.memory_space<vmem>>, vector<256x1xf32>
      tpu.vector_store %arg7[%c0_29, %c0_30], %42 {strides = array<i32>} : memref<256x1xf32, #tpu.memory_space<vmem>>, vector<256x1xf32>,
      %cst_31 = arith.constant 0.000000e+00 : f32
      %44 = vector.broadcast %cst_31 : f32 to vector<256x1xf32>
      %c0_32 = arith.constant 0 : index
      %c0_33 = arith.constant 0 : index
      %45 = vector.load %arg8[%c0_32, %c0_33] : memref<256x1xf32, #tpu.memory_space<vmem>>, vector<256x1xf32>
      tpu.vector_store %arg8[%c0_32, %c0_33], %44 {strides = array<i32>} : memref<256x1xf32, #tpu.memory_space<vmem>>, vector<256x1xf32>,
    } else {
    }
    %c0 = arith.constant 0 : index
    %c0_1 = arith.constant 0 : index
    %3 = vector.load %arg3[%c0, %c0_1] : memref<256x256xf32, #tpu.memory_space<vmem>>, vector<256x256xf32>
    %c0_2 = arith.constant 0 : index
    %c0_3 = arith.constant 0 : index
    %4 = vector.load %arg4[%c0_2, %c0_3] : memref<512x256xf32, #tpu.memory_space<vmem>>, vector<512x256xf32>
    %cst = arith.constant dense<0.000000e+00> : vector<256x512xf32>
    %5 = tpu.matmul %3, %4, %cst {dimension_numbers = #tpu.dot_dimension_numbers<[1], [1], [0], [0], [0, 0, 1, 0], [], []>} : vector<256x256xf32>, vector<512x256xf32>, vector<256x512xf32> -> vector<256x512xf32>
    %6 = tpu.iota {dimensions = array<i32: 1>} : vector<256x512xi32>
    %c0_4 = arith.constant 0 : index
    %c0_5 = arith.constant 0 : index
    %7 = vector.load %arg6[%c0_4, %c0_5] : memref<256x1xf32, #tpu.memory_space<vmem>>, vector<256x1xf32>
    %cst_6 = arith.constant dense<0xFF800000> : vector<256xf32>
    %8 = vector.multi_reduction <maximumf>, %5, %cst_6 [1] : vector<256x512xf32> to vector<256xf32>
    %9 = vector.shape_cast %8 : vector<256xf32> to vector<256x1xf32>
    %10 = arith.maximumf %7, %9 : vector<256x1xf32>
    %c0_7 = arith.constant 0 : index
    %c0_8 = arith.constant 0 : index
    %11 = vector.load %arg6[%c0_7, %c0_8] : memref<256x1xf32, #tpu.memory_space<vmem>>, vector<256x1xf32>
    %12 = arith.subf %11, %10 : vector<256x1xf32>
    %13 = math.exp %12 : vector<256x1xf32>
    %c0_9 = arith.constant 0 : index
    %c0_10 = arith.constant 0 : index
    %14 = vector.load %arg7[%c0_9, %c0_10] : memref<256x1xf32, #tpu.memory_space<vmem>>, vector<256x1xf32>
    %15 = arith.mulf %13, %14 : vector<256x1xf32>
    %16 = vector.broadcast %10 : vector<256x1xf32> to vector<256x512xf32>
    %17 = arith.subf %5, %16 : vector<256x512xf32>
    %18 = math.exp %17 : vector<256x512xf32>
    %cst_11 = arith.constant dense<0.000000e+00> : vector<256xf32>
    %19 = vector.multi_reduction <add>, %18, %cst_11 [1] : vector<256x512xf32> to vector<256xf32>
    %20 = vector.shape_cast %19 : vector<256xf32> to vector<256x1xf32>
    %21 = arith.addf %15, %20 : vector<256x1xf32>
    %c0_12 = arith.constant 0 : index
    %c0_13 = arith.constant 0 : index
    %22 = vector.load %arg7[%c0_12, %c0_13] : memref<256x1xf32, #tpu.memory_space<vmem>>, vector<256x1xf32>
    tpu.vector_store %arg7[%c0_12, %c0_13], %21 {strides = array<i32>} : memref<256x1xf32, #tpu.memory_space<vmem>>, vector<256x1xf32>,
    %c0_14 = arith.constant 0 : index
    %c0_15 = arith.constant 0 : index
    %23 = vector.load %arg6[%c0_14, %c0_15] : memref<256x1xf32, #tpu.memory_space<vmem>>, vector<256x1xf32>
    tpu.vector_store %arg6[%c0_14, %c0_15], %10 {strides = array<i32>} : memref<256x1xf32, #tpu.memory_space<vmem>>, vector<256x1xf32>,
    %c0_16 = arith.constant 0 : index
    %c0_17 = arith.constant 0 : index
    %24 = vector.load %arg2[%c0_16, %c0_17] : memref<256x1xi32, #tpu.memory_space<vmem>>, vector<256x1xi32>
    %c512_i32 = arith.constant 512 : i32
    %25 = arith.muli %arg1, %c512_i32 : i32
    %26 = vector.broadcast %25 : i32 to vector<256x1xi32>
    %27 = arith.subi %24, %26 : vector<256x1xi32>
    %c0_18 = arith.constant 0 : index
    %c0_19 = arith.constant 0 : index
    %28 = vector.load %arg8[%c0_18, %c0_19] : memref<256x1xf32, #tpu.memory_space<vmem>>, vector<256x1xf32>
    %29 = vector.broadcast %27 : vector<256x1xi32> to vector<256x512xi32>
    %30 = arith.cmpi eq, %6, %29 : vector<256x512xi32>
    %cst_20 = arith.constant 0.000000e+00 : f32
    %31 = vector.broadcast %cst_20 : f32 to vector<256x512xf32>
    %32 = arith.select %30, %5, %31 : vector<256x512xi1>, vector<256x512xf32>
    %cst_21 = arith.constant dense<0.000000e+00> : vector<256xf32>
    %33 = vector.multi_reduction <add>, %32, %cst_21 [1] : vector<256x512xf32> to vector<256xf32>
    %34 = vector.shape_cast %33 : vector<256xf32> to vector<256x1xf32>
    %35 = arith.addf %28, %34 : vector<256x1xf32>
    %c0_22 = arith.constant 0 : index
    %c0_23 = arith.constant 0 : index
    %36 = vector.load %arg8[%c0_22, %c0_23] : memref<256x1xf32, #tpu.memory_space<vmem>>, vector<256x1xf32>
    tpu.vector_store %arg8[%c0_22, %c0_23], %35 {strides = array<i32>} : memref<256x1xf32, #tpu.memory_space<vmem>>, vector<256x1xf32>,
    %c3_i32 = arith.constant 3 : i32
    %37 = arith.cmpi eq, %arg1, %c3_i32 : i32
    %38 = arith.extui %37 : i1 to i32
    %c0_i32_24 = arith.constant 0 : i32
    %39 = arith.cmpi ne, %38, %c0_i32_24 : i32
    scf.if %39 {
      %c0_25 = arith.constant 0 : index
      %c0_26 = arith.constant 0 : index
      %40 = vector.load %arg6[%c0_25, %c0_26] : memref<256x1xf32, #tpu.memory_space<vmem>>, vector<256x1xf32>
      %c0_27 = arith.constant 0 : index
      %c0_28 = arith.constant 0 : index
      %41 = vector.load %arg7[%c0_27, %c0_28] : memref<256x1xf32, #tpu.memory_space<vmem>>, vector<256x1xf32>
      %42 = math.log %41 : vector<256x1xf32>
      %43 = arith.addf %40, %42 : vector<256x1xf32>
      %c0_29 = arith.constant 0 : index
      %c0_30 = arith.constant 0 : index
      %44 = vector.load %arg2[%c0_29, %c0_30] : memref<256x1xi32, #tpu.memory_space<vmem>>, vector<256x1xi32>
      %c-100_i32 = arith.constant -100 : i32
      %45 = vector.broadcast %c-100_i32 : i32 to vector<256x1xi32>
      %46 = arith.cmpi ne, %44, %45 : vector<256x1xi32>
      %c0_31 = arith.constant 0 : index
      %c0_32 = arith.constant 0 : index
      %47 = vector.load %arg8[%c0_31, %c0_32] : memref<256x1xf32, #tpu.memory_space<vmem>>, vector<256x1xf32>
      %48 = arith.subf %43, %47 : vector<256x1xf32>
      %cst_33 = arith.constant 0.000000e+00 : f32
      %49 = vector.broadcast %cst_33 : f32 to vector<256x1xf32>
      %50 = arith.select %46, %48, %49 : vector<256x1xi1>, vector<256x1xf32>
      %c0_34 = arith.constant 0 : index
      %c0_35 = arith.constant 0 : index
      %51 = vector.load %arg5[%c0_34, %c0_35] : memref<256x1xf32, #tpu.memory_space<vmem>>, vector<256x1xf32>
      tpu.vector_store %arg5[%c0_34, %c0_35], %50 {strides = array<i32>} : memref<256x1xf32, #tpu.memory_space<vmem>>, vector<256x1xf32>,
    } else {
    }
    return
  }
  func.func @transform_0(%arg0: i32, %arg1: i32) -> (i32, i32) {
    %c0_i32 = arith.constant 0 : i32
    %c0_i32_0 = arith.constant 0 : i32
    return %arg0, %c0_i32 : i32, i32
  }
  func.func @transform_1(%arg0: i32, %arg1: i32) -> (i32, i32) {
    %c0_i32 = arith.constant 0 : i32
    %c0_i32_0 = arith.constant 0 : i32
    return %arg0, %c0_i32 : i32, i32
  }
  func.func @transform_2(%arg0: i32, %arg1: i32) -> (i32, i32) {
    %c0_i32 = arith.constant 0 : i32
    %c0_i32_0 = arith.constant 0 : i32
    return %arg1, %c0_i32 : i32, i32
  }
  func.func @transform_3(%arg0: i32, %arg1: i32) -> (i32, i32) {
    %c0_i32 = arith.constant 0 : i32
    %c0_i32_0 = arith.constant 0 : i32
    return %arg0, %c0_i32 : i32, i32
  }
}

module attributes {stable_mosaic.version = 11 : i64} {
  func.func @_lm_head_ce_kernel(%arg0: i32, %arg1: i32, %arg2: memref<256x1xi32, #tpu.memory_space<vmem>>, %arg3: memref<256x256xf32, #tpu.memory_space<vmem>>, %arg4: memref<512x256xf32, #tpu.memory_space<vmem>>, %arg5: memref<256x1xf32, #tpu.memory_space<vmem>>, %arg6: memref<256x1xf32, #tpu.memory_space<vmem>>, %arg7: memref<256x1xf32, #tpu.memory_space<vmem>>, %arg8: memref<256x1xf32, #tpu.memory_space<vmem>>) attributes {dimension_semantics = [#tpu.dimension_semantics<parallel>, #tpu.dimension_semantics<arbitrary>], iteration_bounds = array<i64: 2, 4>, scalar_prefetch = 0 : i64, scratch_operands = 3 : i64, tpu.core_type = #tpu.core_type<tc>, window_params = [{transform_indices = @transform_0, window_bounds = array<i64: 256, 1>}, {transform_indices = @transform_1, window_bounds = array<i64: 256, 256>}, {transform_indices = @transform_2, window_bounds = array<i64: 512, 256>}, {transform_indices = @transform_3, window_bounds = array<i64: 256, 1>}]} {
    %c0_i32 = arith.constant 0 : i32
    %0 = arith.cmpi eq, %arg1, %c0_i32 : i32
    %1 = arith.extui %0 : i1 to i32
    %c0_i32_0 = arith.constant 0 : i32
    %2 = arith.cmpi ne, %1, %c0_i32_0 : i32
    scf.if %2 {
      %cst_25 = arith.constant 0xFF800000 : f32
      %40 = vector.broadcast %cst_25 : f32 to vector<256x1xf32>
      %c0_26 = arith.constant 0 : index
      %c0_27 = arith.constant 0 : index
      %41 = vector.load %arg6[%c0_26, %c0_27] : memref<256x1xf32, #tpu.memory_space<vmem>>, vector<256x1xf32>
      tpu.vector_store %arg6[%c0_26, %c0_27], %40 {strides = array<i32>} : memref<256x1xf32, #tpu.memory_space<vmem>>, vector<256x1xf32>,
      %cst_28 = arith.constant 0.000000e+00 : f32
      %42 = vector.broadcast %cst_28 : f32 to vector<256x1xf32>
      %c0_29 = arith.constant 0 : index
      %c0_30 = arith.constant 0 : index
      %43 = vector.load %arg7[%c0_29, %c0_30] : memref<256x1xf32, #tpu.memory_space<vmem>>, vector<256x1xf32>
      tpu.vector_store %arg7[%c0_29, %c0_30], %42 {strides = array<i32>} : memref<256x1xf32, #tpu.memory_space<vmem>>, vector<256x1xf32>,
      %cst_31 = arith.constant 0.000000e+00 : f32
      %44 = vector.broadcast %cst_31 : f32 to vector<256x1xf32>
      %c0_32 = arith.constant 0 : index
      %c0_33 = arith.constant 0 : index
      %45 = vector.load %arg8[%c0_32, %c0_33] : memref<256x1xf32, #tpu.memory_space<vmem>>, vector<256x1xf32>
      tpu.vector_store %arg8[%c0_32, %c0_33], %44 {strides = array<i32>} : memref<256x1xf32, #tpu.memory_space<vmem>>, vector<256x1xf32>,
    } else {
    }
    %c0 = arith.constant 0 : index
    %c0_1 = arith.constant 0 : index
    %3 = vector.load %arg3[%c0, %c0_1] : memref<256x256xf32, #tpu.memory_space<vmem>>, vector<256x256xf32>
    %c0_2 = arith.constant 0 : index
    %c0_3 = arith.constant 0 : index
    %4 = vector.load %arg4[%c0_2, %c0_3] : memref<512x256xf32, #tpu.memory_space<vmem>>, vector<512x256xf32>
    %cst = arith.constant dense<0.000000e+00> : vector<256x512xf32>
    %5 = tpu.matmul %3, %4, %cst {dimension_numbers = #tpu.dot_dimension_numbers<[1], [1], [0], [0], [0, 0, 1, 0], [], []>} : vector<256x256xf32>, vector<512x256xf32>, vector<256x512xf32> -> vector<256x512xf32>
    %6 = tpu.iota {dimensions = array<i32: 1>} : vector<256x512xi32>
    %c0_4 = arith.constant 0 : index
    %c0_5 = arith.constant 0 : index
    %7 = vector.load %arg6[%c0_4, %c0_5] : memref<256x1xf32, #tpu.memory_space<vmem>>, vector<256x1xf32>
    %cst_6 = arith.constant dense<0xFF800000> : vector<256xf32>
    %8 = vector.multi_reduction <maximumf>, %5, %cst_6 [1] : vector<256x512xf32> to vector<256xf32>
    %9 = vector.shape_cast %8 : vector<256xf32> to vector<256x1xf32>
    %10 = arith.maximumf %7, %9 : vector<256x1xf32>
    %c0_7 = arith.constant 0 : index
    %c0_8 = arith.constant 0 : index
    %11 = vector.load %arg6[%c0_7, %c0_8] : memref<256x1xf32, #tpu.memory_space<vmem>>, vector<256x1xf32>
    %12 = arith.subf %11, %10 : vector<256x1xf32>
    %13 = math.exp %12 : vector<256x1xf32>
    %c0_9 = arith.constant 0 : index
    %c0_10 = arith.constant 0 : index
    %14 = vector.load %arg7[%c0_9, %c0_10] : memref<256x1xf32, #tpu.memory_space<vmem>>, vector<256x1xf32>
    %15 = arith.mulf %13, %14 : vector<256x1xf32>
    %16 = vector.broadcast %10 : vector<256x1xf32> to vector<256x512xf32>
    %17 = arith.subf %5, %16 : vector<256x512xf32>
    %18 = math.exp %17 : vector<256x512xf32>
    %cst_11 = arith.constant dense<0.000000e+00> : vector<256xf32>
    %19 = vector.multi_reduction <add>, %18, %cst_11 [1] : vector<256x512xf32> to vector<256xf32>
    %20 = vector.shape_cast %19 : vector<256xf32> to vector<256x1xf32>
    %21 = arith.addf %15, %20 : vector<256x1xf32>
    %c0_12 = arith.constant 0 : index
    %c0_13 = arith.constant 0 : index
    %22 = vector.load %arg7[%c0_12, %c0_13] : memref<256x1xf32, #tpu.memory_space<vmem>>, vector<256x1xf32>
    tpu.vector_store %arg7[%c0_12, %c0_13], %21 {strides = array<i32>} : memref<256x1xf32, #tpu.memory_space<vmem>>, vector<256x1xf32>,
    %c0_14 = arith.constant 0 : index
    %c0_15 = arith.constant 0 : index
    %23 = vector.load %arg6[%c0_14, %c0_15] : memref<256x1xf32, #tpu.memory_space<vmem>>, vector<256x1xf32>
    tpu.vector_store %arg6[%c0_14, %c0_15], %10 {strides = array<i32>} : memref<256x1xf32, #tpu.memory_space<vmem>>, vector<256x1xf32>,
    %c0_16 = arith.constant 0 : index
    %c0_17 = arith.constant 0 : index
    %24 = vector.load %arg2[%c0_16, %c0_17] : memref<256x1xi32, #tpu.memory_space<vmem>>, vector<256x1xi32>
    %c512_i32 = arith.constant 512 : i32
    %25 = arith.muli %arg1, %c512_i32 : i32
    %26 = vector.broadcast %25 : i32 to vector<256x1xi32>
    %27 = arith.subi %24, %26 : vector<256x1xi32>
    %c0_18 = arith.constant 0 : index
    %c0_19 = arith.constant 0 : index
    %28 = vector.load %arg8[%c0_18, %c0_19] : memref<256x1xf32, #tpu.memory_space<vmem>>, vector<256x1xf32>
    %29 = vector.broadcast %27 : vector<256x1xi32> to vector<256x512xi32>
    %30 = arith.cmpi eq, %6, %29 : vector<256x512xi32>
    %cst_20 = arith.constant 0.000000e+00 : f32
    %31 = vector.broadcast %cst_20 : f32 to vector<256x512xf32>
    %32 = arith.select %30, %5, %31 : vector<256x512xi1>, vector<256x512xf32>
    %cst_21 = arith.constant dense<0.000000e+00> : vector<256xf32>
    %33 = vector.multi_reduction <add>, %32, %cst_21 [1] : vector<256x512xf32> to vector<256xf32>
    %34 = vector.shape_cast %33 : vector<256xf32> to vector<256x1xf32>
    %35 = arith.addf %28, %34 : vector<256x1xf32>
    %c0_22 = arith.constant 0 : index
    %c0_23 = arith.constant 0 : index
    %36 = vector.load %arg8[%c0_22, %c0_23] : memref<256x1xf32, #tpu.memory_space<vmem>>, vector<256x1xf32>
    tpu.vector_store %arg8[%c0_22, %c0_23], %35 {strides = array<i32>} : memref<256x1xf32, #tpu.memory_space<vmem>>, vector<256x1xf32>,
    %c3_i32 = arith.constant 3 : i32
    %37 = arith.cmpi eq, %arg1, %c3_i32 : i32
    %38 = arith.extui %37 : i1 to i32
    %c0_i32_24 = arith.constant 0 : i32
    %39 = arith.cmpi ne, %38, %c0_i32_24 : i32
    scf.if %39 {
      %c0_25 = arith.constant 0 : index
      %c0_26 = arith.constant 0 : index
      %40 = vector.load %arg6[%c0_25, %c0_26] : memref<256x1xf32, #tpu.memory_space<vmem>>, vector<256x1xf32>
      %c0_27 = arith.constant 0 : index
      %c0_28 = arith.constant 0 : index
      %41 = vector.load %arg7[%c0_27, %c0_28] : memref<256x1xf32, #tpu.memory_space<vmem>>, vector<256x1xf32>
      %42 = math.log %41 : vector<256x1xf32>
      %43 = arith.addf %40, %42 : vector<256x1xf32>
      %c0_29 = arith.constant 0 : index
      %c0_30 = arith.constant 0 : index
      %44 = vector.load %arg2[%c0_29, %c0_30] : memref<256x1xi32, #tpu.memory_space<vmem>>, vector<256x1xi32>
      %c-100_i32 = arith.constant -100 : i32
      %45 = vector.broadcast %c-100_i32 : i32 to vector<256x1xi32>
      %46 = arith.cmpi ne, %44, %45 : vector<256x1xi32>
      %c0_31 = arith.constant 0 : index
      %c0_32 = arith.constant 0 : index
      %47 = vector.load %arg8[%c0_31, %c0_32] : memref<256x1xf32, #tpu.memory_space<vmem>>, vector<256x1xf32>
      %48 = arith.subf %43, %47 : vector<256x1xf32>
      %cst_33 = arith.constant 0.000000e+00 : f32
      %49 = vector.broadcast %cst_33 : f32 to vector<256x1xf32>
      %50 = arith.select %46, %48, %49 : vector<256x1xi1>, vector<256x1xf32>
      %c0_34 = arith.constant 0 : index
      %c0_35 = arith.constant 0 : index
      %51 = vector.load %arg5[%c0_34, %c0_35] : memref<256x1xf32, #tpu.memory_space<vmem>>, vector<256x1xf32>
      tpu.vector_store %arg5[%c0_34, %c0_35], %50 {strides = array<i32>} : memref<256x1xf32, #tpu.memory_space<vmem>>, vector<256x1xf32>,
    } else {
    }
    return
  }
  func.func @transform_0(%arg0: i32, %arg1: i32) -> (i32, i32) {
    %c0_i32 = arith.constant 0 : i32
    %c0_i32_0 = arith.constant 0 : i32
    return %arg0, %c0_i32 : i32, i32
  }
  func.func @transform_1(%arg0: i32, %arg1: i32) -> (i32, i32) {
    %c0_i32 = arith.constant 0 : i32
    %c0_i32_0 = arith.constant 0 : i32
    return %arg0, %c0_i32 : i32, i32
  }
  func.func @transform_2(%arg0: i32, %arg1: i32) -> (i32, i32) {
    %c0_i32 = arith.constant 0 : i32
    %c0_i32_0 = arith.constant 0 : i32
    return %arg1, %c0_i32 : i32, i32
  }
  func.func @transform_3(%arg0: i32, %arg1: i32) -> (i32, i32) {
    %c0_i32 = arith.constant 0 : i32
    %c0_i32_0 = arith.constant 0 : i32
    return %arg0, %c0_i32 : i32, i32
  }
}

</mosaic_0001>

<llo_original>
// kernel: tpu_custom_call.1
$region0: #{tpu_custom_call.1}
  #allocation0 [shape = 'u32[]', space=smem, size = 0x4, offset = 0x4, fixed_abs, tag = 'smem constant byte address 0x4 - core index']
  #allocation1 [shape = 'u32[144,128]{1,0:T(1,128)}', space=vmem, size = 0x12000, scoped, tag = 'internal scratch']
  #allocation2 [shape = 'f32[256,1]{1,0:T(8,128)}', space=vmem, size = 0x20000, scoped, tag = 'scratch operand']
  #allocation3 [shape = 'f32[256,1]{1,0:T(8,128)}', space=vmem, size = 0x20000, scoped, tag = 'scratch operand']
  #allocation4 [shape = 'f32[256,1]{1,0:T(8,128)}', space=vmem, size = 0x20000, scoped, tag = 'scratch operand']
  %s0 = inlined_call_operand.vmem [shape: s32[512,1], index: 0, kind: input, shape index: {}]
  %s1 = inlined_call_operand.hbm [shape: f32[512,256], index: 1, kind: input, shape index: {}]
  %s2 = inlined_call_operand.hbm [shape: f32[2048,256], index: 2, kind: input, shape index: {}]
  %s3 = inlined_call_operand.vmem [shape: f32[512,1], index: 3, kind: output, shape index: {}]
  %s4 = sld [smem:[#allocation0]]
  $region61: #{tpu_custom_call.1} parent=0
    _
  %s6 = ssub.s32 1, %s4
  %s7 = scalar_select 0, %s6, %s4
  $region1: #{tpu_custom_call.1} parent=0
    #allocation5 [shape = 'u8[262144]{0}', space=vmem, size = 0x40000, scoped, tag = 'input window, operand 1, single buffered']
    #allocation6 [shape = 's32[2]{0}', space=sflag, size = 0x8, scoped, tag = 'scoped memory for tpu_custom_call.1']
    #allocation7 [shape = 'u8[1048576]{0}', space=vmem, size = 0x100000, scoped, tag = 'input window, operand 2']
    #allocation8 [shape = 's32[2]{0}', space=sflag, size = 0x8, scoped, tag = 'scoped memory for tpu_custom_call.1']
    %8 = vsyncpa [#allocation6], 0
    %9 = vsyncpa [#allocation8], 0
    %s10 = scalar_lea.sflag [#allocation8], 1
    %11 = vsyncpa %s10, 0
    loop: start=0, step=1, limit=10
    $region2: #{tpu_custom_call.1} parent=1 // loop_pre_header
      _
    $region3: #{tpu_custom_call.1} parent=1 // loop_header
      %s13 = sphi 0, %s17
      %p14 = scmp.ge.s32.totalorder %s13, 10
      %s20 = sphi 0, %s32
      %s21 = sphi 0, %s28
      %s22 = sphi 0, %s20
      %s23 = sphi 0, %s21
      %s24 = sphi 0, %s22
      %s25 = sphi 0, %s23
      %s35 = sphi 0, %s37
      %s38 = sphi 0, %s35
      %s39 = sphi 0, %s38
      %s55 = sphi 0, %s39
      %s61 = sphi 0, %s63
      %s64 = sphi 0, %s61
      %s65 = sphi 0, %s64
      %s81 = sphi 0, %s65
      %s87 = sphi 0, %s89
      %s90 = sphi 0, %s87
      %s91 = sphi 0, %s90
      %s107 = sphi 0, %s91
      %s113 = sphi 0, %s115
      %s116 = sphi 0, %s113
      %s117 = sphi 0, %s116
      %s133 = sphi 0, %s117
    $region4: #{tpu_custom_call.1} parent=1 // loop_header_branch
      %16 = sbr.rel (%p14) target = $region8
    $region5: #{tpu_custom_call.1} parent=1 // loop_body
      %s18 = ssub.s32 %s13, 1
      %s19 = ssub.s32 %s13, 2
      %s26 = sadd.s32 1, %s21
      %p27 = scmp.ge.s32.totalorder %s26, 4
      %s28 = scalar_select %p27, 0, %s26
      %s29 = sadd.s32 1, %s20
      %s30 = scalar_select %p27, %s29, %s20
      %p31 = scmp.ge.s32.totalorder %s30, 2
      %s32 = scalar_select %p31, 0, %s30
      %s33 = ssub.s32 %s20, %s32
      %p34 = scmp.eq.s32.totalorder %s33, 0
      %s36 = sadd.s32 %s35, 1
      %s37 = scalar_select %p34, %s35, %s36
      %p40 = pneg %p34
      %p41 = scmp.eq.s32.totalorder %s13, 7
      %p42 = por %p40, %p41
      %p43 = scmp.ne.s32.totalorder %s35, %s38
      %p44 = scmp.eq.s32.totalorder %s13, 0
      %p45 = por %p43, %p44
      %p46 = scmp.ne.s32.totalorder %s35, %s38
      %p47 = scmp.eq.s32.totalorder %s18, 7
      %p48 = por %p46, %p47
      %p49 = scmp.ne.s32.totalorder %s38, %s39
      %p50 = scmp.eq.s32.totalorder %s18, 0
      %p51 = por %p49, %p50
      %p52 = scmp.ne.s32.totalorder %s38, %s39
      %p53 = scmp.eq.s32.totalorder %s19, 7
      %p54 = por %p52, %p53
      %p56 = scmp.ne.s32.totalorder %s39, %s55
      %p57 = scmp.eq.s32.totalorder %s19, 0
      %p58 = por %p56, %p57
      %s59 = ssub.s32 %s20, %s32
      %p60 = scmp.eq.s32.totalorder %s59, 0
      %s62 = sadd.s32 %s61, 1
      %s63 = scalar_select %p60, %s61, %s62
      %p66 = pneg %p60
      %p67 = scmp.eq.s32.totalorder %s13, 7
      %p68 = por %p66, %p67
      %p69 = scmp.ne.s32.totalorder %s61, %s64
      %p70 = scmp.eq.s32.totalorder %s13, 0
      %p71 = por %p69, %p70
      %p72 = scmp.ne.s32.totalorder %s61, %s64
      %p73 = scmp.eq.s32.totalorder %s18, 7
      %p74 = por %p72, %p73
      %p75 = scmp.ne.s32.totalorder %s64, %s65
      %p76 = scmp.eq.s32.totalorder %s18, 0
      %p77 = por %p75, %p76
      %p78 = scmp.ne.s32.totalorder %s64, %s65
      %p79 = scmp.eq.s32.totalorder %s19, 7
      %p80 = por %p78, %p79
      %p82 = scmp.ne.s32.totalorder %s65, %s81
      %p83 = scmp.eq.s32.totalorder %s19, 0
      %p84 = por %p82, %p83
      %s85 = ssub.s32 %s21, %s28
      %p86 = scmp.eq.s32.totalorder %s85, 0
      %s88 = sadd.s32 %s87, 1
      %s89 = scalar_select %p86, %s87, %s88
      %p92 = pneg %p86
      %p93 = scmp.eq.s32.totalorder %s13, 7
      %p94 = por %p92, %p93
      %p95 = scmp.ne.s32.totalorder %s87, %s90
      %p96 = scmp.eq.s32.totalorder %s13, 0
      %p97 = por %p95, %p96
      %p98 = scmp.ne.s32.totalorder %s87, %s90
      %p99 = scmp.eq.s32.totalorder %s18, 7
      %p100 = por %p98, %p99
      %p101 = scmp.ne.s32.totalorder %s90, %s91
      %p102 = scmp.eq.s32.totalorder %s18, 0
      %p103 = por %p101, %p102
      %p104 = scmp.ne.s32.totalorder %s90, %s91
      %p105 = scmp.eq.s32.totalorder %s19, 7
      %p106 = por %p104, %p105
      %p108 = scmp.ne.s32.totalorder %s91, %s107
      %p109 = scmp.eq.s32.totalorder %s19, 0
      %p110 = por %p108, %p109
      %s111 = ssub.s32 %s20, %s32
      %p112 = scmp.eq.s32.totalorder %s111, 0
      %s114 = sadd.s32 %s113, 1
      %s115 = scalar_select %p112, %s113, %s114
      %p118 = pneg %p112
      %p119 = scmp.eq.s32.totalorder %s13, 7
      %p120 = por %p118, %p119
      %p121 = scmp.ne.s32.totalorder %s113, %s116
      %p122 = scmp.eq.s32.totalorder %s13, 0
      %p123 = por %p121, %p122
      %p124 = scmp.ne.s32.totalorder %s113, %s116
      %p125 = scmp.eq.s32.totalorder %s18, 7
      %p126 = por %p124, %p125
      %p127 = scmp.ne.s32.totalorder %s116, %s117
      %p128 = scmp.eq.s32.totalorder %s18, 0
      %p129 = por %p127, %p128
      %p130 = scmp.ne.s32.totalorder %s116, %s117
      %p131 = scmp.eq.s32.totalorder %s19, 7
      %p132 = por %p130, %p131
      %p134 = scmp.ne.s32.totalorder %s117, %s133
      %p135 = scmp.eq.s32.totalorder %s19, 0
      %p136 = por %p134, %p135
      %p137 = scmp.le.s32.totalorder 1, %s13
      %p138 = scmp.lt.s32.totalorder %s13, 9
      %p139 = pnand %p137, %p138
      %p140 = pneg %p139
      // Predicated region
      $region9: #{tpu_custom_call.1} parent=5 // pred_check
        _
      $region10: #{tpu_custom_call.1} parent=5 // pred_check_branch
        %142 = sbr.rel (%p139) target = $region12
      $region11: #{tpu_custom_call.1} parent=5 // pred_region
        %s143 = ssub.s32 %s13, 1
        // Predicated region
        $region13: #{tpu_custom_call.1} parent=11 // pred_check
          %p144 = pneg %p77
        $region14: #{tpu_custom_call.1} parent=11 // pred_check_branch
          %146 = sbr.rel (%p144) target = $region16
        $region15: #{tpu_custom_call.1} parent=11 // pred_region
          %s147 = smul.u32 32, %s22
          %s149 = ssub.s32 8192, 8192
          %150 = vsyncadd [#allocation6], %s149
          %s151 = smul.addr %s147, 2
          %s152 = smul.addr %s151, 128
          %s153 = scalar_lea.hbm %s1, %s152
          %s154 = sshll.u32 [#allocation5], 4
          %s155 = int_to_ptr.vmem [resolvable:$true] %s154
          %160 = dma.hbm_to_vmem [thread:$0]  %s153, 8192, %s155, [#allocation6], 256, 256, 16
        $region16: #{tpu_custom_call.1} parent=11 // pred_fallthru
          _
      $region12: #{tpu_custom_call.1} parent=5 // pred_fallthru
        _
      %p161 = scmp.lt.s32.totalorder %s13, 8
      // Predicated region
      $region17: #{tpu_custom_call.1} parent=5 // pred_check
        %p162 = pneg %p161
      $region18: #{tpu_custom_call.1} parent=5 // pred_check_branch
        %164 = sbr.rel (%p162) target = $region20
      $region19: #{tpu_custom_call.1} parent=5 // pred_region
        // Predicated region
        $region21: #{tpu_custom_call.1} parent=19 // pred_check
          %p165 = pneg %p45
        $region22: #{tpu_custom_call.1} parent=19 // pred_check_branch
          %167 = sbr.rel (%p165) target = $region24
        $region23: #{tpu_custom_call.1} parent=19 // pred_region
          %s168 = smul.u32 32, %s20
          %p169 = scmp.lt.s32.totalorder %s168, 63
          %s170 = scalar_select %p169, %s168, 63
          %s171 = smul.addr %s170, 8
          %s172 = scalar_lea.vmem %s0, %s171
          %s173 = smul.u32 32, %s20
        $region24: #{tpu_custom_call.1} parent=19 // pred_fallthru
          _
        // Predicated region
        $region25: #{tpu_custom_call.1} parent=19 // pred_check
          %p174 = pneg %p97
        $region26: #{tpu_custom_call.1} parent=19 // pred_check_branch
          %176 = sbr.rel (%p174) target = $region28
        $region27: #{tpu_custom_call.1} parent=19 // pred_region
          %s177 = sand.u32 %s87, 1
          %s178 = scalar_lea.sflag [#allocation8], %s177
          %s179 = sand.u32 %s87, 1
          %s180 = smul.addr %s179, 1024
          %s181 = scalar_lea.vmem [#allocation7], %s180
          %s182 = smul.u32 64, %s21
          %s184 = ssub.s32 16384, 16384
          %185 = vsyncadd %s178, %s184
          %s186 = smul.addr %s182, 2
          %s187 = smul.addr %s186, 128
          %s188 = scalar_lea.hbm %s2, %s187
          %s189 = sshll.u32 %s181, 4
          %s190 = int_to_ptr.vmem [resolvable:$true] %s189
          %195 = dma.hbm_to_vmem [thread:$0]  %s188, 16384, %s190, %s178, 256, 256, 16
        $region28: #{tpu_custom_call.1} parent=19 // pred_fallthru
          _
      $region20: #{tpu_custom_call.1} parent=5 // pred_fallthru
        _
      %p196 = scmp.le.s32.totalorder 1, %s13
      %p197 = scmp.lt.s32.totalorder %s13, 9
      %p198 = pnand %p196, %p197
      %p199 = pneg %p198
      // Predicated region
      $region29: #{tpu_custom_call.1} parent=5 // pred_check
        _
      $region30: #{tpu_custom_call.1} parent=5 // pred_check_branch
        %201 = sbr.rel (%p198) target = $region32
      $region31: #{tpu_custom_call.1} parent=5 // pred_region
        %s202 = ssub.s32 %s13, 1
        // Predicated region
        $region33: #{tpu_custom_call.1} parent=31 // pred_check
          %p203 = pneg %p77
        $region34: #{tpu_custom_call.1} parent=31 // pred_check_branch
          %205 = sbr.rel (%p203) target = $region36
        $region35: #{tpu_custom_call.1} parent=31 // pred_region
          %206 = dma.done [#allocation6], 8192
        $region36: #{tpu_custom_call.1} parent=31 // pred_fallthru
          _
        %s207 = sand.u32 %s90, 1
        %s208 = scalar_lea.sflag [#allocation8], %s207
        %s209 = sand.u32 %s90, 1
        %s210 = smul.addr %s209, 1024
        %s211 = scalar_lea.vmem [#allocation7], %s210
        // Predicated region
        $region37: #{tpu_custom_call.1} parent=31 // pred_check
          %p212 = pneg %p103
        $region38: #{tpu_custom_call.1} parent=31 // pred_check_branch
          %214 = sbr.rel (%p212) target = $region40
        $region39: #{tpu_custom_call.1} parent=31 // pred_region
          %215 = dma.done %s208, 16384
        $region40: #{tpu_custom_call.1} parent=31 // pred_fallthru
          _
        %s216 = smul.u32 32, %s22
        %p217 = scmp.lt.s32.totalorder %s216, 63
        %s218 = scalar_select %p217, %s216, 63
        %s219 = smul.addr %s218, 8
        %s220 = scalar_lea.vmem %s0, %s219
        %p221 = pneg %p51
        %p222 = pneg %p48
        %p223 = pneg %p77
        %p224 = pneg %p74
        %s225 = sand.u32 %s90, 1
        %s226 = scalar_lea.sflag [#allocation8], %s225
        %s227 = sand.u32 %s90, 1
        %s228 = smul.addr %s227, 1024
        %s229 = scalar_lea.vmem [#allocation7], %s228
        %p230 = pneg %p103
        %p231 = pneg %p100
        %p232 = pneg %p129
        %p233 = pneg %p126
        %s234 = smul.u32 32, %s22
        %p235 = scmp.lt.s32.totalorder %s234, 63
        %s236 = scalar_select %p235, %s234, 63
        %s237 = smul.addr %s236, 8
        %s238 = scalar_lea.vmem %s3, %s237
        %s239 = smul.u32 32, %s22
        %p240 = scmp.lt.s32.totalorder %s239, 63
        %s241 = scalar_select %p240, %s239, 63
        %s242 = smul.addr %s241, 8
        %s243 = scalar_lea.vmem %s0, %s242
        %s244 = smul.u32 32, %s22
        %s245 = smul.u32 32, %s22
        %s246 = smul.u32 64, %s23
        %s247 = smul.u32 32, %s22
        %p248 = scmp.lt.s32.totalorder %s247, 63
        %s249 = scalar_select %p248, %s247, 63
        %s250 = smul.addr %s249, 8
        %s251 = scalar_lea.vmem %s3, %s250
        %s252 = smul.u32 32, %s22
        %p253 = scmp.eq.s32.totalorder %s23, 0
        // Predicated region
        $region41: #{tpu_custom_call.1} parent=31 // pred_check
          %p254 = pneg %p253
        $region42: #{tpu_custom_call.1} parent=31 // pred_check_branch
          %256 = sbr.rel (%p254) target = $region44
        $region43: #{tpu_custom_call.1} parent=31 // pred_region
          %vm257 = vcmask 7168
          %258 = vst.msk [vmem:[#allocation2] sm:$0xff] %vm257, -inf
          %259 = vst.msk [vmem:[#allocation2 + $0x8] sm:$0xff] %vm257, -inf
          %260 = vst.msk [vmem:[#allocation2 + $0x10] sm:$0xff] %vm257, -inf
          %261 = vst.msk [vmem:[#allocation2 + $0x18] sm:$0xff] %vm257, -inf
          %262 = vst.msk [vmem:[#allocation2 + $0x20] sm:$0xff] %vm257, -inf
          %263 = vst.msk [vmem:[#allocation2 + $0x28] sm:$0xff] %vm257, -inf
          %264 = vst.msk [vmem:[#allocation2 + $0x30] sm:$0xff] %vm257, -inf
          %265 = vst.msk [vmem:[#allocation2 + $0x38] sm:$0xff] %vm257, -inf
          %266 = vst.msk [vmem:[#allocation2 + $0x40] sm:$0xff] %vm257, -inf
          %267 = vst.msk [vmem:[#allocation2 + $0x48] sm:$0xff] %vm257, -inf
          %268 = vst.msk [vmem:[#allocation2 + $0x50] sm:$0xff] %vm257, -inf
          %269 = vst.msk [vmem:[#allocation2 + $0x58] sm:$0xff] %vm257, -inf
          %270 = vst.msk [vmem:[#allocation2 + $0x60] sm:$0xff] %vm257, -inf
          %271 = vst.msk [vmem:[#allocation2 + $0x68] sm:$0xff] %vm257, -inf
          %272 = vst.msk [vmem:[#allocation2 + $0x70] sm:$0xff] %vm257, -inf
          %273 = vst.msk [vmem:[#allocation2 + $0x78] sm:$0xff] %vm257, -inf
          %274 = vst.msk [vmem:[#allocation2 + $0x80] sm:$0xff] %vm257, -inf
          %275 = vst.msk [vmem:[#allocation2 + $0x88] sm:$0xff] %vm257, -inf
          %276 = vst.msk [vmem:[#allocation2 + $0x90] sm:$0xff] %vm257, -inf
          %277 = vst.msk [vmem:[#allocation2 + $0x98] sm:$0xff] %vm257, -inf
          %278 = vst.msk [vmem:[#allocation2 + $0xa0] sm:$0xff] %vm257, -inf
          %279 = vst.msk [vmem:[#allocation2 + $0xa8] sm:$0xff] %vm257, -inf
          %280 = vst.msk [vmem:[#allocation2 + $0xb0] sm:$0xff] %vm257, -inf
          %281 = vst.msk [vmem:[#allocation2 + $0xb8] sm:$0xff] %vm257, -inf
          %282 = vst.msk [vmem:[#allocation2 + $0xc0] sm:$0xff] %vm257, -inf
          %283 = vst.msk [vmem:[#allocation2 + $0xc8] sm:$0xff] %vm257, -inf
          %284 = vst.msk [vmem:[#allocation2 + $0xd0] sm:$0xff] %vm257, -inf
          %285 = vst.msk [vmem:[#allocation2 + $0xd8] sm:$0xff] %vm257, -inf
          %286 = vst.msk [vmem:[#allocation2 + $0xe0] sm:$0xff] %vm257, -inf
          %287 = vst.msk [vmem:[#allocation2 + $0xe8] sm:$0xff] %vm257, -inf
          %288 = vst.msk [vmem:[#allocation2 + $0xf0] sm:$0xff] %vm257, -inf
          %289 = vst.msk [vmem:[#allocation2 + $0xf8] sm:$0xff] %vm257, -inf
          %290 = vst.msk [vmem:[#allocation3] sm:$0xff] %vm257, 0.0
          %291 = vst.msk [vmem:[#allocation3 + $0x8] sm:$0xff] %vm257, 0.0
          %292 = vst.msk [vmem:[#allocation3 + $0x10] sm:$0xff] %vm257, 0.0
          %293 = vst.msk [vmem:[#allocation3 + $0x18] sm:$0xff] %vm257, 0.0
          %294 = vst.msk [vmem:[#allocation3 + $0x20] sm:$0xff] %vm257, 0.0
          %295 = vst.msk [vmem:[#allocation3 + $0x28] sm:$0xff] %vm257, 0.0
          %296 = vst.msk [vmem:[#allocation3 + $0x30] sm:$0xff] %vm257, 0.0
          %297 = vst.msk [vmem:[#allocation3 + $0x38] sm:$0xff] %vm257, 0.0
          %298 = vst.msk [vmem:[#allocation3 + $0x40] sm:$0xff] %vm257, 0.0
          %299 = vst.msk [vmem:[#allocation3 + $0x48] sm:$0xff] %vm257, 0.0
          %300 = vst.msk [vmem:[#allocation3 + $0x50] sm:$0xff] %vm257, 0.0
          %301 = vst.msk [vmem:[#allocation3 + $0x58] sm:$0xff] %vm257, 0.0
          %302 = vst.msk [vmem:[#allocation3 + $0x60] sm:$0xff] %vm257, 0.0
          %303 = vst.msk [vmem:[#allocation3 + $0x68] sm:$0xff] %vm257, 0.0
          %304 = vst.msk [vmem:[#allocation3 + $0x70] sm:$0xff] %vm257, 0.0
          %305 = vst.msk [vmem:[#allocation3 + $0x78] sm:$0xff] %vm257, 0.0
          %306 = vst.msk [vmem:[#allocation3 + $0x80] sm:$0xff] %vm257, 0.0
          %307 = vst.msk [vmem:[#allocation3 + $0x88] sm:$0xff] %vm257, 0.0
          %308 = vst.msk [vmem:[#allocation3 + $0x90] sm:$0xff] %vm257, 0.0
          %309 = vst.msk [vmem:[#allocation3 + $0x98] sm:$0xff] %vm257, 0.0
          %310 = vst.msk [vmem:[#allocation3 + $0xa0] sm:$0xff] %vm257, 0.0
          %311 = vst.msk [vmem:[#allocation3 + $0xa8] sm:$0xff] %vm257, 0.0
          %312 = vst.msk [vmem:[#allocation3 + $0xb0] sm:$0xff] %vm257, 0.0
          %313 = vst.msk [vmem:[#allocation3 + $0xb8] sm:$0xff] %vm257, 0.0
          %314 = vst.msk [vmem:[#allocation3 + $0xc0] sm:$0xff] %vm257, 0.0
          %315 = vst.msk [vmem:[#allocation3 + $0xc8] sm:$0xff] %vm257, 0.0
          %316 = vst.msk [vmem:[#allocation3 + $0xd0] sm:$0xff] %vm257, 0.0
          %317 = vst.msk [vmem:[#allocation3 + $0xd8] sm:$0xff] %vm257, 0.0
          %318 = vst.msk [vmem:[#allocation3 + $0xe0] sm:$0xff] %vm257, 0.0
          %319 = vst.msk [vmem:[#allocation3 + $0xe8] sm:$0xff] %vm257, 0.0
          %320 = vst.msk [vmem:[#allocation3 + $0xf0] sm:$0xff] %vm257, 0.0
          %321 = vst.msk [vmem:[#allocation3 + $0xf8] sm:$0xff] %vm257, 0.0
          %322 = vst.msk [vmem:[#allocation4] sm:$0xff] %vm257, 0.0
          %323 = vst.msk [vmem:[#allocation4 + $0x8] sm:$0xff] %vm257, 0.0
          %324 = vst.msk [vmem:[#allocation4 + $0x10] sm:$0xff] %vm257, 0.0
          %325 = vst.msk [vmem:[#allocation4 + $0x18] sm:$0xff] %vm257, 0.0
          %326 = vst.msk [vmem:[#allocation4 + $0x20] sm:$0xff] %vm257, 0.0
          %327 = vst.msk [vmem:[#allocation4 + $0x28] sm:$0xff] %vm257, 0.0
          %328 = vst.msk [vmem:[#allocation4 + $0x30] sm:$0xff] %vm257, 0.0
          %329 = vst.msk [vmem:[#allocation4 + $0x38] sm:$0xff] %vm257, 0.0
          %330 = vst.msk [vmem:[#allocation4 + $0x40] sm:$0xff] %vm257, 0.0
          %331 = vst.msk [vmem:[#allocation4 + $0x48] sm:$0xff] %vm257, 0.0
          %332 = vst.msk [vmem:[#allocation4 + $0x50] sm:$0xff] %vm257, 0.0
          %333 = vst.msk [vmem:[#allocation4 + $0x58] sm:$0xff] %vm257, 0.0
          %334 = vst.msk [vmem:[#allocation4 + $0x60] sm:$0xff] %vm257, 0.0
          %335 = vst.msk [vmem:[#allocation4 + $0x68] sm:$0xff] %vm257, 0.0
          %336 = vst.msk [vmem:[#allocation4 + $0x70] sm:$0xff] %vm257, 0.0
          %337 = vst.msk [vmem:[#allocation4 + $0x78] sm:$0xff] %vm257, 0.0
          %338 = vst.msk [vmem:[#allocation4 + $0x80] sm:$0xff] %vm257, 0.0
          %339 = vst.msk [vmem:[#allocation4 + $0x88] sm:$0xff] %vm257, 0.0
          %340 = vst.msk [vmem:[#allocation4 + $0x90] sm:$0xff] %vm257, 0.0
          %341 = vst.msk [vmem:[#allocation4 + $0x98] sm:$0xff] %vm257, 0.0
          %342 = vst.msk [vmem:[#allocation4 + $0xa0] sm:$0xff] %vm257, 0.0
          %343 = vst.msk [vmem:[#allocation4 + $0xa8] sm:$0xff] %vm257, 0.0
          %344 = vst.msk [vmem:[#allocation4 + $0xb0] sm:$0xff] %vm257, 0.0
          %345 = vst.msk [vmem:[#allocation4 + $0xb8] sm:$0xff] %vm257, 0.0
          %346 = vst.msk [vmem:[#allocation4 + $0xc0] sm:$0xff] %vm257, 0.0
          %347 = vst.msk [vmem:[#allocation4 + $0xc8] sm:$0xff] %vm257, 0.0
          %348 = vst.msk [vmem:[#allocation4 + $0xd0] sm:$0xff] %vm257, 0.0
          %349 = vst.msk [vmem:[#allocation4 + $0xd8] sm:$0xff] %vm257, 0.0
          %350 = vst.msk [vmem:[#allocation4 + $0xe0] sm:$0xff] %vm257, 0.0
          %351 = vst.msk [vmem:[#allocation4 + $0xe8] sm:$0xff] %vm257, 0.0
          %352 = vst.msk [vmem:[#allocation4 + $0xf0] sm:$0xff] %vm257, 0.0
          %353 = vst.msk [vmem:[#allocation4 + $0xf8] sm:$0xff] %vm257, 0.0
        $region44: #{tpu_custom_call.1} parent=31 // pred_fallthru
          _
        %v354 = vld [vmem:[#allocation5] sm:$0xff]
        %v355 = vld [vmem:[#allocation5 + $0x8] sm:$0xff]
        %v356 = vld [vmem:[#allocation5 + $0x10] sm:$0xff]
        %v357 = vld [vmem:[#allocation5 + $0x18] sm:$0xff]
        %v358 = vld [vmem:[#allocation5 + $0x20] sm:$0xff]
        %v359 = vld [vmem:[#allocation5 + $0x28] sm:$0xff]
        %v360 = vld [vmem:[#allocation5 + $0x30] sm:$0xff]
        %v361 = vld [vmem:[#allocation5 + $0x38] sm:$0xff]
        %v362 = vld [vmem:[#allocation5 + $0x40] sm:$0xff]
        %v363 = vld [vmem:[#allocation5 + $0x48] sm:$0xff]
        %v364 = vld [vmem:[#allocation5 + $0x50] sm:$0xff]
        %v365 = vld [vmem:[#allocation5 + $0x58] sm:$0xff]
        %v366 = vld [vmem:[#allocation5 + $0x60] sm:$0xff]
        %v367 = vld [vmem:[#allocation5 + $0x68] sm:$0xff]
        %v368 = vld [vmem:[#allocation5 + $0x70] sm:$0xff]
        %v369 = vld [vmem:[#allocation5 + $0x78] sm:$0xff]
        %v370 = vld [vmem:[#allocation5 + $0x80] sm:$0xff]
        %v371 = vld [vmem:[#allocation5 + $0x88] sm:$0xff]
        %v372 = vld [vmem:[#allocation5 + $0x90] sm:$0xff]
        %v373 = vld [vmem:[#allocation5 + $0x98] sm:$0xff]
        %v374 = vld [vmem:[#allocation5 + $0xa0] sm:$0xff]
        %v375 = vld [vmem:[#allocation5 + $0xa8] sm:$0xff]
        %v376 = vld [vmem:[#allocation5 + $0xb0] sm:$0xff]
        %v377 = vld [vmem:[#allocation5 + $0xb8] sm:$0xff]
        %v378 = vld [vmem:[#allocation5 + $0xc0] sm:$0xff]
        %v379 = vld [vmem:[#allocation5 + $0xc8] sm:$0xff]
        %v380 = vld [vmem:[#allocation5 + $0xd0] sm:$0xff]
        %v381 = vld [vmem:[#allocation5 + $0xd8] sm:$0xff]
        %v382 = vld [vmem:[#allocation5 + $0xe0] sm:$0xff]
        %v383 = vld [vmem:[#allocation5 + $0xe8] sm:$0xff]
        %v384 = vld [vmem:[#allocation5 + $0xf0] sm:$0xff]
        %v385 = vld [vmem:[#allocation5 + $0xf8] sm:$0xff]
        %v386 = vld [vmem:[#allocation5 + $0x100] sm:$0xff]
        %v387 = vld [vmem:[#allocation5 + $0x108] sm:$0xff]
        %v388 = vld [vmem:[#allocation5 + $0x110] sm:$0xff]
        %v389 = vld [vmem:[#allocation5 + $0x118] sm:$0xff]
        %v390 = vld [vmem:[#allocation5 + $0x120] sm:$0xff]
        %v391 = vld [vmem:[#allocation5 + $0x128] sm:$0xff]
        %v392 = vld [vmem:[#allocation5 + $0x130] sm:$0xff]
        %v393 = vld [vmem:[#allocation5 + $0x138] sm:$0xff]
        %v394 = vld [vmem:[#allocation5 + $0x140] sm:$0xff]
        %v395 = vld [vmem:[#allocation5 + $0x148] sm:$0xff]
        %v396 = vld [vmem:[#allocation5 + $0x150] sm:$0xff]
        %v397 = vld [vmem:[#allocation5 + $0x158] sm:$0xff]
        %v398 = vld [vmem:[#allocation5 + $0x160] sm:$0xff]
        %v399 = vld [vmem:[#allocation5 + $0x168] sm:$0xff]
        %v400 = vld [vmem:[#allocation5 + $0x170] sm:$0xff]
        %v401 = vld [vmem:[#allocation5 + $0x178] sm:$0xff]
        %v402 = vld [vmem:[#allocation5 + $0x180] sm:$0xff]
        %v403 = vld [vmem:[#allocation5 + $0x188] sm:$0xff]
        %v404 = vld [vmem:[#allocation5 + $0x190] sm:$0xff]
        %v405 = vld [vmem:[#allocation5 + $0x198] sm:$0xff]
        %v406 = vld [vmem:[#allocation5 + $0x1a0] sm:$0xff]
        %v407 = vld [vmem:[#allocation5 + $0x1a8] sm:$0xff]
        %v408 = vld [vmem:[#allocation5 + $0x1b0] sm:$0xff]
        %v409 = vld [vmem:[#allocation5 + $0x1b8] sm:$0xff]
        %v410 = vld [vmem:[#allocation5 + $0x1c0] sm:$0xff]
        %v411 = vld [vmem:[#allocation5 + $0x1c8] sm:$0xff]
        %v412 = vld [vmem:[#allocation5 + $0x1d0] sm:$0xff]
        %v413 = vld [vmem:[#allocation5 + $0x1d8] sm:$0xff]
        %v414 = vld [vmem:[#allocation5 + $0x1e0] sm:$0xff]
        %v415 = vld [vmem:[#allocation5 + $0x1e8] sm:$0xff]
        %v416 = vld [vmem:[#allocation5 + $0x1f0] sm:$0xff]
        %v417 = vld [vmem:[#allocation5 + $0x1f8] sm:$0xff]
        %v418 = vld [vmem:[%s211] sm:$0xff]
        %v419 = vld [vmem:[%s211 + $0x8] sm:$0xff]
        %v420 = vld [vmem:[%s211 + $0x10] sm:$0xff]
        %v421 = vld [vmem:[%s211 + $0x18] sm:$0xff]
        %v422 = vld [vmem:[%s211 + $0x20] sm:$0xff]
        %v423 = vld [vmem:[%s211 + $0x28] sm:$0xff]
        %v424 = vld [vmem:[%s211 + $0x30] sm:$0xff]
        %v425 = vld [vmem:[%s211 + $0x38] sm:$0xff]
        %v426 = vld [vmem:[%s211 + $0x40] sm:$0xff]
        %v427 = vld [vmem:[%s211 + $0x48] sm:$0xff]
        %v428 = vld [vmem:[%s211 + $0x50] sm:$0xff]
        %v429 = vld [vmem:[%s211 + $0x58] sm:$0xff]
        %v430 = vld [vmem:[%s211 + $0x60] sm:$0xff]
        %v431 = vld [vmem:[%s211 + $0x68] sm:$0xff]
        %v432 = vld [vmem:[%s211 + $0x70] sm:$0xff]
        %v433 = vld [vmem:[%s211 + $0x78] sm:$0xff]
        %v434 = vld [vmem:[%s211 + $0x80] sm:$0xff]
        %v435 = vld [vmem:[%s211 + $0x88] sm:$0xff]
        %v436 = vld [vmem:[%s211 + $0x90] sm:$0xff]
        %v437 = vld [vmem:[%s211 + $0x98] sm:$0xff]
        %v438 = vld [vmem:[%s211 + $0xa0] sm:$0xff]
        %v439 = vld [vmem:[%s211 + $0xa8] sm:$0xff]
        %v440 = vld [vmem:[%s211 + $0xb0] sm:$0xff]
        %v441 = vld [vmem:[%s211 + $0xb8] sm:$0xff]
        %v442 = vld [vmem:[%s211 + $0xc0] sm:$0xff]
        %v443 = vld [vmem:[%s211 + $0xc8] sm:$0xff]
        %v444 = vld [vmem:[%s211 + $0xd0] sm:$0xff]
        %v445 = vld [vmem:[%s211 + $0xd8] sm:$0xff]
        %v446 = vld [vmem:[%s211 + $0xe0] sm:$0xff]
        %v447 = vld [vmem:[%s211 + $0xe8] sm:$0xff]
        %v448 = vld [vmem:[%s211 + $0xf0] sm:$0xff]
        %v449 = vld [vmem:[%s211 + $0xf8] sm:$0xff]
        %v450 = vld [vmem:[%s211 + $0x100] sm:$0xff]
        %v451 = vld [vmem:[%s211 + $0x108] sm:$0xff]
        %v452 = vld [vmem:[%s211 + $0x110] sm:$0xff]
        %v453 = vld [vmem:[%s211 + $0x118] sm:$0xff]
        %v454 = vld [vmem:[%s211 + $0x120] sm:$0xff]
        %v455 = vld [vmem:[%s211 + $0x128] sm:$0xff]
        %v456 = vld [vmem:[%s211 + $0x130] sm:$0xff]
        %v457 = vld [vmem:[%s211 + $0x138] sm:$0xff]
        %v458 = vld [vmem:[%s211 + $0x140] sm:$0xff]
        %v459 = vld [vmem:[%s211 + $0x148] sm:$0xff]
        %v460 = vld [vmem:[%s211 + $0x150] sm:$0xff]
        %v461 = vld [vmem:[%s211 + $0x158] sm:$0xff]
        %v462 = vld [vmem:[%s211 + $0x160] sm:$0xff]
        %v463 = vld [vmem:[%s211 + $0x168] sm:$0xff]
        %v464 = vld [vmem:[%s211 + $0x170] sm:$0xff]
        %v465 = vld [vmem:[%s211 + $0x178] sm:$0xff]
        %v466 = vld [vmem:[%s211 + $0x180] sm:$0xff]
        %v467 = vld [vmem:[%s211 + $0x188] sm:$0xff]
        %v468 = vld [vmem:[%s211 + $0x190] sm:$0xff]
        %v469 = vld [vmem:[%s211 + $0x198] sm:$0xff]
        %v470 = vld [vmem:[%s211 + $0x1a0] sm:$0xff]
        %v471 = vld [vmem:[%s211 + $0x1a8] sm:$0xff]
        %v472 = vld [vmem:[%s211 + $0x1b0] sm:$0xff]
        %v473 = vld [vmem:[%s211 + $0x1b8] sm:$0xff]
        %v474 = vld [vmem:[%s211 + $0x1c0] sm:$0xff]
        %v475 = vld [vmem:[%s211 + $0x1c8] sm:$0xff]
        %v476 = vld [vmem:[%s211 + $0x1d0] sm:$0xff]
        %v477 = vld [vmem:[%s211 + $0x1d8] sm:$0xff]
        %v478 = vld [vmem:[%s211 + $0x1e0] sm:$0xff]
        %v479 = vld [vmem:[%s211 + $0x1e8] sm:$0xff]
        %v480 = vld [vmem:[%s211 + $0x1f0] sm:$0xff]
        %v481 = vld [vmem:[%s211 + $0x1f8] sm:$0xff]
        %v482 = vld [vmem:[%s211 + $0x200] sm:$0xff]
        %v483 = vld [vmem:[%s211 + $0x208] sm:$0xff]
        %v484 = vld [vmem:[%s211 + $0x210] sm:$0xff]
        %v485 = vld [vmem:[%s211 + $0x218] sm:$0xff]
        %v486 = vld [vmem:[%s211 + $0x220] sm:$0xff]
        %v487 = vld [vmem:[%s211 + $0x228] sm:$0xff]
        %v488 = vld [vmem:[%s211 + $0x230] sm:$0xff]
        %v489 = vld [vmem:[%s211 + $0x238] sm:$0xff]
        %v490 = vld [vmem:[%s211 + $0x240] sm:$0xff]
        %v491 = vld [vmem:[%s211 + $0x248] sm:$0xff]
        %v492 = vld [vmem:[%s211 + $0x250] sm:$0xff]
        %v493 = vld [vmem:[%s211 + $0x258] sm:$0xff]
        %v494 = vld [vmem:[%s211 + $0x260] sm:$0xff]
        %v495 = vld [vmem:[%s211 + $0x268] sm:$0xff]
        %v496 = vld [vmem:[%s211 + $0x270] sm:$0xff]
        %v497 = vld [vmem:[%s211 + $0x278] sm:$0xff]
        %v498 = vld [vmem:[%s211 + $0x280] sm:$0xff]
        %v499 = vld [vmem:[%s211 + $0x288] sm:$0xff]
        %v500 = vld [vmem:[%s211 + $0x290] sm:$0xff]
        %v501 = vld [vmem:[%s211 + $0x298] sm:$0xff]
        %v502 = vld [vmem:[%s211 + $0x2a0] sm:$0xff]
        %v503 = vld [vmem:[%s211 + $0x2a8] sm:$0xff]
        %v504 = vld [vmem:[%s211 + $0x2b0] sm:$0xff]
        %v505 = vld [vmem:[%s211 + $0x2b8] sm:$0xff]
        %v506 = vld [vmem:[%s211 + $0x2c0] sm:$0xff]
        %v507 = vld [vmem:[%s211 + $0x2c8] sm:$0xff]
        %v508 = vld [vmem:[%s211 + $0x2d0] sm:$0xff]
        %v509 = vld [vmem:[%s211 + $0x2d8] sm:$0xff]
        %v510 = vld [vmem:[%s211 + $0x2e0] sm:$0xff]
        %v511 = vld [vmem:[%s211 + $0x2e8] sm:$0xff]
        %v512 = vld [vmem:[%s211 + $0x2f0] sm:$0xff]
        %v513 = vld [vmem:[%s211 + $0x2f8] sm:$0xff]
        %v514 = vld [vmem:[%s211 + $0x300] sm:$0xff]
        %v515 = vld [vmem:[%s211 + $0x308] sm:$0xff]
        %v516 = vld [vmem:[%s211 + $0x310] sm:$0xff]
        %v517 = vld [vmem:[%s211 + $0x318] sm:$0xff]
        %v518 = vld [vmem:[%s211 + $0x320] sm:$0xff]
        %v519 = vld [vmem:[%s211 + $0x328] sm:$0xff]
        %v520 = vld [vmem:[%s211 + $0x330] sm:$0xff]
        %v521 = vld [vmem:[%s211 + $0x338] sm:$0xff]
        %v522 = vld [vmem:[%s211 + $0x340] sm:$0xff]
        %v523 = vld [vmem:[%s211 + $0x348] sm:$0xff]
        %v524 = vld [vmem:[%s211 + $0x350] sm:$0xff]
        %v525 = vld [vmem:[%s211 + $0x358] sm:$0xff]
        %v526 = vld [vmem:[%s211 + $0x360] sm:$0xff]
        %v527 = vld [vmem:[%s211 + $0x368] sm:$0xff]
        %v528 = vld [vmem:[%s211 + $0x370] sm:$0xff]
        %v529 = vld [vmem:[%s211 + $0x378] sm:$0xff]
        %v530 = vld [vmem:[%s211 + $0x380] sm:$0xff]
        %v531 = vld [vmem:[%s211 + $0x388] sm:$0xff]
        %v532 = vld [vmem:[%s211 + $0x390] sm:$0xff]
        %v533 = vld [vmem:[%s211 + $0x398] sm:$0xff]
        %v534 = vld [vmem:[%s211 + $0x3a0] sm:$0xff]
        %v535 = vld [vmem:[%s211 + $0x3a8] sm:$0xff]
        %v536 = vld [vmem:[%s211 + $0x3b0] sm:$0xff]
        %v537 = vld [vmem:[%s211 + $0x3b8] sm:$0xff]
        %v538 = vld [vmem:[%s211 + $0x3c0] sm:$0xff]
        %v539 = vld [vmem:[%s211 + $0x3c8] sm:$0xff]
        %v540 = vld [vmem:[%s211 + $0x3d0] sm:$0xff]
        %v541 = vld [vmem:[%s211 + $0x3d8] sm:$0xff]
        %v542 = vld [vmem:[%s211 + $0x3e0] sm:$0xff]
        %v543 = vld [vmem:[%s211 + $0x3e8] sm:$0xff]
        %v544 = vld [vmem:[%s211 + $0x3f0] sm:$0xff]
        %v545 = vld [vmem:[%s211 + $0x3f8] sm:$0xff]
        %546 = vmatprep.subr.mxu0 %v419
        %547 = vmatpush1.xpose.msra.mxu0 %v418
        %548 = vmatprep.subr.mxu0 %v421
        %549 = vmatpush1.xpose.msra.mxu0 %v420
        %550 = vmatprep.subr.mxu0 %v423
        %551 = vmatpush1.xpose.msra.mxu0 %v422
        %552 = vmatprep.subr.mxu0 %v425
        %553 = vmatpush1.xpose.msra.mxu0 %v424
        %554 = vmatprep.subr.mxu0 %v427
        %555 = vmatpush1.xpose.msra.mxu0 %v426
        %556 = vmatprep.subr.mxu0 %v429
        %557 = vmatpush1.xpose.msra.mxu0 %v428
        %558 = vmatprep.subr.mxu0 %v431
        %559 = vmatpush1.xpose.msra.mxu0 %v430
        %560 = vmatprep.subr.mxu0 %v433
        %561 = vmatpush1.xpose.msra.mxu0 %v432
        %562 = vmatprep.subr.mxu0 %v435
        %563 = vmatpush1.xpose.msra.mxu0 %v434
        %564 = vmatprep.subr.mxu0 %v437
        %565 = vmatpush1.xpose.msra.mxu0 %v436
        %566 = vmatprep.subr.mxu0 %v439
        %567 = vmatpush1.xpose.msra.mxu0 %v438
        %568 = vmatprep.subr.mxu0 %v441
        %569 = vmatpush1.xpose.msra.mxu0 %v440
        %570 = vmatprep.subr.mxu0 %v443
        %571 = vmatpush1.xpose.msra.mxu0 %v442
        %572 = vmatprep.subr.mxu0 %v445
        %573 = vmatpush1.xpose.msra.mxu0 %v444
        %574 = vmatprep.subr.mxu0 %v447
        %575 = vmatpush1.xpose.msra.mxu0 %v446
        %576 = vmatprep.subr.mxu0 %v449
        %577 = vmatpush1.xpose.msra.mxu0 %v448
        %578 = vmatprep.subr.mxu0 %v451
        %579 = vmatpush1.xpose.msra.mxu0 %v450
        %580 = vmatprep.subr.mxu0 %v453
        %581 = vmatpush1.xpose.msra.mxu0 %v452
        %582 = vmatprep.subr.mxu0 %v455
        %583 = vmatpush1.xpose.msra.mxu0 %v454
        %584 = vmatprep.subr.mxu0 %v457
        %585 = vmatpush1.xpose.msra.mxu0 %v456
        %586 = vmatprep.subr.mxu0 %v459
        %587 = vmatpush1.xpose.msra.mxu0 %v458
        %588 = vmatprep.subr.mxu0 %v461
        %589 = vmatpush1.xpose.msra.mxu0 %v460
        %590 = vmatprep.subr.mxu0 %v463
        %591 = vmatpush1.xpose.msra.mxu0 %v462
        %592 = vmatprep.subr.mxu0 %v465
        %593 = vmatpush1.xpose.msra.mxu0 %v464
        %594 = vmatprep.subr.mxu0 %v467
        %595 = vmatpush1.xpose.msra.mxu0 %v466
        %596 = vmatprep.subr.mxu0 %v469
        %597 = vmatpush1.xpose.msra.mxu0 %v468
        %598 = vmatprep.subr.mxu0 %v471
        %599 = vmatpush1.xpose.msra.mxu0 %v470
        %600 = vmatprep.subr.mxu0 %v473
        %601 = vmatpush1.xpose.msra.mxu0 %v472
        %602 = vmatprep.subr.mxu0 %v475
        %603 = vmatpush1.xpose.msra.mxu0 %v474
        %604 = vmatprep.subr.mxu0 %v477
        %605 = vmatpush1.xpose.msra.mxu0 %v476
        %606 = vmatprep.subr.mxu0 %v479
        %607 = vmatpush1.xpose.msra.mxu0 %v478
        %608 = vmatprep.subr.mxu0 %v481
        %609 = vmatpush1.xpose.msra.mxu0 %v480
        %610 = vmatprep.mubr.f32.mxu0 %v355
        %611 = vmatmul.mubr.f32.gmra.mrb[0].mxu0 %v354
        %v612 = vpop.f32.mrb[0].mxu0
        %v613 = vadd.f32 0.0, %v612
        %v614 = vpop.f32.mrb[0].mxu0
        %v615 = vadd.f32 0.0, %v614
        %616 = vmatprep.mubr.f32.mxu0 %v357
        %617 = vmatmul.mubr.f32.gmra.mrb[0].mxu0 %v356
        %v618 = vpop.f32.mrb[0].mxu0
        %v619 = vadd.f32 0.0, %v618
        %v620 = vpop.f32.mrb[0].mxu0
        %v621 = vadd.f32 0.0, %v620
        %622 = vmatprep.mubr.f32.mxu0 %v359
        %623 = vmatmul.mubr.f32.gmra.mrb[0].mxu0 %v358
        %v624 = vpop.f32.mrb[0].mxu0
        %v625 = vadd.f32 0.0, %v624
        %v626 = vpop.f32.mrb[0].mxu0
        %v627 = vadd.f32 0.0, %v626
        %628 = vmatprep.mubr.f32.mxu0 %v361
        %629 = vmatmul.mubr.f32.gmra.mrb[0].mxu0 %v360
        %v630 = vpop.f32.mrb[0].mxu0
        %v631 = vadd.f32 0.0, %v630
        %v632 = vpop.f32.mrb[0].mxu0
        %v633 = vadd.f32 0.0, %v632
        %634 = vmatprep.mubr.f32.mxu0 %v363
        %635 = vmatmul.mubr.f32.gmra.mrb[0].mxu0 %v362
        %v636 = vpop.f32.mrb[0].mxu0
        %v637 = vadd.f32 0.0, %v636
        %v638 = vpop.f32.mrb[0].mxu0
        %v639 = vadd.f32 0.0, %v638
        %640 = vmatprep.mubr.f32.mxu0 %v365
        %641 = vmatmul.mubr.f32.gmra.mrb[0].mxu0 %v364
        %v642 = vpop.f32.mrb[0].mxu0
        %v643 = vadd.f32 0.0, %v642
        %v644 = vpop.f32.mrb[0].mxu0
        %v645 = vadd.f32 0.0, %v644
        %646 = vmatprep.mubr.f32.mxu0 %v367
        %647 = vmatmul.mubr.f32.gmra.mrb[0].mxu0 %v366
        %v648 = vpop.f32.mrb[0].mxu0
        %v649 = vadd.f32 0.0, %v648
        %v650 = vpop.f32.mrb[0].mxu0
        %v651 = vadd.f32 0.0, %v650
        %652 = vmatprep.mubr.f32.mxu0 %v369
        %653 = vmatmul.mubr.f32.gmra.mrb[0].mxu0 %v368
        %v654 = vpop.f32.mrb[0].mxu0
        %v655 = vadd.f32 0.0, %v654
        %v656 = vpop.f32.mrb[0].mxu0
        %v657 = vadd.f32 0.0, %v656
        %658 = vmatprep.mubr.f32.mxu0 %v371
        %659 = vmatmul.mubr.f32.gmra.mrb[0].mxu0 %v370
        %v660 = vpop.f32.mrb[0].mxu0
        %v661 = vadd.f32 0.0, %v660
        %v662 = vpop.f32.mrb[0].mxu0
        %v663 = vadd.f32 0.0, %v662
        %664 = vmatprep.mubr.f32.mxu0 %v373
        %665 = vmatmul.mubr.f32.gmra.mrb[0].mxu0 %v372
        %v666 = vpop.f32.mrb[0].mxu0
        %v667 = vadd.f32 0.0, %v666
        %v668 = vpop.f32.mrb[0].mxu0
        %v669 = vadd.f32 0.0, %v668
        %670 = vmatprep.mubr.f32.mxu0 %v375
        %671 = vmatmul.mubr.f32.gmra.mrb[0].mxu0 %v374
        %v672 = vpop.f32.mrb[0].mxu0
        %v673 = vadd.f32 0.0, %v672
        %v674 = vpop.f32.mrb[0].mxu0
        %v675 = vadd.f32 0.0, %v674
        %676 = vmatprep.mubr.f32.mxu0 %v377
        %677 = vmatmul.mubr.f32.gmra.mrb[0].mxu0 %v376
        %v678 = vpop.f32.mrb[0].mxu0
        %v679 = vadd.f32 0.0, %v678
        %v680 = vpop.f32.mrb[0].mxu0
        %v681 = vadd.f32 0.0, %v680
        %682 = vmatprep.mubr.f32.mxu0 %v379
        %683 = vmatmul.mubr.f32.gmra.mrb[0].mxu0 %v378
        %v684 = vpop.f32.mrb[0].mxu0
        %v685 = vadd.f32 0.0, %v684
        %v686 = vpop.f32.mrb[0].mxu0
        %v687 = vadd.f32 0.0, %v686
        %688 = vmatprep.mubr.f32.mxu0 %v381
        %689 = vmatmul.mubr.f32.gmra.mrb[0].mxu0 %v380
        %v690 = vpop.f32.mrb[0].mxu0
        %v691 = vadd.f32 0.0, %v690
        %v692 = vpop.f32.mrb[0].mxu0
        %v693 = vadd.f32 0.0, %v692
        %694 = vmatprep.mubr.f32.mxu0 %v383
        %695 = vmatmul.mubr.f32.gmra.mrb[0].mxu0 %v382
        %v696 = vpop.f32.mrb[0].mxu0
        %v697 = vadd.f32 0.0, %v696
        %v698 = vpop.f32.mrb[0].mxu0
        %v699 = vadd.f32 0.0, %v698
        %700 = vmatprep.mubr.f32.mxu0 %v385
        %701 = vmatmul.mubr.f32.gmra.mrb[0].mxu0 %v384
        %v702 = vpop.f32.mrb[0].mxu0
        %v703 = vadd.f32 0.0, %v702
        %v704 = vpop.f32.mrb[0].mxu0
        %v705 = vadd.f32 0.0, %v704
        %706 = vmatprep.mubr.f32.mxu0 %v387
        %707 = vmatmul.mubr.f32.gmra.mrb[0].mxu0 %v386
        %v708 = vpop.f32.mrb[0].mxu0
        %v709 = vadd.f32 0.0, %v708
        %v710 = vpop.f32.mrb[0].mxu0
        %v711 = vadd.f32 0.0, %v710
        %712 = vmatprep.mubr.f32.mxu0 %v389
        %713 = vmatmul.mubr.f32.gmra.mrb[0].mxu0 %v388
        %v714 = vpop.f32.mrb[0].mxu0
        %v715 = vadd.f32 0.0, %v714
        %v716 = vpop.f32.mrb[0].mxu0
        %v717 = vadd.f32 0.0, %v716
        %718 = vmatprep.mubr.f32.mxu0 %v391
        %719 = vmatmul.mubr.f32.gmra.mrb[0].mxu0 %v390
        %v720 = vpop.f32.mrb[0].mxu0
        %v721 = vadd.f32 0.0, %v720
        %v722 = vpop.f32.mrb[0].mxu0
        %v723 = vadd.f32 0.0, %v722
        %724 = vmatprep.mubr.f32.mxu0 %v393
        %725 = vmatmul.mubr.f32.gmra.mrb[0].mxu0 %v392
        %v726 = vpop.f32.mrb[0].mxu0
        %v727 = vadd.f32 0.0, %v726
        %v728 = vpop.f32.mrb[0].mxu0
        %v729 = vadd.f32 0.0, %v728
        %730 = vmatprep.mubr.f32.mxu0 %v395
        %731 = vmatmul.mubr.f32.gmra.mrb[0].mxu0 %v394
        %v732 = vpop.f32.mrb[0].mxu0
        %v733 = vadd.f32 0.0, %v732
        %v734 = vpop.f32.mrb[0].mxu0
        %v735 = vadd.f32 0.0, %v734
        %736 = vmatprep.mubr.f32.mxu0 %v397
        %737 = vmatmul.mubr.f32.gmra.mrb[0].mxu0 %v396
        %v738 = vpop.f32.mrb[0].mxu0
        %v739 = vadd.f32 0.0, %v738
        %v740 = vpop.f32.mrb[0].mxu0
        %v741 = vadd.f32 0.0, %v740
        %742 = vmatprep.mubr.f32.mxu0 %v399
        %743 = vmatmul.mubr.f32.gmra.mrb[0].mxu0 %v398
        %v744 = vpop.f32.mrb[0].mxu0
        %v745 = vadd.f32 0.0, %v744
        %v746 = vpop.f32.mrb[0].mxu0
        %v747 = vadd.f32 0.0, %v746
        %748 = vmatprep.mubr.f32.mxu0 %v401
        %749 = vmatmul.mubr.f32.gmra.mrb[0].mxu0 %v400
        %v750 = vpop.f32.mrb[0].mxu0
        %v751 = vadd.f32 0.0, %v750
        %v752 = vpop.f32.mrb[0].mxu0
        %v753 = vadd.f32 0.0, %v752
        %754 = vmatprep.mubr.f32.mxu0 %v403
        %755 = vmatmul.mubr.f32.gmra.mrb[0].mxu0 %v402
        %v756 = vpop.f32.mrb[0].mxu0
        %v757 = vadd.f32 0.0, %v756
        %v758 = vpop.f32.mrb[0].mxu0
        %v759 = vadd.f32 0.0, %v758
        %760 = vmatprep.mubr.f32.mxu0 %v405
        %761 = vmatmul.mubr.f32.gmra.mrb[0].mxu0 %v404
        %v762 = vpop.f32.mrb[0].mxu0
        %v763 = vadd.f32 0.0, %v762
        %v764 = vpop.f32.mrb[0].mxu0
        %v765 = vadd.f32 0.0, %v764
        %766 = vmatprep.mubr.f32.mxu0 %v407
        %767 = vmatmul.mubr.f32.gmra.mrb[0].mxu0 %v406
        %v768 = vpop.f32.mrb[0].mxu0
        %v769 = vadd.f32 0.0, %v768
        %v770 = vpop.f32.mrb[0].mxu0
        %v771 = vadd.f32 0.0, %v770
        %772 = vmatprep.mubr.f32.mxu0 %v409
        %773 = vmatmul.mubr.f32.gmra.mrb[0].mxu0 %v408
        %v774 = vpop.f32.mrb[0].mxu0
        %v775 = vadd.f32 0.0, %v774
        %v776 = vpop.f32.mrb[0].mxu0
        %v777 = vadd.f32 0.0, %v776
        %778 = vmatprep.mubr.f32.mxu0 %v411
        %779 = vmatmul.mubr.f32.gmra.mrb[0].mxu0 %v410
        %v780 = vpop.f32.mrb[0].mxu0
        %v781 = vadd.f32 0.0, %v780
        %v782 = vpop.f32.mrb[0].mxu0
        %v783 = vadd.f32 0.0, %v782
        %784 = vmatprep.mubr.f32.mxu0 %v413
        %785 = vmatmul.mubr.f32.gmra.mrb[0].mxu0 %v412
        %v786 = vpop.f32.mrb[0].mxu0
        %v787 = vadd.f32 0.0, %v786
        %v788 = vpop.f32.mrb[0].mxu0
        %v789 = vadd.f32 0.0, %v788
        %790 = vmatprep.mubr.f32.mxu0 %v415
        %791 = vmatmul.mubr.f32.gmra.mrb[0].mxu0 %v414
        %v792 = vpop.f32.mrb[0].mxu0
        %v793 = vadd.f32 0.0, %v792
        %v794 = vpop.f32.mrb[0].mxu0
        %v795 = vadd.f32 0.0, %v794
        %796 = vmatprep.mubr.f32.mxu0 %v417
        %797 = vmatmul.mubr.f32.gmra.mrb[0].mxu0 %v416
        %v798 = vpop.f32.mrb[0].mxu0
        %v799 = vadd.f32 0.0, %v798
        %v800 = vpop.f32.mrb[0].mxu0
        %v801 = vadd.f32 0.0, %v800
        %802 = vdwg.mxu0
        %803 = vmatprep.subr.mxu0 %v483
        %804 = vmatpush1.xpose.msra.mxu0 %v482
        %805 = vmatprep.subr.mxu0 %v485
        %806 = vmatpush1.xpose.msra.mxu0 %v484
        %807 = vmatprep.subr.mxu0 %v487
        %808 = vmatpush1.xpose.msra.mxu0 %v486
        %809 = vmatprep.subr.mxu0 %v489
        %810 = vmatpush1.xpose.msra.mxu0 %v488
        %811 = vmatprep.subr.mxu0 %v491
        %812 = vmatpush1.xpose.msra.mxu0 %v490
        %813 = vmatprep.subr.mxu0 %v493
        %814 = vmatpush1.xpose.msra.mxu0 %v492
        %815 = vmatprep.subr.mxu0 %v495
        %816 = vmatpush1.xpose.msra.mxu0 %v494
        %817 = vmatprep.subr.mxu0 %v497
        %818 = vmatpush1.xpose.msra.mxu0 %v496
        %819 = vmatprep.subr.mxu0 %v499
        %820 = vmatpush1.xpose.msra.mxu0 %v498
        %821 = vmatprep.subr.mxu0 %v501
        %822 = vmatpush1.xpose.msra.mxu0 %v500
        %823 = vmatprep.subr.mxu0 %v503
        %824 = vmatpush1.xpose.msra.mxu0 %v502
        %825 = vmatprep.subr.mxu0 %v505
        %826 = vmatpush1.xpose.msra.mxu0 %v504
        %827 = vmatprep.subr.mxu0 %v507
        %828 = vmatpush1.xpose.msra.mxu0 %v506
        %829 = vmatprep.subr.mxu0 %v509
        %830 = vmatpush1.xpose.msra.mxu0 %v508
        %831 = vmatprep.subr.mxu0 %v511
        %832 = vmatpush1.xpose.msra.mxu0 %v510
        %833 = vmatprep.subr.mxu0 %v513
        %834 = vmatpush1.xpose.msra.mxu0 %v512
        %835 = vmatprep.subr.mxu0 %v515
        %836 = vmatpush1.xpose.msra.mxu0 %v514
        %837 = vmatprep.subr.mxu0 %v517
        %838 = vmatpush1.xpose.msra.mxu0 %v516
        %839 = vmatprep.subr.mxu0 %v519
        %840 = vmatpush1.xpose.msra.mxu0 %v518
        %841 = vmatprep.subr.mxu0 %v521
        %842 = vmatpush1.xpose.msra.mxu0 %v520
        %843 = vmatprep.subr.mxu0 %v523
        %844 = vmatpush1.xpose.msra.mxu0 %v522
        %845 = vmatprep.subr.mxu0 %v525
        %846 = vmatpush1.xpose.msra.mxu0 %v524
        %847 = vmatprep.subr.mxu0 %v527
        %848 = vmatpush1.xpose.msra.mxu0 %v526
        %849 = vmatprep.subr.mxu0 %v529
        %850 = vmatpush1.xpose.msra.mxu0 %v528
        %851 = vmatprep.subr.mxu0 %v531
        %852 = vmatpush1.xpose.msra.mxu0 %v530
        %853 = vmatprep.subr.mxu0 %v533
        %854 = vmatpush1.xpose.msra.mxu0 %v532
        %855 = vmatprep.subr.mxu0 %v535
        %856 = vmatpush1.xpose.msra.mxu0 %v534
        %857 = vmatprep.subr.mxu0 %v537
        %858 = vmatpush1.xpose.msra.mxu0 %v536
        %859 = vmatprep.subr.mxu0 %v539
        %860 = vmatpush1.xpose.msra.mxu0 %v538
        %861 = vmatprep.subr.mxu0 %v541
        %862 = vmatpush1.xpose.msra.mxu0 %v540
        %863 = vmatprep.subr.mxu0 %v543
        %864 = vmatpush1.xpose.msra.mxu0 %v542
        %865 = vmatprep.subr.mxu0 %v545
        %866 = vmatpush1.xpose.msra.mxu0 %v544
        %867 = vmatprep.mubr.f32.mxu0 %v355
        %868 = vmatmul.mubr.f32.gmra.mrb[0].mxu0 %v354
        %v869 = vpop.f32.mrb[0].mxu0
        %v870 = vadd.f32 0.0, %v869
        %v871 = vpop.f32.mrb[0].mxu0
        %v872 = vadd.f32 0.0, %v871
        %873 = vmatprep.mubr.f32.mxu0 %v357
        %874 = vmatmul.mubr.f32.gmra.mrb[0].mxu0 %v356
        %v875 = vpop.f32.mrb[0].mxu0
        %v876 = vadd.f32 0.0, %v875
        %v877 = vpop.f32.mrb[0].mxu0
        %v878 = vadd.f32 0.0, %v877
        %879 = vmatprep.mubr.f32.mxu0 %v359
        %880 = vmatmul.mubr.f32.gmra.mrb[0].mxu0 %v358
        %v881 = vpop.f32.mrb[0].mxu0
        %v882 = vadd.f32 0.0, %v881
        %v883 = vpop.f32.mrb[0].mxu0
        %v884 = vadd.f32 0.0, %v883
        %885 = vmatprep.mubr.f32.mxu0 %v361
        %886 = vmatmul.mubr.f32.gmra.mrb[0].mxu0 %v360
        %v887 = vpop.f32.mrb[0].mxu0
        %v888 = vadd.f32 0.0, %v887
        %v889 = vpop.f32.mrb[0].mxu0
        %v890 = vadd.f32 0.0, %v889
        %891 = vmatprep.mubr.f32.mxu0 %v363
        %892 = vmatmul.mubr.f32.gmra.mrb[0].mxu0 %v362
        %v893 = vpop.f32.mrb[0].mxu0
        %v894 = vadd.f32 0.0, %v893
        %v895 = vpop.f32.mrb[0].mxu0
        %v896 = vadd.f32 0.0, %v895
        %897 = vmatprep.mubr.f32.mxu0 %v365
        %898 = vmatmul.mubr.f32.gmra.mrb[0].mxu0 %v364
        %v899 = vpop.f32.mrb[0].mxu0
        %v900 = vadd.f32 0.0, %v899
        %v901 = vpop.f32.mrb[0].mxu0
        %v902 = vadd.f32 0.0, %v901
        %903 = vmatprep.mubr.f32.mxu0 %v367
        %904 = vmatmul.mubr.f32.gmra.mrb[0].mxu0 %v366
        %v905 = vpop.f32.mrb[0].mxu0
        %v906 = vadd.f32 0.0, %v905
        %v907 = vpop.f32.mrb[0].mxu0
        %v908 = vadd.f32 0.0, %v907
        %909 = vmatprep.mubr.f32.mxu0 %v369
        %910 = vmatmul.mubr.f32.gmra.mrb[0].mxu0 %v368
        %v911 = vpop.f32.mrb[0].mxu0
        %v912 = vadd.f32 0.0, %v911
        %v913 = vpop.f32.mrb[0].mxu0
        %v914 = vadd.f32 0.0, %v913
        %915 = vmatprep.mubr.f32.mxu0 %v371
        %916 = vmatmul.mubr.f32.gmra.mrb[0].mxu0 %v370
        %v917 = vpop.f32.mrb[0].mxu0
        %v918 = vadd.f32 0.0, %v917
        %v919 = vpop.f32.mrb[0].mxu0
        %v920 = vadd.f32 0.0, %v919
        %921 = vmatprep.mubr.f32.mxu0 %v373
        %922 = vmatmul.mubr.f32.gmra.mrb[0].mxu0 %v372
        %v923 = vpop.f32.mrb[0].mxu0
        %v924 = vadd.f32 0.0, %v923
        %v925 = vpop.f32.mrb[0].mxu0
        %v926 = vadd.f32 0.0, %v925
        %927 = vmatprep.mubr.f32.mxu0 %v375
        %928 = vmatmul.mubr.f32.gmra.mrb[0].mxu0 %v374
        %v929 = vpop.f32.mrb[0].mxu0
        %v930 = vadd.f32 0.0, %v929
        %v931 = vpop.f32.mrb[0].mxu0
        %v932 = vadd.f32 0.0, %v931
        %933 = vmatprep.mubr.f32.mxu0 %v377
        %934 = vmatmul.mubr.f32.gmra.mrb[0].mxu0 %v376
        %v935 = vpop.f32.mrb[0].mxu0
        %v936 = vadd.f32 0.0, %v935
        %v937 = vpop.f32.mrb[0].mxu0
        %v938 = vadd.f32 0.0, %v937
        %939 = vmatprep.mubr.f32.mxu0 %v379
        %940 = vmatmul.mubr.f32.gmra.mrb[0].mxu0 %v378
        %v941 = vpop.f32.mrb[0].mxu0
        %v942 = vadd.f32 0.0, %v941
        %v943 = vpop.f32.mrb[0].mxu0
        %v944 = vadd.f32 0.0, %v943
        %945 = vmatprep.mubr.f32.mxu0 %v381
        %946 = vmatmul.mubr.f32.gmra.mrb[0].mxu0 %v380
        %v947 = vpop.f32.mrb[0].mxu0
        %v948 = vadd.f32 0.0, %v947
        %v949 = vpop.f32.mrb[0].mxu0
        %v950 = vadd.f32 0.0, %v949
        %951 = vmatprep.mubr.f32.mxu0 %v383
        %952 = vmatmul.mubr.f32.gmra.mrb[0].mxu0 %v382
        %v953 = vpop.f32.mrb[0].mxu0
        %v954 = vadd.f32 0.0, %v953
        %v955 = vpop.f32.mrb[0].mxu0
        %v956 = vadd.f32 0.0, %v955
        %957 = vmatprep.mubr.f32.mxu0 %v385
        %958 = vmatmul.mubr.f32.gmra.mrb[0].mxu0 %v384
        %v959 = vpop.f32.mrb[0].mxu0
        %v960 = vadd.f32 0.0, %v959
        %v961 = vpop.f32.mrb[0].mxu0
        %v962 = vadd.f32 0.0, %v961
        %963 = vmatprep.mubr.f32.mxu0 %v387
        %964 = vmatmul.mubr.f32.gmra.mrb[0].mxu0 %v386
        %v965 = vpop.f32.mrb[0].mxu0
        %v966 = vadd.f32 0.0, %v965
        %v967 = vpop.f32.mrb[0].mxu0
        %v968 = vadd.f32 0.0, %v967
        %969 = vmatprep.mubr.f32.mxu0 %v389
        %970 = vmatmul.mubr.f32.gmra.mrb[0].mxu0 %v388
        %v971 = vpop.f32.mrb[0].mxu0
        %v972 = vadd.f32 0.0, %v971
        %v973 = vpop.f32.mrb[0].mxu0
        %v974 = vadd.f32 0.0, %v973
        %975 = vmatprep.mubr.f32.mxu0 %v391
        %976 = vmatmul.mubr.f32.gmra.mrb[0].mxu0 %v390
        %v977 = vpop.f32.mrb[0].mxu0
        %v978 = vadd.f32 0.0, %v977
        %v979 = vpop.f32.mrb[0].mxu0
        %v980 = vadd.f32 0.0, %v979
        %981 = vmatprep.mubr.f32.mxu0 %v393
        %982 = vmatmul.mubr.f32.gmra.mrb[0].mxu0 %v392
        %v983 = vpop.f32.mrb[0].mxu0
        %v984 = vadd.f32 0.0, %v983
        %v985 = vpop.f32.mrb[0].mxu0
        %v986 = vadd.f32 0.0, %v985
        %987 = vmatprep.mubr.f32.mxu0 %v395
        %988 = vmatmul.mubr.f32.gmra.mrb[0].mxu0 %v394
        %v989 = vpop.f32.mrb[0].mxu0
        %v990 = vadd.f32 0.0, %v989
        %v991 = vpop.f32.mrb[0].mxu0
        %v992 = vadd.f32 0.0, %v991
        %993 = vmatprep.mubr.f32.mxu0 %v397
        %994 = vmatmul.mubr.f32.gmra.mrb[0].mxu0 %v396
        %v995 = vpop.f32.mrb[0].mxu0
        %v996 = vadd.f32 0.0, %v995
        %v997 = vpop.f32.mrb[0].mxu0
        %v998 = vadd.f32 0.0, %v997
        %999 = vmatprep.mubr.f32.mxu0 %v399
        %1000 = vmatmul.mubr.f32.gmra.mrb[0].mxu0 %v398
        %v1001 = vpop.f32.mrb[0].mxu0
        %v1002 = vadd.f32 0.0, %v1001
        %v1003 = vpop.f32.mrb[0].mxu0
        %v1004 = vadd.f32 0.0, %v1003
        %1005 = vmatprep.mubr.f32.mxu0 %v401
        %1006 = vmatmul.mubr.f32.gmra.mrb[0].mxu0 %v400
        %v1007 = vpop.f32.mrb[0].mxu0
        %v1008 = vadd.f32 0.0, %v1007
        %v1009 = vpop.f32.mrb[0].mxu0
        %v1010 = vadd.f32 0.0, %v1009
        %1011 = vmatprep.mubr.f32.mxu0 %v403
        %1012 = vmatmul.mubr.f32.gmra.mrb[0].mxu0 %v402
        %v1013 = vpop.f32.mrb[0].mxu0
        %v1014 = vadd.f32 0.0, %v1013
        %v1015 = vpop.f32.mrb[0].mxu0
        %v1016 = vadd.f32 0.0, %v1015
        %1017 = vmatprep.mubr.f32.mxu0 %v405
        %1018 = vmatmul.mubr.f32.gmra.mrb[0].mxu0 %v404
        %v1019 = vpop.f32.mrb[0].mxu0
        %v1020 = vadd.f32 0.0, %v1019
        %v1021 = vpop.f32.mrb[0].mxu0
        %v1022 = vadd.f32 0.0, %v1021
        %1023 = vmatprep.mubr.f32.mxu0 %v407
        %1024 = vmatmul.mubr.f32.gmra.mrb[0].mxu0 %v406
        %v1025 = vpop.f32.mrb[0].mxu0
        %v1026 = vadd.f32 0.0, %v1025
        %v1027 = vpop.f32.mrb[0].mxu0
        %v1028 = vadd.f32 0.0, %v1027
        %1029 = vmatprep.mubr.f32.mxu0 %v409
        %1030 = vmatmul.mubr.f32.gmra.mrb[0].mxu0 %v408
        %v1031 = vpop.f32.mrb[0].mxu0
        %v1032 = vadd.f32 0.0, %v1031
        %v1033 = vpop.f32.mrb[0].mxu0
        %v1034 = vadd.f32 0.0, %v1033
        %1035 = vmatprep.mubr.f32.mxu0 %v411
        %1036 = vmatmul.mubr.f32.gmra.mrb[0].mxu0 %v410
        %v1037 = vpop.f32.mrb[0].mxu0
        %v1038 = vadd.f32 0.0, %v1037
        %v1039 = vpop.f32.mrb[0].mxu0
        %v1040 = vadd.f32 0.0, %v1039
        %1041 = vmatprep.mubr.f32.mxu0 %v413
        %1042 = vmatmul.mubr.f32.gmra.mrb[0].mxu0 %v412
        %v1043 = vpop.f32.mrb[0].mxu0
        %v1044 = vadd.f32 0.0, %v1043
        %v1045 = vpop.f32.mrb[0].mxu0
        %v1046 = vadd.f32 0.0, %v1045
        %1047 = vmatprep.mubr.f32.mxu0 %v415
        %1048 = vmatmul.mubr.f32.gmra.mrb[0].mxu0 %v414
        %v1049 = vpop.f32.mrb[0].mxu0
        %v1050 = vadd.f32 0.0, %v1049
        %v1051 = vpop.f32.mrb[0].mxu0
        %v1052 = vadd.f32 0.0, %v1051
        %1053 = vmatprep.mubr.f32.mxu0 %v417
        %1054 = vmatmul.mubr.f32.gmra.mrb[0].mxu0 %v416
        %v1055 = vpop.f32.mrb[0].mxu0
        %v1056 = vadd.f32 0.0, %v1055
        %v1057 = vpop.f32.mrb[0].mxu0
        %v1058 = vadd.f32 0.0, %v1057
        %1059 = vdwg.mxu0
        %v1060 = vlaneseq
        %v1061 = vand.u32 %v1060, 127
        %v1062 = vadd.s32 %v1061, 128
        %v1063 = vadd.s32 %v1061, 256
        %v1064 = vadd.s32 %v1061, 384
        %v1065 = vld [vmem:[#allocation2] sm:$0xff]
        %v1066 = vld [vmem:[#allocation2 + $0x8] sm:$0xff]
        %v1067 = vld [vmem:[#allocation2 + $0x10] sm:$0xff]
        %v1068 = vld [vmem:[#allocation2 + $0x18] sm:$0xff]
        %v1069 = vld [vmem:[#allocation2 + $0x20] sm:$0xff]
        %v1070 = vld [vmem:[#allocation2 + $0x28] sm:$0xff]
        %v1071 = vld [vmem:[#allocation2 + $0x30] sm:$0xff]
        %v1072 = vld [vmem:[#allocation2 + $0x38] sm:$0xff]
        %v1073 = vld [vmem:[#allocation2 + $0x40] sm:$0xff]
        %v1074 = vld [vmem:[#allocation2 + $0x48] sm:$0xff]
        %v1075 = vld [vmem:[#allocation2 + $0x50] sm:$0xff]
        %v1076 = vld [vmem:[#allocation2 + $0x58] sm:$0xff]
        %v1077 = vld [vmem:[#allocation2 + $0x60] sm:$0xff]
        %v1078 = vld [vmem:[#allocation2 + $0x68] sm:$0xff]
        %v1079 = vld [vmem:[#allocation2 + $0x70] sm:$0xff]
        %v1080 = vld [vmem:[#allocation2 + $0x78] sm:$0xff]
        %v1081 = vld [vmem:[#allocation2 + $0x80] sm:$0xff]
        %v1082 = vld [vmem:[#allocation2 + $0x88] sm:$0xff]
        %v1083 = vld [vmem:[#allocation2 + $0x90] sm:$0xff]
        %v1084 = vld [vmem:[#allocation2 + $0x98] sm:$0xff]
        %v1085 = vld [vmem:[#allocation2 + $0xa0] sm:$0xff]
        %v1086 = vld [vmem:[#allocation2 + $0xa8] sm:$0xff]
        %v1087 = vld [vmem:[#allocation2 + $0xb0] sm:$0xff]
        %v1088 = vld [vmem:[#allocation2 + $0xb8] sm:$0xff]
        %v1089 = vld [vmem:[#allocation2 + $0xc0] sm:$0xff]
        %v1090 = vld [vmem:[#allocation2 + $0xc8] sm:$0xff]
        %v1091 = vld [vmem:[#allocation2 + $0xd0] sm:$0xff]
        %v1092 = vld [vmem:[#allocation2 + $0xd8] sm:$0xff]
        %v1093 = vld [vmem:[#allocation2 + $0xe0] sm:$0xff]
        %v1094 = vld [vmem:[#allocation2 + $0xe8] sm:$0xff]
        %v1095 = vld [vmem:[#allocation2 + $0xf0] sm:$0xff]
        %v1096 = vld [vmem:[#allocation2 + $0xf8] sm:$0xff]
        %v1097 = vmax.f32 %v613, %v615
        %v1098 = vmax.f32 %v1097, %v870
        %v1099 = vmax.f32 %v1098, %v872
        %1100 = vmax.xlane.f32.xlu0 %v1099
        %v1101 = vpop.xlane.xlu0 %1100
        %v1102 = vmax.f32 %v619, %v621
        %v1103 = vmax.f32 %v1102, %v876
        %v1104 = vmax.f32 %v1103, %v878
        %1105 = vmax.xlane.f32.xlu0 %v1104
        %v1106 = vpop.xlane.xlu0 %1105
        %v1107 = vmax.f32 %v625, %v627
        %v1108 = vmax.f32 %v1107, %v882
        %v1109 = vmax.f32 %v1108, %v884
        %1110 = vmax.xlane.f32.xlu0 %v1109
        %v1111 = vpop.xlane.xlu0 %1110
        %v1112 = vmax.f32 %v631, %v633
        %v1113 = vmax.f32 %v1112, %v888
        %v1114 = vmax.f32 %v1113, %v890
        %1115 = vmax.xlane.f32.xlu0 %v1114
        %v1116 = vpop.xlane.xlu0 %1115
        %v1117 = vmax.f32 %v637, %v639
        %v1118 = vmax.f32 %v1117, %v894
        %v1119 = vmax.f32 %v1118, %v896
        %1120 = vmax.xlane.f32.xlu0 %v1119
        %v1121 = vpop.xlane.xlu0 %1120
        %v1122 = vmax.f32 %v643, %v645
        %v1123 = vmax.f32 %v1122, %v900
        %v1124 = vmax.f32 %v1123, %v902
        %1125 = vmax.xlane.f32.xlu0 %v1124
        %v1126 = vpop.xlane.xlu0 %1125
        %v1127 = vmax.f32 %v649, %v651
        %v1128 = vmax.f32 %v1127, %v906
        %v1129 = vmax.f32 %v1128, %v908
        %1130 = vmax.xlane.f32.xlu0 %v1129
        %v1131 = vpop.xlane.xlu0 %1130
        %v1132 = vmax.f32 %v655, %v657
        %v1133 = vmax.f32 %v1132, %v912
        %v1134 = vmax.f32 %v1133, %v914
        %1135 = vmax.xlane.f32.xlu0 %v1134
        %v1136 = vpop.xlane.xlu0 %1135
        %v1137 = vmax.f32 %v661, %v663
        %v1138 = vmax.f32 %v1137, %v918
        %v1139 = vmax.f32 %v1138, %v920
        %1140 = vmax.xlane.f32.xlu0 %v1139
        %v1141 = vpop.xlane.xlu0 %1140
        %v1142 = vmax.f32 %v667, %v669
        %v1143 = vmax.f32 %v1142, %v924
        %v1144 = vmax.f32 %v1143, %v926
        %1145 = vmax.xlane.f32.xlu0 %v1144
        %v1146 = vpop.xlane.xlu0 %1145
        %v1147 = vmax.f32 %v673, %v675
        %v1148 = vmax.f32 %v1147, %v930
        %v1149 = vmax.f32 %v1148, %v932
        %1150 = vmax.xlane.f32.xlu0 %v1149
        %v1151 = vpop.xlane.xlu0 %1150
        %v1152 = vmax.f32 %v679, %v681
        %v1153 = vmax.f32 %v1152, %v936
        %v1154 = vmax.f32 %v1153, %v938
        %1155 = vmax.xlane.f32.xlu0 %v1154
        %v1156 = vpop.xlane.xlu0 %1155
        %v1157 = vmax.f32 %v685, %v687
        %v1158 = vmax.f32 %v1157, %v942
        %v1159 = vmax.f32 %v1158, %v944
        %1160 = vmax.xlane.f32.xlu0 %v1159
        %v1161 = vpop.xlane.xlu0 %1160
        %v1162 = vmax.f32 %v691, %v693
        %v1163 = vmax.f32 %v1162, %v948
        %v1164 = vmax.f32 %v1163, %v950
        %1165 = vmax.xlane.f32.xlu0 %v1164
        %v1166 = vpop.xlane.xlu0 %1165
        %v1167 = vmax.f32 %v697, %v699
        %v1168 = vmax.f32 %v1167, %v954
        %v1169 = vmax.f32 %v1168, %v956
        %1170 = vmax.xlane.f32.xlu0 %v1169
        %v1171 = vpop.xlane.xlu0 %1170
        %v1172 = vmax.f32 %v703, %v705
        %v1173 = vmax.f32 %v1172, %v960
        %v1174 = vmax.f32 %v1173, %v962
        %1175 = vmax.xlane.f32.xlu0 %v1174
        %v1176 = vpop.xlane.xlu0 %1175
        %v1177 = vmax.f32 %v709, %v711
        %v1178 = vmax.f32 %v1177, %v966
        %v1179 = vmax.f32 %v1178, %v968
        %1180 = vmax.xlane.f32.xlu0 %v1179
        %v1181 = vpop.xlane.xlu0 %1180
        %v1182 = vmax.f32 %v715, %v717
        %v1183 = vmax.f32 %v1182, %v972
        %v1184 = vmax.f32 %v1183, %v974
        %1185 = vmax.xlane.f32.xlu0 %v1184
        %v1186 = vpop.xlane.xlu0 %1185
        %v1187 = vmax.f32 %v721, %v723
        %v1188 = vmax.f32 %v1187, %v978
        %v1189 = vmax.f32 %v1188, %v980
        %1190 = vmax.xlane.f32.xlu0 %v1189
        %v1191 = vpop.xlane.xlu0 %1190
        %v1192 = vmax.f32 %v727, %v729
        %v1193 = vmax.f32 %v1192, %v984
        %v1194 = vmax.f32 %v1193, %v986
        %1195 = vmax.xlane.f32.xlu0 %v1194
        %v1196 = vpop.xlane.xlu0 %1195
        %v1197 = vmax.f32 %v733, %v735
        %v1198 = vmax.f32 %v1197, %v990
        %v1199 = vmax.f32 %v1198, %v992
        %1200 = vmax.xlane.f32.xlu0 %v1199
        %v1201 = vpop.xlane.xlu0 %1200
        %v1202 = vmax.f32 %v739, %v741
        %v1203 = vmax.f32 %v1202, %v996
        %v1204 = vmax.f32 %v1203, %v998
        %1205 = vmax.xlane.f32.xlu0 %v1204
        %v1206 = vpop.xlane.xlu0 %1205
        %v1207 = vmax.f32 %v745, %v747
        %v1208 = vmax.f32 %v1207, %v1002
        %v1209 = vmax.f32 %v1208, %v1004
        %1210 = vmax.xlane.f32.xlu0 %v1209
        %v1211 = vpop.xlane.xlu0 %1210
        %v1212 = vmax.f32 %v751, %v753
        %v1213 = vmax.f32 %v1212, %v1008
        %v1214 = vmax.f32 %v1213, %v1010
        %1215 = vmax.xlane.f32.xlu0 %v1214
        %v1216 = vpop.xlane.xlu0 %1215
        %v1217 = vmax.f32 %v757, %v759
        %v1218 = vmax.f32 %v1217, %v1014
        %v1219 = vmax.f32 %v1218, %v1016
        %1220 = vmax.xlane.f32.xlu0 %v1219
        %v1221 = vpop.xlane.xlu0 %1220
        %v1222 = vmax.f32 %v763, %v765
        %v1223 = vmax.f32 %v1222, %v1020
        %v1224 = vmax.f32 %v1223, %v1022
        %1225 = vmax.xlane.f32.xlu0 %v1224
        %v1226 = vpop.xlane.xlu0 %1225
        %v1227 = vmax.f32 %v769, %v771
        %v1228 = vmax.f32 %v1227, %v1026
        %v1229 = vmax.f32 %v1228, %v1028
        %1230 = vmax.xlane.f32.xlu0 %v1229
        %v1231 = vpop.xlane.xlu0 %1230
        %v1232 = vmax.f32 %v775, %v777
        %v1233 = vmax.f32 %v1232, %v1032
        %v1234 = vmax.f32 %v1233, %v1034
        %1235 = vmax.xlane.f32.xlu0 %v1234
        %v1236 = vpop.xlane.xlu0 %1235
        %v1237 = vmax.f32 %v781, %v783
        %v1238 = vmax.f32 %v1237, %v1038
        %v1239 = vmax.f32 %v1238, %v1040
        %1240 = vmax.xlane.f32.xlu0 %v1239
        %v1241 = vpop.xlane.xlu0 %1240
        %v1242 = vmax.f32 %v787, %v789
        %v1243 = vmax.f32 %v1242, %v1044
        %v1244 = vmax.f32 %v1243, %v1046
        %1245 = vmax.xlane.f32.xlu0 %v1244
        %v1246 = vpop.xlane.xlu0 %1245
        %v1247 = vmax.f32 %v793, %v795
        %v1248 = vmax.f32 %v1247, %v1050
        %v1249 = vmax.f32 %v1248, %v1052
        %1250 = vmax.xlane.f32.xlu0 %v1249
        %v1251 = vpop.xlane.xlu0 %1250
        %v1252 = vmax.f32 %v799, %v801
        %v1253 = vmax.f32 %v1252, %v1056
        %v1254 = vmax.f32 %v1253, %v1058
        %1255 = vmax.xlane.f32.xlu0 %v1254
        %v1256 = vpop.xlane.xlu0 %1255
        %v1257 = vmax.f32 %v1065, %v1101
        %v1258 = vmax.f32 %v1066, %v1106
        %v1259 = vmax.f32 %v1067, %v1111
        %v1260 = vmax.f32 %v1068, %v1116
        %v1261 = vmax.f32 %v1069, %v1121
        %v1262 = vmax.f32 %v1070, %v1126
        %v1263 = vmax.f32 %v1071, %v1131
        %v1264 = vmax.f32 %v1072, %v1136
        %v1265 = vmax.f32 %v1073, %v1141
        %v1266 = vmax.f32 %v1074, %v1146
        %v1267 = vmax.f32 %v1075, %v1151
        %v1268 = vmax.f32 %v1076, %v1156
        %v1269 = vmax.f32 %v1077, %v1161
        %v1270 = vmax.f32 %v1078, %v1166
        %v1271 = vmax.f32 %v1079, %v1171
        %v1272 = vmax.f32 %v1080, %v1176
        %v1273 = vmax.f32 %v1081, %v1181
        %v1274 = vmax.f32 %v1082, %v1186
        %v1275 = vmax.f32 %v1083, %v1191
        %v1276 = vmax.f32 %v1084, %v1196
        %v1277 = vmax.f32 %v1085, %v1201
        %v1278 = vmax.f32 %v1086, %v1206
        %v1279 = vmax.f32 %v1087, %v1211
        %v1280 = vmax.f32 %v1088, %v1216
        %v1281 = vmax.f32 %v1089, %v1221
        %v1282 = vmax.f32 %v1090, %v1226
        %v1283 = vmax.f32 %v1091, %v1231
        %v1284 = vmax.f32 %v1092, %v1236
        %v1285 = vmax.f32 %v1093, %v1241
        %v1286 = vmax.f32 %v1094, %v1246
        %v1287 = vmax.f32 %v1095, %v1251
        %v1288 = vmax.f32 %v1096, %v1256
        %v1289 = vsub.f32 %v1065, %v1257
        %v1290 = vsub.f32 %v1066, %v1258
        %v1291 = vsub.f32 %v1067, %v1259
        %v1292 = vsub.f32 %v1068, %v1260
        %v1293 = vsub.f32 %v1069, %v1261
        %v1294 = vsub.f32 %v1070, %v1262
        %v1295 = vsub.f32 %v1071, %v1263
        %v1296 = vsub.f32 %v1072, %v1264
        %v1297 = vsub.f32 %v1073, %v1265
        %v1298 = vsub.f32 %v1074, %v1266
        %v1299 = vsub.f32 %v1075, %v1267
        %v1300 = vsub.f32 %v1076, %v1268
        %v1301 = vsub.f32 %v1077, %v1269
        %v1302 = vsub.f32 %v1078, %v1270
        %v1303 = vsub.f32 %v1079, %v1271
        %v1304 = vsub.f32 %v1080, %v1272
        %v1305 = vsub.f32 %v1081, %v1273
        %v1306 = vsub.f32 %v1082, %v1274
        %v1307 = vsub.f32 %v1083, %v1275
        %v1308 = vsub.f32 %v1084, %v1276
        %v1309 = vsub.f32 %v1085, %v1277
        %v1310 = vsub.f32 %v1086, %v1278
        %v1311 = vsub.f32 %v1087, %v1279
        %v1312 = vsub.f32 %v1088, %v1280
        %v1313 = vsub.f32 %v1089, %v1281
        %v1314 = vsub.f32 %v1090, %v1282
        %v1315 = vsub.f32 %v1091, %v1283
        %v1316 = vsub.f32 %v1092, %v1284
        %v1317 = vsub.f32 %v1093, %v1285
        %v1318 = vsub.f32 %v1094, %v1286
        %v1319 = vsub.f32 %v1095, %v1287
        %v1320 = vsub.f32 %v1096, %v1288
        %v1321 = vmul.f32 %v1289, 1.442695
        %v1322 = vpow.pop %v1321
        %v1323 = vmul.f32 %v1290, 1.442695
        %v1324 = vpow.pop %v1323
        %v1325 = vmul.f32 %v1291, 1.442695
        %v1326 = vpow.pop %v1325
        %v1327 = vmul.f32 %v1292, 1.442695
        %v1328 = vpow.pop %v1327
        %v1329 = vmul.f32 %v1293, 1.442695
        %v1330 = vpow.pop %v1329
        %v1331 = vmul.f32 %v1294, 1.442695
        %v1332 = vpow.pop %v1331
        %v1333 = vmul.f32 %v1295, 1.442695
        %v1334 = vpow.pop %v1333
        %v1335 = vmul.f32 %v1296, 1.442695
        %v1336 = vpow.pop %v1335
        %v1337 = vmul.f32 %v1297, 1.442695
        %v1338 = vpow.pop %v1337
        %v1339 = vmul.f32 %v1298, 1.442695
        %v1340 = vpow.pop %v1339
        %v1341 = vmul.f32 %v1299, 1.442695
        %v1342 = vpow.pop %v1341
        %v1343 = vmul.f32 %v1300, 1.442695
        %v1344 = vpow.pop %v1343
        %v1345 = vmul.f32 %v1301, 1.442695
        %v1346 = vpow.pop %v1345
        %v1347 = vmul.f32 %v1302, 1.442695
        %v1348 = vpow.pop %v1347
        %v1349 = vmul.f32 %v1303, 1.442695
        %v1350 = vpow.pop %v1349
        %v1351 = vmul.f32 %v1304, 1.442695
        %v1352 = vpow.pop %v1351
        %v1353 = vmul.f32 %v1305, 1.442695
        %v1354 = vpow.pop %v1353
        %v1355 = vmul.f32 %v1306, 1.442695
        %v1356 = vpow.pop %v1355
        %v1357 = vmul.f32 %v1307, 1.442695
        %v1358 = vpow.pop %v1357
        %v1359 = vmul.f32 %v1308, 1.442695
        %v1360 = vpow.pop %v1359
        %v1361 = vmul.f32 %v1309, 1.442695
        %v1362 = vpow.pop %v1361
        %v1363 = vmul.f32 %v1310, 1.442695
        %v1364 = vpow.pop %v1363
        %v1365 = vmul.f32 %v1311, 1.442695
        %v1366 = vpow.pop %v1365
        %v1367 = vmul.f32 %v1312, 1.442695
        %v1368 = vpow.pop %v1367
        %v1369 = vmul.f32 %v1313, 1.442695
        %v1370 = vpow.pop %v1369
        %v1371 = vmul.f32 %v1314, 1.442695
        %v1372 = vpow.pop %v1371
        %v1373 = vmul.f32 %v1315, 1.442695
        %v1374 = vpow.pop %v1373
        %v1375 = vmul.f32 %v1316, 1.442695
        %v1376 = vpow.pop %v1375
        %v1377 = vmul.f32 %v1317, 1.442695
        %v1378 = vpow.pop %v1377
        %v1379 = vmul.f32 %v1318, 1.442695
        %v1380 = vpow.pop %v1379
        %v1381 = vmul.f32 %v1319, 1.442695
        %v1382 = vpow.pop %v1381
        %v1383 = vmul.f32 %v1320, 1.442695
        %v1384 = vpow.pop %v1383
        %v1385 = vld [vmem:[#allocation3] sm:$0xff]
        %v1386 = vld [vmem:[#allocation3 + $0x8] sm:$0xff]
        %v1387 = vld [vmem:[#allocation3 + $0x10] sm:$0xff]
        %v1388 = vld [vmem:[#allocation3 + $0x18] sm:$0xff]
        %v1389 = vld [vmem:[#allocation3 + $0x20] sm:$0xff]
        %v1390 = vld [vmem:[#allocation3 + $0x28] sm:$0xff]
        %v1391 = vld [vmem:[#allocation3 + $0x30] sm:$0xff]
        %v1392 = vld [vmem:[#allocation3 + $0x38] sm:$0xff]
        %v1393 = vld [vmem:[#allocation3 + $0x40] sm:$0xff]
        %v1394 = vld [vmem:[#allocation3 + $0x48] sm:$0xff]
        %v1395 = vld [vmem:[#allocation3 + $0x50] sm:$0xff]
        %v1396 = vld [vmem:[#allocation3 + $0x58] sm:$0xff]
        %v1397 = vld [vmem:[#allocation3 + $0x60] sm:$0xff]
        %v1398 = vld [vmem:[#allocation3 + $0x68] sm:$0xff]
        %v1399 = vld [vmem:[#allocation3 + $0x70] sm:$0xff]
        %v1400 = vld [vmem:[#allocation3 + $0x78] sm:$0xff]
        %v1401 = vld [vmem:[#allocation3 + $0x80] sm:$0xff]
        %v1402 = vld [vmem:[#allocation3 + $0x88] sm:$0xff]
        %v1403 = vld [vmem:[#allocation3 + $0x90] sm:$0xff]
        %v1404 = vld [vmem:[#allocation3 + $0x98] sm:$0xff]
        %v1405 = vld [vmem:[#allocation3 + $0xa0] sm:$0xff]
        %v1406 = vld [vmem:[#allocation3 + $0xa8] sm:$0xff]
        %v1407 = vld [vmem:[#allocation3 + $0xb0] sm:$0xff]
        %v1408 = vld [vmem:[#allocation3 + $0xb8] sm:$0xff]
        %v1409 = vld [vmem:[#allocation3 + $0xc0] sm:$0xff]
        %v1410 = vld [vmem:[#allocation3 + $0xc8] sm:$0xff]
        %v1411 = vld [vmem:[#allocation3 + $0xd0] sm:$0xff]
        %v1412 = vld [vmem:[#allocation3 + $0xd8] sm:$0xff]
        %v1413 = vld [vmem:[#allocation3 + $0xe0] sm:$0xff]
        %v1414 = vld [vmem:[#allocation3 + $0xe8] sm:$0xff]
        %v1415 = vld [vmem:[#allocation3 + $0xf0] sm:$0xff]
        %v1416 = vld [vmem:[#allocation3 + $0xf8] sm:$0xff]
        %v1417 = vmul.f32 %v1322, %v1385
        %v1418 = vmul.f32 %v1324, %v1386
        %v1419 = vmul.f32 %v1326, %v1387
        %v1420 = vmul.f32 %v1328, %v1388
        %v1421 = vmul.f32 %v1330, %v1389
        %v1422 = vmul.f32 %v1332, %v1390
        %v1423 = vmul.f32 %v1334, %v1391
        %v1424 = vmul.f32 %v1336, %v1392
        %v1425 = vmul.f32 %v1338, %v1393
        %v1426 = vmul.f32 %v1340, %v1394
        %v1427 = vmul.f32 %v1342, %v1395
        %v1428 = vmul.f32 %v1344, %v1396
        %v1429 = vmul.f32 %v1346, %v1397
        %v1430 = vmul.f32 %v1348, %v1398
        %v1431 = vmul.f32 %v1350, %v1399
        %v1432 = vmul.f32 %v1352, %v1400
        %v1433 = vmul.f32 %v1354, %v1401
        %v1434 = vmul.f32 %v1356, %v1402
        %v1435 = vmul.f32 %v1358, %v1403
        %v1436 = vmul.f32 %v1360, %v1404
        %v1437 = vmul.f32 %v1362, %v1405
        %v1438 = vmul.f32 %v1364, %v1406
        %v1439 = vmul.f32 %v1366, %v1407
        %v1440 = vmul.f32 %v1368, %v1408
        %v1441 = vmul.f32 %v1370, %v1409
        %v1442 = vmul.f32 %v1372, %v1410
        %v1443 = vmul.f32 %v1374, %v1411
        %v1444 = vmul.f32 %v1376, %v1412
        %v1445 = vmul.f32 %v1378, %v1413
        %v1446 = vmul.f32 %v1380, %v1414
        %v1447 = vmul.f32 %v1382, %v1415
        %v1448 = vmul.f32 %v1384, %v1416
        %1450 = vset.pattern.permute.xlu0 0
        %1451 = vperm.xlu0 %1450, %v1257
        %v1452 = vpop.permute.xlu0 %1451
        %1455 = vset.pattern.permute.xlu0 0
        %1456 = vperm.xlu0 %1455, %v1258
        %v1457 = vpop.permute.xlu0 %1456
        %1460 = vset.pattern.permute.xlu0 0
        %1461 = vperm.xlu0 %1460, %v1259
        %v1462 = vpop.permute.xlu0 %1461
        %1465 = vset.pattern.permute.xlu0 0
        %1466 = vperm.xlu0 %1465, %v1260
        %v1467 = vpop.permute.xlu0 %1466
        %1470 = vset.pattern.permute.xlu0 0
        %1471 = vperm.xlu0 %1470, %v1261
        %v1472 = vpop.permute.xlu0 %1471
        %1475 = vset.pattern.permute.xlu0 0
        %1476 = vperm.xlu0 %1475, %v1262
        %v1477 = vpop.permute.xlu0 %1476
        %1480 = vset.pattern.permute.xlu0 0
        %1481 = vperm.xlu0 %1480, %v1263
        %v1482 = vpop.permute.xlu0 %1481
        %1485 = vset.pattern.permute.xlu0 0
        %1486 = vperm.xlu0 %1485, %v1264
        %v1487 = vpop.permute.xlu0 %1486
        %1490 = vset.pattern.permute.xlu0 0
        %1491 = vperm.xlu0 %1490, %v1265
        %v1492 = vpop.permute.xlu0 %1491
        %1495 = vset.pattern.permute.xlu0 0
        %1496 = vperm.xlu0 %1495, %v1266
        %v1497 = vpop.permute.xlu0 %1496
        %1500 = vset.pattern.permute.xlu0 0
        %1501 = vperm.xlu0 %1500, %v1267
        %v1502 = vpop.permute.xlu0 %1501
        %1505 = vset.pattern.permute.xlu0 0
        %1506 = vperm.xlu0 %1505, %v1268
        %v1507 = vpop.permute.xlu0 %1506
        %1510 = vset.pattern.permute.xlu0 0
        %1511 = vperm.xlu0 %1510, %v1269
        %v1512 = vpop.permute.xlu0 %1511
        %1515 = vset.pattern.permute.xlu0 0
        %1516 = vperm.xlu0 %1515, %v1270
        %v1517 = vpop.permute.xlu0 %1516
        %1520 = vset.pattern.permute.xlu0 0
        %1521 = vperm.xlu0 %1520, %v1271
        %v1522 = vpop.permute.xlu0 %1521
        %1525 = vset.pattern.permute.xlu0 0
        %1526 = vperm.xlu0 %1525, %v1272
        %v1527 = vpop.permute.xlu0 %1526
        %1530 = vset.pattern.permute.xlu0 0
        %1531 = vperm.xlu0 %1530, %v1273
        %v1532 = vpop.permute.xlu0 %1531
        %1535 = vset.pattern.permute.xlu0 0
        %1536 = vperm.xlu0 %1535, %v1274
        %v1537 = vpop.permute.xlu0 %1536
        %1540 = vset.pattern.permute.xlu0 0
        %1541 = vperm.xlu0 %1540, %v1275
        %v1542 = vpop.permute.xlu0 %1541
        %1545 = vset.pattern.permute.xlu0 0
        %1546 = vperm.xlu0 %1545, %v1276
        %v1547 = vpop.permute.xlu0 %1546
        %1550 = vset.pattern.permute.xlu0 0
        %1551 = vperm.xlu0 %1550, %v1277
        %v1552 = vpop.permute.xlu0 %1551
        %1555 = vset.pattern.permute.xlu0 0
        %1556 = vperm.xlu0 %1555, %v1278
        %v1557 = vpop.permute.xlu0 %1556
        %1560 = vset.pattern.permute.xlu0 0
        %1561 = vperm.xlu0 %1560, %v1279
        %v1562 = vpop.permute.xlu0 %1561
        %1565 = vset.pattern.permute.xlu0 0
        %1566 = vperm.xlu0 %1565, %v1280
        %v1567 = vpop.permute.xlu0 %1566
        %1570 = vset.pattern.permute.xlu0 0
        %1571 = vperm.xlu0 %1570, %v1281
        %v1572 = vpop.permute.xlu0 %1571
        %1575 = vset.pattern.permute.xlu0 0
        %1576 = vperm.xlu0 %1575, %v1282
        %v1577 = vpop.permute.xlu0 %1576
        %1580 = vset.pattern.permute.xlu0 0
        %1581 = vperm.xlu0 %1580, %v1283
        %v1582 = vpop.permute.xlu0 %1581
        %1585 = vset.pattern.permute.xlu0 0
        %1586 = vperm.xlu0 %1585, %v1284
        %v1587 = vpop.permute.xlu0 %1586
        %1590 = vset.pattern.permute.xlu0 0
        %1591 = vperm.xlu0 %1590, %v1285
        %v1592 = vpop.permute.xlu0 %1591
        %1595 = vset.pattern.permute.xlu0 0
        %1596 = vperm.xlu0 %1595, %v1286
        %v1597 = vpop.permute.xlu0 %1596
        %1600 = vset.pattern.permute.xlu0 0
        %1601 = vperm.xlu0 %1600, %v1287
        %v1602 = vpop.permute.xlu0 %1601
        %1605 = vset.pattern.permute.xlu0 0
        %1606 = vperm.xlu0 %1605, %v1288
        %v1607 = vpop.permute.xlu0 %1606
        %v1609 = vsub.f32 %v613, %v1452
        %v1610 = vsub.f32 %v615, %v1452
        %v1611 = vsub.f32 %v870, %v1452
        %v1612 = vsub.f32 %v872, %v1452
        %v1613 = vsub.f32 %v619, %v1457
        %v1614 = vsub.f32 %v621, %v1457
        %v1615 = vsub.f32 %v876, %v1457
        %v1616 = vsub.f32 %v878, %v1457
        %v1617 = vsub.f32 %v625, %v1462
        %v1618 = vsub.f32 %v627, %v1462
        %v1619 = vsub.f32 %v882, %v1462
        %v1620 = vsub.f32 %v884, %v1462
        %v1621 = vsub.f32 %v631, %v1467
        %v1622 = vsub.f32 %v633, %v1467
        %v1623 = vsub.f32 %v888, %v1467
        %v1624 = vsub.f32 %v890, %v1467
        %v1625 = vsub.f32 %v637, %v1472
        %v1626 = vsub.f32 %v639, %v1472
        %v1627 = vsub.f32 %v894, %v1472
        %v1628 = vsub.f32 %v896, %v1472
        %v1629 = vsub.f32 %v643, %v1477
        %v1630 = vsub.f32 %v645, %v1477
        %v1631 = vsub.f32 %v900, %v1477
        %v1632 = vsub.f32 %v902, %v1477
        %v1633 = vsub.f32 %v649, %v1482
        %v1634 = vsub.f32 %v651, %v1482
        %v1635 = vsub.f32 %v906, %v1482
        %v1636 = vsub.f32 %v908, %v1482
        %v1637 = vsub.f32 %v655, %v1487
        %v1638 = vsub.f32 %v657, %v1487
        %v1639 = vsub.f32 %v912, %v1487
        %v1640 = vsub.f32 %v914, %v1487
        %v1641 = vsub.f32 %v661, %v1492
        %v1642 = vsub.f32 %v663, %v1492
        %v1643 = vsub.f32 %v918, %v1492
        %v1644 = vsub.f32 %v920, %v1492
        %v1645 = vsub.f32 %v667, %v1497
        %v1646 = vsub.f32 %v669, %v1497
        %v1647 = vsub.f32 %v924, %v1497
        %v1648 = vsub.f32 %v926, %v1497
        %v1649 = vsub.f32 %v673, %v1502
        %v1650 = vsub.f32 %v675, %v1502
        %v1651 = vsub.f32 %v930, %v1502
        %v1652 = vsub.f32 %v932, %v1502
        %v1653 = vsub.f32 %v679, %v1507
        %v1654 = vsub.f32 %v681, %v1507
        %v1655 = vsub.f32 %v936, %v1507
        %v1656 = vsub.f32 %v938, %v1507
        %v1657 = vsub.f32 %v685, %v1512
        %v1658 = vsub.f32 %v687, %v1512
        %v1659 = vsub.f32 %v942, %v1512
        %v1660 = vsub.f32 %v944, %v1512
        %v1661 = vsub.f32 %v691, %v1517
        %v1662 = vsub.f32 %v693, %v1517
        %v1663 = vsub.f32 %v948, %v1517
        %v1664 = vsub.f32 %v950, %v1517
        %v1665 = vsub.f32 %v697, %v1522
        %v1666 = vsub.f32 %v699, %v1522
        %v1667 = vsub.f32 %v954, %v1522
        %v1668 = vsub.f32 %v956, %v1522
        %v1669 = vsub.f32 %v703, %v1527
        %v1670 = vsub.f32 %v705, %v1527
        %v1671 = vsub.f32 %v960, %v1527
        %v1672 = vsub.f32 %v962, %v1527
        %v1673 = vsub.f32 %v709, %v1532
        %v1674 = vsub.f32 %v711, %v1532
        %v1675 = vsub.f32 %v966, %v1532
        %v1676 = vsub.f32 %v968, %v1532
        %v1677 = vsub.f32 %v715, %v1537
        %v1678 = vsub.f32 %v717, %v1537
        %v1679 = vsub.f32 %v972, %v1537
        %v1680 = vsub.f32 %v974, %v1537
        %v1681 = vsub.f32 %v721, %v1542
        %v1682 = vsub.f32 %v723, %v1542
        %v1683 = vsub.f32 %v978, %v1542
        %v1684 = vsub.f32 %v980, %v1542
        %v1685 = vsub.f32 %v727, %v1547
        %v1686 = vsub.f32 %v729, %v1547
        %v1687 = vsub.f32 %v984, %v1547
        %v1688 = vsub.f32 %v986, %v1547
        %v1689 = vsub.f32 %v733, %v1552
        %v1690 = vsub.f32 %v735, %v1552
        %v1691 = vsub.f32 %v990, %v1552
        %v1692 = vsub.f32 %v992, %v1552
        %v1693 = vsub.f32 %v739, %v1557
        %v1694 = vsub.f32 %v741, %v1557
        %v1695 = vsub.f32 %v996, %v1557
        %v1696 = vsub.f32 %v998, %v1557
        %v1697 = vsub.f32 %v745, %v1562
        %v1698 = vsub.f32 %v747, %v1562
        %v1699 = vsub.f32 %v1002, %v1562
        %v1700 = vsub.f32 %v1004, %v1562
        %v1701 = vsub.f32 %v751, %v1567
        %v1702 = vsub.f32 %v753, %v1567
        %v1703 = vsub.f32 %v1008, %v1567
        %v1704 = vsub.f32 %v1010, %v1567
        %v1705 = vsub.f32 %v757, %v1572
        %v1706 = vsub.f32 %v759, %v1572
        %v1707 = vsub.f32 %v1014, %v1572
        %v1708 = vsub.f32 %v1016, %v1572
        %v1709 = vsub.f32 %v763, %v1577
        %v1710 = vsub.f32 %v765, %v1577
        %v1711 = vsub.f32 %v1020, %v1577
        %v1712 = vsub.f32 %v1022, %v1577
        %v1713 = vsub.f32 %v769, %v1582
        %v1714 = vsub.f32 %v771, %v1582
        %v1715 = vsub.f32 %v1026, %v1582
        %v1716 = vsub.f32 %v1028, %v1582
        %v1717 = vsub.f32 %v775, %v1587
        %v1718 = vsub.f32 %v777, %v1587
        %v1719 = vsub.f32 %v1032, %v1587
        %v1720 = vsub.f32 %v1034, %v1587
        %v1721 = vsub.f32 %v781, %v1592
        %v1722 = vsub.f32 %v783, %v1592
        %v1723 = vsub.f32 %v1038, %v1592
        %v1724 = vsub.f32 %v1040, %v1592
        %v1725 = vsub.f32 %v787, %v1597
        %v1726 = vsub.f32 %v789, %v1597
        %v1727 = vsub.f32 %v1044, %v1597
        %v1728 = vsub.f32 %v1046, %v1597
        %v1729 = vsub.f32 %v793, %v1602
        %v1730 = vsub.f32 %v795, %v1602
        %v1731 = vsub.f32 %v1050, %v1602
        %v1732 = vsub.f32 %v1052, %v1602
        %v1733 = vsub.f32 %v799, %v1607
        %v1734 = vsub.f32 %v801, %v1607
        %v1735 = vsub.f32 %v1056, %v1607
        %v1736 = vsub.f32 %v1058, %v1607
        %v1737 = vmul.f32 %v1609, 1.442695
        %v1738 = vpow.pop %v1737
        %v1739 = vmul.f32 %v1610, 1.442695
        %v1740 = vpow.pop %v1739
        %v1741 = vmul.f32 %v1611, 1.442695
        %v1742 = vpow.pop %v1741
        %v1743 = vmul.f32 %v1612, 1.442695
        %v1744 = vpow.pop %v1743
        %v1745 = vmul.f32 %v1613, 1.442695
        %v1746 = vpow.pop %v1745
        %v1747 = vmul.f32 %v1614, 1.442695
        %v1748 = vpow.pop %v1747
        %v1749 = vmul.f32 %v1615, 1.442695
        %v1750 = vpow.pop %v1749
        %v1751 = vmul.f32 %v1616, 1.442695
        %v1752 = vpow.pop %v1751
        %v1753 = vmul.f32 %v1617, 1.442695
        %v1754 = vpow.pop %v1753
        %v1755 = vmul.f32 %v1618, 1.442695
        %v1756 = vpow.pop %v1755
        %v1757 = vmul.f32 %v1619, 1.442695
        %v1758 = vpow.pop %v1757
        %v1759 = vmul.f32 %v1620, 1.442695
        %v1760 = vpow.pop %v1759
        %v1761 = vmul.f32 %v1621, 1.442695
        %v1762 = vpow.pop %v1761
        %v1763 = vmul.f32 %v1622, 1.442695
        %v1764 = vpow.pop %v1763
        %v1765 = vmul.f32 %v1623, 1.442695
        %v1766 = vpow.pop %v1765
        %v1767 = vmul.f32 %v1624, 1.442695
        %v1768 = vpow.pop %v1767
        %v1769 = vmul.f32 %v1625, 1.442695
        %v1770 = vpow.pop %v1769
        %v1771 = vmul.f32 %v1626, 1.442695
        %v1772 = vpow.pop %v1771
        %v1773 = vmul.f32 %v1627, 1.442695
        %v1774 = vpow.pop %v1773
        %v1775 = vmul.f32 %v1628, 1.442695
        %v1776 = vpow.pop %v1775
        %v1777 = vmul.f32 %v1629, 1.442695
        %v1778 = vpow.pop %v1777
        %v1779 = vmul.f32 %v1630, 1.442695
        %v1780 = vpow.pop %v1779
        %v1781 = vmul.f32 %v1631, 1.442695
        %v1782 = vpow.pop %v1781
        %v1783 = vmul.f32 %v1632, 1.442695
        %v1784 = vpow.pop %v1783
        %v1785 = vmul.f32 %v1633, 1.442695
        %v1786 = vpow.pop %v1785
        %v1787 = vmul.f32 %v1634, 1.442695
        %v1788 = vpow.pop %v1787
        %v1789 = vmul.f32 %v1635, 1.442695
        %v1790 = vpow.pop %v1789
        %v1791 = vmul.f32 %v1636, 1.442695
        %v1792 = vpow.pop %v1791
        %v1793 = vmul.f32 %v1637, 1.442695
        %v1794 = vpow.pop %v1793
        %v1795 = vmul.f32 %v1638, 1.442695
        %v1796 = vpow.pop %v1795
        %v1797 = vmul.f32 %v1639, 1.442695
        %v1798 = vpow.pop %v1797
        %v1799 = vmul.f32 %v1640, 1.442695
        %v1800 = vpow.pop %v1799
        %v1801 = vmul.f32 %v1641, 1.442695
        %v1802 = vpow.pop %v1801
        %v1803 = vmul.f32 %v1642, 1.442695
        %v1804 = vpow.pop %v1803
        %v1805 = vmul.f32 %v1643, 1.442695
        %v1806 = vpow.pop %v1805
        %v1807 = vmul.f32 %v1644, 1.442695
        %v1808 = vpow.pop %v1807
        %v1809 = vmul.f32 %v1645, 1.442695
        %v1810 = vpow.pop %v1809
        %v1811 = vmul.f32 %v1646, 1.442695
        %v1812 = vpow.pop %v1811
        %v1813 = vmul.f32 %v1647, 1.442695
        %v1814 = vpow.pop %v1813
        %v1815 = vmul.f32 %v1648, 1.442695
        %v1816 = vpow.pop %v1815
        %v1817 = vmul.f32 %v1649, 1.442695
        %v1818 = vpow.pop %v1817
        %v1819 = vmul.f32 %v1650, 1.442695
        %v1820 = vpow.pop %v1819
        %v1821 = vmul.f32 %v1651, 1.442695
        %v1822 = vpow.pop %v1821
        %v1823 = vmul.f32 %v1652, 1.442695
        %v1824 = vpow.pop %v1823
        %v1825 = vmul.f32 %v1653, 1.442695
        %v1826 = vpow.pop %v1825
        %v1827 = vmul.f32 %v1654, 1.442695
        %v1828 = vpow.pop %v1827
        %v1829 = vmul.f32 %v1655, 1.442695
        %v1830 = vpow.pop %v1829
        %v1831 = vmul.f32 %v1656, 1.442695
        %v1832 = vpow.pop %v1831
        %v1833 = vmul.f32 %v1657, 1.442695
        %v1834 = vpow.pop %v1833
        %v1835 = vmul.f32 %v1658, 1.442695
        %v1836 = vpow.pop %v1835
        %v1837 = vmul.f32 %v1659, 1.442695
        %v1838 = vpow.pop %v1837
        %v1839 = vmul.f32 %v1660, 1.442695
        %v1840 = vpow.pop %v1839
        %v1841 = vmul.f32 %v1661, 1.442695
        %v1842 = vpow.pop %v1841
        %v1843 = vmul.f32 %v1662, 1.442695
        %v1844 = vpow.pop %v1843
        %v1845 = vmul.f32 %v1663, 1.442695
        %v1846 = vpow.pop %v1845
        %v1847 = vmul.f32 %v1664, 1.442695
        %v1848 = vpow.pop %v1847
        %v1849 = vmul.f32 %v1665, 1.442695
        %v1850 = vpow.pop %v1849
        %v1851 = vmul.f32 %v1666, 1.442695
        %v1852 = vpow.pop %v1851
        %v1853 = vmul.f32 %v1667, 1.442695
        %v1854 = vpow.pop %v1853
        %v1855 = vmul.f32 %v1668, 1.442695
        %v1856 = vpow.pop %v1855
        %v1857 = vmul.f32 %v1669, 1.442695
        %v1858 = vpow.pop %v1857
        %v1859 = vmul.f32 %v1670, 1.442695
        %v1860 = vpow.pop %v1859
        %v1861 = vmul.f32 %v1671, 1.442695
        %v1862 = vpow.pop %v1861
        %v1863 = vmul.f32 %v1672, 1.442695
        %v1864 = vpow.pop %v1863
        %v1865 = vmul.f32 %v1673, 1.442695
        %v1866 = vpow.pop %v1865
        %v1867 = vmul.f32 %v1674, 1.442695
        %v1868 = vpow.pop %v1867
        %v1869 = vmul.f32 %v1675, 1.442695
        %v1870 = vpow.pop %v1869
        %v1871 = vmul.f32 %v1676, 1.442695
        %v1872 = vpow.pop %v1871
        %v1873 = vmul.f32 %v1677, 1.442695
        %v1874 = vpow.pop %v1873
        %v1875 = vmul.f32 %v1678, 1.442695
        %v1876 = vpow.pop %v1875
        %v1877 = vmul.f32 %v1679, 1.442695
        %v1878 = vpow.pop %v1877
        %v1879 = vmul.f32 %v1680, 1.442695
        %v1880 = vpow.pop %v1879
        %v1881 = vmul.f32 %v1681, 1.442695
        %v1882 = vpow.pop %v1881
        %v1883 = vmul.f32 %v1682, 1.442695
        %v1884 = vpow.pop %v1883
        %v1885 = vmul.f32 %v1683, 1.442695
        %v1886 = vpow.pop %v1885
        %v1887 = vmul.f32 %v1684, 1.442695
        %v1888 = vpow.pop %v1887
        %v1889 = vmul.f32 %v1685, 1.442695
        %v1890 = vpow.pop %v1889
        %v1891 = vmul.f32 %v1686, 1.442695
        %v1892 = vpow.pop %v1891
        %v1893 = vmul.f32 %v1687, 1.442695
        %v1894 = vpow.pop %v1893
        %v1895 = vmul.f32 %v1688, 1.442695
        %v1896 = vpow.pop %v1895
        %v1897 = vmul.f32 %v1689, 1.442695
        %v1898 = vpow.pop %v1897
        %v1899 = vmul.f32 %v1690, 1.442695
        %v1900 = vpow.pop %v1899
        %v1901 = vmul.f32 %v1691, 1.442695
        %v1902 = vpow.pop %v1901
        %v1903 = vmul.f32 %v1692, 1.442695
        %v1904 = vpow.pop %v1903
        %v1905 = vmul.f32 %v1693, 1.442695
        %v1906 = vpow.pop %v1905
        %v1907 = vmul.f32 %v1694, 1.442695
        %v1908 = vpow.pop %v1907
        %v1909 = vmul.f32 %v1695, 1.442695
        %v1910 = vpow.pop %v1909
        %v1911 = vmul.f32 %v1696, 1.442695
        %v1912 = vpow.pop %v1911
        %v1913 = vmul.f32 %v1697, 1.442695
        %v1914 = vpow.pop %v1913
        %v1915 = vmul.f32 %v1698, 1.442695
        %v1916 = vpow.pop %v1915
        %v1917 = vmul.f32 %v1699, 1.442695
        %v1918 = vpow.pop %v1917
        %v1919 = vmul.f32 %v1700, 1.442695
        %v1920 = vpow.pop %v1919
        %v1921 = vmul.f32 %v1701, 1.442695
        %v1922 = vpow.pop %v1921
        %v1923 = vmul.f32 %v1702, 1.442695
        %v1924 = vpow.pop %v1923
        %v1925 = vmul.f32 %v1703, 1.442695
        %v1926 = vpow.pop %v1925
        %v1927 = vmul.f32 %v1704, 1.442695
        %v1928 = vpow.pop %v1927
        %v1929 = vmul.f32 %v1705, 1.442695
        %v1930 = vpow.pop %v1929
        %v1931 = vmul.f32 %v1706, 1.442695
        %v1932 = vpow.pop %v1931
        %v1933 = vmul.f32 %v1707, 1.442695
        %v1934 = vpow.pop %v1933
        %v1935 = vmul.f32 %v1708, 1.442695
        %v1936 = vpow.pop %v1935
        %v1937 = vmul.f32 %v1709, 1.442695
        %v1938 = vpow.pop %v1937
        %v1939 = vmul.f32 %v1710, 1.442695
        %v1940 = vpow.pop %v1939
        %v1941 = vmul.f32 %v1711, 1.442695
        %v1942 = vpow.pop %v1941
        %v1943 = vmul.f32 %v1712, 1.442695
        %v1944 = vpow.pop %v1943
        %v1945 = vmul.f32 %v1713, 1.442695
        %v1946 = vpow.pop %v1945
        %v1947 = vmul.f32 %v1714, 1.442695
        %v1948 = vpow.pop %v1947
        %v1949 = vmul.f32 %v1715, 1.442695
        %v1950 = vpow.pop %v1949
        %v1951 = vmul.f32 %v1716, 1.442695
        %v1952 = vpow.pop %v1951
        %v1953 = vmul.f32 %v1717, 1.442695
        %v1954 = vpow.pop %v1953
        %v1955 = vmul.f32 %v1718, 1.442695
        %v1956 = vpow.pop %v1955
        %v1957 = vmul.f32 %v1719, 1.442695
        %v1958 = vpow.pop %v1957
        %v1959 = vmul.f32 %v1720, 1.442695
        %v1960 = vpow.pop %v1959
        %v1961 = vmul.f32 %v1721, 1.442695
        %v1962 = vpow.pop %v1961
        %v1963 = vmul.f32 %v1722, 1.442695
        %v1964 = vpow.pop %v1963
        %v1965 = vmul.f32 %v1723, 1.442695
        %v1966 = vpow.pop %v1965
        %v1967 = vmul.f32 %v1724, 1.442695
        %v1968 = vpow.pop %v1967
        %v1969 = vmul.f32 %v1725, 1.442695
        %v1970 = vpow.pop %v1969
        %v1971 = vmul.f32 %v1726, 1.442695
        %v1972 = vpow.pop %v1971
        %v1973 = vmul.f32 %v1727, 1.442695
        %v1974 = vpow.pop %v1973
        %v1975 = vmul.f32 %v1728, 1.442695
        %v1976 = vpow.pop %v1975
        %v1977 = vmul.f32 %v1729, 1.442695
        %v1978 = vpow.pop %v1977
        %v1979 = vmul.f32 %v1730, 1.442695
        %v1980 = vpow.pop %v1979
        %v1981 = vmul.f32 %v1731, 1.442695
        %v1982 = vpow.pop %v1981
        %v1983 = vmul.f32 %v1732, 1.442695
        %v1984 = vpow.pop %v1983
        %v1985 = vmul.f32 %v1733, 1.442695
        %v1986 = vpow.pop %v1985
        %v1987 = vmul.f32 %v1734, 1.442695
        %v1988 = vpow.pop %v1987
        %v1989 = vmul.f32 %v1735, 1.442695
        %v1990 = vpow.pop %v1989
        %v1991 = vmul.f32 %v1736, 1.442695
        %v1992 = vpow.pop %v1991
        %v1993 = vadd.f32 %v1738, %v1740
        %v1994 = vadd.f32 %v1993, %v1742
        %v1995 = vadd.f32 %v1994, %v1744
        %1996 = vadd.xlane.f32.xlu0 %v1995
        %v1997 = vpop.xlane.xlu0 %1996
        %v1998 = vadd.f32 %v1746, %v1748
        %v1999 = vadd.f32 %v1998, %v1750
        %v2000 = vadd.f32 %v1999, %v1752
        %2001 = vadd.xlane.f32.xlu0 %v2000
        %v2002 = vpop.xlane.xlu0 %2001
        %v2003 = vadd.f32 %v1754, %v1756
        %v2004 = vadd.f32 %v2003, %v1758
        %v2005 = vadd.f32 %v2004, %v1760
        %2006 = vadd.xlane.f32.xlu0 %v2005
        %v2007 = vpop.xlane.xlu0 %2006
        %v2008 = vadd.f32 %v1762, %v1764
        %v2009 = vadd.f32 %v2008, %v1766
        %v2010 = vadd.f32 %v2009, %v1768
        %2011 = vadd.xlane.f32.xlu0 %v2010
        %v2012 = vpop.xlane.xlu0 %2011
        %v2013 = vadd.f32 %v1770, %v1772
        %v2014 = vadd.f32 %v2013, %v1774
        %v2015 = vadd.f32 %v2014, %v1776
        %2016 = vadd.xlane.f32.xlu0 %v2015
        %v2017 = vpop.xlane.xlu0 %2016
        %v2018 = vadd.f32 %v1778, %v1780
        %v2019 = vadd.f32 %v2018, %v1782
        %v2020 = vadd.f32 %v2019, %v1784
        %2021 = vadd.xlane.f32.xlu0 %v2020
        %v2022 = vpop.xlane.xlu0 %2021
        %v2023 = vadd.f32 %v1786, %v1788
        %v2024 = vadd.f32 %v2023, %v1790
        %v2025 = vadd.f32 %v2024, %v1792
        %2026 = vadd.xlane.f32.xlu0 %v2025
        %v2027 = vpop.xlane.xlu0 %2026
        %v2028 = vadd.f32 %v1794, %v1796
        %v2029 = vadd.f32 %v2028, %v1798
        %v2030 = vadd.f32 %v2029, %v1800
        %2031 = vadd.xlane.f32.xlu0 %v2030
        %v2032 = vpop.xlane.xlu0 %2031
        %v2033 = vadd.f32 %v1802, %v1804
        %v2034 = vadd.f32 %v2033, %v1806
        %v2035 = vadd.f32 %v2034, %v1808
        %2036 = vadd.xlane.f32.xlu0 %v2035
        %v2037 = vpop.xlane.xlu0 %2036
        %v2038 = vadd.f32 %v1810, %v1812
        %v2039 = vadd.f32 %v2038, %v1814
        %v2040 = vadd.f32 %v2039, %v1816
        %2041 = vadd.xlane.f32.xlu0 %v2040
        %v2042 = vpop.xlane.xlu0 %2041
        %v2043 = vadd.f32 %v1818, %v1820
        %v2044 = vadd.f32 %v2043, %v1822
        %v2045 = vadd.f32 %v2044, %v1824
        %2046 = vadd.xlane.f32.xlu0 %v2045
        %v2047 = vpop.xlane.xlu0 %2046
        %v2048 = vadd.f32 %v1826, %v1828
        %v2049 = vadd.f32 %v2048, %v1830
        %v2050 = vadd.f32 %v2049, %v1832
        %2051 = vadd.xlane.f32.xlu0 %v2050
        %v2052 = vpop.xlane.xlu0 %2051
        %v2053 = vadd.f32 %v1834, %v1836
        %v2054 = vadd.f32 %v2053, %v1838
        %v2055 = vadd.f32 %v2054, %v1840
        %2056 = vadd.xlane.f32.xlu0 %v2055
        %v2057 = vpop.xlane.xlu0 %2056
        %v2058 = vadd.f32 %v1842, %v1844
        %v2059 = vadd.f32 %v2058, %v1846
        %v2060 = vadd.f32 %v2059, %v1848
        %2061 = vadd.xlane.f32.xlu0 %v2060
        %v2062 = vpop.xlane.xlu0 %2061
        %v2063 = vadd.f32 %v1850, %v1852
        %v2064 = vadd.f32 %v2063, %v1854
        %v2065 = vadd.f32 %v2064, %v1856
        %2066 = vadd.xlane.f32.xlu0 %v2065
        %v2067 = vpop.xlane.xlu0 %2066
        %v2068 = vadd.f32 %v1858, %v1860
        %v2069 = vadd.f32 %v2068, %v1862
        %v2070 = vadd.f32 %v2069, %v1864
        %2071 = vadd.xlane.f32.xlu0 %v2070
        %v2072 = vpop.xlane.xlu0 %2071
        %v2073 = vadd.f32 %v1866, %v1868
        %v2074 = vadd.f32 %v2073, %v1870
        %v2075 = vadd.f32 %v2074, %v1872
        %2076 = vadd.xlane.f32.xlu0 %v2075
        %v2077 = vpop.xlane.xlu0 %2076
        %v2078 = vadd.f32 %v1874, %v1876
        %v2079 = vadd.f32 %v2078, %v1878
        %v2080 = vadd.f32 %v2079, %v1880
        %2081 = vadd.xlane.f32.xlu0 %v2080
        %v2082 = vpop.xlane.xlu0 %2081
        %v2083 = vadd.f32 %v1882, %v1884
        %v2084 = vadd.f32 %v2083, %v1886
        %v2085 = vadd.f32 %v2084, %v1888
        %2086 = vadd.xlane.f32.xlu0 %v2085
        %v2087 = vpop.xlane.xlu0 %2086
        %v2088 = vadd.f32 %v1890, %v1892
        %v2089 = vadd.f32 %v2088, %v1894
        %v2090 = vadd.f32 %v2089, %v1896
        %2091 = vadd.xlane.f32.xlu0 %v2090
        %v2092 = vpop.xlane.xlu0 %2091
        %v2093 = vadd.f32 %v1898, %v1900
        %v2094 = vadd.f32 %v2093, %v1902
        %v2095 = vadd.f32 %v2094, %v1904
        %2096 = vadd.xlane.f32.xlu0 %v2095
        %v2097 = vpop.xlane.xlu0 %2096
        %v2098 = vadd.f32 %v1906, %v1908
        %v2099 = vadd.f32 %v2098, %v1910
        %v2100 = vadd.f32 %v2099, %v1912
        %2101 = vadd.xlane.f32.xlu0 %v2100
        %v2102 = vpop.xlane.xlu0 %2101
        %v2103 = vadd.f32 %v1914, %v1916
        %v2104 = vadd.f32 %v2103, %v1918
        %v2105 = vadd.f32 %v2104, %v1920
        %2106 = vadd.xlane.f32.xlu0 %v2105
        %v2107 = vpop.xlane.xlu0 %2106
        %v2108 = vadd.f32 %v1922, %v1924
        %v2109 = vadd.f32 %v2108, %v1926
        %v2110 = vadd.f32 %v2109, %v1928
        %2111 = vadd.xlane.f32.xlu0 %v2110
        %v2112 = vpop.xlane.xlu0 %2111
        %v2113 = vadd.f32 %v1930, %v1932
        %v2114 = vadd.f32 %v2113, %v1934
        %v2115 = vadd.f32 %v2114, %v1936
        %2116 = vadd.xlane.f32.xlu0 %v2115
        %v2117 = vpop.xlane.xlu0 %2116
        %v2118 = vadd.f32 %v1938, %v1940
        %v2119 = vadd.f32 %v2118, %v1942
        %v2120 = vadd.f32 %v2119, %v1944
        %2121 = vadd.xlane.f32.xlu0 %v2120
        %v2122 = vpop.xlane.xlu0 %2121
        %v2123 = vadd.f32 %v1946, %v1948
        %v2124 = vadd.f32 %v2123, %v1950
        %v2125 = vadd.f32 %v2124, %v1952
        %2126 = vadd.xlane.f32.xlu0 %v2125
        %v2127 = vpop.xlane.xlu0 %2126
        %v2128 = vadd.f32 %v1954, %v1956
        %v2129 = vadd.f32 %v2128, %v1958
        %v2130 = vadd.f32 %v2129, %v1960
        %2131 = vadd.xlane.f32.xlu0 %v2130
        %v2132 = vpop.xlane.xlu0 %2131
        %v2133 = vadd.f32 %v1962, %v1964
        %v2134 = vadd.f32 %v2133, %v1966
        %v2135 = vadd.f32 %v2134, %v1968
        %2136 = vadd.xlane.f32.xlu0 %v2135
        %v2137 = vpop.xlane.xlu0 %2136
        %v2138 = vadd.f32 %v1970, %v1972
        %v2139 = vadd.f32 %v2138, %v1974
        %v2140 = vadd.f32 %v2139, %v1976
        %2141 = vadd.xlane.f32.xlu0 %v2140
        %v2142 = vpop.xlane.xlu0 %2141
        %v2143 = vadd.f32 %v1978, %v1980
        %v2144 = vadd.f32 %v2143, %v1982
        %v2145 = vadd.f32 %v2144, %v1984
        %2146 = vadd.xlane.f32.xlu0 %v2145
        %v2147 = vpop.xlane.xlu0 %2146
        %v2148 = vadd.f32 %v1986, %v1988
        %v2149 = vadd.f32 %v2148, %v1990
        %v2150 = vadd.f32 %v2149, %v1992
        %2151 = vadd.xlane.f32.xlu0 %v2150
        %v2152 = vpop.xlane.xlu0 %2151
        %v2153 = vadd.f32 %v1417, %v1997
        %v2154 = vadd.f32 %v1418, %v2002
        %v2155 = vadd.f32 %v1419, %v2007
        %v2156 = vadd.f32 %v1420, %v2012
        %v2157 = vadd.f32 %v1421, %v2017
        %v2158 = vadd.f32 %v1422, %v2022
        %v2159 = vadd.f32 %v1423, %v2027
        %v2160 = vadd.f32 %v1424, %v2032
        %v2161 = vadd.f32 %v1425, %v2037
        %v2162 = vadd.f32 %v1426, %v2042
        %v2163 = vadd.f32 %v1427, %v2047
        %v2164 = vadd.f32 %v1428, %v2052
        %v2165 = vadd.f32 %v1429, %v2057
        %v2166 = vadd.f32 %v1430, %v2062
        %v2167 = vadd.f32 %v1431, %v2067
        %v2168 = vadd.f32 %v1432, %v2072
        %v2169 = vadd.f32 %v1433, %v2077
        %v2170 = vadd.f32 %v1434, %v2082
        %v2171 = vadd.f32 %v1435, %v2087
        %v2172 = vadd.f32 %v1436, %v2092
        %v2173 = vadd.f32 %v1437, %v2097
        %v2174 = vadd.f32 %v1438, %v2102
        %v2175 = vadd.f32 %v1439, %v2107
        %v2176 = vadd.f32 %v1440, %v2112
        %v2177 = vadd.f32 %v1441, %v2117
        %v2178 = vadd.f32 %v1442, %v2122
        %v2179 = vadd.f32 %v1443, %v2127
        %v2180 = vadd.f32 %v1444, %v2132
        %v2181 = vadd.f32 %v1445, %v2137
        %v2182 = vadd.f32 %v1446, %v2142
        %v2183 = vadd.f32 %v1447, %v2147
        %v2184 = vadd.f32 %v1448, %v2152
        %vm2185 = vcmask 7168
        %2186 = vst.msk [vmem:[#allocation3] sm:$0xff] %vm2185, %v2153
        %2187 = vst.msk [vmem:[#allocation3 + $0x8] sm:$0xff] %vm2185, %v2154
        %2188 = vst.msk [vmem:[#allocation3 + $0x10] sm:$0xff] %vm2185, %v2155
        %2189 = vst.msk [vmem:[#allocation3 + $0x18] sm:$0xff] %vm2185, %v2156
        %2190 = vst.msk [vmem:[#allocation3 + $0x20] sm:$0xff] %vm2185, %v2157
        %2191 = vst.msk [vmem:[#allocation3 + $0x28] sm:$0xff] %vm2185, %v2158
        %2192 = vst.msk [vmem:[#allocation3 + $0x30] sm:$0xff] %vm2185, %v2159
        %2193 = vst.msk [vmem:[#allocation3 + $0x38] sm:$0xff] %vm2185, %v2160
        %2194 = vst.msk [vmem:[#allocation3 + $0x40] sm:$0xff] %vm2185, %v2161
        %2195 = vst.msk [vmem:[#allocation3 + $0x48] sm:$0xff] %vm2185, %v2162
        %2196 = vst.msk [vmem:[#allocation3 + $0x50] sm:$0xff] %vm2185, %v2163
        %2197 = vst.msk [vmem:[#allocation3 + $0x58] sm:$0xff] %vm2185, %v2164
        %2198 = vst.msk [vmem:[#allocation3 + $0x60] sm:$0xff] %vm2185, %v2165
        %2199 = vst.msk [vmem:[#allocation3 + $0x68] sm:$0xff] %vm2185, %v2166
        %2200 = vst.msk [vmem:[#allocation3 + $0x70] sm:$0xff] %vm2185, %v2167
        %2201 = vst.msk [vmem:[#allocation3 + $0x78] sm:$0xff] %vm2185, %v2168
        %2202 = vst.msk [vmem:[#allocation3 + $0x80] sm:$0xff] %vm2185, %v2169
        %2203 = vst.msk [vmem:[#allocation3 + $0x88] sm:$0xff] %vm2185, %v2170
        %2204 = vst.msk [vmem:[#allocation3 + $0x90] sm:$0xff] %vm2185, %v2171
        %2205 = vst.msk [vmem:[#allocation3 + $0x98] sm:$0xff] %vm2185, %v2172
        %2206 = vst.msk [vmem:[#allocation3 + $0xa0] sm:$0xff] %vm2185, %v2173
        %2207 = vst.msk [vmem:[#allocation3 + $0xa8] sm:$0xff] %vm2185, %v2174
        %2208 = vst.msk [vmem:[#allocation3 + $0xb0] sm:$0xff] %vm2185, %v2175
        %2209 = vst.msk [vmem:[#allocation3 + $0xb8] sm:$0xff] %vm2185, %v2176
        %2210 = vst.msk [vmem:[#allocation3 + $0xc0] sm:$0xff] %vm2185, %v2177
        %2211 = vst.msk [vmem:[#allocation3 + $0xc8] sm:$0xff] %vm2185, %v2178
        %2212 = vst.msk [vmem:[#allocation3 + $0xd0] sm:$0xff] %vm2185, %v2179
        %2213 = vst.msk [vmem:[#allocation3 + $0xd8] sm:$0xff] %vm2185, %v2180
        %2214 = vst.msk [vmem:[#allocation3 + $0xe0] sm:$0xff] %vm2185, %v2181
        %2215 = vst.msk [vmem:[#allocation3 + $0xe8] sm:$0xff] %vm2185, %v2182
        %2216 = vst.msk [vmem:[#allocation3 + $0xf0] sm:$0xff] %vm2185, %v2183
        %2217 = vst.msk [vmem:[#allocation3 + $0xf8] sm:$0xff] %vm2185, %v2184
        %2218 = vst.msk [vmem:[#allocation2] sm:$0xff] %vm2185, %v1257
        %2219 = vst.msk [vmem:[#allocation2 + $0x8] sm:$0xff] %vm2185, %v1258
        %2220 = vst.msk [vmem:[#allocation2 + $0x10] sm:$0xff] %vm2185, %v1259
        %2221 = vst.msk [vmem:[#allocation2 + $0x18] sm:$0xff] %vm2185, %v1260
        %2222 = vst.msk [vmem:[#allocation2 + $0x20] sm:$0xff] %vm2185, %v1261
        %2223 = vst.msk [vmem:[#allocation2 + $0x28] sm:$0xff] %vm2185, %v1262
        %2224 = vst.msk [vmem:[#allocation2 + $0x30] sm:$0xff] %vm2185, %v1263
        %2225 = vst.msk [vmem:[#allocation2 + $0x38] sm:$0xff] %vm2185, %v1264
        %2226 = vst.msk [vmem:[#allocation2 + $0x40] sm:$0xff] %vm2185, %v1265
        %2227 = vst.msk [vmem:[#allocation2 + $0x48] sm:$0xff] %vm2185, %v1266
        %2228 = vst.msk [vmem:[#allocation2 + $0x50] sm:$0xff] %vm2185, %v1267
        %2229 = vst.msk [vmem:[#allocation2 + $0x58] sm:$0xff] %vm2185, %v1268
        %2230 = vst.msk [vmem:[#allocation2 + $0x60] sm:$0xff] %vm2185, %v1269
        %2231 = vst.msk [vmem:[#allocation2 + $0x68] sm:$0xff] %vm2185, %v1270
        %2232 = vst.msk [vmem:[#allocation2 + $0x70] sm:$0xff] %vm2185, %v1271
        %2233 = vst.msk [vmem:[#allocation2 + $0x78] sm:$0xff] %vm2185, %v1272
        %2234 = vst.msk [vmem:[#allocation2 + $0x80] sm:$0xff] %vm2185, %v1273
        %2235 = vst.msk [vmem:[#allocation2 + $0x88] sm:$0xff] %vm2185, %v1274
        %2236 = vst.msk [vmem:[#allocation2 + $0x90] sm:$0xff] %vm2185, %v1275
        %2237 = vst.msk [vmem:[#allocation2 + $0x98] sm:$0xff] %vm2185, %v1276
        %2238 = vst.msk [vmem:[#allocation2 + $0xa0] sm:$0xff] %vm2185, %v1277
        %2239 = vst.msk [vmem:[#allocation2 + $0xa8] sm:$0xff] %vm2185, %v1278
        %2240 = vst.msk [vmem:[#allocation2 + $0xb0] sm:$0xff] %vm2185, %v1279
        %2241 = vst.msk [vmem:[#allocation2 + $0xb8] sm:$0xff] %vm2185, %v1280
        %2242 = vst.msk [vmem:[#allocation2 + $0xc0] sm:$0xff] %vm2185, %v1281
        %2243 = vst.msk [vmem:[#allocation2 + $0xc8] sm:$0xff] %vm2185, %v1282
        %2244 = vst.msk [vmem:[#allocation2 + $0xd0] sm:$0xff] %vm2185, %v1283
        %2245 = vst.msk [vmem:[#allocation2 + $0xd8] sm:$0xff] %vm2185, %v1284
        %2246 = vst.msk [vmem:[#allocation2 + $0xe0] sm:$0xff] %vm2185, %v1285
        %2247 = vst.msk [vmem:[#allocation2 + $0xe8] sm:$0xff] %vm2185, %v1286
        %2248 = vst.msk [vmem:[#allocation2 + $0xf0] sm:$0xff] %vm2185, %v1287
        %2249 = vst.msk [vmem:[#allocation2 + $0xf8] sm:$0xff] %vm2185, %v1288
        %v2250 = vld [vmem:[%s243] sm:$0xff]
        %v2251 = vld [vmem:[%s243 + $0x8] sm:$0xff]
        %v2252 = vld [vmem:[%s243 + $0x10] sm:$0xff]
        %v2253 = vld [vmem:[%s243 + $0x18] sm:$0xff]
        %v2254 = vld [vmem:[%s243 + $0x20] sm:$0xff]
        %v2255 = vld [vmem:[%s243 + $0x28] sm:$0xff]
        %v2256 = vld [vmem:[%s243 + $0x30] sm:$0xff]
        %v2257 = vld [vmem:[%s243 + $0x38] sm:$0xff]
        %v2258 = vld [vmem:[%s243 + $0x40] sm:$0xff]
        %v2259 = vld [vmem:[%s243 + $0x48] sm:$0xff]
        %v2260 = vld [vmem:[%s243 + $0x50] sm:$0xff]
        %v2261 = vld [vmem:[%s243 + $0x58] sm:$0xff]
        %v2262 = vld [vmem:[%s243 + $0x60] sm:$0xff]
        %v2263 = vld [vmem:[%s243 + $0x68] sm:$0xff]
        %v2264 = vld [vmem:[%s243 + $0x70] sm:$0xff]
        %v2265 = vld [vmem:[%s243 + $0x78] sm:$0xff]
        %v2266 = vld [vmem:[%s243 + $0x80] sm:$0xff]
        %v2267 = vld [vmem:[%s243 + $0x88] sm:$0xff]
        %v2268 = vld [vmem:[%s243 + $0x90] sm:$0xff]
        %v2269 = vld [vmem:[%s243 + $0x98] sm:$0xff]
        %v2270 = vld [vmem:[%s243 + $0xa0] sm:$0xff]
        %v2271 = vld [vmem:[%s243 + $0xa8] sm:$0xff]
        %v2272 = vld [vmem:[%s243 + $0xb0] sm:$0xff]
        %v2273 = vld [vmem:[%s243 + $0xb8] sm:$0xff]
        %v2274 = vld [vmem:[%s243 + $0xc0] sm:$0xff]
        %v2275 = vld [vmem:[%s243 + $0xc8] sm:$0xff]
        %v2276 = vld [vmem:[%s243 + $0xd0] sm:$0xff]
        %v2277 = vld [vmem:[%s243 + $0xd8] sm:$0xff]
        %v2278 = vld [vmem:[%s243 + $0xe0] sm:$0xff]
        %v2279 = vld [vmem:[%s243 + $0xe8] sm:$0xff]
        %v2280 = vld [vmem:[%s243 + $0xf0] sm:$0xff]
        %v2281 = vld [vmem:[%s243 + $0xf8] sm:$0xff]
        %s2282 = smul.u32 %s23, 512
        %v2283 = vstv %s2282
        %v2284 = vsub.s32 %v2250, %v2283
        %v2285 = vsub.s32 %v2251, %v2283
        %v2286 = vsub.s32 %v2252, %v2283
        %v2287 = vsub.s32 %v2253, %v2283
        %v2288 = vsub.s32 %v2254, %v2283
        %v2289 = vsub.s32 %v2255, %v2283
        %v2290 = vsub.s32 %v2256, %v2283
        %v2291 = vsub.s32 %v2257, %v2283
        %v2292 = vsub.s32 %v2258, %v2283
        %v2293 = vsub.s32 %v2259, %v2283
        %v2294 = vsub.s32 %v2260, %v2283
        %v2295 = vsub.s32 %v2261, %v2283
        %v2296 = vsub.s32 %v2262, %v2283
        %v2297 = vsub.s32 %v2263, %v2283
        %v2298 = vsub.s32 %v2264, %v2283
        %v2299 = vsub.s32 %v2265, %v2283
        %v2300 = vsub.s32 %v2266, %v2283
        %v2301 = vsub.s32 %v2267, %v2283
        %v2302 = vsub.s32 %v2268, %v2283
        %v2303 = vsub.s32 %v2269, %v2283
        %v2304 = vsub.s32 %v2270, %v2283
        %v2305 = vsub.s32 %v2271, %v2283
        %v2306 = vsub.s32 %v2272, %v2283
        %v2307 = vsub.s32 %v2273, %v2283
        %v2308 = vsub.s32 %v2274, %v2283
        %v2309 = vsub.s32 %v2275, %v2283
        %v2310 = vsub.s32 %v2276, %v2283
        %v2311 = vsub.s32 %v2277, %v2283
        %v2312 = vsub.s32 %v2278, %v2283
        %v2313 = vsub.s32 %v2279, %v2283
        %v2314 = vsub.s32 %v2280, %v2283
        %v2315 = vsub.s32 %v2281, %v2283
        %v2316 = vld [vmem:[#allocation4] sm:$0xff]
        %v2317 = vld [vmem:[#allocation4 + $0x8] sm:$0xff]
        %v2318 = vld [vmem:[#allocation4 + $0x10] sm:$0xff]
        %v2319 = vld [vmem:[#allocation4 + $0x18] sm:$0xff]
        %v2320 = vld [vmem:[#allocation4 + $0x20] sm:$0xff]
        %v2321 = vld [vmem:[#allocation4 + $0x28] sm:$0xff]
        %v2322 = vld [vmem:[#allocation4 + $0x30] sm:$0xff]
        %v2323 = vld [vmem:[#allocation4 + $0x38] sm:$0xff]
        %v2324 = vld [vmem:[#allocation4 + $0x40] sm:$0xff]
        %v2325 = vld [vmem:[#allocation4 + $0x48] sm:$0xff]
        %v2326 = vld [vmem:[#allocation4 + $0x50] sm:$0xff]
        %v2327 = vld [vmem:[#allocation4 + $0x58] sm:$0xff]
        %v2328 = vld [vmem:[#allocation4 + $0x60] sm:$0xff]
        %v2329 = vld [vmem:[#allocation4 + $0x68] sm:$0xff]
        %v2330 = vld [vmem:[#allocation4 + $0x70] sm:$0xff]
        %v2331 = vld [vmem:[#allocation4 + $0x78] sm:$0xff]
        %v2332 = vld [vmem:[#allocation4 + $0x80] sm:$0xff]
        %v2333 = vld [vmem:[#allocation4 + $0x88] sm:$0xff]
        %v2334 = vld [vmem:[#allocation4 + $0x90] sm:$0xff]
        %v2335 = vld [vmem:[#allocation4 + $0x98] sm:$0xff]
        %v2336 = vld [vmem:[#allocation4 + $0xa0] sm:$0xff]
        %v2337 = vld [vmem:[#allocation4 + $0xa8] sm:$0xff]
        %v2338 = vld [vmem:[#allocation4 + $0xb0] sm:$0xff]
        %v2339 = vld [vmem:[#allocation4 + $0xb8] sm:$0xff]
        %v2340 = vld [vmem:[#allocation4 + $0xc0] sm:$0xff]
        %v2341 = vld [vmem:[#allocation4 + $0xc8] sm:$0xff]
        %v2342 = vld [vmem:[#allocation4 + $0xd0] sm:$0xff]
        %v2343 = vld [vmem:[#allocation4 + $0xd8] sm:$0xff]
        %v2344 = vld [vmem:[#allocation4 + $0xe0] sm:$0xff]
        %v2345 = vld [vmem:[#allocation4 + $0xe8] sm:$0xff]
        %v2346 = vld [vmem:[#allocation4 + $0xf0] sm:$0xff]
        %v2347 = vld [vmem:[#allocation4 + $0xf8] sm:$0xff]
        %2348 = vset.pattern.permute.xlu0 0
        %2349 = vperm.xlu0 %2348, %v2284
        %v2350 = vpop.permute.xlu0 %2349
        %2351 = vset.pattern.permute.xlu0 0
        %2352 = vperm.xlu0 %2351, %v2285
        %v2353 = vpop.permute.xlu0 %2352
        %2354 = vset.pattern.permute.xlu0 0
        %2355 = vperm.xlu0 %2354, %v2286
        %v2356 = vpop.permute.xlu0 %2355
        %2357 = vset.pattern.permute.xlu0 0
        %2358 = vperm.xlu0 %2357, %v2287
        %v2359 = vpop.permute.xlu0 %2358
        %2360 = vset.pattern.permute.xlu0 0
        %2361 = vperm.xlu0 %2360, %v2288
        %v2362 = vpop.permute.xlu0 %2361
        %2363 = vset.pattern.permute.xlu0 0
        %2364 = vperm.xlu0 %2363, %v2289
        %v2365 = vpop.permute.xlu0 %2364
        %2366 = vset.pattern.permute.xlu0 0
        %2367 = vperm.xlu0 %2366, %v2290
        %v2368 = vpop.permute.xlu0 %2367
        %2369 = vset.pattern.permute.xlu0 0
        %2370 = vperm.xlu0 %2369, %v2291
        %v2371 = vpop.permute.xlu0 %2370
        %2372 = vset.pattern.permute.xlu0 0
        %2373 = vperm.xlu0 %2372, %v2292
        %v2374 = vpop.permute.xlu0 %2373
        %2375 = vset.pattern.permute.xlu0 0
        %2376 = vperm.xlu0 %2375, %v2293
        %v2377 = vpop.permute.xlu0 %2376
        %2378 = vset.pattern.permute.xlu0 0
        %2379 = vperm.xlu0 %2378, %v2294
        %v2380 = vpop.permute.xlu0 %2379
        %2381 = vset.pattern.permute.xlu0 0
        %2382 = vperm.xlu0 %2381, %v2295
        %v2383 = vpop.permute.xlu0 %2382
        %2384 = vset.pattern.permute.xlu0 0
        %2385 = vperm.xlu0 %2384, %v2296
        %v2386 = vpop.permute.xlu0 %2385
        %2387 = vset.pattern.permute.xlu0 0
        %2388 = vperm.xlu0 %2387, %v2297
        %v2389 = vpop.permute.xlu0 %2388
        %2390 = vset.pattern.permute.xlu0 0
        %2391 = vperm.xlu0 %2390, %v2298
        %v2392 = vpop.permute.xlu0 %2391
        %2393 = vset.pattern.permute.xlu0 0
        %2394 = vperm.xlu0 %2393, %v2299
        %v2395 = vpop.permute.xlu0 %2394
        %2396 = vset.pattern.permute.xlu0 0
        %2397 = vperm.xlu0 %2396, %v2300
        %v2398 = vpop.permute.xlu0 %2397
        %2399 = vset.pattern.permute.xlu0 0
        %2400 = vperm.xlu0 %2399, %v2301
        %v2401 = vpop.permute.xlu0 %2400
        %2402 = vset.pattern.permute.xlu0 0
        %2403 = vperm.xlu0 %2402, %v2302
        %v2404 = vpop.permute.xlu0 %2403
        %2405 = vset.pattern.permute.xlu0 0
        %2406 = vperm.xlu0 %2405, %v2303
        %v2407 = vpop.permute.xlu0 %2406
        %2408 = vset.pattern.permute.xlu0 0
        %2409 = vperm.xlu0 %2408, %v2304
        %v2410 = vpop.permute.xlu0 %2409
        %2411 = vset.pattern.permute.xlu0 0
        %2412 = vperm.xlu0 %2411, %v2305
        %v2413 = vpop.permute.xlu0 %2412
        %2414 = vset.pattern.permute.xlu0 0
        %2415 = vperm.xlu0 %2414, %v2306
        %v2416 = vpop.permute.xlu0 %2415
        %2417 = vset.pattern.permute.xlu0 0
        %2418 = vperm.xlu0 %2417, %v2307
        %v2419 = vpop.permute.xlu0 %2418
        %2420 = vset.pattern.permute.xlu0 0
        %2421 = vperm.xlu0 %2420, %v2308
        %v2422 = vpop.permute.xlu0 %2421
        %2423 = vset.pattern.permute.xlu0 0
        %2424 = vperm.xlu0 %2423, %v2309
        %v2425 = vpop.permute.xlu0 %2424
        %2426 = vset.pattern.permute.xlu0 0
        %2427 = vperm.xlu0 %2426, %v2310
        %v2428 = vpop.permute.xlu0 %2427
        %2429 = vset.pattern.permute.xlu0 0
        %2430 = vperm.xlu0 %2429, %v2311
        %v2431 = vpop.permute.xlu0 %2430
        %2432 = vset.pattern.permute.xlu0 0
        %2433 = vperm.xlu0 %2432, %v2312
        %v2434 = vpop.permute.xlu0 %2433
        %2435 = vset.pattern.permute.xlu0 0
        %2436 = vperm.xlu0 %2435, %v2313
        %v2437 = vpop.permute.xlu0 %2436
        %2438 = vset.pattern.permute.xlu0 0
        %2439 = vperm.xlu0 %2438, %v2314
        %v2440 = vpop.permute.xlu0 %2439
        %2441 = vset.pattern.permute.xlu0 0
        %2442 = vperm.xlu0 %2441, %v2315
        %v2443 = vpop.permute.xlu0 %2442
        %vm2444 = vcmp.eq.s32.totalorder %v1061, %v2350
        %vm2445 = vcmp.eq.s32.totalorder %v1062, %v2350
        %vm2446 = vcmp.eq.s32.totalorder %v1063, %v2350
        %vm2447 = vcmp.eq.s32.totalorder %v1064, %v2350
        %vm2448 = vcmp.eq.s32.totalorder %v1061, %v2353
        %vm2449 = vcmp.eq.s32.totalorder %v1062, %v2353
        %vm2450 = vcmp.eq.s32.totalorder %v1063, %v2353
        %vm2451 = vcmp.eq.s32.totalorder %v1064, %v2353
        %vm2452 = vcmp.eq.s32.totalorder %v1061, %v2356
        %vm2453 = vcmp.eq.s32.totalorder %v1062, %v2356
        %vm2454 = vcmp.eq.s32.totalorder %v1063, %v2356
        %vm2455 = vcmp.eq.s32.totalorder %v1064, %v2356
        %vm2456 = vcmp.eq.s32.totalorder %v1061, %v2359
        %vm2457 = vcmp.eq.s32.totalorder %v1062, %v2359
        %vm2458 = vcmp.eq.s32.totalorder %v1063, %v2359
        %vm2459 = vcmp.eq.s32.totalorder %v1064, %v2359
        %vm2460 = vcmp.eq.s32.totalorder %v1061, %v2362
        %vm2461 = vcmp.eq.s32.totalorder %v1062, %v2362
        %vm2462 = vcmp.eq.s32.totalorder %v1063, %v2362
        %vm2463 = vcmp.eq.s32.totalorder %v1064, %v2362
        %vm2464 = vcmp.eq.s32.totalorder %v1061, %v2365
        %vm2465 = vcmp.eq.s32.totalorder %v1062, %v2365
        %vm2466 = vcmp.eq.s32.totalorder %v1063, %v2365
        %vm2467 = vcmp.eq.s32.totalorder %v1064, %v2365
        %vm2468 = vcmp.eq.s32.totalorder %v1061, %v2368
        %vm2469 = vcmp.eq.s32.totalorder %v1062, %v2368
        %vm2470 = vcmp.eq.s32.totalorder %v1063, %v2368
        %vm2471 = vcmp.eq.s32.totalorder %v1064, %v2368
        %vm2472 = vcmp.eq.s32.totalorder %v1061, %v2371
        %vm2473 = vcmp.eq.s32.totalorder %v1062, %v2371
        %vm2474 = vcmp.eq.s32.totalorder %v1063, %v2371
        %vm2475 = vcmp.eq.s32.totalorder %v1064, %v2371
        %vm2476 = vcmp.eq.s32.totalorder %v1061, %v2374
        %vm2477 = vcmp.eq.s32.totalorder %v1062, %v2374
        %vm2478 = vcmp.eq.s32.totalorder %v1063, %v2374
        %vm2479 = vcmp.eq.s32.totalorder %v1064, %v2374
        %vm2480 = vcmp.eq.s32.totalorder %v1061, %v2377
        %vm2481 = vcmp.eq.s32.totalorder %v1062, %v2377
        %vm2482 = vcmp.eq.s32.totalorder %v1063, %v2377
        %vm2483 = vcmp.eq.s32.totalorder %v1064, %v2377
        %vm2484 = vcmp.eq.s32.totalorder %v1061, %v2380
        %vm2485 = vcmp.eq.s32.totalorder %v1062, %v2380
        %vm2486 = vcmp.eq.s32.totalorder %v1063, %v2380
        %vm2487 = vcmp.eq.s32.totalorder %v1064, %v2380
        %vm2488 = vcmp.eq.s32.totalorder %v1061, %v2383
        %vm2489 = vcmp.eq.s32.totalorder %v1062, %v2383
        %vm2490 = vcmp.eq.s32.totalorder %v1063, %v2383
        %vm2491 = vcmp.eq.s32.totalorder %v1064, %v2383
        %vm2492 = vcmp.eq.s32.totalorder %v1061, %v2386
        %vm2493 = vcmp.eq.s32.totalorder %v1062, %v2386
        %vm2494 = vcmp.eq.s32.totalorder %v1063, %v2386
        %vm2495 = vcmp.eq.s32.totalorder %v1064, %v2386
        %vm2496 = vcmp.eq.s32.totalorder %v1061, %v2389
        %vm2497 = vcmp.eq.s32.totalorder %v1062, %v2389
        %vm2498 = vcmp.eq.s32.totalorder %v1063, %v2389
        %vm2499 = vcmp.eq.s32.totalorder %v1064, %v2389
        %vm2500 = vcmp.eq.s32.totalorder %v1061, %v2392
        %vm2501 = vcmp.eq.s32.totalorder %v1062, %v2392
        %vm2502 = vcmp.eq.s32.totalorder %v1063, %v2392
        %vm2503 = vcmp.eq.s32.totalorder %v1064, %v2392
        %vm2504 = vcmp.eq.s32.totalorder %v1061, %v2395
        %vm2505 = vcmp.eq.s32.totalorder %v1062, %v2395
        %vm2506 = vcmp.eq.s32.totalorder %v1063, %v2395
        %vm2507 = vcmp.eq.s32.totalorder %v1064, %v2395
        %vm2508 = vcmp.eq.s32.totalorder %v1061, %v2398
        %vm2509 = vcmp.eq.s32.totalorder %v1062, %v2398
        %vm2510 = vcmp.eq.s32.totalorder %v1063, %v2398
        %vm2511 = vcmp.eq.s32.totalorder %v1064, %v2398
        %vm2512 = vcmp.eq.s32.totalorder %v1061, %v2401
        %vm2513 = vcmp.eq.s32.totalorder %v1062, %v2401
        %vm2514 = vcmp.eq.s32.totalorder %v1063, %v2401
        %vm2515 = vcmp.eq.s32.totalorder %v1064, %v2401
        %vm2516 = vcmp.eq.s32.totalorder %v1061, %v2404
        %vm2517 = vcmp.eq.s32.totalorder %v1062, %v2404
        %vm2518 = vcmp.eq.s32.totalorder %v1063, %v2404
        %vm2519 = vcmp.eq.s32.totalorder %v1064, %v2404
        %vm2520 = vcmp.eq.s32.totalorder %v1061, %v2407
        %vm2521 = vcmp.eq.s32.totalorder %v1062, %v2407
        %vm2522 = vcmp.eq.s32.totalorder %v1063, %v2407
        %vm2523 = vcmp.eq.s32.totalorder %v1064, %v2407
        %vm2524 = vcmp.eq.s32.totalorder %v1061, %v2410
        %vm2525 = vcmp.eq.s32.totalorder %v1062, %v2410
        %vm2526 = vcmp.eq.s32.totalorder %v1063, %v2410
        %vm2527 = vcmp.eq.s32.totalorder %v1064, %v2410
        %vm2528 = vcmp.eq.s32.totalorder %v1061, %v2413
        %vm2529 = vcmp.eq.s32.totalorder %v1062, %v2413
        %vm2530 = vcmp.eq.s32.totalorder %v1063, %v2413
        %vm2531 = vcmp.eq.s32.totalorder %v1064, %v2413
        %vm2532 = vcmp.eq.s32.totalorder %v1061, %v2416
        %vm2533 = vcmp.eq.s32.totalorder %v1062, %v2416
        %vm2534 = vcmp.eq.s32.totalorder %v1063, %v2416
        %vm2535 = vcmp.eq.s32.totalorder %v1064, %v2416
        %vm2536 = vcmp.eq.s32.totalorder %v1061, %v2419
        %vm2537 = vcmp.eq.s32.totalorder %v1062, %v2419
        %vm2538 = vcmp.eq.s32.totalorder %v1063, %v2419
        %vm2539 = vcmp.eq.s32.totalorder %v1064, %v2419
        %vm2540 = vcmp.eq.s32.totalorder %v1061, %v2422
        %vm2541 = vcmp.eq.s32.totalorder %v1062, %v2422
        %vm2542 = vcmp.eq.s32.totalorder %v1063, %v2422
        %vm2543 = vcmp.eq.s32.totalorder %v1064, %v2422
        %vm2544 = vcmp.eq.s32.totalorder %v1061, %v2425
        %vm2545 = vcmp.eq.s32.totalorder %v1062, %v2425
        %vm2546 = vcmp.eq.s32.totalorder %v1063, %v2425
        %vm2547 = vcmp.eq.s32.totalorder %v1064, %v2425
        %vm2548 = vcmp.eq.s32.totalorder %v1061, %v2428
        %vm2549 = vcmp.eq.s32.totalorder %v1062, %v2428
        %vm2550 = vcmp.eq.s32.totalorder %v1063, %v2428
        %vm2551 = vcmp.eq.s32.totalorder %v1064, %v2428
        %vm2552 = vcmp.eq.s32.totalorder %v1061, %v2431
        %vm2553 = vcmp.eq.s32.totalorder %v1062, %v2431
        %vm2554 = vcmp.eq.s32.totalorder %v1063, %v2431
        %vm2555 = vcmp.eq.s32.totalorder %v1064, %v2431
        %vm2556 = vcmp.eq.s32.totalorder %v1061, %v2434
        %vm2557 = vcmp.eq.s32.totalorder %v1062, %v2434
        %vm2558 = vcmp.eq.s32.totalorder %v1063, %v2434
        %vm2559 = vcmp.eq.s32.totalorder %v1064, %v2434
        %vm2560 = vcmp.eq.s32.totalorder %v1061, %v2437
        %vm2561 = vcmp.eq.s32.totalorder %v1062, %v2437
        %vm2562 = vcmp.eq.s32.totalorder %v1063, %v2437
        %vm2563 = vcmp.eq.s32.totalorder %v1064, %v2437
        %vm2564 = vcmp.eq.s32.totalorder %v1061, %v2440
        %vm2565 = vcmp.eq.s32.totalorder %v1062, %v2440
        %vm2566 = vcmp.eq.s32.totalorder %v1063, %v2440
        %vm2567 = vcmp.eq.s32.totalorder %v1064, %v2440
        %vm2568 = vcmp.eq.s32.totalorder %v1061, %v2443
        %vm2569 = vcmp.eq.s32.totalorder %v1062, %v2443
        %vm2570 = vcmp.eq.s32.totalorder %v1063, %v2443
        %vm2571 = vcmp.eq.s32.totalorder %v1064, %v2443
        %v2572 = vsel %vm2444, %v613, 0.0
        %v2573 = vsel %vm2445, %v615, 0.0
        %v2574 = vsel %vm2446, %v870, 0.0
        %v2575 = vsel %vm2447, %v872, 0.0
        %v2576 = vsel %vm2448, %v619, 0.0
        %v2577 = vsel %vm2449, %v621, 0.0
        %v2578 = vsel %vm2450, %v876, 0.0
        %v2579 = vsel %vm2451, %v878, 0.0
        %v2580 = vsel %vm2452, %v625, 0.0
        %v2581 = vsel %vm2453, %v627, 0.0
        %v2582 = vsel %vm2454, %v882, 0.0
        %v2583 = vsel %vm2455, %v884, 0.0
        %v2584 = vsel %vm2456, %v631, 0.0
        %v2585 = vsel %vm2457, %v633, 0.0
        %v2586 = vsel %vm2458, %v888, 0.0
        %v2587 = vsel %vm2459, %v890, 0.0
        %v2588 = vsel %vm2460, %v637, 0.0
        %v2589 = vsel %vm2461, %v639, 0.0
        %v2590 = vsel %vm2462, %v894, 0.0
        %v2591 = vsel %vm2463, %v896, 0.0
        %v2592 = vsel %vm2464, %v643, 0.0
        %v2593 = vsel %vm2465, %v645, 0.0
        %v2594 = vsel %vm2466, %v900, 0.0
        %v2595 = vsel %vm2467, %v902, 0.0
        %v2596 = vsel %vm2468, %v649, 0.0
        %v2597 = vsel %vm2469, %v651, 0.0
        %v2598 = vsel %vm2470, %v906, 0.0
        %v2599 = vsel %vm2471, %v908, 0.0
        %v2600 = vsel %vm2472, %v655, 0.0
        %v2601 = vsel %vm2473, %v657, 0.0
        %v2602 = vsel %vm2474, %v912, 0.0
        %v2603 = vsel %vm2475, %v914, 0.0
        %v2604 = vsel %vm2476, %v661, 0.0
        %v2605 = vsel %vm2477, %v663, 0.0
        %v2606 = vsel %vm2478, %v918, 0.0
        %v2607 = vsel %vm2479, %v920, 0.0
        %v2608 = vsel %vm2480, %v667, 0.0
        %v2609 = vsel %vm2481, %v669, 0.0
        %v2610 = vsel %vm2482, %v924, 0.0
        %v2611 = vsel %vm2483, %v926, 0.0
        %v2612 = vsel %vm2484, %v673, 0.0
        %v2613 = vsel %vm2485, %v675, 0.0
        %v2614 = vsel %vm2486, %v930, 0.0
        %v2615 = vsel %vm2487, %v932, 0.0
        %v2616 = vsel %vm2488, %v679, 0.0
        %v2617 = vsel %vm2489, %v681, 0.0
        %v2618 = vsel %vm2490, %v936, 0.0
        %v2619 = vsel %vm2491, %v938, 0.0
        %v2620 = vsel %vm2492, %v685, 0.0
        %v2621 = vsel %vm2493, %v687, 0.0
        %v2622 = vsel %vm2494, %v942, 0.0
        %v2623 = vsel %vm2495, %v944, 0.0
        %v2624 = vsel %vm2496, %v691, 0.0
        %v2625 = vsel %vm2497, %v693, 0.0
        %v2626 = vsel %vm2498, %v948, 0.0
        %v2627 = vsel %vm2499, %v950, 0.0
        %v2628 = vsel %vm2500, %v697, 0.0
        %v2629 = vsel %vm2501, %v699, 0.0
        %v2630 = vsel %vm2502, %v954, 0.0
        %v2631 = vsel %vm2503, %v956, 0.0
        %v2632 = vsel %vm2504, %v703, 0.0
        %v2633 = vsel %vm2505, %v705, 0.0
        %v2634 = vsel %vm2506, %v960, 0.0
        %v2635 = vsel %vm2507, %v962, 0.0
        %v2636 = vsel %vm2508, %v709, 0.0
        %v2637 = vsel %vm2509, %v711, 0.0
        %v2638 = vsel %vm2510, %v966, 0.0
        %v2639 = vsel %vm2511, %v968, 0.0
        %v2640 = vsel %vm2512, %v715, 0.0
        %v2641 = vsel %vm2513, %v717, 0.0
        %v2642 = vsel %vm2514, %v972, 0.0
        %v2643 = vsel %vm2515, %v974, 0.0
        %v2644 = vsel %vm2516, %v721, 0.0
        %v2645 = vsel %vm2517, %v723, 0.0
        %v2646 = vsel %vm2518, %v978, 0.0
        %v2647 = vsel %vm2519, %v980, 0.0
        %v2648 = vsel %vm2520, %v727, 0.0
        %v2649 = vsel %vm2521, %v729, 0.0
        %v2650 = vsel %vm2522, %v984, 0.0
        %v2651 = vsel %vm2523, %v986, 0.0
        %v2652 = vsel %vm2524, %v733, 0.0
        %v2653 = vsel %vm2525, %v735, 0.0
        %v2654 = vsel %vm2526, %v990, 0.0
        %v2655 = vsel %vm2527, %v992, 0.0
        %v2656 = vsel %vm2528, %v739, 0.0
        %v2657 = vsel %vm2529, %v741, 0.0
        %v2658 = vsel %vm2530, %v996, 0.0
        %v2659 = vsel %vm2531, %v998, 0.0
        %v2660 = vsel %vm2532, %v745, 0.0
        %v2661 = vsel %vm2533, %v747, 0.0
        %v2662 = vsel %vm2534, %v1002, 0.0
        %v2663 = vsel %vm2535, %v1004, 0.0
        %v2664 = vsel %vm2536, %v751, 0.0
        %v2665 = vsel %vm2537, %v753, 0.0
        %v2666 = vsel %vm2538, %v1008, 0.0
        %v2667 = vsel %vm2539, %v1010, 0.0
        %v2668 = vsel %vm2540, %v757, 0.0
        %v2669 = vsel %vm2541, %v759, 0.0
        %v2670 = vsel %vm2542, %v1014, 0.0
        %v2671 = vsel %vm2543, %v1016, 0.0
        %v2672 = vsel %vm2544, %v763, 0.0
        %v2673 = vsel %vm2545, %v765, 0.0
        %v2674 = vsel %vm2546, %v1020, 0.0
        %v2675 = vsel %vm2547, %v1022, 0.0
        %v2676 = vsel %vm2548, %v769, 0.0
        %v2677 = vsel %vm2549, %v771, 0.0
        %v2678 = vsel %vm2550, %v1026, 0.0
        %v2679 = vsel %vm2551, %v1028, 0.0
        %v2680 = vsel %vm2552, %v775, 0.0
        %v2681 = vsel %vm2553, %v777, 0.0
        %v2682 = vsel %vm2554, %v1032, 0.0
        %v2683 = vsel %vm2555, %v1034, 0.0
        %v2684 = vsel %vm2556, %v781, 0.0
        %v2685 = vsel %vm2557, %v783, 0.0
        %v2686 = vsel %vm2558, %v1038, 0.0
        %v2687 = vsel %vm2559, %v1040, 0.0
        %v2688 = vsel %vm2560, %v787, 0.0
        %v2689 = vsel %vm2561, %v789, 0.0
        %v2690 = vsel %vm2562, %v1044, 0.0
        %v2691 = vsel %vm2563, %v1046, 0.0
        %v2692 = vsel %vm2564, %v793, 0.0
        %v2693 = vsel %vm2565, %v795, 0.0
        %v2694 = vsel %vm2566, %v1050, 0.0
        %v2695 = vsel %vm2567, %v1052, 0.0
        %v2696 = vsel %vm2568, %v799, 0.0
        %v2697 = vsel %vm2569, %v801, 0.0
        %v2698 = vsel %vm2570, %v1056, 0.0
        %v2699 = vsel %vm2571, %v1058, 0.0
        %v2700 = vadd.f32 %v2572, %v2573
        %v2701 = vadd.f32 %v2700, %v2574
        %v2702 = vadd.f32 %v2701, %v2575
        %2703 = vadd.xlane.f32.xlu0 %v2702
        %v2704 = vpop.xlane.xlu0 %2703
        %v2705 = vadd.f32 %v2576, %v2577
        %v2706 = vadd.f32 %v2705, %v2578
        %v2707 = vadd.f32 %v2706, %v2579
        %2708 = vadd.xlane.f32.xlu0 %v2707
        %v2709 = vpop.xlane.xlu0 %2708
        %v2710 = vadd.f32 %v2580, %v2581
        %v2711 = vadd.f32 %v2710, %v2582
        %v2712 = vadd.f32 %v2711, %v2583
        %2713 = vadd.xlane.f32.xlu0 %v2712
        %v2714 = vpop.xlane.xlu0 %2713
        %v2715 = vadd.f32 %v2584, %v2585
        %v2716 = vadd.f32 %v2715, %v2586
        %v2717 = vadd.f32 %v2716, %v2587
        %2718 = vadd.xlane.f32.xlu0 %v2717
        %v2719 = vpop.xlane.xlu0 %2718
        %v2720 = vadd.f32 %v2588, %v2589
        %v2721 = vadd.f32 %v2720, %v2590
        %v2722 = vadd.f32 %v2721, %v2591
        %2723 = vadd.xlane.f32.xlu0 %v2722
        %v2724 = vpop.xlane.xlu0 %2723
        %v2725 = vadd.f32 %v2592, %v2593
        %v2726 = vadd.f32 %v2725, %v2594
        %v2727 = vadd.f32 %v2726, %v2595
        %2728 = vadd.xlane.f32.xlu0 %v2727
        %v2729 = vpop.xlane.xlu0 %2728
        %v2730 = vadd.f32 %v2596, %v2597
        %v2731 = vadd.f32 %v2730, %v2598
        %v2732 = vadd.f32 %v2731, %v2599
        %2733 = vadd.xlane.f32.xlu0 %v2732
        %v2734 = vpop.xlane.xlu0 %2733
        %v2735 = vadd.f32 %v2600, %v2601
        %v2736 = vadd.f32 %v2735, %v2602
        %v2737 = vadd.f32 %v2736, %v2603
        %2738 = vadd.xlane.f32.xlu0 %v2737
        %v2739 = vpop.xlane.xlu0 %2738
        %v2740 = vadd.f32 %v2604, %v2605
        %v2741 = vadd.f32 %v2740, %v2606
        %v2742 = vadd.f32 %v2741, %v2607
        %2743 = vadd.xlane.f32.xlu0 %v2742
        %v2744 = vpop.xlane.xlu0 %2743
        %v2745 = vadd.f32 %v2608, %v2609
        %v2746 = vadd.f32 %v2745, %v2610
        %v2747 = vadd.f32 %v2746, %v2611
        %2748 = vadd.xlane.f32.xlu0 %v2747
        %v2749 = vpop.xlane.xlu0 %2748
        %v2750 = vadd.f32 %v2612, %v2613
        %v2751 = vadd.f32 %v2750, %v2614
        %v2752 = vadd.f32 %v2751, %v2615
        %2753 = vadd.xlane.f32.xlu0 %v2752
        %v2754 = vpop.xlane.xlu0 %2753
        %v2755 = vadd.f32 %v2616, %v2617
        %v2756 = vadd.f32 %v2755, %v2618
        %v2757 = vadd.f32 %v2756, %v2619
        %2758 = vadd.xlane.f32.xlu0 %v2757
        %v2759 = vpop.xlane.xlu0 %2758
        %v2760 = vadd.f32 %v2620, %v2621
        %v2761 = vadd.f32 %v2760, %v2622
        %v2762 = vadd.f32 %v2761, %v2623
        %2763 = vadd.xlane.f32.xlu0 %v2762
        %v2764 = vpop.xlane.xlu0 %2763
        %v2765 = vadd.f32 %v2624, %v2625
        %v2766 = vadd.f32 %v2765, %v2626
        %v2767 = vadd.f32 %v2766, %v2627
        %2768 = vadd.xlane.f32.xlu0 %v2767
        %v2769 = vpop.xlane.xlu0 %2768
        %v2770 = vadd.f32 %v2628, %v2629
        %v2771 = vadd.f32 %v2770, %v2630
        %v2772 = vadd.f32 %v2771, %v2631
        %2773 = vadd.xlane.f32.xlu0 %v2772
        %v2774 = vpop.xlane.xlu0 %2773
        %v2775 = vadd.f32 %v2632, %v2633
        %v2776 = vadd.f32 %v2775, %v2634
        %v2777 = vadd.f32 %v2776, %v2635
        %2778 = vadd.xlane.f32.xlu0 %v2777
        %v2779 = vpop.xlane.xlu0 %2778
        %v2780 = vadd.f32 %v2636, %v2637
        %v2781 = vadd.f32 %v2780, %v2638
        %v2782 = vadd.f32 %v2781, %v2639
        %2783 = vadd.xlane.f32.xlu0 %v2782
        %v2784 = vpop.xlane.xlu0 %2783
        %v2785 = vadd.f32 %v2640, %v2641
        %v2786 = vadd.f32 %v2785, %v2642
        %v2787 = vadd.f32 %v2786, %v2643
        %2788 = vadd.xlane.f32.xlu0 %v2787
        %v2789 = vpop.xlane.xlu0 %2788
        %v2790 = vadd.f32 %v2644, %v2645
        %v2791 = vadd.f32 %v2790, %v2646
        %v2792 = vadd.f32 %v2791, %v2647
        %2793 = vadd.xlane.f32.xlu0 %v2792
        %v2794 = vpop.xlane.xlu0 %2793
        %v2795 = vadd.f32 %v2648, %v2649
        %v2796 = vadd.f32 %v2795, %v2650
        %v2797 = vadd.f32 %v2796, %v2651
        %2798 = vadd.xlane.f32.xlu0 %v2797
        %v2799 = vpop.xlane.xlu0 %2798
        %v2800 = vadd.f32 %v2652, %v2653
        %v2801 = vadd.f32 %v2800, %v2654
        %v2802 = vadd.f32 %v2801, %v2655
        %2803 = vadd.xlane.f32.xlu0 %v2802
        %v2804 = vpop.xlane.xlu0 %2803
        %v2805 = vadd.f32 %v2656, %v2657
        %v2806 = vadd.f32 %v2805, %v2658
        %v2807 = vadd.f32 %v2806, %v2659
        %2808 = vadd.xlane.f32.xlu0 %v2807
        %v2809 = vpop.xlane.xlu0 %2808
        %v2810 = vadd.f32 %v2660, %v2661
        %v2811 = vadd.f32 %v2810, %v2662
        %v2812 = vadd.f32 %v2811, %v2663
        %2813 = vadd.xlane.f32.xlu0 %v2812
        %v2814 = vpop.xlane.xlu0 %2813
        %v2815 = vadd.f32 %v2664, %v2665
        %v2816 = vadd.f32 %v2815, %v2666
        %v2817 = vadd.f32 %v2816, %v2667
        %2818 = vadd.xlane.f32.xlu0 %v2817
        %v2819 = vpop.xlane.xlu0 %2818
        %v2820 = vadd.f32 %v2668, %v2669
        %v2821 = vadd.f32 %v2820, %v2670
        %v2822 = vadd.f32 %v2821, %v2671
        %2823 = vadd.xlane.f32.xlu0 %v2822
        %v2824 = vpop.xlane.xlu0 %2823
        %v2825 = vadd.f32 %v2672, %v2673
        %v2826 = vadd.f32 %v2825, %v2674
        %v2827 = vadd.f32 %v2826, %v2675
        %2828 = vadd.xlane.f32.xlu0 %v2827
        %v2829 = vpop.xlane.xlu0 %2828
        %v2830 = vadd.f32 %v2676, %v2677
        %v2831 = vadd.f32 %v2830, %v2678
        %v2832 = vadd.f32 %v2831, %v2679
        %2833 = vadd.xlane.f32.xlu0 %v2832
        %v2834 = vpop.xlane.xlu0 %2833
        %v2835 = vadd.f32 %v2680, %v2681
        %v2836 = vadd.f32 %v2835, %v2682
        %v2837 = vadd.f32 %v2836, %v2683
        %2838 = vadd.xlane.f32.xlu0 %v2837
        %v2839 = vpop.xlane.xlu0 %2838
        %v2840 = vadd.f32 %v2684, %v2685
        %v2841 = vadd.f32 %v2840, %v2686
        %v2842 = vadd.f32 %v2841, %v2687
        %2843 = vadd.xlane.f32.xlu0 %v2842
        %v2844 = vpop.xlane.xlu0 %2843
        %v2845 = vadd.f32 %v2688, %v2689
        %v2846 = vadd.f32 %v2845, %v2690
        %v2847 = vadd.f32 %v2846, %v2691
        %2848 = vadd.xlane.f32.xlu0 %v2847
        %v2849 = vpop.xlane.xlu0 %2848
        %v2850 = vadd.f32 %v2692, %v2693
        %v2851 = vadd.f32 %v2850, %v2694
        %v2852 = vadd.f32 %v2851, %v2695
        %2853 = vadd.xlane.f32.xlu0 %v2852
        %v2854 = vpop.xlane.xlu0 %2853
        %v2855 = vadd.f32 %v2696, %v2697
        %v2856 = vadd.f32 %v2855, %v2698
        %v2857 = vadd.f32 %v2856, %v2699
        %2858 = vadd.xlane.f32.xlu0 %v2857
        %v2859 = vpop.xlane.xlu0 %2858
        %v2860 = vadd.f32 %v2316, %v2704
        %v2861 = vadd.f32 %v2317, %v2709
        %v2862 = vadd.f32 %v2318, %v2714
        %v2863 = vadd.f32 %v2319, %v2719
        %v2864 = vadd.f32 %v2320, %v2724
        %v2865 = vadd.f32 %v2321, %v2729
        %v2866 = vadd.f32 %v2322, %v2734
        %v2867 = vadd.f32 %v2323, %v2739
        %v2868 = vadd.f32 %v2324, %v2744
        %v2869 = vadd.f32 %v2325, %v2749
        %v2870 = vadd.f32 %v2326, %v2754
        %v2871 = vadd.f32 %v2327, %v2759
        %v2872 = vadd.f32 %v2328, %v2764
        %v2873 = vadd.f32 %v2329, %v2769
        %v2874 = vadd.f32 %v2330, %v2774
        %v2875 = vadd.f32 %v2331, %v2779
        %v2876 = vadd.f32 %v2332, %v2784
        %v2877 = vadd.f32 %v2333, %v2789
        %v2878 = vadd.f32 %v2334, %v2794
        %v2879 = vadd.f32 %v2335, %v2799
        %v2880 = vadd.f32 %v2336, %v2804
        %v2881 = vadd.f32 %v2337, %v2809
        %v2882 = vadd.f32 %v2338, %v2814
        %v2883 = vadd.f32 %v2339, %v2819
        %v2884 = vadd.f32 %v2340, %v2824
        %v2885 = vadd.f32 %v2341, %v2829
        %v2886 = vadd.f32 %v2342, %v2834
        %v2887 = vadd.f32 %v2343, %v2839
        %v2888 = vadd.f32 %v2344, %v2844
        %v2889 = vadd.f32 %v2345, %v2849
        %v2890 = vadd.f32 %v2346, %v2854
        %v2891 = vadd.f32 %v2347, %v2859
        %2892 = vst.msk [vmem:[#allocation4] sm:$0xff] %vm2185, %v2860
        %2893 = vst.msk [vmem:[#allocation4 + $0x8] sm:$0xff] %vm2185, %v2861
        %2894 = vst.msk [vmem:[#allocation4 + $0x10] sm:$0xff] %vm2185, %v2862
        %2895 = vst.msk [vmem:[#allocation4 + $0x18] sm:$0xff] %vm2185, %v2863
        %2896 = vst.msk [vmem:[#allocation4 + $0x20] sm:$0xff] %vm2185, %v2864
        %2897 = vst.msk [vmem:[#allocation4 + $0x28] sm:$0xff] %vm2185, %v2865
        %2898 = vst.msk [vmem:[#allocation4 + $0x30] sm:$0xff] %vm2185, %v2866
        %2899 = vst.msk [vmem:[#allocation4 + $0x38] sm:$0xff] %vm2185, %v2867
        %2900 = vst.msk [vmem:[#allocation4 + $0x40] sm:$0xff] %vm2185, %v2868
        %2901 = vst.msk [vmem:[#allocation4 + $0x48] sm:$0xff] %vm2185, %v2869
        %2902 = vst.msk [vmem:[#allocation4 + $0x50] sm:$0xff] %vm2185, %v2870
        %2903 = vst.msk [vmem:[#allocation4 + $0x58] sm:$0xff] %vm2185, %v2871
        %2904 = vst.msk [vmem:[#allocation4 + $0x60] sm:$0xff] %vm2185, %v2872
        %2905 = vst.msk [vmem:[#allocation4 + $0x68] sm:$0xff] %vm2185, %v2873
        %2906 = vst.msk [vmem:[#allocation4 + $0x70] sm:$0xff] %vm2185, %v2874
        %2907 = vst.msk [vmem:[#allocation4 + $0x78] sm:$0xff] %vm2185, %v2875
        %2908 = vst.msk [vmem:[#allocation4 + $0x80] sm:$0xff] %vm2185, %v2876
        %2909 = vst.msk [vmem:[#allocation4 + $0x88] sm:$0xff] %vm2185, %v2877
        %2910 = vst.msk [vmem:[#allocation4 + $0x90] sm:$0xff] %vm2185, %v2878
        %2911 = vst.msk [vmem:[#allocation4 + $0x98] sm:$0xff] %vm2185, %v2879
        %2912 = vst.msk [vmem:[#allocation4 + $0xa0] sm:$0xff] %vm2185, %v2880
        %2913 = vst.msk [vmem:[#allocation4 + $0xa8] sm:$0xff] %vm2185, %v2881
        %2914 = vst.msk [vmem:[#allocation4 + $0xb0] sm:$0xff] %vm2185, %v2882
        %2915 = vst.msk [vmem:[#allocation4 + $0xb8] sm:$0xff] %vm2185, %v2883
        %2916 = vst.msk [vmem:[#allocation4 + $0xc0] sm:$0xff] %vm2185, %v2884
        %2917 = vst.msk [vmem:[#allocation4 + $0xc8] sm:$0xff] %vm2185, %v2885
        %2918 = vst.msk [vmem:[#allocation4 + $0xd0] sm:$0xff] %vm2185, %v2886
        %2919 = vst.msk [vmem:[#allocation4 + $0xd8] sm:$0xff] %vm2185, %v2887
        %2920 = vst.msk [vmem:[#allocation4 + $0xe0] sm:$0xff] %vm2185, %v2888
        %2921 = vst.msk [vmem:[#allocation4 + $0xe8] sm:$0xff] %vm2185, %v2889
        %2922 = vst.msk [vmem:[#allocation4 + $0xf0] sm:$0xff] %vm2185, %v2890
        %2923 = vst.msk [vmem:[#allocation4 + $0xf8] sm:$0xff] %vm2185, %v2891
        %p2924 = scmp.eq.s32.totalorder %s23, 3
        // Predicated region
        $region45: #{tpu_custom_call.1} parent=31 // pred_check
          %p2925 = pneg %p2924
        $region46: #{tpu_custom_call.1} parent=31 // pred_check_branch
          %2927 = sbr.rel (%p2925) target = $region48
        $region47: #{tpu_custom_call.1} parent=31 // pred_region
          %v2928 = vld [vmem:[#allocation2] sm:$0xff]
          %v2929 = vld [vmem:[#allocation2 + $0x8] sm:$0xff]
          %v2930 = vld [vmem:[#allocation2 + $0x10] sm:$0xff]
          %v2931 = vld [vmem:[#allocation2 + $0x18] sm:$0xff]
          %v2932 = vld [vmem:[#allocation2 + $0x20] sm:$0xff]
          %v2933 = vld [vmem:[#allocation2 + $0x28] sm:$0xff]
          %v2934 = vld [vmem:[#allocation2 + $0x30] sm:$0xff]
          %v2935 = vld [vmem:[#allocation2 + $0x38] sm:$0xff]
          %v2936 = vld [vmem:[#allocation2 + $0x40] sm:$0xff]
          %v2937 = vld [vmem:[#allocation2 + $0x48] sm:$0xff]
          %v2938 = vld [vmem:[#allocation2 + $0x50] sm:$0xff]
          %v2939 = vld [vmem:[#allocation2 + $0x58] sm:$0xff]
          %v2940 = vld [vmem:[#allocation2 + $0x60] sm:$0xff]
          %v2941 = vld [vmem:[#allocation2 + $0x68] sm:$0xff]
          %v2942 = vld [vmem:[#allocation2 + $0x70] sm:$0xff]
          %v2943 = vld [vmem:[#allocation2 + $0x78] sm:$0xff]
          %v2944 = vld [vmem:[#allocation2 + $0x80] sm:$0xff]
          %v2945 = vld [vmem:[#allocation2 + $0x88] sm:$0xff]
          %v2946 = vld [vmem:[#allocation2 + $0x90] sm:$0xff]
          %v2947 = vld [vmem:[#allocation2 + $0x98] sm:$0xff]
          %v2948 = vld [vmem:[#allocation2 + $0xa0] sm:$0xff]
          %v2949 = vld [vmem:[#allocation2 + $0xa8] sm:$0xff]
          %v2950 = vld [vmem:[#allocation2 + $0xb0] sm:$0xff]
          %v2951 = vld [vmem:[#allocation2 + $0xb8] sm:$0xff]
          %v2952 = vld [vmem:[#allocation2 + $0xc0] sm:$0xff]
          %v2953 = vld [vmem:[#allocation2 + $0xc8] sm:$0xff]
          %v2954 = vld [vmem:[#allocation2 + $0xd0] sm:$0xff]
          %v2955 = vld [vmem:[#allocation2 + $0xd8] sm:$0xff]
          %v2956 = vld [vmem:[#allocation2 + $0xe0] sm:$0xff]
          %v2957 = vld [vmem:[#allocation2 + $0xe8] sm:$0xff]
          %v2958 = vld [vmem:[#allocation2 + $0xf0] sm:$0xff]
          %v2959 = vld [vmem:[#allocation2 + $0xf8] sm:$0xff]
          %v2960 = vld [vmem:[#allocation3] sm:$0xff]
          %v2961 = vld [vmem:[#allocation3 + $0x8] sm:$0xff]
          %v2962 = vld [vmem:[#allocation3 + $0x10] sm:$0xff]
          %v2963 = vld [vmem:[#allocation3 + $0x18] sm:$0xff]
          %v2964 = vld [vmem:[#allocation3 + $0x20] sm:$0xff]
          %v2965 = vld [vmem:[#allocation3 + $0x28] sm:$0xff]
          %v2966 = vld [vmem:[#allocation3 + $0x30] sm:$0xff]
          %v2967 = vld [vmem:[#allocation3 + $0x38] sm:$0xff]
          %v2968 = vld [vmem:[#allocation3 + $0x40] sm:$0xff]
          %v2969 = vld [vmem:[#allocation3 + $0x48] sm:$0xff]
          %v2970 = vld [vmem:[#allocation3 + $0x50] sm:$0xff]
          %v2971 = vld [vmem:[#allocation3 + $0x58] sm:$0xff]
          %v2972 = vld [vmem:[#allocation3 + $0x60] sm:$0xff]
          %v2973 = vld [vmem:[#allocation3 + $0x68] sm:$0xff]
          %v2974 = vld [vmem:[#allocation3 + $0x70] sm:$0xff]
          %v2975 = vld [vmem:[#allocation3 + $0x78] sm:$0xff]
          %v2976 = vld [vmem:[#allocation3 + $0x80] sm:$0xff]
          %v2977 = vld [vmem:[#allocation3 + $0x88] sm:$0xff]
          %v2978 = vld [vmem:[#allocation3 + $0x90] sm:$0xff]
          %v2979 = vld [vmem:[#allocation3 + $0x98] sm:$0xff]
          %v2980 = vld [vmem:[#allocation3 + $0xa0] sm:$0xff]
          %v2981 = vld [vmem:[#allocation3 + $0xa8] sm:$0xff]
          %v2982 = vld [vmem:[#allocation3 + $0xb0] sm:$0xff]
          %v2983 = vld [vmem:[#allocation3 + $0xb8] sm:$0xff]
          %v2984 = vld [vmem:[#allocation3 + $0xc0] sm:$0xff]
          %v2985 = vld [vmem:[#allocation3 + $0xc8] sm:$0xff]
          %v2986 = vld [vmem:[#allocation3 + $0xd0] sm:$0xff]
          %v2987 = vld [vmem:[#allocation3 + $0xd8] sm:$0xff]
          %v2988 = vld [vmem:[#allocation3 + $0xe0] sm:$0xff]
          %v2989 = vld [vmem:[#allocation3 + $0xe8] sm:$0xff]
          %v2990 = vld [vmem:[#allocation3 + $0xf0] sm:$0xff]
          %v2991 = vld [vmem:[#allocation3 + $0xf8] sm:$0xff]
          %v2992 = vlog2.pop %v2960
          %v2993 = vmul.f32 %v2992, 0.6931472
          %v2994 = vlog2.pop %v2961
          %v2995 = vmul.f32 %v2994, 0.6931472
          %v2996 = vlog2.pop %v2962
          %v2997 = vmul.f32 %v2996, 0.6931472
          %v2998 = vlog2.pop %v2963
          %v2999 = vmul.f32 %v2998, 0.6931472
          %v3000 = vlog2.pop %v2964
          %v3001 = vmul.f32 %v3000, 0.6931472
          %v3002 = vlog2.pop %v2965
          %v3003 = vmul.f32 %v3002, 0.6931472
          %v3004 = vlog2.pop %v2966
          %v3005 = vmul.f32 %v3004, 0.6931472
          %v3006 = vlog2.pop %v2967
          %v3007 = vmul.f32 %v3006, 0.6931472
          %v3008 = vlog2.pop %v2968
          %v3009 = vmul.f32 %v3008, 0.6931472
          %v3010 = vlog2.pop %v2969
          %v3011 = vmul.f32 %v3010, 0.6931472
          %v3012 = vlog2.pop %v2970
          %v3013 = vmul.f32 %v3012, 0.6931472
          %v3014 = vlog2.pop %v2971
          %v3015 = vmul.f32 %v3014, 0.6931472
          %v3016 = vlog2.pop %v2972
          %v3017 = vmul.f32 %v3016, 0.6931472
          %v3018 = vlog2.pop %v2973
          %v3019 = vmul.f32 %v3018, 0.6931472
          %v3020 = vlog2.pop %v2974
          %v3021 = vmul.f32 %v3020, 0.6931472
          %v3022 = vlog2.pop %v2975
          %v3023 = vmul.f32 %v3022, 0.6931472
          %v3024 = vlog2.pop %v2976
          %v3025 = vmul.f32 %v3024, 0.6931472
          %v3026 = vlog2.pop %v2977
          %v3027 = vmul.f32 %v3026, 0.6931472
          %v3028 = vlog2.pop %v2978
          %v3029 = vmul.f32 %v3028, 0.6931472
          %v3030 = vlog2.pop %v2979
          %v3031 = vmul.f32 %v3030, 0.6931472
          %v3032 = vlog2.pop %v2980
          %v3033 = vmul.f32 %v3032, 0.6931472
          %v3034 = vlog2.pop %v2981
          %v3035 = vmul.f32 %v3034, 0.6931472
          %v3036 = vlog2.pop %v2982
          %v3037 = vmul.f32 %v3036, 0.6931472
          %v3038 = vlog2.pop %v2983
          %v3039 = vmul.f32 %v3038, 0.6931472
          %v3040 = vlog2.pop %v2984
          %v3041 = vmul.f32 %v3040, 0.6931472
          %v3042 = vlog2.pop %v2985
          %v3043 = vmul.f32 %v3042, 0.6931472
          %v3044 = vlog2.pop %v2986
          %v3045 = vmul.f32 %v3044, 0.6931472
          %v3046 = vlog2.pop %v2987
          %v3047 = vmul.f32 %v3046, 0.6931472
          %v3048 = vlog2.pop %v2988
          %v3049 = vmul.f32 %v3048, 0.6931472
          %v3050 = vlog2.pop %v2989
          %v3051 = vmul.f32 %v3050, 0.6931472
          %v3052 = vlog2.pop %v2990
          %v3053 = vmul.f32 %v3052, 0.6931472
          %v3054 = vlog2.pop %v2991
          %v3055 = vmul.f32 %v3054, 0.6931472
          %v3056 = vadd.f32 %v2928, %v2993
          %v3057 = vadd.f32 %v2929, %v2995
          %v3058 = vadd.f32 %v2930, %v2997
          %v3059 = vadd.f32 %v2931, %v2999
          %v3060 = vadd.f32 %v2932, %v3001
          %v3061 = vadd.f32 %v2933, %v3003
          %v3062 = vadd.f32 %v2934, %v3005
          %v3063 = vadd.f32 %v2935, %v3007
          %v3064 = vadd.f32 %v2936, %v3009
          %v3065 = vadd.f32 %v2937, %v3011
          %v3066 = vadd.f32 %v2938, %v3013
          %v3067 = vadd.f32 %v2939, %v3015
          %v3068 = vadd.f32 %v2940, %v3017
          %v3069 = vadd.f32 %v2941, %v3019
          %v3070 = vadd.f32 %v2942, %v3021
          %v3071 = vadd.f32 %v2943, %v3023
          %v3072 = vadd.f32 %v2944, %v3025
          %v3073 = vadd.f32 %v2945, %v3027
          %v3074 = vadd.f32 %v2946, %v3029
          %v3075 = vadd.f32 %v2947, %v3031
          %v3076 = vadd.f32 %v2948, %v3033
          %v3077 = vadd.f32 %v2949, %v3035
          %v3078 = vadd.f32 %v2950, %v3037
          %v3079 = vadd.f32 %v2951, %v3039
          %v3080 = vadd.f32 %v2952, %v3041
          %v3081 = vadd.f32 %v2953, %v3043
          %v3082 = vadd.f32 %v2954, %v3045
          %v3083 = vadd.f32 %v2955, %v3047
          %v3084 = vadd.f32 %v2956, %v3049
          %v3085 = vadd.f32 %v2957, %v3051
          %v3086 = vadd.f32 %v2958, %v3053
          %v3087 = vadd.f32 %v2959, %v3055
          %v3088 = vld [vmem:[%s243] sm:$0xff]
          %v3089 = vld [vmem:[%s243 + $0x8] sm:$0xff]
          %v3090 = vld [vmem:[%s243 + $0x10] sm:$0xff]
          %v3091 = vld [vmem:[%s243 + $0x18] sm:$0xff]
          %v3092 = vld [vmem:[%s243 + $0x20] sm:$0xff]
          %v3093 = vld [vmem:[%s243 + $0x28] sm:$0xff]
          %v3094 = vld [vmem:[%s243 + $0x30] sm:$0xff]
          %v3095 = vld [vmem:[%s243 + $0x38] sm:$0xff]
          %v3096 = vld [vmem:[%s243 + $0x40] sm:$0xff]
          %v3097 = vld [vmem:[%s243 + $0x48] sm:$0xff]
          %v3098 = vld [vmem:[%s243 + $0x50] sm:$0xff]
          %v3099 = vld [vmem:[%s243 + $0x58] sm:$0xff]
          %v3100 = vld [vmem:[%s243 + $0x60] sm:$0xff]
          %v3101 = vld [vmem:[%s243 + $0x68] sm:$0xff]
          %v3102 = vld [vmem:[%s243 + $0x70] sm:$0xff]
          %v3103 = vld [vmem:[%s243 + $0x78] sm:$0xff]
          %v3104 = vld [vmem:[%s243 + $0x80] sm:$0xff]
          %v3105 = vld [vmem:[%s243 + $0x88] sm:$0xff]
          %v3106 = vld [vmem:[%s243 + $0x90] sm:$0xff]
          %v3107 = vld [vmem:[%s243 + $0x98] sm:$0xff]
          %v3108 = vld [vmem:[%s243 + $0xa0] sm:$0xff]
          %v3109 = vld [vmem:[%s243 + $0xa8] sm:$0xff]
          %v3110 = vld [vmem:[%s243 + $0xb0] sm:$0xff]
          %v3111 = vld [vmem:[%s243 + $0xb8] sm:$0xff]
          %v3112 = vld [vmem:[%s243 + $0xc0] sm:$0xff]
          %v3113 = vld [vmem:[%s243 + $0xc8] sm:$0xff]
          %v3114 = vld [vmem:[%s243 + $0xd0] sm:$0xff]
          %v3115 = vld [vmem:[%s243 + $0xd8] sm:$0xff]
          %v3116 = vld [vmem:[%s243 + $0xe0] sm:$0xff]
          %v3117 = vld [vmem:[%s243 + $0xe8] sm:$0xff]
          %v3118 = vld [vmem:[%s243 + $0xf0] sm:$0xff]
          %v3119 = vld [vmem:[%s243 + $0xf8] sm:$0xff]
          %vm3120 = vcmp.ne.s32.totalorder %v3088, 4294967196
          %vm3121 = vcmp.ne.s32.totalorder %v3089, 4294967196
          %vm3122 = vcmp.ne.s32.totalorder %v3090, 4294967196
          %vm3123 = vcmp.ne.s32.totalorder %v3091, 4294967196
          %vm3124 = vcmp.ne.s32.totalorder %v3092, 4294967196
          %vm3125 = vcmp.ne.s32.totalorder %v3093, 4294967196
          %vm3126 = vcmp.ne.s32.totalorder %v3094, 4294967196
          %vm3127 = vcmp.ne.s32.totalorder %v3095, 4294967196
          %vm3128 = vcmp.ne.s32.totalorder %v3096, 4294967196
          %vm3129 = vcmp.ne.s32.totalorder %v3097, 4294967196
          %vm3130 = vcmp.ne.s32.totalorder %v3098, 4294967196
          %vm3131 = vcmp.ne.s32.totalorder %v3099, 4294967196
          %vm3132 = vcmp.ne.s32.totalorder %v3100, 4294967196
          %vm3133 = vcmp.ne.s32.totalorder %v3101, 4294967196
          %vm3134 = vcmp.ne.s32.totalorder %v3102, 4294967196
          %vm3135 = vcmp.ne.s32.totalorder %v3103, 4294967196
          %vm3136 = vcmp.ne.s32.totalorder %v3104, 4294967196
          %vm3137 = vcmp.ne.s32.totalorder %v3105, 4294967196
          %vm3138 = vcmp.ne.s32.totalorder %v3106, 4294967196
          %vm3139 = vcmp.ne.s32.totalorder %v3107, 4294967196
          %vm3140 = vcmp.ne.s32.totalorder %v3108, 4294967196
          %vm3141 = vcmp.ne.s32.totalorder %v3109, 4294967196
          %vm3142 = vcmp.ne.s32.totalorder %v3110, 4294967196
          %vm3143 = vcmp.ne.s32.totalorder %v3111, 4294967196
          %vm3144 = vcmp.ne.s32.totalorder %v3112, 4294967196
          %vm3145 = vcmp.ne.s32.totalorder %v3113, 4294967196
          %vm3146 = vcmp.ne.s32.totalorder %v3114, 4294967196
          %vm3147 = vcmp.ne.s32.totalorder %v3115, 4294967196
          %vm3148 = vcmp.ne.s32.totalorder %v3116, 4294967196
          %vm3149 = vcmp.ne.s32.totalorder %v3117, 4294967196
          %vm3150 = vcmp.ne.s32.totalorder %v3118, 4294967196
          %vm3151 = vcmp.ne.s32.totalorder %v3119, 4294967196
          %v3152 = vld [vmem:[#allocation4] sm:$0xff]
          %v3153 = vld [vmem:[#allocation4 + $0x8] sm:$0xff]
          %v3154 = vld [vmem:[#allocation4 + $0x10] sm:$0xff]
          %v3155 = vld [vmem:[#allocation4 + $0x18] sm:$0xff]
          %v3156 = vld [vmem:[#allocation4 + $0x20] sm:$0xff]
          %v3157 = vld [vmem:[#allocation4 + $0x28] sm:$0xff]
          %v3158 = vld [vmem:[#allocation4 + $0x30] sm:$0xff]
          %v3159 = vld [vmem:[#allocation4 + $0x38] sm:$0xff]
          %v3160 = vld [vmem:[#allocation4 + $0x40] sm:$0xff]
          %v3161 = vld [vmem:[#allocation4 + $0x48] sm:$0xff]
          %v3162 = vld [vmem:[#allocation4 + $0x50] sm:$0xff]
          %v3163 = vld [vmem:[#allocation4 + $0x58] sm:$0xff]
          %v3164 = vld [vmem:[#allocation4 + $0x60] sm:$0xff]
          %v3165 = vld [vmem:[#allocation4 + $0x68] sm:$0xff]
          %v3166 = vld [vmem:[#allocation4 + $0x70] sm:$0xff]
          %v3167 = vld [vmem:[#allocation4 + $0x78] sm:$0xff]
          %v3168 = vld [vmem:[#allocation4 + $0x80] sm:$0xff]
          %v3169 = vld [vmem:[#allocation4 + $0x88] sm:$0xff]
          %v3170 = vld [vmem:[#allocation4 + $0x90] sm:$0xff]
          %v3171 = vld [vmem:[#allocation4 + $0x98] sm:$0xff]
          %v3172 = vld [vmem:[#allocation4 + $0xa0] sm:$0xff]
          %v3173 = vld [vmem:[#allocation4 + $0xa8] sm:$0xff]
          %v3174 = vld [vmem:[#allocation4 + $0xb0] sm:$0xff]
          %v3175 = vld [vmem:[#allocation4 + $0xb8] sm:$0xff]
          %v3176 = vld [vmem:[#allocation4 + $0xc0] sm:$0xff]
          %v3177 = vld [vmem:[#allocation4 + $0xc8] sm:$0xff]
          %v3178 = vld [vmem:[#allocation4 + $0xd0] sm:$0xff]
          %v3179 = vld [vmem:[#allocation4 + $0xd8] sm:$0xff]
          %v3180 = vld [vmem:[#allocation4 + $0xe0] sm:$0xff]
          %v3181 = vld [vmem:[#allocation4 + $0xe8] sm:$0xff]
          %v3182 = vld [vmem:[#allocation4 + $0xf0] sm:$0xff]
          %v3183 = vld [vmem:[#allocation4 + $0xf8] sm:$0xff]
          %v3184 = vsub.f32 %v3056, %v3152
          %v3185 = vsub.f32 %v3057, %v3153
          %v3186 = vsub.f32 %v3058, %v3154
          %v3187 = vsub.f32 %v3059, %v3155
          %v3188 = vsub.f32 %v3060, %v3156
          %v3189 = vsub.f32 %v3061, %v3157
          %v3190 = vsub.f32 %v3062, %v3158
          %v3191 = vsub.f32 %v3063, %v3159
          %v3192 = vsub.f32 %v3064, %v3160
          %v3193 = vsub.f32 %v3065, %v3161
          %v3194 = vsub.f32 %v3066, %v3162
          %v3195 = vsub.f32 %v3067, %v3163
          %v3196 = vsub.f32 %v3068, %v3164
          %v3197 = vsub.f32 %v3069, %v3165
          %v3198 = vsub.f32 %v3070, %v3166
          %v3199 = vsub.f32 %v3071, %v3167
          %v3200 = vsub.f32 %v3072, %v3168
          %v3201 = vsub.f32 %v3073, %v3169
          %v3202 = vsub.f32 %v3074, %v3170
          %v3203 = vsub.f32 %v3075, %v3171
          %v3204 = vsub.f32 %v3076, %v3172
          %v3205 = vsub.f32 %v3077, %v3173
          %v3206 = vsub.f32 %v3078, %v3174
          %v3207 = vsub.f32 %v3079, %v3175
          %v3208 = vsub.f32 %v3080, %v3176
          %v3209 = vsub.f32 %v3081, %v3177
          %v3210 = vsub.f32 %v3082, %v3178
          %v3211 = vsub.f32 %v3083, %v3179
          %v3212 = vsub.f32 %v3084, %v3180
          %v3213 = vsub.f32 %v3085, %v3181
          %v3214 = vsub.f32 %v3086, %v3182
          %v3215 = vsub.f32 %v3087, %v3183
          %v3216 = vsel %vm3120, %v3184, 0.0
          %v3217 = vsel %vm3121, %v3185, 0.0
          %v3218 = vsel %vm3122, %v3186, 0.0
          %v3219 = vsel %vm3123, %v3187, 0.0
          %v3220 = vsel %vm3124, %v3188, 0.0
          %v3221 = vsel %vm3125, %v3189, 0.0
          %v3222 = vsel %vm3126, %v3190, 0.0
          %v3223 = vsel %vm3127, %v3191, 0.0
          %v3224 = vsel %vm3128, %v3192, 0.0
          %v3225 = vsel %vm3129, %v3193, 0.0
          %v3226 = vsel %vm3130, %v3194, 0.0
          %v3227 = vsel %vm3131, %v3195, 0.0
          %v3228 = vsel %vm3132, %v3196, 0.0
          %v3229 = vsel %vm3133, %v3197, 0.0
          %v3230 = vsel %vm3134, %v3198, 0.0
          %v3231 = vsel %vm3135, %v3199, 0.0
          %v3232 = vsel %vm3136, %v3200, 0.0
          %v3233 = vsel %vm3137, %v3201, 0.0
          %v3234 = vsel %vm3138, %v3202, 0.0
          %v3235 = vsel %vm3139, %v3203, 0.0
          %v3236 = vsel %vm3140, %v3204, 0.0
          %v3237 = vsel %vm3141, %v3205, 0.0
          %v3238 = vsel %vm3142, %v3206, 0.0
          %v3239 = vsel %vm3143, %v3207, 0.0
          %v3240 = vsel %vm3144, %v3208, 0.0
          %v3241 = vsel %vm3145, %v3209, 0.0
          %v3242 = vsel %vm3146, %v3210, 0.0
          %v3243 = vsel %vm3147, %v3211, 0.0
          %v3244 = vsel %vm3148, %v3212, 0.0
          %v3245 = vsel %vm3149, %v3213, 0.0
          %v3246 = vsel %vm3150, %v3214, 0.0
          %v3247 = vsel %vm3151, %v3215, 0.0
          %3248 = vst.msk [vmem:[%s251] sm:$0xff] %vm2185, %v3216
          %3249 = vst.msk [vmem:[%s251 + $0x8] sm:$0xff] %vm2185, %v3217
          %3250 = vst.msk [vmem:[%s251 + $0x10] sm:$0xff] %vm2185, %v3218
          %3251 = vst.msk [vmem:[%s251 + $0x18] sm:$0xff] %vm2185, %v3219
          %3252 = vst.msk [vmem:[%s251 + $0x20] sm:$0xff] %vm2185, %v3220
          %3253 = vst.msk [vmem:[%s251 + $0x28] sm:$0xff] %vm2185, %v3221
          %3254 = vst.msk [vmem:[%s251 + $0x30] sm:$0xff] %vm2185, %v3222
          %3255 = vst.msk [vmem:[%s251 + $0x38] sm:$0xff] %vm2185, %v3223
          %3256 = vst.msk [vmem:[%s251 + $0x40] sm:$0xff] %vm2185, %v3224
          %3257 = vst.msk [vmem:[%s251 + $0x48] sm:$0xff] %vm2185, %v3225
          %3258 = vst.msk [vmem:[%s251 + $0x50] sm:$0xff] %vm2185, %v3226
          %3259 = vst.msk [vmem:[%s251 + $0x58] sm:$0xff] %vm2185, %v3227
          %3260 = vst.msk [vmem:[%s251 + $0x60] sm:$0xff] %vm2185, %v3228
          %3261 = vst.msk [vmem:[%s251 + $0x68] sm:$0xff] %vm2185, %v3229
          %3262 = vst.msk [vmem:[%s251 + $0x70] sm:$0xff] %vm2185, %v3230
          %3263 = vst.msk [vmem:[%s251 + $0x78] sm:$0xff] %vm2185, %v3231
          %3264 = vst.msk [vmem:[%s251 + $0x80] sm:$0xff] %vm2185, %v3232
          %3265 = vst.msk [vmem:[%s251 + $0x88] sm:$0xff] %vm2185, %v3233
          %3266 = vst.msk [vmem:[%s251 + $0x90] sm:$0xff] %vm2185, %v3234
          %3267 = vst.msk [vmem:[%s251 + $0x98] sm:$0xff] %vm2185, %v3235
          %3268 = vst.msk [vmem:[%s251 + $0xa0] sm:$0xff] %vm2185, %v3236
          %3269 = vst.msk [vmem:[%s251 + $0xa8] sm:$0xff] %vm2185, %v3237
          %3270 = vst.msk [vmem:[%s251 + $0xb0] sm:$0xff] %vm2185, %v3238
          %3271 = vst.msk [vmem:[%s251 + $0xb8] sm:$0xff] %vm2185, %v3239
          %3272 = vst.msk [vmem:[%s251 + $0xc0] sm:$0xff] %vm2185, %v3240
          %3273 = vst.msk [vmem:[%s251 + $0xc8] sm:$0xff] %vm2185, %v3241
          %3274 = vst.msk [vmem:[%s251 + $0xd0] sm:$0xff] %vm2185, %v3242
          %3275 = vst.msk [vmem:[%s251 + $0xd8] sm:$0xff] %vm2185, %v3243
          %3276 = vst.msk [vmem:[%s251 + $0xe0] sm:$0xff] %vm2185, %v3244
          %3277 = vst.msk [vmem:[%s251 + $0xe8] sm:$0xff] %vm2185, %v3245
          %3278 = vst.msk [vmem:[%s251 + $0xf0] sm:$0xff] %vm2185, %v3246
          %3279 = vst.msk [vmem:[%s251 + $0xf8] sm:$0xff] %vm2185, %v3247
        $region48: #{tpu_custom_call.1} parent=31 // pred_fallthru
          _
        %s3280 = smul.u32 32, %s22
        %p3281 = scmp.lt.s32.totalorder %s3280, 63
        %s3282 = scalar_select %p3281, %s3280, 63
        %s3283 = smul.addr %s3282, 8
        %s3284 = scalar_lea.vmem %s3, %s3283
        // Predicated region
        $region49: #{tpu_custom_call.1} parent=31 // pred_check
          %p3285 = pneg %p126
        $region50: #{tpu_custom_call.1} parent=31 // pred_check_branch
          %3287 = sbr.rel (%p3285) target = $region52
        $region51: #{tpu_custom_call.1} parent=31 // pred_region
          %s3288 = smul.u32 32, %s22
        $region52: #{tpu_custom_call.1} parent=31 // pred_fallthru
          _
      $region32: #{tpu_custom_call.1} parent=5 // pred_fallthru
        _
      %p3289 = scmp.le.s32.totalorder 2, %s13
      // Predicated region
      $region53: #{tpu_custom_call.1} parent=5 // pred_check
        %p3290 = pneg %p3289
      $region54: #{tpu_custom_call.1} parent=5 // pred_check_branch
        %3292 = sbr.rel (%p3290) target = $region56
      $region55: #{tpu_custom_call.1} parent=5 // pred_region
        %s3293 = ssub.s32 %s13, 2
        // Predicated region
        $region57: #{tpu_custom_call.1} parent=55 // pred_check
          %p3294 = pneg %p132
        $region58: #{tpu_custom_call.1} parent=55 // pred_check_branch
          %3296 = sbr.rel (%p3294) target = $region60
        $region59: #{tpu_custom_call.1} parent=55 // pred_region
          %s3297 = smul.u32 32, %s24
          %p3298 = scmp.lt.s32.totalorder %s3297, 63
          %s3299 = scalar_select %p3298, %s3297, 63
          %s3300 = smul.addr %s3299, 8
          %s3301 = scalar_lea.vmem %s3, %s3300
        $region60: #{tpu_custom_call.1} parent=55 // pred_fallthru
          _
      $region56: #{tpu_custom_call.1} parent=5 // pred_fallthru
        _
    $region6: #{tpu_custom_call.1} parent=1 // loop_footer
      %s17 = sadd.s32 1, %s13
    $region7: #{tpu_custom_call.1} parent=1 // loop_footer_branch
      %12 = sbr.rel target = $region3
    $region8: #{tpu_custom_call.1} parent=1 // loop_exit
      _
    %3302 = vsyncpa [#allocation6], 1
    %s3303 = scalar_lea.sflag [#allocation6], 1
    %3304 = vsyncpa %s3303, 1
    %3305 = vsyncpa [#allocation8], 1
    %s3306 = scalar_lea.sflag [#allocation8], 1
    %3307 = vsyncpa %s3306, 1

// kernel: tpu_custom_call.1
$region0: #{tpu_custom_call.1}
  #allocation0 [shape = 'u32[]', space=smem, size = 0x4, offset = 0x4, fixed_abs, tag = 'smem constant byte address 0x4 - core index']
  #allocation1 [shape = 'u32[144,128]{1,0:T(1,128)}', space=vmem, size = 0x12000, scoped, tag = 'internal scratch']
  #allocation2 [shape = 'f32[256,1]{1,0:T(8,128)}', space=vmem, size = 0x20000, scoped, tag = 'scratch operand']
  #allocation3 [shape = 'f32[256,1]{1,0:T(8,128)}', space=vmem, size = 0x20000, scoped, tag = 'scratch operand']
  #allocation4 [shape = 'f32[256,1]{1,0:T(8,128)}', space=vmem, size = 0x20000, scoped, tag = 'scratch operand']
  %s0 = inlined_call_operand.vmem [shape: s32[512,1], index: 0, kind: input, shape index: {}]
  %s1 = inlined_call_operand.hbm [shape: f32[512,256], index: 1, kind: input, shape index: {}]
  %s2 = inlined_call_operand.hbm [shape: f32[2048,256], index: 2, kind: input, shape index: {}]
  %s3 = inlined_call_operand.vmem [shape: f32[512,1], index: 3, kind: output, shape index: {}]
  %s4 = sld [smem:[#allocation0]]
  $region61: #{tpu_custom_call.1} parent=0
    _
  %s6 = ssub.s32 1, %s4
  %s7 = scalar_select 0, %s6, %s4
  $region1: #{tpu_custom_call.1} parent=0
    #allocation5 [shape = 'u8[524288]{0}', space=vmem, size = 0x80000, scoped, tag = 'input window, operand 1']
    #allocation6 [shape = 's32[2]{0}', space=sflag, size = 0x8, scoped, tag = 'scoped memory for tpu_custom_call.1']
    #allocation7 [shape = 'u8[1048576]{0}', space=vmem, size = 0x100000, scoped, tag = 'input window, operand 2']
    #allocation8 [shape = 's32[2]{0}', space=sflag, size = 0x8, scoped, tag = 'scoped memory for tpu_custom_call.1']
    %8 = vsyncpa [#allocation6], 0
    %s9 = scalar_lea.sflag [#allocation6], 1
    %10 = vsyncpa %s9, 0
    %11 = vsyncpa [#allocation8], 0
    %s12 = scalar_lea.sflag [#allocation8], 1
    %13 = vsyncpa %s12, 0
    loop: start=0, step=1, limit=10
    $region2: #{tpu_custom_call.1} parent=1 // loop_pre_header
      _
    $region3: #{tpu_custom_call.1} parent=1 // loop_header
      %s15 = sphi 0, %s19
      %p16 = scmp.ge.s32.totalorder %s15, 10
      %s22 = sphi 0, %s34
      %s23 = sphi 0, %s30
      %s24 = sphi 0, %s22
      %s25 = sphi 0, %s23
      %s26 = sphi 0, %s24
      %s27 = sphi 0, %s25
      %s37 = sphi 0, %s39
      %s40 = sphi 0, %s37
      %s41 = sphi 0, %s40
      %s57 = sphi 0, %s41
      %s63 = sphi 0, %s65
      %s66 = sphi 0, %s63
      %s67 = sphi 0, %s66
      %s83 = sphi 0, %s67
      %s89 = sphi 0, %s91
      %s92 = sphi 0, %s89
      %s93 = sphi 0, %s92
      %s109 = sphi 0, %s93
      %s115 = sphi 0, %s117
      %s118 = sphi 0, %s115
      %s119 = sphi 0, %s118
      %s135 = sphi 0, %s119
    $region4: #{tpu_custom_call.1} parent=1 // loop_header_branch
      %18 = sbr.rel (%p16) target = $region8
    $region5: #{tpu_custom_call.1} parent=1 // loop_body
      %s20 = ssub.s32 %s15, 1
      %s21 = ssub.s32 %s15, 2
      %s28 = sadd.s32 1, %s23
      %p29 = scmp.ge.s32.totalorder %s28, 4
      %s30 = scalar_select %p29, 0, %s28
      %s31 = sadd.s32 1, %s22
      %s32 = scalar_select %p29, %s31, %s22
      %p33 = scmp.ge.s32.totalorder %s32, 2
      %s34 = scalar_select %p33, 0, %s32
      %s35 = ssub.s32 %s22, %s34
      %p36 = scmp.eq.s32.totalorder %s35, 0
      %s38 = sadd.s32 %s37, 1
      %s39 = scalar_select %p36, %s37, %s38
      %p42 = pneg %p36
      %p43 = scmp.eq.s32.totalorder %s15, 7
      %p44 = por %p42, %p43
      %p45 = scmp.ne.s32.totalorder %s37, %s40
      %p46 = scmp.eq.s32.totalorder %s15, 0
      %p47 = por %p45, %p46
      %p48 = scmp.ne.s32.totalorder %s37, %s40
      %p49 = scmp.eq.s32.totalorder %s20, 7
      %p50 = por %p48, %p49
      %p51 = scmp.ne.s32.totalorder %s40, %s41
      %p52 = scmp.eq.s32.totalorder %s20, 0
      %p53 = por %p51, %p52
      %p54 = scmp.ne.s32.totalorder %s40, %s41
      %p55 = scmp.eq.s32.totalorder %s21, 7
      %p56 = por %p54, %p55
      %p58 = scmp.ne.s32.totalorder %s41, %s57
      %p59 = scmp.eq.s32.totalorder %s21, 0
      %p60 = por %p58, %p59
      %s61 = ssub.s32 %s22, %s34
      %p62 = scmp.eq.s32.totalorder %s61, 0
      %s64 = sadd.s32 %s63, 1
      %s65 = scalar_select %p62, %s63, %s64
      %p68 = pneg %p62
      %p69 = scmp.eq.s32.totalorder %s15, 7
      %p70 = por %p68, %p69
      %p71 = scmp.ne.s32.totalorder %s63, %s66
      %p72 = scmp.eq.s32.totalorder %s15, 0
      %p73 = por %p71, %p72
      %p74 = scmp.ne.s32.totalorder %s63, %s66
      %p75 = scmp.eq.s32.totalorder %s20, 7
      %p76 = por %p74, %p75
      %p77 = scmp.ne.s32.totalorder %s66, %s67
      %p78 = scmp.eq.s32.totalorder %s20, 0
      %p79 = por %p77, %p78
      %p80 = scmp.ne.s32.totalorder %s66, %s67
      %p81 = scmp.eq.s32.totalorder %s21, 7
      %p82 = por %p80, %p81
      %p84 = scmp.ne.s32.totalorder %s67, %s83
      %p85 = scmp.eq.s32.totalorder %s21, 0
      %p86 = por %p84, %p85
      %s87 = ssub.s32 %s23, %s30
      %p88 = scmp.eq.s32.totalorder %s87, 0
      %s90 = sadd.s32 %s89, 1
      %s91 = scalar_select %p88, %s89, %s90
      %p94 = pneg %p88
      %p95 = scmp.eq.s32.totalorder %s15, 7
      %p96 = por %p94, %p95
      %p97 = scmp.ne.s32.totalorder %s89, %s92
      %p98 = scmp.eq.s32.totalorder %s15, 0
      %p99 = por %p97, %p98
      %p100 = scmp.ne.s32.totalorder %s89, %s92
      %p101 = scmp.eq.s32.totalorder %s20, 7
      %p102 = por %p100, %p101
      %p103 = scmp.ne.s32.totalorder %s92, %s93
      %p104 = scmp.eq.s32.totalorder %s20, 0
      %p105 = por %p103, %p104
      %p106 = scmp.ne.s32.totalorder %s92, %s93
      %p107 = scmp.eq.s32.totalorder %s21, 7
      %p108 = por %p106, %p107
      %p110 = scmp.ne.s32.totalorder %s93, %s109
      %p111 = scmp.eq.s32.totalorder %s21, 0
      %p112 = por %p110, %p111
      %s113 = ssub.s32 %s22, %s34
      %p114 = scmp.eq.s32.totalorder %s113, 0
      %s116 = sadd.s32 %s115, 1
      %s117 = scalar_select %p114, %s115, %s116
      %p120 = pneg %p114
      %p121 = scmp.eq.s32.totalorder %s15, 7
      %p122 = por %p120, %p121
      %p123 = scmp.ne.s32.totalorder %s115, %s118
      %p124 = scmp.eq.s32.totalorder %s15, 0
      %p125 = por %p123, %p124
      %p126 = scmp.ne.s32.totalorder %s115, %s118
      %p127 = scmp.eq.s32.totalorder %s20, 7
      %p128 = por %p126, %p127
      %p129 = scmp.ne.s32.totalorder %s118, %s119
      %p130 = scmp.eq.s32.totalorder %s20, 0
      %p131 = por %p129, %p130
      %p132 = scmp.ne.s32.totalorder %s118, %s119
      %p133 = scmp.eq.s32.totalorder %s21, 7
      %p134 = por %p132, %p133
      %p136 = scmp.ne.s32.totalorder %s119, %s135
      %p137 = scmp.eq.s32.totalorder %s21, 0
      %p138 = por %p136, %p137
      %p139 = scmp.le.s32.totalorder 1, %s15
      %p140 = scmp.lt.s32.totalorder %s15, 9
      %p141 = pnand %p139, %p140
      %p142 = pneg %p141
      // Predicated region
      $region9: #{tpu_custom_call.1} parent=5 // pred_check
        _
      $region10: #{tpu_custom_call.1} parent=5 // pred_check_branch
        %144 = sbr.rel (%p141) target = $region12
      $region11: #{tpu_custom_call.1} parent=5 // pred_region
        %s145 = ssub.s32 %s15, 1
      $region12: #{tpu_custom_call.1} parent=5 // pred_fallthru
        _
      %p146 = scmp.lt.s32.totalorder %s15, 8
      // Predicated region
      $region13: #{tpu_custom_call.1} parent=5 // pred_check
        %p147 = pneg %p146
      $region14: #{tpu_custom_call.1} parent=5 // pred_check_branch
        %149 = sbr.rel (%p147) target = $region16
      $region15: #{tpu_custom_call.1} parent=5 // pred_region
        // Predicated region
        $region17: #{tpu_custom_call.1} parent=15 // pred_check
          %p150 = pneg %p47
        $region18: #{tpu_custom_call.1} parent=15 // pred_check_branch
          %152 = sbr.rel (%p150) target = $region20
        $region19: #{tpu_custom_call.1} parent=15 // pred_region
          %s153 = smul.u32 32, %s22
          %p154 = scmp.lt.s32.totalorder %s153, 63
          %s155 = scalar_select %p154, %s153, 63
          %s156 = smul.addr %s155, 8
          %s157 = scalar_lea.vmem %s0, %s156
          %s158 = smul.u32 32, %s22
        $region20: #{tpu_custom_call.1} parent=15 // pred_fallthru
          _
        // Predicated region
        $region21: #{tpu_custom_call.1} parent=15 // pred_check
          %p159 = pneg %p73
        $region22: #{tpu_custom_call.1} parent=15 // pred_check_branch
          %161 = sbr.rel (%p159) target = $region24
        $region23: #{tpu_custom_call.1} parent=15 // pred_region
          %s162 = sand.u32 %s63, 1
          %s163 = scalar_lea.sflag [#allocation6], %s162
          %s164 = sand.u32 %s63, 1
          %s165 = smul.addr %s164, 512
          %s166 = scalar_lea.vmem [#allocation5], %s165
          %s167 = smul.u32 32, %s22
          %s169 = ssub.s32 8192, 8192
          %170 = vsyncadd %s163, %s169
          %s171 = smul.addr %s167, 2
          %s172 = smul.addr %s171, 128
          %s173 = scalar_lea.hbm %s1, %s172
          %s174 = sshll.u32 %s166, 4
          %s175 = int_to_ptr.vmem [resolvable:$true] %s174
          %180 = dma.hbm_to_vmem [thread:$0]  %s173, 8192, %s175, %s163, 256, 256, 16
        $region24: #{tpu_custom_call.1} parent=15 // pred_fallthru
          _
        // Predicated region
        $region25: #{tpu_custom_call.1} parent=15 // pred_check
          %p181 = pneg %p99
        $region26: #{tpu_custom_call.1} parent=15 // pred_check_branch
          %183 = sbr.rel (%p181) target = $region28
        $region27: #{tpu_custom_call.1} parent=15 // pred_region
          %s184 = sand.u32 %s89, 1
          %s185 = scalar_lea.sflag [#allocation8], %s184
          %s186 = sand.u32 %s89, 1
          %s187 = smul.addr %s186, 1024
          %s188 = scalar_lea.vmem [#allocation7], %s187
          %s189 = smul.u32 64, %s23
          %s191 = ssub.s32 16384, 16384
          %192 = vsyncadd %s185, %s191
          %s193 = smul.addr %s189, 2
          %s194 = smul.addr %s193, 128
          %s195 = scalar_lea.hbm %s2, %s194
          %s196 = sshll.u32 %s188, 4
          %s197 = int_to_ptr.vmem [resolvable:$true] %s196
          %202 = dma.hbm_to_vmem [thread:$0]  %s195, 16384, %s197, %s185, 256, 256, 16
        $region28: #{tpu_custom_call.1} parent=15 // pred_fallthru
          _
      $region16: #{tpu_custom_call.1} parent=5 // pred_fallthru
        _
      %p203 = scmp.le.s32.totalorder 1, %s15
      %p204 = scmp.lt.s32.totalorder %s15, 9
      %p205 = pnand %p203, %p204
      %p206 = pneg %p205
      // Predicated region
      $region29: #{tpu_custom_call.1} parent=5 // pred_check
        _
      $region30: #{tpu_custom_call.1} parent=5 // pred_check_branch
        %208 = sbr.rel (%p205) target = $region32
      $region31: #{tpu_custom_call.1} parent=5 // pred_region
        %s209 = ssub.s32 %s15, 1
        %s210 = sand.u32 %s66, 1
        %s211 = scalar_lea.sflag [#allocation6], %s210
        %s212 = sand.u32 %s66, 1
        %s213 = smul.addr %s212, 512
        %s214 = scalar_lea.vmem [#allocation5], %s213
        // Predicated region
        $region33: #{tpu_custom_call.1} parent=31 // pred_check
          %p215 = pneg %p79
        $region34: #{tpu_custom_call.1} parent=31 // pred_check_branch
          %217 = sbr.rel (%p215) target = $region36
        $region35: #{tpu_custom_call.1} parent=31 // pred_region
          %218 = dma.done %s211, 8192
        $region36: #{tpu_custom_call.1} parent=31 // pred_fallthru
          _
        %s219 = sand.u32 %s92, 1
        %s220 = scalar_lea.sflag [#allocation8], %s219
        %s221 = sand.u32 %s92, 1
        %s222 = smul.addr %s221, 1024
        %s223 = scalar_lea.vmem [#allocation7], %s222
        // Predicated region
        $region37: #{tpu_custom_call.1} parent=31 // pred_check
          %p224 = pneg %p105
        $region38: #{tpu_custom_call.1} parent=31 // pred_check_branch
          %226 = sbr.rel (%p224) target = $region40
        $region39: #{tpu_custom_call.1} parent=31 // pred_region
          %227 = dma.done %s220, 16384
        $region40: #{tpu_custom_call.1} parent=31 // pred_fallthru
          _
        %s228 = smul.u32 32, %s24
        %p229 = scmp.lt.s32.totalorder %s228, 63
        %s230 = scalar_select %p229, %s228, 63
        %s231 = smul.addr %s230, 8
        %s232 = scalar_lea.vmem %s0, %s231
        %p233 = pneg %p53
        %p234 = pneg %p50
        %s235 = sand.u32 %s66, 1
        %s236 = scalar_lea.sflag [#allocation6], %s235
        %s237 = sand.u32 %s66, 1
        %s238 = smul.addr %s237, 512
        %s239 = scalar_lea.vmem [#allocation5], %s238
        %p240 = pneg %p79
        %p241 = pneg %p76
        %s242 = sand.u32 %s92, 1
        %s243 = scalar_lea.sflag [#allocation8], %s242
        %s244 = sand.u32 %s92, 1
        %s245 = smul.addr %s244, 1024
        %s246 = scalar_lea.vmem [#allocation7], %s245
        %p247 = pneg %p105
        %p248 = pneg %p102
        %p249 = pneg %p131
        %p250 = pneg %p128
        %s251 = smul.u32 32, %s24
        %p252 = scmp.lt.s32.totalorder %s251, 63
        %s253 = scalar_select %p252, %s251, 63
        %s254 = smul.addr %s253, 8
        %s255 = scalar_lea.vmem %s3, %s254
        %s256 = smul.u32 32, %s24
        %p257 = scmp.lt.s32.totalorder %s256, 63
        %s258 = scalar_select %p257, %s256, 63
        %s259 = smul.addr %s258, 8
        %s260 = scalar_lea.vmem %s0, %s259
        %s261 = smul.u32 32, %s24
        %s262 = smul.u32 32, %s24
        %s263 = smul.u32 64, %s25
        %s264 = smul.u32 32, %s24
        %p265 = scmp.lt.s32.totalorder %s264, 63
        %s266 = scalar_select %p265, %s264, 63
        %s267 = smul.addr %s266, 8
        %s268 = scalar_lea.vmem %s3, %s267
        %s269 = smul.u32 32, %s24
        %p270 = scmp.eq.s32.totalorder %s25, 0
        // Predicated region
        $region41: #{tpu_custom_call.1} parent=31 // pred_check
          %p271 = pneg %p270
        $region42: #{tpu_custom_call.1} parent=31 // pred_check_branch
          %273 = sbr.rel (%p271) target = $region44
        $region43: #{tpu_custom_call.1} parent=31 // pred_region
          %vm274 = vcmask 7168
          %275 = vst.msk [vmem:[#allocation2] sm:$0xff] %vm274, -inf
          %276 = vst.msk [vmem:[#allocation2 + $0x8] sm:$0xff] %vm274, -inf
          %277 = vst.msk [vmem:[#allocation2 + $0x10] sm:$0xff] %vm274, -inf
          %278 = vst.msk [vmem:[#allocation2 + $0x18] sm:$0xff] %vm274, -inf
          %279 = vst.msk [vmem:[#allocation2 + $0x20] sm:$0xff] %vm274, -inf
          %280 = vst.msk [vmem:[#allocation2 + $0x28] sm:$0xff] %vm274, -inf
          %281 = vst.msk [vmem:[#allocation2 + $0x30] sm:$0xff] %vm274, -inf
          %282 = vst.msk [vmem:[#allocation2 + $0x38] sm:$0xff] %vm274, -inf
          %283 = vst.msk [vmem:[#allocation2 + $0x40] sm:$0xff] %vm274, -inf
          %284 = vst.msk [vmem:[#allocation2 + $0x48] sm:$0xff] %vm274, -inf
          %285 = vst.msk [vmem:[#allocation2 + $0x50] sm:$0xff] %vm274, -inf
          %286 = vst.msk [vmem:[#allocation2 + $0x58] sm:$0xff] %vm274, -inf
          %287 = vst.msk [vmem:[#allocation2 + $0x60] sm:$0xff] %vm274, -inf
          %288 = vst.msk [vmem:[#allocation2 + $0x68] sm:$0xff] %vm274, -inf
          %289 = vst.msk [vmem:[#allocation2 + $0x70] sm:$0xff] %vm274, -inf
          %290 = vst.msk [vmem:[#allocation2 + $0x78] sm:$0xff] %vm274, -inf
          %291 = vst.msk [vmem:[#allocation2 + $0x80] sm:$0xff] %vm274, -inf
          %292 = vst.msk [vmem:[#allocation2 + $0x88] sm:$0xff] %vm274, -inf
          %293 = vst.msk [vmem:[#allocation2 + $0x90] sm:$0xff] %vm274, -inf
          %294 = vst.msk [vmem:[#allocation2 + $0x98] sm:$0xff] %vm274, -inf
          %295 = vst.msk [vmem:[#allocation2 + $0xa0] sm:$0xff] %vm274, -inf
          %296 = vst.msk [vmem:[#allocation2 + $0xa8] sm:$0xff] %vm274, -inf
          %297 = vst.msk [vmem:[#allocation2 + $0xb0] sm:$0xff] %vm274, -inf
          %298 = vst.msk [vmem:[#allocation2 + $0xb8] sm:$0xff] %vm274, -inf
          %299 = vst.msk [vmem:[#allocation2 + $0xc0] sm:$0xff] %vm274, -inf
          %300 = vst.msk [vmem:[#allocation2 + $0xc8] sm:$0xff] %vm274, -inf
          %301 = vst.msk [vmem:[#allocation2 + $0xd0] sm:$0xff] %vm274, -inf
          %302 = vst.msk [vmem:[#allocation2 + $0xd8] sm:$0xff] %vm274, -inf
          %303 = vst.msk [vmem:[#allocation2 + $0xe0] sm:$0xff] %vm274, -inf
          %304 = vst.msk [vmem:[#allocation2 + $0xe8] sm:$0xff] %vm274, -inf
          %305 = vst.msk [vmem:[#allocation2 + $0xf0] sm:$0xff] %vm274, -inf
          %306 = vst.msk [vmem:[#allocation2 + $0xf8] sm:$0xff] %vm274, -inf
          %307 = vst.msk [vmem:[#allocation3] sm:$0xff] %vm274, 0.0
          %308 = vst.msk [vmem:[#allocation3 + $0x8] sm:$0xff] %vm274, 0.0
          %309 = vst.msk [vmem:[#allocation3 + $0x10] sm:$0xff] %vm274, 0.0
          %310 = vst.msk [vmem:[#allocation3 + $0x18] sm:$0xff] %vm274, 0.0
          %311 = vst.msk [vmem:[#allocation3 + $0x20] sm:$0xff] %vm274, 0.0
          %312 = vst.msk [vmem:[#allocation3 + $0x28] sm:$0xff] %vm274, 0.0
          %313 = vst.msk [vmem:[#allocation3 + $0x30] sm:$0xff] %vm274, 0.0
          %314 = vst.msk [vmem:[#allocation3 + $0x38] sm:$0xff] %vm274, 0.0
          %315 = vst.msk [vmem:[#allocation3 + $0x40] sm:$0xff] %vm274, 0.0
          %316 = vst.msk [vmem:[#allocation3 + $0x48] sm:$0xff] %vm274, 0.0
          %317 = vst.msk [vmem:[#allocation3 + $0x50] sm:$0xff] %vm274, 0.0
          %318 = vst.msk [vmem:[#allocation3 + $0x58] sm:$0xff] %vm274, 0.0
          %319 = vst.msk [vmem:[#allocation3 + $0x60] sm:$0xff] %vm274, 0.0
          %320 = vst.msk [vmem:[#allocation3 + $0x68] sm:$0xff] %vm274, 0.0
          %321 = vst.msk [vmem:[#allocation3 + $0x70] sm:$0xff] %vm274, 0.0
          %322 = vst.msk [vmem:[#allocation3 + $0x78] sm:$0xff] %vm274, 0.0
          %323 = vst.msk [vmem:[#allocation3 + $0x80] sm:$0xff] %vm274, 0.0
          %324 = vst.msk [vmem:[#allocation3 + $0x88] sm:$0xff] %vm274, 0.0
          %325 = vst.msk [vmem:[#allocation3 + $0x90] sm:$0xff] %vm274, 0.0
          %326 = vst.msk [vmem:[#allocation3 + $0x98] sm:$0xff] %vm274, 0.0
          %327 = vst.msk [vmem:[#allocation3 + $0xa0] sm:$0xff] %vm274, 0.0
          %328 = vst.msk [vmem:[#allocation3 + $0xa8] sm:$0xff] %vm274, 0.0
          %329 = vst.msk [vmem:[#allocation3 + $0xb0] sm:$0xff] %vm274, 0.0
          %330 = vst.msk [vmem:[#allocation3 + $0xb8] sm:$0xff] %vm274, 0.0
          %331 = vst.msk [vmem:[#allocation3 + $0xc0] sm:$0xff] %vm274, 0.0
          %332 = vst.msk [vmem:[#allocation3 + $0xc8] sm:$0xff] %vm274, 0.0
          %333 = vst.msk [vmem:[#allocation3 + $0xd0] sm:$0xff] %vm274, 0.0
          %334 = vst.msk [vmem:[#allocation3 + $0xd8] sm:$0xff] %vm274, 0.0
          %335 = vst.msk [vmem:[#allocation3 + $0xe0] sm:$0xff] %vm274, 0.0
          %336 = vst.msk [vmem:[#allocation3 + $0xe8] sm:$0xff] %vm274, 0.0
          %337 = vst.msk [vmem:[#allocation3 + $0xf0] sm:$0xff] %vm274, 0.0
          %338 = vst.msk [vmem:[#allocation3 + $0xf8] sm:$0xff] %vm274, 0.0
          %339 = vst.msk [vmem:[#allocation4] sm:$0xff] %vm274, 0.0
          %340 = vst.msk [vmem:[#allocation4 + $0x8] sm:$0xff] %vm274, 0.0
          %341 = vst.msk [vmem:[#allocation4 + $0x10] sm:$0xff] %vm274, 0.0
          %342 = vst.msk [vmem:[#allocation4 + $0x18] sm:$0xff] %vm274, 0.0
          %343 = vst.msk [vmem:[#allocation4 + $0x20] sm:$0xff] %vm274, 0.0
          %344 = vst.msk [vmem:[#allocation4 + $0x28] sm:$0xff] %vm274, 0.0
          %345 = vst.msk [vmem:[#allocation4 + $0x30] sm:$0xff] %vm274, 0.0
          %346 = vst.msk [vmem:[#allocation4 + $0x38] sm:$0xff] %vm274, 0.0
          %347 = vst.msk [vmem:[#allocation4 + $0x40] sm:$0xff] %vm274, 0.0
          %348 = vst.msk [vmem:[#allocation4 + $0x48] sm:$0xff] %vm274, 0.0
          %349 = vst.msk [vmem:[#allocation4 + $0x50] sm:$0xff] %vm274, 0.0
          %350 = vst.msk [vmem:[#allocation4 + $0x58] sm:$0xff] %vm274, 0.0
          %351 = vst.msk [vmem:[#allocation4 + $0x60] sm:$0xff] %vm274, 0.0
          %352 = vst.msk [vmem:[#allocation4 + $0x68] sm:$0xff] %vm274, 0.0
          %353 = vst.msk [vmem:[#allocation4 + $0x70] sm:$0xff] %vm274, 0.0
          %354 = vst.msk [vmem:[#allocation4 + $0x78] sm:$0xff] %vm274, 0.0
          %355 = vst.msk [vmem:[#allocation4 + $0x80] sm:$0xff] %vm274, 0.0
          %356 = vst.msk [vmem:[#allocation4 + $0x88] sm:$0xff] %vm274, 0.0
          %357 = vst.msk [vmem:[#allocation4 + $0x90] sm:$0xff] %vm274, 0.0
          %358 = vst.msk [vmem:[#allocation4 + $0x98] sm:$0xff] %vm274, 0.0
          %359 = vst.msk [vmem:[#allocation4 + $0xa0] sm:$0xff] %vm274, 0.0
          %360 = vst.msk [vmem:[#allocation4 + $0xa8] sm:$0xff] %vm274, 0.0
          %361 = vst.msk [vmem:[#allocation4 + $0xb0] sm:$0xff] %vm274, 0.0
          %362 = vst.msk [vmem:[#allocation4 + $0xb8] sm:$0xff] %vm274, 0.0
          %363 = vst.msk [vmem:[#allocation4 + $0xc0] sm:$0xff] %vm274, 0.0
          %364 = vst.msk [vmem:[#allocation4 + $0xc8] sm:$0xff] %vm274, 0.0
          %365 = vst.msk [vmem:[#allocation4 + $0xd0] sm:$0xff] %vm274, 0.0
          %366 = vst.msk [vmem:[#allocation4 + $0xd8] sm:$0xff] %vm274, 0.0
          %367 = vst.msk [vmem:[#allocation4 + $0xe0] sm:$0xff] %vm274, 0.0
          %368 = vst.msk [vmem:[#allocation4 + $0xe8] sm:$0xff] %vm274, 0.0
          %369 = vst.msk [vmem:[#allocation4 + $0xf0] sm:$0xff] %vm274, 0.0
          %370 = vst.msk [vmem:[#allocation4 + $0xf8] sm:$0xff] %vm274, 0.0
        $region44: #{tpu_custom_call.1} parent=31 // pred_fallthru
          _
        %v371 = vld [vmem:[%s214] sm:$0xff]
        %v372 = vld [vmem:[%s214 + $0x8] sm:$0xff]
        %v373 = vld [vmem:[%s214 + $0x10] sm:$0xff]
        %v374 = vld [vmem:[%s214 + $0x18] sm:$0xff]
        %v375 = vld [vmem:[%s214 + $0x20] sm:$0xff]
        %v376 = vld [vmem:[%s214 + $0x28] sm:$0xff]
        %v377 = vld [vmem:[%s214 + $0x30] sm:$0xff]
        %v378 = vld [vmem:[%s214 + $0x38] sm:$0xff]
        %v379 = vld [vmem:[%s214 + $0x40] sm:$0xff]
        %v380 = vld [vmem:[%s214 + $0x48] sm:$0xff]
        %v381 = vld [vmem:[%s214 + $0x50] sm:$0xff]
        %v382 = vld [vmem:[%s214 + $0x58] sm:$0xff]
        %v383 = vld [vmem:[%s214 + $0x60] sm:$0xff]
        %v384 = vld [vmem:[%s214 + $0x68] sm:$0xff]
        %v385 = vld [vmem:[%s214 + $0x70] sm:$0xff]
        %v386 = vld [vmem:[%s214 + $0x78] sm:$0xff]
        %v387 = vld [vmem:[%s214 + $0x80] sm:$0xff]
        %v388 = vld [vmem:[%s214 + $0x88] sm:$0xff]
        %v389 = vld [vmem:[%s214 + $0x90] sm:$0xff]
        %v390 = vld [vmem:[%s214 + $0x98] sm:$0xff]
        %v391 = vld [vmem:[%s214 + $0xa0] sm:$0xff]
        %v392 = vld [vmem:[%s214 + $0xa8] sm:$0xff]
        %v393 = vld [vmem:[%s214 + $0xb0] sm:$0xff]
        %v394 = vld [vmem:[%s214 + $0xb8] sm:$0xff]
        %v395 = vld [vmem:[%s214 + $0xc0] sm:$0xff]
        %v396 = vld [vmem:[%s214 + $0xc8] sm:$0xff]
        %v397 = vld [vmem:[%s214 + $0xd0] sm:$0xff]
        %v398 = vld [vmem:[%s214 + $0xd8] sm:$0xff]
        %v399 = vld [vmem:[%s214 + $0xe0] sm:$0xff]
        %v400 = vld [vmem:[%s214 + $0xe8] sm:$0xff]
        %v401 = vld [vmem:[%s214 + $0xf0] sm:$0xff]
        %v402 = vld [vmem:[%s214 + $0xf8] sm:$0xff]
        %v403 = vld [vmem:[%s214 + $0x100] sm:$0xff]
        %v404 = vld [vmem:[%s214 + $0x108] sm:$0xff]
        %v405 = vld [vmem:[%s214 + $0x110] sm:$0xff]
        %v406 = vld [vmem:[%s214 + $0x118] sm:$0xff]
        %v407 = vld [vmem:[%s214 + $0x120] sm:$0xff]
        %v408 = vld [vmem:[%s214 + $0x128] sm:$0xff]
        %v409 = vld [vmem:[%s214 + $0x130] sm:$0xff]
        %v410 = vld [vmem:[%s214 + $0x138] sm:$0xff]
        %v411 = vld [vmem:[%s214 + $0x140] sm:$0xff]
        %v412 = vld [vmem:[%s214 + $0x148] sm:$0xff]
        %v413 = vld [vmem:[%s214 + $0x150] sm:$0xff]
        %v414 = vld [vmem:[%s214 + $0x158] sm:$0xff]
        %v415 = vld [vmem:[%s214 + $0x160] sm:$0xff]
        %v416 = vld [vmem:[%s214 + $0x168] sm:$0xff]
        %v417 = vld [vmem:[%s214 + $0x170] sm:$0xff]
        %v418 = vld [vmem:[%s214 + $0x178] sm:$0xff]
        %v419 = vld [vmem:[%s214 + $0x180] sm:$0xff]
        %v420 = vld [vmem:[%s214 + $0x188] sm:$0xff]
        %v421 = vld [vmem:[%s214 + $0x190] sm:$0xff]
        %v422 = vld [vmem:[%s214 + $0x198] sm:$0xff]
        %v423 = vld [vmem:[%s214 + $0x1a0] sm:$0xff]
        %v424 = vld [vmem:[%s214 + $0x1a8] sm:$0xff]
        %v425 = vld [vmem:[%s214 + $0x1b0] sm:$0xff]
        %v426 = vld [vmem:[%s214 + $0x1b8] sm:$0xff]
        %v427 = vld [vmem:[%s214 + $0x1c0] sm:$0xff]
        %v428 = vld [vmem:[%s214 + $0x1c8] sm:$0xff]
        %v429 = vld [vmem:[%s214 + $0x1d0] sm:$0xff]
        %v430 = vld [vmem:[%s214 + $0x1d8] sm:$0xff]
        %v431 = vld [vmem:[%s214 + $0x1e0] sm:$0xff]
        %v432 = vld [vmem:[%s214 + $0x1e8] sm:$0xff]
        %v433 = vld [vmem:[%s214 + $0x1f0] sm:$0xff]
        %v434 = vld [vmem:[%s214 + $0x1f8] sm:$0xff]
        %v435 = vld [vmem:[%s223] sm:$0xff]
        %v436 = vld [vmem:[%s223 + $0x8] sm:$0xff]
        %v437 = vld [vmem:[%s223 + $0x10] sm:$0xff]
        %v438 = vld [vmem:[%s223 + $0x18] sm:$0xff]
        %v439 = vld [vmem:[%s223 + $0x20] sm:$0xff]
        %v440 = vld [vmem:[%s223 + $0x28] sm:$0xff]
        %v441 = vld [vmem:[%s223 + $0x30] sm:$0xff]
        %v442 = vld [vmem:[%s223 + $0x38] sm:$0xff]
        %v443 = vld [vmem:[%s223 + $0x40] sm:$0xff]
        %v444 = vld [vmem:[%s223 + $0x48] sm:$0xff]
        %v445 = vld [vmem:[%s223 + $0x50] sm:$0xff]
        %v446 = vld [vmem:[%s223 + $0x58] sm:$0xff]
        %v447 = vld [vmem:[%s223 + $0x60] sm:$0xff]
        %v448 = vld [vmem:[%s223 + $0x68] sm:$0xff]
        %v449 = vld [vmem:[%s223 + $0x70] sm:$0xff]
        %v450 = vld [vmem:[%s223 + $0x78] sm:$0xff]
        %v451 = vld [vmem:[%s223 + $0x80] sm:$0xff]
        %v452 = vld [vmem:[%s223 + $0x88] sm:$0xff]
        %v453 = vld [vmem:[%s223 + $0x90] sm:$0xff]
        %v454 = vld [vmem:[%s223 + $0x98] sm:$0xff]
        %v455 = vld [vmem:[%s223 + $0xa0] sm:$0xff]
        %v456 = vld [vmem:[%s223 + $0xa8] sm:$0xff]
        %v457 = vld [vmem:[%s223 + $0xb0] sm:$0xff]
        %v458 = vld [vmem:[%s223 + $0xb8] sm:$0xff]
        %v459 = vld [vmem:[%s223 + $0xc0] sm:$0xff]
        %v460 = vld [vmem:[%s223 + $0xc8] sm:$0xff]
        %v461 = vld [vmem:[%s223 + $0xd0] sm:$0xff]
        %v462 = vld [vmem:[%s223 + $0xd8] sm:$0xff]
        %v463 = vld [vmem:[%s223 + $0xe0] sm:$0xff]
        %v464 = vld [vmem:[%s223 + $0xe8] sm:$0xff]
        %v465 = vld [vmem:[%s223 + $0xf0] sm:$0xff]
        %v466 = vld [vmem:[%s223 + $0xf8] sm:$0xff]
        %v467 = vld [vmem:[%s223 + $0x100] sm:$0xff]
        %v468 = vld [vmem:[%s223 + $0x108] sm:$0xff]
        %v469 = vld [vmem:[%s223 + $0x110] sm:$0xff]
        %v470 = vld [vmem:[%s223 + $0x118] sm:$0xff]
        %v471 = vld [vmem:[%s223 + $0x120] sm:$0xff]
        %v472 = vld [vmem:[%s223 + $0x128] sm:$0xff]
        %v473 = vld [vmem:[%s223 + $0x130] sm:$0xff]
        %v474 = vld [vmem:[%s223 + $0x138] sm:$0xff]
        %v475 = vld [vmem:[%s223 + $0x140] sm:$0xff]
        %v476 = vld [vmem:[%s223 + $0x148] sm:$0xff]
        %v477 = vld [vmem:[%s223 + $0x150] sm:$0xff]
        %v478 = vld [vmem:[%s223 + $0x158] sm:$0xff]
        %v479 = vld [vmem:[%s223 + $0x160] sm:$0xff]
        %v480 = vld [vmem:[%s223 + $0x168] sm:$0xff]
        %v481 = vld [vmem:[%s223 + $0x170] sm:$0xff]
        %v482 = vld [vmem:[%s223 + $0x178] sm:$0xff]
        %v483 = vld [vmem:[%s223 + $0x180] sm:$0xff]
        %v484 = vld [vmem:[%s223 + $0x188] sm:$0xff]
        %v485 = vld [vmem:[%s223 + $0x190] sm:$0xff]
        %v486 = vld [vmem:[%s223 + $0x198] sm:$0xff]
        %v487 = vld [vmem:[%s223 + $0x1a0] sm:$0xff]
        %v488 = vld [vmem:[%s223 + $0x1a8] sm:$0xff]
        %v489 = vld [vmem:[%s223 + $0x1b0] sm:$0xff]
        %v490 = vld [vmem:[%s223 + $0x1b8] sm:$0xff]
        %v491 = vld [vmem:[%s223 + $0x1c0] sm:$0xff]
        %v492 = vld [vmem:[%s223 + $0x1c8] sm:$0xff]
        %v493 = vld [vmem:[%s223 + $0x1d0] sm:$0xff]
        %v494 = vld [vmem:[%s223 + $0x1d8] sm:$0xff]
        %v495 = vld [vmem:[%s223 + $0x1e0] sm:$0xff]
        %v496 = vld [vmem:[%s223 + $0x1e8] sm:$0xff]
        %v497 = vld [vmem:[%s223 + $0x1f0] sm:$0xff]
        %v498 = vld [vmem:[%s223 + $0x1f8] sm:$0xff]
        %v499 = vld [vmem:[%s223 + $0x200] sm:$0xff]
        %v500 = vld [vmem:[%s223 + $0x208] sm:$0xff]
        %v501 = vld [vmem:[%s223 + $0x210] sm:$0xff]
        %v502 = vld [vmem:[%s223 + $0x218] sm:$0xff]
        %v503 = vld [vmem:[%s223 + $0x220] sm:$0xff]
        %v504 = vld [vmem:[%s223 + $0x228] sm:$0xff]
        %v505 = vld [vmem:[%s223 + $0x230] sm:$0xff]
        %v506 = vld [vmem:[%s223 + $0x238] sm:$0xff]
        %v507 = vld [vmem:[%s223 + $0x240] sm:$0xff]
        %v508 = vld [vmem:[%s223 + $0x248] sm:$0xff]
        %v509 = vld [vmem:[%s223 + $0x250] sm:$0xff]
        %v510 = vld [vmem:[%s223 + $0x258] sm:$0xff]
        %v511 = vld [vmem:[%s223 + $0x260] sm:$0xff]
        %v512 = vld [vmem:[%s223 + $0x268] sm:$0xff]
        %v513 = vld [vmem:[%s223 + $0x270] sm:$0xff]
        %v514 = vld [vmem:[%s223 + $0x278] sm:$0xff]
        %v515 = vld [vmem:[%s223 + $0x280] sm:$0xff]
        %v516 = vld [vmem:[%s223 + $0x288] sm:$0xff]
        %v517 = vld [vmem:[%s223 + $0x290] sm:$0xff]
        %v518 = vld [vmem:[%s223 + $0x298] sm:$0xff]
        %v519 = vld [vmem:[%s223 + $0x2a0] sm:$0xff]
        %v520 = vld [vmem:[%s223 + $0x2a8] sm:$0xff]
        %v521 = vld [vmem:[%s223 + $0x2b0] sm:$0xff]
        %v522 = vld [vmem:[%s223 + $0x2b8] sm:$0xff]
        %v523 = vld [vmem:[%s223 + $0x2c0] sm:$0xff]
        %v524 = vld [vmem:[%s223 + $0x2c8] sm:$0xff]
        %v525 = vld [vmem:[%s223 + $0x2d0] sm:$0xff]
        %v526 = vld [vmem:[%s223 + $0x2d8] sm:$0xff]
        %v527 = vld [vmem:[%s223 + $0x2e0] sm:$0xff]
        %v528 = vld [vmem:[%s223 + $0x2e8] sm:$0xff]
        %v529 = vld [vmem:[%s223 + $0x2f0] sm:$0xff]
        %v530 = vld [vmem:[%s223 + $0x2f8] sm:$0xff]
        %v531 = vld [vmem:[%s223 + $0x300] sm:$0xff]
        %v532 = vld [vmem:[%s223 + $0x308] sm:$0xff]
        %v533 = vld [vmem:[%s223 + $0x310] sm:$0xff]
        %v534 = vld [vmem:[%s223 + $0x318] sm:$0xff]
        %v535 = vld [vmem:[%s223 + $0x320] sm:$0xff]
        %v536 = vld [vmem:[%s223 + $0x328] sm:$0xff]
        %v537 = vld [vmem:[%s223 + $0x330] sm:$0xff]
        %v538 = vld [vmem:[%s223 + $0x338] sm:$0xff]
        %v539 = vld [vmem:[%s223 + $0x340] sm:$0xff]
        %v540 = vld [vmem:[%s223 + $0x348] sm:$0xff]
        %v541 = vld [vmem:[%s223 + $0x350] sm:$0xff]
        %v542 = vld [vmem:[%s223 + $0x358] sm:$0xff]
        %v543 = vld [vmem:[%s223 + $0x360] sm:$0xff]
        %v544 = vld [vmem:[%s223 + $0x368] sm:$0xff]
        %v545 = vld [vmem:[%s223 + $0x370] sm:$0xff]
        %v546 = vld [vmem:[%s223 + $0x378] sm:$0xff]
        %v547 = vld [vmem:[%s223 + $0x380] sm:$0xff]
        %v548 = vld [vmem:[%s223 + $0x388] sm:$0xff]
        %v549 = vld [vmem:[%s223 + $0x390] sm:$0xff]
        %v550 = vld [vmem:[%s223 + $0x398] sm:$0xff]
        %v551 = vld [vmem:[%s223 + $0x3a0] sm:$0xff]
        %v552 = vld [vmem:[%s223 + $0x3a8] sm:$0xff]
        %v553 = vld [vmem:[%s223 + $0x3b0] sm:$0xff]
        %v554 = vld [vmem:[%s223 + $0x3b8] sm:$0xff]
        %v555 = vld [vmem:[%s223 + $0x3c0] sm:$0xff]
        %v556 = vld [vmem:[%s223 + $0x3c8] sm:$0xff]
        %v557 = vld [vmem:[%s223 + $0x3d0] sm:$0xff]
        %v558 = vld [vmem:[%s223 + $0x3d8] sm:$0xff]
        %v559 = vld [vmem:[%s223 + $0x3e0] sm:$0xff]
        %v560 = vld [vmem:[%s223 + $0x3e8] sm:$0xff]
        %v561 = vld [vmem:[%s223 + $0x3f0] sm:$0xff]
        %v562 = vld [vmem:[%s223 + $0x3f8] sm:$0xff]
        %563 = vmatprep.subr.mxu0 %v436
        %564 = vmatpush1.xpose.msra.mxu0 %v435
        %565 = vmatprep.subr.mxu0 %v438
        %566 = vmatpush1.xpose.msra.mxu0 %v437
        %567 = vmatprep.subr.mxu0 %v440
        %568 = vmatpush1.xpose.msra.mxu0 %v439
        %569 = vmatprep.subr.mxu0 %v442
        %570 = vmatpush1.xpose.msra.mxu0 %v441
        %571 = vmatprep.subr.mxu0 %v444
        %572 = vmatpush1.xpose.msra.mxu0 %v443
        %573 = vmatprep.subr.mxu0 %v446
        %574 = vmatpush1.xpose.msra.mxu0 %v445
        %575 = vmatprep.subr.mxu0 %v448
        %576 = vmatpush1.xpose.msra.mxu0 %v447
        %577 = vmatprep.subr.mxu0 %v450
        %578 = vmatpush1.xpose.msra.mxu0 %v449
        %579 = vmatprep.subr.mxu0 %v452
        %580 = vmatpush1.xpose.msra.mxu0 %v451
        %581 = vmatprep.subr.mxu0 %v454
        %582 = vmatpush1.xpose.msra.mxu0 %v453
        %583 = vmatprep.subr.mxu0 %v456
        %584 = vmatpush1.xpose.msra.mxu0 %v455
        %585 = vmatprep.subr.mxu0 %v458
        %586 = vmatpush1.xpose.msra.mxu0 %v457
        %587 = vmatprep.subr.mxu0 %v460
        %588 = vmatpush1.xpose.msra.mxu0 %v459
        %589 = vmatprep.subr.mxu0 %v462
        %590 = vmatpush1.xpose.msra.mxu0 %v461
        %591 = vmatprep.subr.mxu0 %v464
        %592 = vmatpush1.xpose.msra.mxu0 %v463
        %593 = vmatprep.subr.mxu0 %v466
        %594 = vmatpush1.xpose.msra.mxu0 %v465
        %595 = vmatprep.subr.mxu0 %v468
        %596 = vmatpush1.xpose.msra.mxu0 %v467
        %597 = vmatprep.subr.mxu0 %v470
        %598 = vmatpush1.xpose.msra.mxu0 %v469
        %599 = vmatprep.subr.mxu0 %v472
        %600 = vmatpush1.xpose.msra.mxu0 %v471
        %601 = vmatprep.subr.mxu0 %v474
        %602 = vmatpush1.xpose.msra.mxu0 %v473
        %603 = vmatprep.subr.mxu0 %v476
        %604 = vmatpush1.xpose.msra.mxu0 %v475
        %605 = vmatprep.subr.mxu0 %v478
        %606 = vmatpush1.xpose.msra.mxu0 %v477
        %607 = vmatprep.subr.mxu0 %v480
        %608 = vmatpush1.xpose.msra.mxu0 %v479
        %609 = vmatprep.subr.mxu0 %v482
        %610 = vmatpush1.xpose.msra.mxu0 %v481
        %611 = vmatprep.subr.mxu0 %v484
        %612 = vmatpush1.xpose.msra.mxu0 %v483
        %613 = vmatprep.subr.mxu0 %v486
        %614 = vmatpush1.xpose.msra.mxu0 %v485
        %615 = vmatprep.subr.mxu0 %v488
        %616 = vmatpush1.xpose.msra.mxu0 %v487
        %617 = vmatprep.subr.mxu0 %v490
        %618 = vmatpush1.xpose.msra.mxu0 %v489
        %619 = vmatprep.subr.mxu0 %v492
        %620 = vmatpush1.xpose.msra.mxu0 %v491
        %621 = vmatprep.subr.mxu0 %v494
        %622 = vmatpush1.xpose.msra.mxu0 %v493
        %623 = vmatprep.subr.mxu0 %v496
        %624 = vmatpush1.xpose.msra.mxu0 %v495
        %625 = vmatprep.subr.mxu0 %v498
        %626 = vmatpush1.xpose.msra.mxu0 %v497
        %627 = vmatprep.mubr.f32.mxu0 %v372
        %628 = vmatmul.mubr.f32.gmra.mrb[0].mxu0 %v371
        %v629 = vpop.f32.mrb[0].mxu0
        %v630 = vadd.f32 0.0, %v629
        %v631 = vpop.f32.mrb[0].mxu0
        %v632 = vadd.f32 0.0, %v631
        %633 = vmatprep.mubr.f32.mxu0 %v374
        %634 = vmatmul.mubr.f32.gmra.mrb[0].mxu0 %v373
        %v635 = vpop.f32.mrb[0].mxu0
        %v636 = vadd.f32 0.0, %v635
        %v637 = vpop.f32.mrb[0].mxu0
        %v638 = vadd.f32 0.0, %v637
        %639 = vmatprep.mubr.f32.mxu0 %v376
        %640 = vmatmul.mubr.f32.gmra.mrb[0].mxu0 %v375
        %v641 = vpop.f32.mrb[0].mxu0
        %v642 = vadd.f32 0.0, %v641
        %v643 = vpop.f32.mrb[0].mxu0
        %v644 = vadd.f32 0.0, %v643
        %645 = vmatprep.mubr.f32.mxu0 %v378
        %646 = vmatmul.mubr.f32.gmra.mrb[0].mxu0 %v377
        %v647 = vpop.f32.mrb[0].mxu0
        %v648 = vadd.f32 0.0, %v647
        %v649 = vpop.f32.mrb[0].mxu0
        %v650 = vadd.f32 0.0, %v649
        %651 = vmatprep.mubr.f32.mxu0 %v380
        %652 = vmatmul.mubr.f32.gmra.mrb[0].mxu0 %v379
        %v653 = vpop.f32.mrb[0].mxu0
        %v654 = vadd.f32 0.0, %v653
        %v655 = vpop.f32.mrb[0].mxu0
        %v656 = vadd.f32 0.0, %v655
        %657 = vmatprep.mubr.f32.mxu0 %v382
        %658 = vmatmul.mubr.f32.gmra.mrb[0].mxu0 %v381
        %v659 = vpop.f32.mrb[0].mxu0
        %v660 = vadd.f32 0.0, %v659
        %v661 = vpop.f32.mrb[0].mxu0
        %v662 = vadd.f32 0.0, %v661
        %663 = vmatprep.mubr.f32.mxu0 %v384
        %664 = vmatmul.mubr.f32.gmra.mrb[0].mxu0 %v383
        %v665 = vpop.f32.mrb[0].mxu0
        %v666 = vadd.f32 0.0, %v665
        %v667 = vpop.f32.mrb[0].mxu0
        %v668 = vadd.f32 0.0, %v667
        %669 = vmatprep.mubr.f32.mxu0 %v386
        %670 = vmatmul.mubr.f32.gmra.mrb[0].mxu0 %v385
        %v671 = vpop.f32.mrb[0].mxu0
        %v672 = vadd.f32 0.0, %v671
        %v673 = vpop.f32.mrb[0].mxu0
        %v674 = vadd.f32 0.0, %v673
        %675 = vmatprep.mubr.f32.mxu0 %v388
        %676 = vmatmul.mubr.f32.gmra.mrb[0].mxu0 %v387
        %v677 = vpop.f32.mrb[0].mxu0
        %v678 = vadd.f32 0.0, %v677
        %v679 = vpop.f32.mrb[0].mxu0
        %v680 = vadd.f32 0.0, %v679
        %681 = vmatprep.mubr.f32.mxu0 %v390
        %682 = vmatmul.mubr.f32.gmra.mrb[0].mxu0 %v389
        %v683 = vpop.f32.mrb[0].mxu0
        %v684 = vadd.f32 0.0, %v683
        %v685 = vpop.f32.mrb[0].mxu0
        %v686 = vadd.f32 0.0, %v685
        %687 = vmatprep.mubr.f32.mxu0 %v392
        %688 = vmatmul.mubr.f32.gmra.mrb[0].mxu0 %v391
        %v689 = vpop.f32.mrb[0].mxu0
        %v690 = vadd.f32 0.0, %v689
        %v691 = vpop.f32.mrb[0].mxu0
        %v692 = vadd.f32 0.0, %v691
        %693 = vmatprep.mubr.f32.mxu0 %v394
        %694 = vmatmul.mubr.f32.gmra.mrb[0].mxu0 %v393
        %v695 = vpop.f32.mrb[0].mxu0
        %v696 = vadd.f32 0.0, %v695
        %v697 = vpop.f32.mrb[0].mxu0
        %v698 = vadd.f32 0.0, %v697
        %699 = vmatprep.mubr.f32.mxu0 %v396
        %700 = vmatmul.mubr.f32.gmra.mrb[0].mxu0 %v395
        %v701 = vpop.f32.mrb[0].mxu0
        %v702 = vadd.f32 0.0, %v701
        %v703 = vpop.f32.mrb[0].mxu0
        %v704 = vadd.f32 0.0, %v703
        %705 = vmatprep.mubr.f32.mxu0 %v398
        %706 = vmatmul.mubr.f32.gmra.mrb[0].mxu0 %v397
        %v707 = vpop.f32.mrb[0].mxu0
        %v708 = vadd.f32 0.0, %v707
        %v709 = vpop.f32.mrb[0].mxu0
        %v710 = vadd.f32 0.0, %v709
        %711 = vmatprep.mubr.f32.mxu0 %v400
        %712 = vmatmul.mubr.f32.gmra.mrb[0].mxu0 %v399
        %v713 = vpop.f32.mrb[0].mxu0
        %v714 = vadd.f32 0.0, %v713
        %v715 = vpop.f32.mrb[0].mxu0
        %v716 = vadd.f32 0.0, %v715
        %717 = vmatprep.mubr.f32.mxu0 %v402
        %718 = vmatmul.mubr.f32.gmra.mrb[0].mxu0 %v401
        %v719 = vpop.f32.mrb[0].mxu0
        %v720 = vadd.f32 0.0, %v719
        %v721 = vpop.f32.mrb[0].mxu0
        %v722 = vadd.f32 0.0, %v721
        %723 = vmatprep.mubr.f32.mxu0 %v404
        %724 = vmatmul.mubr.f32.gmra.mrb[0].mxu0 %v403
        %v725 = vpop.f32.mrb[0].mxu0
        %v726 = vadd.f32 0.0, %v725
        %v727 = vpop.f32.mrb[0].mxu0
        %v728 = vadd.f32 0.0, %v727
        %729 = vmatprep.mubr.f32.mxu0 %v406
        %730 = vmatmul.mubr.f32.gmra.mrb[0].mxu0 %v405
        %v731 = vpop.f32.mrb[0].mxu0
        %v732 = vadd.f32 0.0, %v731
        %v733 = vpop.f32.mrb[0].mxu0
        %v734 = vadd.f32 0.0, %v733
        %735 = vmatprep.mubr.f32.mxu0 %v408
        %736 = vmatmul.mubr.f32.gmra.mrb[0].mxu0 %v407
        %v737 = vpop.f32.mrb[0].mxu0
        %v738 = vadd.f32 0.0, %v737
        %v739 = vpop.f32.mrb[0].mxu0
        %v740 = vadd.f32 0.0, %v739
        %741 = vmatprep.mubr.f32.mxu0 %v410
        %742 = vmatmul.mubr.f32.gmra.mrb[0].mxu0 %v409
        %v743 = vpop.f32.mrb[0].mxu0
        %v744 = vadd.f32 0.0, %v743
        %v745 = vpop.f32.mrb[0].mxu0
        %v746 = vadd.f32 0.0, %v745
        %747 = vmatprep.mubr.f32.mxu0 %v412
        %748 = vmatmul.mubr.f32.gmra.mrb[0].mxu0 %v411
        %v749 = vpop.f32.mrb[0].mxu0
        %v750 = vadd.f32 0.0, %v749
        %v751 = vpop.f32.mrb[0].mxu0
        %v752 = vadd.f32 0.0, %v751
        %753 = vmatprep.mubr.f32.mxu0 %v414
        %754 = vmatmul.mubr.f32.gmra.mrb[0].mxu0 %v413
        %v755 = vpop.f32.mrb[0].mxu0
        %v756 = vadd.f32 0.0, %v755
        %v757 = vpop.f32.mrb[0].mxu0
        %v758 = vadd.f32 0.0, %v757
        %759 = vmatprep.mubr.f32.mxu0 %v416
        %760 = vmatmul.mubr.f32.gmra.mrb[0].mxu0 %v415
        %v761 = vpop.f32.mrb[0].mxu0
        %v762 = vadd.f32 0.0, %v761
        %v763 = vpop.f32.mrb[0].mxu0
        %v764 = vadd.f32 0.0, %v763
        %765 = vmatprep.mubr.f32.mxu0 %v418
        %766 = vmatmul.mubr.f32.gmra.mrb[0].mxu0 %v417
        %v767 = vpop.f32.mrb[0].mxu0
        %v768 = vadd.f32 0.0, %v767
        %v769 = vpop.f32.mrb[0].mxu0
        %v770 = vadd.f32 0.0, %v769
        %771 = vmatprep.mubr.f32.mxu0 %v420
        %772 = vmatmul.mubr.f32.gmra.mrb[0].mxu0 %v419
        %v773 = vpop.f32.mrb[0].mxu0
        %v774 = vadd.f32 0.0, %v773
        %v775 = vpop.f32.mrb[0].mxu0
        %v776 = vadd.f32 0.0, %v775
        %777 = vmatprep.mubr.f32.mxu0 %v422
        %778 = vmatmul.mubr.f32.gmra.mrb[0].mxu0 %v421
        %v779 = vpop.f32.mrb[0].mxu0
        %v780 = vadd.f32 0.0, %v779
        %v781 = vpop.f32.mrb[0].mxu0
        %v782 = vadd.f32 0.0, %v781
        %783 = vmatprep.mubr.f32.mxu0 %v424
        %784 = vmatmul.mubr.f32.gmra.mrb[0].mxu0 %v423
        %v785 = vpop.f32.mrb[0].mxu0
        %v786 = vadd.f32 0.0, %v785
        %v787 = vpop.f32.mrb[0].mxu0
        %v788 = vadd.f32 0.0, %v787
        %789 = vmatprep.mubr.f32.mxu0 %v426
        %790 = vmatmul.mubr.f32.gmra.mrb[0].mxu0 %v425
        %v791 = vpop.f32.mrb[0].mxu0
        %v792 = vadd.f32 0.0, %v791
        %v793 = vpop.f32.mrb[0].mxu0
        %v794 = vadd.f32 0.0, %v793
        %795 = vmatprep.mubr.f32.mxu0 %v428
        %796 = vmatmul.mubr.f32.gmra.mrb[0].mxu0 %v427
        %v797 = vpop.f32.mrb[0].mxu0
        %v798 = vadd.f32 0.0, %v797
        %v799 = vpop.f32.mrb[0].mxu0
        %v800 = vadd.f32 0.0, %v799
        %801 = vmatprep.mubr.f32.mxu0 %v430
        %802 = vmatmul.mubr.f32.gmra.mrb[0].mxu0 %v429
        %v803 = vpop.f32.mrb[0].mxu0
        %v804 = vadd.f32 0.0, %v803
        %v805 = vpop.f32.mrb[0].mxu0
        %v806 = vadd.f32 0.0, %v805
        %807 = vmatprep.mubr.f32.mxu0 %v432
        %808 = vmatmul.mubr.f32.gmra.mrb[0].mxu0 %v431
        %v809 = vpop.f32.mrb[0].mxu0
        %v810 = vadd.f32 0.0, %v809
        %v811 = vpop.f32.mrb[0].mxu0
        %v812 = vadd.f32 0.0, %v811
        %813 = vmatprep.mubr.f32.mxu0 %v434
        %814 = vmatmul.mubr.f32.gmra.mrb[0].mxu0 %v433
        %v815 = vpop.f32.mrb[0].mxu0
        %v816 = vadd.f32 0.0, %v815
        %v817 = vpop.f32.mrb[0].mxu0
        %v818 = vadd.f32 0.0, %v817
        %819 = vdwg.mxu0
        %820 = vmatprep.subr.mxu0 %v500
        %821 = vmatpush1.xpose.msra.mxu0 %v499
        %822 = vmatprep.subr.mxu0 %v502
        %823 = vmatpush1.xpose.msra.mxu0 %v501
        %824 = vmatprep.subr.mxu0 %v504
        %825 = vmatpush1.xpose.msra.mxu0 %v503
        %826 = vmatprep.subr.mxu0 %v506
        %827 = vmatpush1.xpose.msra.mxu0 %v505
        %828 = vmatprep.subr.mxu0 %v508
        %829 = vmatpush1.xpose.msra.mxu0 %v507
        %830 = vmatprep.subr.mxu0 %v510
        %831 = vmatpush1.xpose.msra.mxu0 %v509
        %832 = vmatprep.subr.mxu0 %v512
        %833 = vmatpush1.xpose.msra.mxu0 %v511
        %834 = vmatprep.subr.mxu0 %v514
        %835 = vmatpush1.xpose.msra.mxu0 %v513
        %836 = vmatprep.subr.mxu0 %v516
        %837 = vmatpush1.xpose.msra.mxu0 %v515
        %838 = vmatprep.subr.mxu0 %v518
        %839 = vmatpush1.xpose.msra.mxu0 %v517
        %840 = vmatprep.subr.mxu0 %v520
        %841 = vmatpush1.xpose.msra.mxu0 %v519
        %842 = vmatprep.subr.mxu0 %v522
        %843 = vmatpush1.xpose.msra.mxu0 %v521
        %844 = vmatprep.subr.mxu0 %v524
        %845 = vmatpush1.xpose.msra.mxu0 %v523
        %846 = vmatprep.subr.mxu0 %v526
        %847 = vmatpush1.xpose.msra.mxu0 %v525
        %848 = vmatprep.subr.mxu0 %v528
        %849 = vmatpush1.xpose.msra.mxu0 %v527
        %850 = vmatprep.subr.mxu0 %v530
        %851 = vmatpush1.xpose.msra.mxu0 %v529
        %852 = vmatprep.subr.mxu0 %v532
        %853 = vmatpush1.xpose.msra.mxu0 %v531
        %854 = vmatprep.subr.mxu0 %v534
        %855 = vmatpush1.xpose.msra.mxu0 %v533
        %856 = vmatprep.subr.mxu0 %v536
        %857 = vmatpush1.xpose.msra.mxu0 %v535
        %858 = vmatprep.subr.mxu0 %v538
        %859 = vmatpush1.xpose.msra.mxu0 %v537
        %860 = vmatprep.subr.mxu0 %v540
        %861 = vmatpush1.xpose.msra.mxu0 %v539
        %862 = vmatprep.subr.mxu0 %v542
        %863 = vmatpush1.xpose.msra.mxu0 %v541
        %864 = vmatprep.subr.mxu0 %v544
        %865 = vmatpush1.xpose.msra.mxu0 %v543
        %866 = vmatprep.subr.mxu0 %v546
        %867 = vmatpush1.xpose.msra.mxu0 %v545
        %868 = vmatprep.subr.mxu0 %v548
        %869 = vmatpush1.xpose.msra.mxu0 %v547
        %870 = vmatprep.subr.mxu0 %v550
        %871 = vmatpush1.xpose.msra.mxu0 %v549
        %872 = vmatprep.subr.mxu0 %v552
        %873 = vmatpush1.xpose.msra.mxu0 %v551
        %874 = vmatprep.subr.mxu0 %v554
        %875 = vmatpush1.xpose.msra.mxu0 %v553
        %876 = vmatprep.subr.mxu0 %v556
        %877 = vmatpush1.xpose.msra.mxu0 %v555
        %878 = vmatprep.subr.mxu0 %v558
        %879 = vmatpush1.xpose.msra.mxu0 %v557
        %880 = vmatprep.subr.mxu0 %v560
        %881 = vmatpush1.xpose.msra.mxu0 %v559
        %882 = vmatprep.subr.mxu0 %v562
        %883 = vmatpush1.xpose.msra.mxu0 %v561
        %884 = vmatprep.mubr.f32.mxu0 %v372
        %885 = vmatmul.mubr.f32.gmra.mrb[0].mxu0 %v371
        %v886 = vpop.f32.mrb[0].mxu0
        %v887 = vadd.f32 0.0, %v886
        %v888 = vpop.f32.mrb[0].mxu0
        %v889 = vadd.f32 0.0, %v888
        %890 = vmatprep.mubr.f32.mxu0 %v374
        %891 = vmatmul.mubr.f32.gmra.mrb[0].mxu0 %v373
        %v892 = vpop.f32.mrb[0].mxu0
        %v893 = vadd.f32 0.0, %v892
        %v894 = vpop.f32.mrb[0].mxu0
        %v895 = vadd.f32 0.0, %v894
        %896 = vmatprep.mubr.f32.mxu0 %v376
        %897 = vmatmul.mubr.f32.gmra.mrb[0].mxu0 %v375
        %v898 = vpop.f32.mrb[0].mxu0
        %v899 = vadd.f32 0.0, %v898
        %v900 = vpop.f32.mrb[0].mxu0
        %v901 = vadd.f32 0.0, %v900
        %902 = vmatprep.mubr.f32.mxu0 %v378
        %903 = vmatmul.mubr.f32.gmra.mrb[0].mxu0 %v377
        %v904 = vpop.f32.mrb[0].mxu0
        %v905 = vadd.f32 0.0, %v904
        %v906 = vpop.f32.mrb[0].mxu0
        %v907 = vadd.f32 0.0, %v906
        %908 = vmatprep.mubr.f32.mxu0 %v380
        %909 = vmatmul.mubr.f32.gmra.mrb[0].mxu0 %v379
        %v910 = vpop.f32.mrb[0].mxu0
        %v911 = vadd.f32 0.0, %v910
        %v912 = vpop.f32.mrb[0].mxu0
        %v913 = vadd.f32 0.0, %v912
        %914 = vmatprep.mubr.f32.mxu0 %v382
        %915 = vmatmul.mubr.f32.gmra.mrb[0].mxu0 %v381
        %v916 = vpop.f32.mrb[0].mxu0
        %v917 = vadd.f32 0.0, %v916
        %v918 = vpop.f32.mrb[0].mxu0
        %v919 = vadd.f32 0.0, %v918
        %920 = vmatprep.mubr.f32.mxu0 %v384
        %921 = vmatmul.mubr.f32.gmra.mrb[0].mxu0 %v383
        %v922 = vpop.f32.mrb[0].mxu0
        %v923 = vadd.f32 0.0, %v922
        %v924 = vpop.f32.mrb[0].mxu0
        %v925 = vadd.f32 0.0, %v924
        %926 = vmatprep.mubr.f32.mxu0 %v386
        %927 = vmatmul.mubr.f32.gmra.mrb[0].mxu0 %v385
        %v928 = vpop.f32.mrb[0].mxu0
        %v929 = vadd.f32 0.0, %v928
        %v930 = vpop.f32.mrb[0].mxu0
        %v931 = vadd.f32 0.0, %v930
        %932 = vmatprep.mubr.f32.mxu0 %v388
        %933 = vmatmul.mubr.f32.gmra.mrb[0].mxu0 %v387
        %v934 = vpop.f32.mrb[0].mxu0
        %v935 = vadd.f32 0.0, %v934
        %v936 = vpop.f32.mrb[0].mxu0
        %v937 = vadd.f32 0.0, %v936
        %938 = vmatprep.mubr.f32.mxu0 %v390
        %939 = vmatmul.mubr.f32.gmra.mrb[0].mxu0 %v389
        %v940 = vpop.f32.mrb[0].mxu0
        %v941 = vadd.f32 0.0, %v940
        %v942 = vpop.f32.mrb[0].mxu0
        %v943 = vadd.f32 0.0, %v942
        %944 = vmatprep.mubr.f32.mxu0 %v392
        %945 = vmatmul.mubr.f32.gmra.mrb[0].mxu0 %v391
        %v946 = vpop.f32.mrb[0].mxu0
        %v947 = vadd.f32 0.0, %v946
        %v948 = vpop.f32.mrb[0].mxu0
        %v949 = vadd.f32 0.0, %v948
        %950 = vmatprep.mubr.f32.mxu0 %v394
        %951 = vmatmul.mubr.f32.gmra.mrb[0].mxu0 %v393
        %v952 = vpop.f32.mrb[0].mxu0
        %v953 = vadd.f32 0.0, %v952
        %v954 = vpop.f32.mrb[0].mxu0
        %v955 = vadd.f32 0.0, %v954
        %956 = vmatprep.mubr.f32.mxu0 %v396
        %957 = vmatmul.mubr.f32.gmra.mrb[0].mxu0 %v395
        %v958 = vpop.f32.mrb[0].mxu0
        %v959 = vadd.f32 0.0, %v958
        %v960 = vpop.f32.mrb[0].mxu0
        %v961 = vadd.f32 0.0, %v960
        %962 = vmatprep.mubr.f32.mxu0 %v398
        %963 = vmatmul.mubr.f32.gmra.mrb[0].mxu0 %v397
        %v964 = vpop.f32.mrb[0].mxu0
        %v965 = vadd.f32 0.0, %v964
        %v966 = vpop.f32.mrb[0].mxu0
        %v967 = vadd.f32 0.0, %v966
        %968 = vmatprep.mubr.f32.mxu0 %v400
        %969 = vmatmul.mubr.f32.gmra.mrb[0].mxu0 %v399
        %v970 = vpop.f32.mrb[0].mxu0
        %v971 = vadd.f32 0.0, %v970
        %v972 = vpop.f32.mrb[0].mxu0
        %v973 = vadd.f32 0.0, %v972
        %974 = vmatprep.mubr.f32.mxu0 %v402
        %975 = vmatmul.mubr.f32.gmra.mrb[0].mxu0 %v401
        %v976 = vpop.f32.mrb[0].mxu0
        %v977 = vadd.f32 0.0, %v976
        %v978 = vpop.f32.mrb[0].mxu0
        %v979 = vadd.f32 0.0, %v978
        %980 = vmatprep.mubr.f32.mxu0 %v404
        %981 = vmatmul.mubr.f32.gmra.mrb[0].mxu0 %v403
        %v982 = vpop.f32.mrb[0].mxu0
        %v983 = vadd.f32 0.0, %v982
        %v984 = vpop.f32.mrb[0].mxu0
        %v985 = vadd.f32 0.0, %v984
        %986 = vmatprep.mubr.f32.mxu0 %v406
        %987 = vmatmul.mubr.f32.gmra.mrb[0].mxu0 %v405
        %v988 = vpop.f32.mrb[0].mxu0
        %v989 = vadd.f32 0.0, %v988
        %v990 = vpop.f32.mrb[0].mxu0
        %v991 = vadd.f32 0.0, %v990
        %992 = vmatprep.mubr.f32.mxu0 %v408
        %993 = vmatmul.mubr.f32.gmra.mrb[0].mxu0 %v407
        %v994 = vpop.f32.mrb[0].mxu0
        %v995 = vadd.f32 0.0, %v994
        %v996 = vpop.f32.mrb[0].mxu0
        %v997 = vadd.f32 0.0, %v996
        %998 = vmatprep.mubr.f32.mxu0 %v410
        %999 = vmatmul.mubr.f32.gmra.mrb[0].mxu0 %v409
        %v1000 = vpop.f32.mrb[0].mxu0
        %v1001 = vadd.f32 0.0, %v1000
        %v1002 = vpop.f32.mrb[0].mxu0
        %v1003 = vadd.f32 0.0, %v1002
        %1004 = vmatprep.mubr.f32.mxu0 %v412
        %1005 = vmatmul.mubr.f32.gmra.mrb[0].mxu0 %v411
        %v1006 = vpop.f32.mrb[0].mxu0
        %v1007 = vadd.f32 0.0, %v1006
        %v1008 = vpop.f32.mrb[0].mxu0
        %v1009 = vadd.f32 0.0, %v1008
        %1010 = vmatprep.mubr.f32.mxu0 %v414
        %1011 = vmatmul.mubr.f32.gmra.mrb[0].mxu0 %v413
        %v1012 = vpop.f32.mrb[0].mxu0
        %v1013 = vadd.f32 0.0, %v1012
        %v1014 = vpop.f32.mrb[0].mxu0
        %v1015 = vadd.f32 0.0, %v1014
        %1016 = vmatprep.mubr.f32.mxu0 %v416
        %1017 = vmatmul.mubr.f32.gmra.mrb[0].mxu0 %v415
        %v1018 = vpop.f32.mrb[0].mxu0
        %v1019 = vadd.f32 0.0, %v1018
        %v1020 = vpop.f32.mrb[0].mxu0
        %v1021 = vadd.f32 0.0, %v1020
        %1022 = vmatprep.mubr.f32.mxu0 %v418
        %1023 = vmatmul.mubr.f32.gmra.mrb[0].mxu0 %v417
        %v1024 = vpop.f32.mrb[0].mxu0
        %v1025 = vadd.f32 0.0, %v1024
        %v1026 = vpop.f32.mrb[0].mxu0
        %v1027 = vadd.f32 0.0, %v1026
        %1028 = vmatprep.mubr.f32.mxu0 %v420
        %1029 = vmatmul.mubr.f32.gmra.mrb[0].mxu0 %v419
        %v1030 = vpop.f32.mrb[0].mxu0
        %v1031 = vadd.f32 0.0, %v1030
        %v1032 = vpop.f32.mrb[0].mxu0
        %v1033 = vadd.f32 0.0, %v1032
        %1034 = vmatprep.mubr.f32.mxu0 %v422
        %1035 = vmatmul.mubr.f32.gmra.mrb[0].mxu0 %v421
        %v1036 = vpop.f32.mrb[0].mxu0
        %v1037 = vadd.f32 0.0, %v1036
        %v1038 = vpop.f32.mrb[0].mxu0
        %v1039 = vadd.f32 0.0, %v1038
        %1040 = vmatprep.mubr.f32.mxu0 %v424
        %1041 = vmatmul.mubr.f32.gmra.mrb[0].mxu0 %v423
        %v1042 = vpop.f32.mrb[0].mxu0
        %v1043 = vadd.f32 0.0, %v1042
        %v1044 = vpop.f32.mrb[0].mxu0
        %v1045 = vadd.f32 0.0, %v1044
        %1046 = vmatprep.mubr.f32.mxu0 %v426
        %1047 = vmatmul.mubr.f32.gmra.mrb[0].mxu0 %v425
        %v1048 = vpop.f32.mrb[0].mxu0
        %v1049 = vadd.f32 0.0, %v1048
        %v1050 = vpop.f32.mrb[0].mxu0
        %v1051 = vadd.f32 0.0, %v1050
        %1052 = vmatprep.mubr.f32.mxu0 %v428
        %1053 = vmatmul.mubr.f32.gmra.mrb[0].mxu0 %v427
        %v1054 = vpop.f32.mrb[0].mxu0
        %v1055 = vadd.f32 0.0, %v1054
        %v1056 = vpop.f32.mrb[0].mxu0
        %v1057 = vadd.f32 0.0, %v1056
        %1058 = vmatprep.mubr.f32.mxu0 %v430
        %1059 = vmatmul.mubr.f32.gmra.mrb[0].mxu0 %v429
        %v1060 = vpop.f32.mrb[0].mxu0
        %v1061 = vadd.f32 0.0, %v1060
        %v1062 = vpop.f32.mrb[0].mxu0
        %v1063 = vadd.f32 0.0, %v1062
        %1064 = vmatprep.mubr.f32.mxu0 %v432
        %1065 = vmatmul.mubr.f32.gmra.mrb[0].mxu0 %v431
        %v1066 = vpop.f32.mrb[0].mxu0
        %v1067 = vadd.f32 0.0, %v1066
        %v1068 = vpop.f32.mrb[0].mxu0
        %v1069 = vadd.f32 0.0, %v1068
        %1070 = vmatprep.mubr.f32.mxu0 %v434
        %1071 = vmatmul.mubr.f32.gmra.mrb[0].mxu0 %v433
        %v1072 = vpop.f32.mrb[0].mxu0
        %v1073 = vadd.f32 0.0, %v1072
        %v1074 = vpop.f32.mrb[0].mxu0
        %v1075 = vadd.f32 0.0, %v1074
        %1076 = vdwg.mxu0
        %v1077 = vlaneseq
        %v1078 = vand.u32 %v1077, 127
        %v1079 = vadd.s32 %v1078, 128
        %v1080 = vadd.s32 %v1078, 256
        %v1081 = vadd.s32 %v1078, 384
        %v1082 = vld [vmem:[#allocation2] sm:$0xff]
        %v1083 = vld [vmem:[#allocation2 + $0x8] sm:$0xff]
        %v1084 = vld [vmem:[#allocation2 + $0x10] sm:$0xff]
        %v1085 = vld [vmem:[#allocation2 + $0x18] sm:$0xff]
        %v1086 = vld [vmem:[#allocation2 + $0x20] sm:$0xff]
        %v1087 = vld [vmem:[#allocation2 + $0x28] sm:$0xff]
        %v1088 = vld [vmem:[#allocation2 + $0x30] sm:$0xff]
        %v1089 = vld [vmem:[#allocation2 + $0x38] sm:$0xff]
        %v1090 = vld [vmem:[#allocation2 + $0x40] sm:$0xff]
        %v1091 = vld [vmem:[#allocation2 + $0x48] sm:$0xff]
        %v1092 = vld [vmem:[#allocation2 + $0x50] sm:$0xff]
        %v1093 = vld [vmem:[#allocation2 + $0x58] sm:$0xff]
        %v1094 = vld [vmem:[#allocation2 + $0x60] sm:$0xff]
        %v1095 = vld [vmem:[#allocation2 + $0x68] sm:$0xff]
        %v1096 = vld [vmem:[#allocation2 + $0x70] sm:$0xff]
        %v1097 = vld [vmem:[#allocation2 + $0x78] sm:$0xff]
        %v1098 = vld [vmem:[#allocation2 + $0x80] sm:$0xff]
        %v1099 = vld [vmem:[#allocation2 + $0x88] sm:$0xff]
        %v1100 = vld [vmem:[#allocation2 + $0x90] sm:$0xff]
        %v1101 = vld [vmem:[#allocation2 + $0x98] sm:$0xff]
        %v1102 = vld [vmem:[#allocation2 + $0xa0] sm:$0xff]
        %v1103 = vld [vmem:[#allocation2 + $0xa8] sm:$0xff]
        %v1104 = vld [vmem:[#allocation2 + $0xb0] sm:$0xff]
        %v1105 = vld [vmem:[#allocation2 + $0xb8] sm:$0xff]
        %v1106 = vld [vmem:[#allocation2 + $0xc0] sm:$0xff]
        %v1107 = vld [vmem:[#allocation2 + $0xc8] sm:$0xff]
        %v1108 = vld [vmem:[#allocation2 + $0xd0] sm:$0xff]
        %v1109 = vld [vmem:[#allocation2 + $0xd8] sm:$0xff]
        %v1110 = vld [vmem:[#allocation2 + $0xe0] sm:$0xff]
        %v1111 = vld [vmem:[#allocation2 + $0xe8] sm:$0xff]
        %v1112 = vld [vmem:[#allocation2 + $0xf0] sm:$0xff]
        %v1113 = vld [vmem:[#allocation2 + $0xf8] sm:$0xff]
        %v1114 = vmax.f32 %v630, %v632
        %v1115 = vmax.f32 %v1114, %v887
        %v1116 = vmax.f32 %v1115, %v889
        %1117 = vmax.xlane.f32.xlu0 %v1116
        %v1118 = vpop.xlane.xlu0 %1117
        %v1119 = vmax.f32 %v636, %v638
        %v1120 = vmax.f32 %v1119, %v893
        %v1121 = vmax.f32 %v1120, %v895
        %1122 = vmax.xlane.f32.xlu0 %v1121
        %v1123 = vpop.xlane.xlu0 %1122
        %v1124 = vmax.f32 %v642, %v644
        %v1125 = vmax.f32 %v1124, %v899
        %v1126 = vmax.f32 %v1125, %v901
        %1127 = vmax.xlane.f32.xlu0 %v1126
        %v1128 = vpop.xlane.xlu0 %1127
        %v1129 = vmax.f32 %v648, %v650
        %v1130 = vmax.f32 %v1129, %v905
        %v1131 = vmax.f32 %v1130, %v907
        %1132 = vmax.xlane.f32.xlu0 %v1131
        %v1133 = vpop.xlane.xlu0 %1132
        %v1134 = vmax.f32 %v654, %v656
        %v1135 = vmax.f32 %v1134, %v911
        %v1136 = vmax.f32 %v1135, %v913
        %1137 = vmax.xlane.f32.xlu0 %v1136
        %v1138 = vpop.xlane.xlu0 %1137
        %v1139 = vmax.f32 %v660, %v662
        %v1140 = vmax.f32 %v1139, %v917
        %v1141 = vmax.f32 %v1140, %v919
        %1142 = vmax.xlane.f32.xlu0 %v1141
        %v1143 = vpop.xlane.xlu0 %1142
        %v1144 = vmax.f32 %v666, %v668
        %v1145 = vmax.f32 %v1144, %v923
        %v1146 = vmax.f32 %v1145, %v925
        %1147 = vmax.xlane.f32.xlu0 %v1146
        %v1148 = vpop.xlane.xlu0 %1147
        %v1149 = vmax.f32 %v672, %v674
        %v1150 = vmax.f32 %v1149, %v929
        %v1151 = vmax.f32 %v1150, %v931
        %1152 = vmax.xlane.f32.xlu0 %v1151
        %v1153 = vpop.xlane.xlu0 %1152
        %v1154 = vmax.f32 %v678, %v680
        %v1155 = vmax.f32 %v1154, %v935
        %v1156 = vmax.f32 %v1155, %v937
        %1157 = vmax.xlane.f32.xlu0 %v1156
        %v1158 = vpop.xlane.xlu0 %1157
        %v1159 = vmax.f32 %v684, %v686
        %v1160 = vmax.f32 %v1159, %v941
        %v1161 = vmax.f32 %v1160, %v943
        %1162 = vmax.xlane.f32.xlu0 %v1161
        %v1163 = vpop.xlane.xlu0 %1162
        %v1164 = vmax.f32 %v690, %v692
        %v1165 = vmax.f32 %v1164, %v947
        %v1166 = vmax.f32 %v1165, %v949
        %1167 = vmax.xlane.f32.xlu0 %v1166
        %v1168 = vpop.xlane.xlu0 %1167
        %v1169 = vmax.f32 %v696, %v698
        %v1170 = vmax.f32 %v1169, %v953
        %v1171 = vmax.f32 %v1170, %v955
        %1172 = vmax.xlane.f32.xlu0 %v1171
        %v1173 = vpop.xlane.xlu0 %1172
        %v1174 = vmax.f32 %v702, %v704
        %v1175 = vmax.f32 %v1174, %v959
        %v1176 = vmax.f32 %v1175, %v961
        %1177 = vmax.xlane.f32.xlu0 %v1176
        %v1178 = vpop.xlane.xlu0 %1177
        %v1179 = vmax.f32 %v708, %v710
        %v1180 = vmax.f32 %v1179, %v965
        %v1181 = vmax.f32 %v1180, %v967
        %1182 = vmax.xlane.f32.xlu0 %v1181
        %v1183 = vpop.xlane.xlu0 %1182
        %v1184 = vmax.f32 %v714, %v716
        %v1185 = vmax.f32 %v1184, %v971
        %v1186 = vmax.f32 %v1185, %v973
        %1187 = vmax.xlane.f32.xlu0 %v1186
        %v1188 = vpop.xlane.xlu0 %1187
        %v1189 = vmax.f32 %v720, %v722
        %v1190 = vmax.f32 %v1189, %v977
        %v1191 = vmax.f32 %v1190, %v979
        %1192 = vmax.xlane.f32.xlu0 %v1191
        %v1193 = vpop.xlane.xlu0 %1192
        %v1194 = vmax.f32 %v726, %v728
        %v1195 = vmax.f32 %v1194, %v983
        %v1196 = vmax.f32 %v1195, %v985
        %1197 = vmax.xlane.f32.xlu0 %v1196
        %v1198 = vpop.xlane.xlu0 %1197
        %v1199 = vmax.f32 %v732, %v734
        %v1200 = vmax.f32 %v1199, %v989
        %v1201 = vmax.f32 %v1200, %v991
        %1202 = vmax.xlane.f32.xlu0 %v1201
        %v1203 = vpop.xlane.xlu0 %1202
        %v1204 = vmax.f32 %v738, %v740
        %v1205 = vmax.f32 %v1204, %v995
        %v1206 = vmax.f32 %v1205, %v997
        %1207 = vmax.xlane.f32.xlu0 %v1206
        %v1208 = vpop.xlane.xlu0 %1207
        %v1209 = vmax.f32 %v744, %v746
        %v1210 = vmax.f32 %v1209, %v1001
        %v1211 = vmax.f32 %v1210, %v1003
        %1212 = vmax.xlane.f32.xlu0 %v1211
        %v1213 = vpop.xlane.xlu0 %1212
        %v1214 = vmax.f32 %v750, %v752
        %v1215 = vmax.f32 %v1214, %v1007
        %v1216 = vmax.f32 %v1215, %v1009
        %1217 = vmax.xlane.f32.xlu0 %v1216
        %v1218 = vpop.xlane.xlu0 %1217
        %v1219 = vmax.f32 %v756, %v758
        %v1220 = vmax.f32 %v1219, %v1013
        %v1221 = vmax.f32 %v1220, %v1015
        %1222 = vmax.xlane.f32.xlu0 %v1221
        %v1223 = vpop.xlane.xlu0 %1222
        %v1224 = vmax.f32 %v762, %v764
        %v1225 = vmax.f32 %v1224, %v1019
        %v1226 = vmax.f32 %v1225, %v1021
        %1227 = vmax.xlane.f32.xlu0 %v1226
        %v1228 = vpop.xlane.xlu0 %1227
        %v1229 = vmax.f32 %v768, %v770
        %v1230 = vmax.f32 %v1229, %v1025
        %v1231 = vmax.f32 %v1230, %v1027
        %1232 = vmax.xlane.f32.xlu0 %v1231
        %v1233 = vpop.xlane.xlu0 %1232
        %v1234 = vmax.f32 %v774, %v776
        %v1235 = vmax.f32 %v1234, %v1031
        %v1236 = vmax.f32 %v1235, %v1033
        %1237 = vmax.xlane.f32.xlu0 %v1236
        %v1238 = vpop.xlane.xlu0 %1237
        %v1239 = vmax.f32 %v780, %v782
        %v1240 = vmax.f32 %v1239, %v1037
        %v1241 = vmax.f32 %v1240, %v1039
        %1242 = vmax.xlane.f32.xlu0 %v1241
        %v1243 = vpop.xlane.xlu0 %1242
        %v1244 = vmax.f32 %v786, %v788
        %v1245 = vmax.f32 %v1244, %v1043
        %v1246 = vmax.f32 %v1245, %v1045
        %1247 = vmax.xlane.f32.xlu0 %v1246
        %v1248 = vpop.xlane.xlu0 %1247
        %v1249 = vmax.f32 %v792, %v794
        %v1250 = vmax.f32 %v1249, %v1049
        %v1251 = vmax.f32 %v1250, %v1051
        %1252 = vmax.xlane.f32.xlu0 %v1251
        %v1253 = vpop.xlane.xlu0 %1252
        %v1254 = vmax.f32 %v798, %v800
        %v1255 = vmax.f32 %v1254, %v1055
        %v1256 = vmax.f32 %v1255, %v1057
        %1257 = vmax.xlane.f32.xlu0 %v1256
        %v1258 = vpop.xlane.xlu0 %1257
        %v1259 = vmax.f32 %v804, %v806
        %v1260 = vmax.f32 %v1259, %v1061
        %v1261 = vmax.f32 %v1260, %v1063
        %1262 = vmax.xlane.f32.xlu0 %v1261
        %v1263 = vpop.xlane.xlu0 %1262
        %v1264 = vmax.f32 %v810, %v812
        %v1265 = vmax.f32 %v1264, %v1067
        %v1266 = vmax.f32 %v1265, %v1069
        %1267 = vmax.xlane.f32.xlu0 %v1266
        %v1268 = vpop.xlane.xlu0 %1267
        %v1269 = vmax.f32 %v816, %v818
        %v1270 = vmax.f32 %v1269, %v1073
        %v1271 = vmax.f32 %v1270, %v1075
        %1272 = vmax.xlane.f32.xlu0 %v1271
        %v1273 = vpop.xlane.xlu0 %1272
        %v1274 = vmax.f32 %v1082, %v1118
        %v1275 = vmax.f32 %v1083, %v1123
        %v1276 = vmax.f32 %v1084, %v1128
        %v1277 = vmax.f32 %v1085, %v1133
        %v1278 = vmax.f32 %v1086, %v1138
        %v1279 = vmax.f32 %v1087, %v1143
        %v1280 = vmax.f32 %v1088, %v1148
        %v1281 = vmax.f32 %v1089, %v1153
        %v1282 = vmax.f32 %v1090, %v1158
        %v1283 = vmax.f32 %v1091, %v1163
        %v1284 = vmax.f32 %v1092, %v1168
        %v1285 = vmax.f32 %v1093, %v1173
        %v1286 = vmax.f32 %v1094, %v1178
        %v1287 = vmax.f32 %v1095, %v1183
        %v1288 = vmax.f32 %v1096, %v1188
        %v1289 = vmax.f32 %v1097, %v1193
        %v1290 = vmax.f32 %v1098, %v1198
        %v1291 = vmax.f32 %v1099, %v1203
        %v1292 = vmax.f32 %v1100, %v1208
        %v1293 = vmax.f32 %v1101, %v1213
        %v1294 = vmax.f32 %v1102, %v1218
        %v1295 = vmax.f32 %v1103, %v1223
        %v1296 = vmax.f32 %v1104, %v1228
        %v1297 = vmax.f32 %v1105, %v1233
        %v1298 = vmax.f32 %v1106, %v1238
        %v1299 = vmax.f32 %v1107, %v1243
        %v1300 = vmax.f32 %v1108, %v1248
        %v1301 = vmax.f32 %v1109, %v1253
        %v1302 = vmax.f32 %v1110, %v1258
        %v1303 = vmax.f32 %v1111, %v1263
        %v1304 = vmax.f32 %v1112, %v1268
        %v1305 = vmax.f32 %v1113, %v1273
        %v1306 = vsub.f32 %v1082, %v1274
        %v1307 = vsub.f32 %v1083, %v1275
        %v1308 = vsub.f32 %v1084, %v1276
        %v1309 = vsub.f32 %v1085, %v1277
        %v1310 = vsub.f32 %v1086, %v1278
        %v1311 = vsub.f32 %v1087, %v1279
        %v1312 = vsub.f32 %v1088, %v1280
        %v1313 = vsub.f32 %v1089, %v1281
        %v1314 = vsub.f32 %v1090, %v1282
        %v1315 = vsub.f32 %v1091, %v1283
        %v1316 = vsub.f32 %v1092, %v1284
        %v1317 = vsub.f32 %v1093, %v1285
        %v1318 = vsub.f32 %v1094, %v1286
        %v1319 = vsub.f32 %v1095, %v1287
        %v1320 = vsub.f32 %v1096, %v1288
        %v1321 = vsub.f32 %v1097, %v1289
        %v1322 = vsub.f32 %v1098, %v1290
        %v1323 = vsub.f32 %v1099, %v1291
        %v1324 = vsub.f32 %v1100, %v1292
        %v1325 = vsub.f32 %v1101, %v1293
        %v1326 = vsub.f32 %v1102, %v1294
        %v1327 = vsub.f32 %v1103, %v1295
        %v1328 = vsub.f32 %v1104, %v1296
        %v1329 = vsub.f32 %v1105, %v1297
        %v1330 = vsub.f32 %v1106, %v1298
        %v1331 = vsub.f32 %v1107, %v1299
        %v1332 = vsub.f32 %v1108, %v1300
        %v1333 = vsub.f32 %v1109, %v1301
        %v1334 = vsub.f32 %v1110, %v1302
        %v1335 = vsub.f32 %v1111, %v1303
        %v1336 = vsub.f32 %v1112, %v1304
        %v1337 = vsub.f32 %v1113, %v1305
        %v1338 = vmul.f32 %v1306, 1.442695
        %v1339 = vpow.pop %v1338
        %v1340 = vmul.f32 %v1307, 1.442695
        %v1341 = vpow.pop %v1340
        %v1342 = vmul.f32 %v1308, 1.442695
        %v1343 = vpow.pop %v1342
        %v1344 = vmul.f32 %v1309, 1.442695
        %v1345 = vpow.pop %v1344
        %v1346 = vmul.f32 %v1310, 1.442695
        %v1347 = vpow.pop %v1346
        %v1348 = vmul.f32 %v1311, 1.442695
        %v1349 = vpow.pop %v1348
        %v1350 = vmul.f32 %v1312, 1.442695
        %v1351 = vpow.pop %v1350
        %v1352 = vmul.f32 %v1313, 1.442695
        %v1353 = vpow.pop %v1352
        %v1354 = vmul.f32 %v1314, 1.442695
        %v1355 = vpow.pop %v1354
        %v1356 = vmul.f32 %v1315, 1.442695
        %v1357 = vpow.pop %v1356
        %v1358 = vmul.f32 %v1316, 1.442695
        %v1359 = vpow.pop %v1358
        %v1360 = vmul.f32 %v1317, 1.442695
        %v1361 = vpow.pop %v1360
        %v1362 = vmul.f32 %v1318, 1.442695
        %v1363 = vpow.pop %v1362
        %v1364 = vmul.f32 %v1319, 1.442695
        %v1365 = vpow.pop %v1364
        %v1366 = vmul.f32 %v1320, 1.442695
        %v1367 = vpow.pop %v1366
        %v1368 = vmul.f32 %v1321, 1.442695
        %v1369 = vpow.pop %v1368
        %v1370 = vmul.f32 %v1322, 1.442695
        %v1371 = vpow.pop %v1370
        %v1372 = vmul.f32 %v1323, 1.442695
        %v1373 = vpow.pop %v1372
        %v1374 = vmul.f32 %v1324, 1.442695
        %v1375 = vpow.pop %v1374
        %v1376 = vmul.f32 %v1325, 1.442695
        %v1377 = vpow.pop %v1376
        %v1378 = vmul.f32 %v1326, 1.442695
        %v1379 = vpow.pop %v1378
        %v1380 = vmul.f32 %v1327, 1.442695
        %v1381 = vpow.pop %v1380
        %v1382 = vmul.f32 %v1328, 1.442695
        %v1383 = vpow.pop %v1382
        %v1384 = vmul.f32 %v1329, 1.442695
        %v1385 = vpow.pop %v1384
        %v1386 = vmul.f32 %v1330, 1.442695
        %v1387 = vpow.pop %v1386
        %v1388 = vmul.f32 %v1331, 1.442695
        %v1389 = vpow.pop %v1388
        %v1390 = vmul.f32 %v1332, 1.442695
        %v1391 = vpow.pop %v1390
        %v1392 = vmul.f32 %v1333, 1.442695
        %v1393 = vpow.pop %v1392
        %v1394 = vmul.f32 %v1334, 1.442695
        %v1395 = vpow.pop %v1394
        %v1396 = vmul.f32 %v1335, 1.442695
        %v1397 = vpow.pop %v1396
        %v1398 = vmul.f32 %v1336, 1.442695
        %v1399 = vpow.pop %v1398
        %v1400 = vmul.f32 %v1337, 1.442695
        %v1401 = vpow.pop %v1400
        %v1402 = vld [vmem:[#allocation3] sm:$0xff]
        %v1403 = vld [vmem:[#allocation3 + $0x8] sm:$0xff]
        %v1404 = vld [vmem:[#allocation3 + $0x10] sm:$0xff]
        %v1405 = vld [vmem:[#allocation3 + $0x18] sm:$0xff]
        %v1406 = vld [vmem:[#allocation3 + $0x20] sm:$0xff]
        %v1407 = vld [vmem:[#allocation3 + $0x28] sm:$0xff]
        %v1408 = vld [vmem:[#allocation3 + $0x30] sm:$0xff]
        %v1409 = vld [vmem:[#allocation3 + $0x38] sm:$0xff]
        %v1410 = vld [vmem:[#allocation3 + $0x40] sm:$0xff]
        %v1411 = vld [vmem:[#allocation3 + $0x48] sm:$0xff]
        %v1412 = vld [vmem:[#allocation3 + $0x50] sm:$0xff]
        %v1413 = vld [vmem:[#allocation3 + $0x58] sm:$0xff]
        %v1414 = vld [vmem:[#allocation3 + $0x60] sm:$0xff]
        %v1415 = vld [vmem:[#allocation3 + $0x68] sm:$0xff]
        %v1416 = vld [vmem:[#allocation3 + $0x70] sm:$0xff]
        %v1417 = vld [vmem:[#allocation3 + $0x78] sm:$0xff]
        %v1418 = vld [vmem:[#allocation3 + $0x80] sm:$0xff]
        %v1419 = vld [vmem:[#allocation3 + $0x88] sm:$0xff]
        %v1420 = vld [vmem:[#allocation3 + $0x90] sm:$0xff]
        %v1421 = vld [vmem:[#allocation3 + $0x98] sm:$0xff]
        %v1422 = vld [vmem:[#allocation3 + $0xa0] sm:$0xff]
        %v1423 = vld [vmem:[#allocation3 + $0xa8] sm:$0xff]
        %v1424 = vld [vmem:[#allocation3 + $0xb0] sm:$0xff]
        %v1425 = vld [vmem:[#allocation3 + $0xb8] sm:$0xff]
        %v1426 = vld [vmem:[#allocation3 + $0xc0] sm:$0xff]
        %v1427 = vld [vmem:[#allocation3 + $0xc8] sm:$0xff]
        %v1428 = vld [vmem:[#allocation3 + $0xd0] sm:$0xff]
        %v1429 = vld [vmem:[#allocation3 + $0xd8] sm:$0xff]
        %v1430 = vld [vmem:[#allocation3 + $0xe0] sm:$0xff]
        %v1431 = vld [vmem:[#allocation3 + $0xe8] sm:$0xff]
        %v1432 = vld [vmem:[#allocation3 + $0xf0] sm:$0xff]
        %v1433 = vld [vmem:[#allocation3 + $0xf8] sm:$0xff]
        %v1434 = vmul.f32 %v1339, %v1402
        %v1435 = vmul.f32 %v1341, %v1403
        %v1436 = vmul.f32 %v1343, %v1404
        %v1437 = vmul.f32 %v1345, %v1405
        %v1438 = vmul.f32 %v1347, %v1406
        %v1439 = vmul.f32 %v1349, %v1407
        %v1440 = vmul.f32 %v1351, %v1408
        %v1441 = vmul.f32 %v1353, %v1409
        %v1442 = vmul.f32 %v1355, %v1410
        %v1443 = vmul.f32 %v1357, %v1411
        %v1444 = vmul.f32 %v1359, %v1412
        %v1445 = vmul.f32 %v1361, %v1413
        %v1446 = vmul.f32 %v1363, %v1414
        %v1447 = vmul.f32 %v1365, %v1415
        %v1448 = vmul.f32 %v1367, %v1416
        %v1449 = vmul.f32 %v1369, %v1417
        %v1450 = vmul.f32 %v1371, %v1418
        %v1451 = vmul.f32 %v1373, %v1419
        %v1452 = vmul.f32 %v1375, %v1420
        %v1453 = vmul.f32 %v1377, %v1421
        %v1454 = vmul.f32 %v1379, %v1422
        %v1455 = vmul.f32 %v1381, %v1423
        %v1456 = vmul.f32 %v1383, %v1424
        %v1457 = vmul.f32 %v1385, %v1425
        %v1458 = vmul.f32 %v1387, %v1426
        %v1459 = vmul.f32 %v1389, %v1427
        %v1460 = vmul.f32 %v1391, %v1428
        %v1461 = vmul.f32 %v1393, %v1429
        %v1462 = vmul.f32 %v1395, %v1430
        %v1463 = vmul.f32 %v1397, %v1431
        %v1464 = vmul.f32 %v1399, %v1432
        %v1465 = vmul.f32 %v1401, %v1433
        %1467 = vset.pattern.permute.xlu0 0
        %1468 = vperm.xlu0 %1467, %v1274
        %v1469 = vpop.permute.xlu0 %1468
        %1472 = vset.pattern.permute.xlu0 0
        %1473 = vperm.xlu0 %1472, %v1275
        %v1474 = vpop.permute.xlu0 %1473
        %1477 = vset.pattern.permute.xlu0 0
        %1478 = vperm.xlu0 %1477, %v1276
        %v1479 = vpop.permute.xlu0 %1478
        %1482 = vset.pattern.permute.xlu0 0
        %1483 = vperm.xlu0 %1482, %v1277
        %v1484 = vpop.permute.xlu0 %1483
        %1487 = vset.pattern.permute.xlu0 0
        %1488 = vperm.xlu0 %1487, %v1278
        %v1489 = vpop.permute.xlu0 %1488
        %1492 = vset.pattern.permute.xlu0 0
        %1493 = vperm.xlu0 %1492, %v1279
        %v1494 = vpop.permute.xlu0 %1493
        %1497 = vset.pattern.permute.xlu0 0
        %1498 = vperm.xlu0 %1497, %v1280
        %v1499 = vpop.permute.xlu0 %1498
        %1502 = vset.pattern.permute.xlu0 0
        %1503 = vperm.xlu0 %1502, %v1281
        %v1504 = vpop.permute.xlu0 %1503
        %1507 = vset.pattern.permute.xlu0 0
        %1508 = vperm.xlu0 %1507, %v1282
        %v1509 = vpop.permute.xlu0 %1508
        %1512 = vset.pattern.permute.xlu0 0
        %1513 = vperm.xlu0 %1512, %v1283
        %v1514 = vpop.permute.xlu0 %1513
        %1517 = vset.pattern.permute.xlu0 0
        %1518 = vperm.xlu0 %1517, %v1284
        %v1519 = vpop.permute.xlu0 %1518
        %1522 = vset.pattern.permute.xlu0 0
        %1523 = vperm.xlu0 %1522, %v1285
        %v1524 = vpop.permute.xlu0 %1523
        %1527 = vset.pattern.permute.xlu0 0
        %1528 = vperm.xlu0 %1527, %v1286
        %v1529 = vpop.permute.xlu0 %1528
        %1532 = vset.pattern.permute.xlu0 0
        %1533 = vperm.xlu0 %1532, %v1287
        %v1534 = vpop.permute.xlu0 %1533
        %1537 = vset.pattern.permute.xlu0 0
        %1538 = vperm.xlu0 %1537, %v1288
        %v1539 = vpop.permute.xlu0 %1538
        %1542 = vset.pattern.permute.xlu0 0
        %1543 = vperm.xlu0 %1542, %v1289
        %v1544 = vpop.permute.xlu0 %1543
        %1547 = vset.pattern.permute.xlu0 0
        %1548 = vperm.xlu0 %1547, %v1290
        %v1549 = vpop.permute.xlu0 %1548
        %1552 = vset.pattern.permute.xlu0 0
        %1553 = vperm.xlu0 %1552, %v1291
        %v1554 = vpop.permute.xlu0 %1553
        %1557 = vset.pattern.permute.xlu0 0
        %1558 = vperm.xlu0 %1557, %v1292
        %v1559 = vpop.permute.xlu0 %1558
        %1562 = vset.pattern.permute.xlu0 0
        %1563 = vperm.xlu0 %1562, %v1293
        %v1564 = vpop.permute.xlu0 %1563
        %1567 = vset.pattern.permute.xlu0 0
        %1568 = vperm.xlu0 %1567, %v1294
        %v1569 = vpop.permute.xlu0 %1568
        %1572 = vset.pattern.permute.xlu0 0
        %1573 = vperm.xlu0 %1572, %v1295
        %v1574 = vpop.permute.xlu0 %1573
        %1577 = vset.pattern.permute.xlu0 0
        %1578 = vperm.xlu0 %1577, %v1296
        %v1579 = vpop.permute.xlu0 %1578
        %1582 = vset.pattern.permute.xlu0 0
        %1583 = vperm.xlu0 %1582, %v1297
        %v1584 = vpop.permute.xlu0 %1583
        %1587 = vset.pattern.permute.xlu0 0
        %1588 = vperm.xlu0 %1587, %v1298
        %v1589 = vpop.permute.xlu0 %1588
        %1592 = vset.pattern.permute.xlu0 0
        %1593 = vperm.xlu0 %1592, %v1299
        %v1594 = vpop.permute.xlu0 %1593
        %1597 = vset.pattern.permute.xlu0 0
        %1598 = vperm.xlu0 %1597, %v1300
        %v1599 = vpop.permute.xlu0 %1598
        %1602 = vset.pattern.permute.xlu0 0
        %1603 = vperm.xlu0 %1602, %v1301
        %v1604 = vpop.permute.xlu0 %1603
        %1607 = vset.pattern.permute.xlu0 0
        %1608 = vperm.xlu0 %1607, %v1302
        %v1609 = vpop.permute.xlu0 %1608
        %1612 = vset.pattern.permute.xlu0 0
        %1613 = vperm.xlu0 %1612, %v1303
        %v1614 = vpop.permute.xlu0 %1613
        %1617 = vset.pattern.permute.xlu0 0
        %1618 = vperm.xlu0 %1617, %v1304
        %v1619 = vpop.permute.xlu0 %1618
        %1622 = vset.pattern.permute.xlu0 0
        %1623 = vperm.xlu0 %1622, %v1305
        %v1624 = vpop.permute.xlu0 %1623
        %v1626 = vsub.f32 %v630, %v1469
        %v1627 = vsub.f32 %v632, %v1469
        %v1628 = vsub.f32 %v887, %v1469
        %v1629 = vsub.f32 %v889, %v1469
        %v1630 = vsub.f32 %v636, %v1474
        %v1631 = vsub.f32 %v638, %v1474
        %v1632 = vsub.f32 %v893, %v1474
        %v1633 = vsub.f32 %v895, %v1474
        %v1634 = vsub.f32 %v642, %v1479
        %v1635 = vsub.f32 %v644, %v1479
        %v1636 = vsub.f32 %v899, %v1479
        %v1637 = vsub.f32 %v901, %v1479
        %v1638 = vsub.f32 %v648, %v1484
        %v1639 = vsub.f32 %v650, %v1484
        %v1640 = vsub.f32 %v905, %v1484
        %v1641 = vsub.f32 %v907, %v1484
        %v1642 = vsub.f32 %v654, %v1489
        %v1643 = vsub.f32 %v656, %v1489
        %v1644 = vsub.f32 %v911, %v1489
        %v1645 = vsub.f32 %v913, %v1489
        %v1646 = vsub.f32 %v660, %v1494
        %v1647 = vsub.f32 %v662, %v1494
        %v1648 = vsub.f32 %v917, %v1494
        %v1649 = vsub.f32 %v919, %v1494
        %v1650 = vsub.f32 %v666, %v1499
        %v1651 = vsub.f32 %v668, %v1499
        %v1652 = vsub.f32 %v923, %v1499
        %v1653 = vsub.f32 %v925, %v1499
        %v1654 = vsub.f32 %v672, %v1504
        %v1655 = vsub.f32 %v674, %v1504
        %v1656 = vsub.f32 %v929, %v1504
        %v1657 = vsub.f32 %v931, %v1504
        %v1658 = vsub.f32 %v678, %v1509
        %v1659 = vsub.f32 %v680, %v1509
        %v1660 = vsub.f32 %v935, %v1509
        %v1661 = vsub.f32 %v937, %v1509
        %v1662 = vsub.f32 %v684, %v1514
        %v1663 = vsub.f32 %v686, %v1514
        %v1664 = vsub.f32 %v941, %v1514
        %v1665 = vsub.f32 %v943, %v1514
        %v1666 = vsub.f32 %v690, %v1519
        %v1667 = vsub.f32 %v692, %v1519
        %v1668 = vsub.f32 %v947, %v1519
        %v1669 = vsub.f32 %v949, %v1519
        %v1670 = vsub.f32 %v696, %v1524
        %v1671 = vsub.f32 %v698, %v1524
        %v1672 = vsub.f32 %v953, %v1524
        %v1673 = vsub.f32 %v955, %v1524
        %v1674 = vsub.f32 %v702, %v1529
        %v1675 = vsub.f32 %v704, %v1529
        %v1676 = vsub.f32 %v959, %v1529
        %v1677 = vsub.f32 %v961, %v1529
        %v1678 = vsub.f32 %v708, %v1534
        %v1679 = vsub.f32 %v710, %v1534
        %v1680 = vsub.f32 %v965, %v1534
        %v1681 = vsub.f32 %v967, %v1534
        %v1682 = vsub.f32 %v714, %v1539
        %v1683 = vsub.f32 %v716, %v1539
        %v1684 = vsub.f32 %v971, %v1539
        %v1685 = vsub.f32 %v973, %v1539
        %v1686 = vsub.f32 %v720, %v1544
        %v1687 = vsub.f32 %v722, %v1544
        %v1688 = vsub.f32 %v977, %v1544
        %v1689 = vsub.f32 %v979, %v1544
        %v1690 = vsub.f32 %v726, %v1549
        %v1691 = vsub.f32 %v728, %v1549
        %v1692 = vsub.f32 %v983, %v1549
        %v1693 = vsub.f32 %v985, %v1549
        %v1694 = vsub.f32 %v732, %v1554
        %v1695 = vsub.f32 %v734, %v1554
        %v1696 = vsub.f32 %v989, %v1554
        %v1697 = vsub.f32 %v991, %v1554
        %v1698 = vsub.f32 %v738, %v1559
        %v1699 = vsub.f32 %v740, %v1559
        %v1700 = vsub.f32 %v995, %v1559
        %v1701 = vsub.f32 %v997, %v1559
        %v1702 = vsub.f32 %v744, %v1564
        %v1703 = vsub.f32 %v746, %v1564
        %v1704 = vsub.f32 %v1001, %v1564
        %v1705 = vsub.f32 %v1003, %v1564
        %v1706 = vsub.f32 %v750, %v1569
        %v1707 = vsub.f32 %v752, %v1569
        %v1708 = vsub.f32 %v1007, %v1569
        %v1709 = vsub.f32 %v1009, %v1569
        %v1710 = vsub.f32 %v756, %v1574
        %v1711 = vsub.f32 %v758, %v1574
        %v1712 = vsub.f32 %v1013, %v1574
        %v1713 = vsub.f32 %v1015, %v1574
        %v1714 = vsub.f32 %v762, %v1579
        %v1715 = vsub.f32 %v764, %v1579
        %v1716 = vsub.f32 %v1019, %v1579
        %v1717 = vsub.f32 %v1021, %v1579
        %v1718 = vsub.f32 %v768, %v1584
        %v1719 = vsub.f32 %v770, %v1584
        %v1720 = vsub.f32 %v1025, %v1584
        %v1721 = vsub.f32 %v1027, %v1584
        %v1722 = vsub.f32 %v774, %v1589
        %v1723 = vsub.f32 %v776, %v1589
        %v1724 = vsub.f32 %v1031, %v1589
        %v1725 = vsub.f32 %v1033, %v1589
        %v1726 = vsub.f32 %v780, %v1594
        %v1727 = vsub.f32 %v782, %v1594
        %v1728 = vsub.f32 %v1037, %v1594
        %v1729 = vsub.f32 %v1039, %v1594
        %v1730 = vsub.f32 %v786, %v1599
        %v1731 = vsub.f32 %v788, %v1599
        %v1732 = vsub.f32 %v1043, %v1599
        %v1733 = vsub.f32 %v1045, %v1599
        %v1734 = vsub.f32 %v792, %v1604
        %v1735 = vsub.f32 %v794, %v1604
        %v1736 = vsub.f32 %v1049, %v1604
        %v1737 = vsub.f32 %v1051, %v1604
        %v1738 = vsub.f32 %v798, %v1609
        %v1739 = vsub.f32 %v800, %v1609
        %v1740 = vsub.f32 %v1055, %v1609
        %v1741 = vsub.f32 %v1057, %v1609
        %v1742 = vsub.f32 %v804, %v1614
        %v1743 = vsub.f32 %v806, %v1614
        %v1744 = vsub.f32 %v1061, %v1614
        %v1745 = vsub.f32 %v1063, %v1614
        %v1746 = vsub.f32 %v810, %v1619
        %v1747 = vsub.f32 %v812, %v1619
        %v1748 = vsub.f32 %v1067, %v1619
        %v1749 = vsub.f32 %v1069, %v1619
        %v1750 = vsub.f32 %v816, %v1624
        %v1751 = vsub.f32 %v818, %v1624
        %v1752 = vsub.f32 %v1073, %v1624
        %v1753 = vsub.f32 %v1075, %v1624
        %v1754 = vmul.f32 %v1626, 1.442695
        %v1755 = vpow.pop %v1754
        %v1756 = vmul.f32 %v1627, 1.442695
        %v1757 = vpow.pop %v1756
        %v1758 = vmul.f32 %v1628, 1.442695
        %v1759 = vpow.pop %v1758
        %v1760 = vmul.f32 %v1629, 1.442695
        %v1761 = vpow.pop %v1760
        %v1762 = vmul.f32 %v1630, 1.442695
        %v1763 = vpow.pop %v1762
        %v1764 = vmul.f32 %v1631, 1.442695
        %v1765 = vpow.pop %v1764
        %v1766 = vmul.f32 %v1632, 1.442695
        %v1767 = vpow.pop %v1766
        %v1768 = vmul.f32 %v1633, 1.442695
        %v1769 = vpow.pop %v1768
        %v1770 = vmul.f32 %v1634, 1.442695
        %v1771 = vpow.pop %v1770
        %v1772 = vmul.f32 %v1635, 1.442695
        %v1773 = vpow.pop %v1772
        %v1774 = vmul.f32 %v1636, 1.442695
        %v1775 = vpow.pop %v1774
        %v1776 = vmul.f32 %v1637, 1.442695
        %v1777 = vpow.pop %v1776
        %v1778 = vmul.f32 %v1638, 1.442695
        %v1779 = vpow.pop %v1778
        %v1780 = vmul.f32 %v1639, 1.442695
        %v1781 = vpow.pop %v1780
        %v1782 = vmul.f32 %v1640, 1.442695
        %v1783 = vpow.pop %v1782
        %v1784 = vmul.f32 %v1641, 1.442695
        %v1785 = vpow.pop %v1784
        %v1786 = vmul.f32 %v1642, 1.442695
        %v1787 = vpow.pop %v1786
        %v1788 = vmul.f32 %v1643, 1.442695
        %v1789 = vpow.pop %v1788
        %v1790 = vmul.f32 %v1644, 1.442695
        %v1791 = vpow.pop %v1790
        %v1792 = vmul.f32 %v1645, 1.442695
        %v1793 = vpow.pop %v1792
        %v1794 = vmul.f32 %v1646, 1.442695
        %v1795 = vpow.pop %v1794
        %v1796 = vmul.f32 %v1647, 1.442695
        %v1797 = vpow.pop %v1796
        %v1798 = vmul.f32 %v1648, 1.442695
        %v1799 = vpow.pop %v1798
        %v1800 = vmul.f32 %v1649, 1.442695
        %v1801 = vpow.pop %v1800
        %v1802 = vmul.f32 %v1650, 1.442695
        %v1803 = vpow.pop %v1802
        %v1804 = vmul.f32 %v1651, 1.442695
        %v1805 = vpow.pop %v1804
        %v1806 = vmul.f32 %v1652, 1.442695
        %v1807 = vpow.pop %v1806
        %v1808 = vmul.f32 %v1653, 1.442695
        %v1809 = vpow.pop %v1808
        %v1810 = vmul.f32 %v1654, 1.442695
        %v1811 = vpow.pop %v1810
        %v1812 = vmul.f32 %v1655, 1.442695
        %v1813 = vpow.pop %v1812
        %v1814 = vmul.f32 %v1656, 1.442695
        %v1815 = vpow.pop %v1814
        %v1816 = vmul.f32 %v1657, 1.442695
        %v1817 = vpow.pop %v1816
        %v1818 = vmul.f32 %v1658, 1.442695
        %v1819 = vpow.pop %v1818
        %v1820 = vmul.f32 %v1659, 1.442695
        %v1821 = vpow.pop %v1820
        %v1822 = vmul.f32 %v1660, 1.442695
        %v1823 = vpow.pop %v1822
        %v1824 = vmul.f32 %v1661, 1.442695
        %v1825 = vpow.pop %v1824
        %v1826 = vmul.f32 %v1662, 1.442695
        %v1827 = vpow.pop %v1826
        %v1828 = vmul.f32 %v1663, 1.442695
        %v1829 = vpow.pop %v1828
        %v1830 = vmul.f32 %v1664, 1.442695
        %v1831 = vpow.pop %v1830
        %v1832 = vmul.f32 %v1665, 1.442695
        %v1833 = vpow.pop %v1832
        %v1834 = vmul.f32 %v1666, 1.442695
        %v1835 = vpow.pop %v1834
        %v1836 = vmul.f32 %v1667, 1.442695
        %v1837 = vpow.pop %v1836
        %v1838 = vmul.f32 %v1668, 1.442695
        %v1839 = vpow.pop %v1838
        %v1840 = vmul.f32 %v1669, 1.442695
        %v1841 = vpow.pop %v1840
        %v1842 = vmul.f32 %v1670, 1.442695
        %v1843 = vpow.pop %v1842
        %v1844 = vmul.f32 %v1671, 1.442695
        %v1845 = vpow.pop %v1844
        %v1846 = vmul.f32 %v1672, 1.442695
        %v1847 = vpow.pop %v1846
        %v1848 = vmul.f32 %v1673, 1.442695
        %v1849 = vpow.pop %v1848
        %v1850 = vmul.f32 %v1674, 1.442695
        %v1851 = vpow.pop %v1850
        %v1852 = vmul.f32 %v1675, 1.442695
        %v1853 = vpow.pop %v1852
        %v1854 = vmul.f32 %v1676, 1.442695
        %v1855 = vpow.pop %v1854
        %v1856 = vmul.f32 %v1677, 1.442695
        %v1857 = vpow.pop %v1856
        %v1858 = vmul.f32 %v1678, 1.442695
        %v1859 = vpow.pop %v1858
        %v1860 = vmul.f32 %v1679, 1.442695
        %v1861 = vpow.pop %v1860
        %v1862 = vmul.f32 %v1680, 1.442695
        %v1863 = vpow.pop %v1862
        %v1864 = vmul.f32 %v1681, 1.442695
        %v1865 = vpow.pop %v1864
        %v1866 = vmul.f32 %v1682, 1.442695
        %v1867 = vpow.pop %v1866
        %v1868 = vmul.f32 %v1683, 1.442695
        %v1869 = vpow.pop %v1868
        %v1870 = vmul.f32 %v1684, 1.442695
        %v1871 = vpow.pop %v1870
        %v1872 = vmul.f32 %v1685, 1.442695
        %v1873 = vpow.pop %v1872
        %v1874 = vmul.f32 %v1686, 1.442695
        %v1875 = vpow.pop %v1874
        %v1876 = vmul.f32 %v1687, 1.442695
        %v1877 = vpow.pop %v1876
        %v1878 = vmul.f32 %v1688, 1.442695
        %v1879 = vpow.pop %v1878
        %v1880 = vmul.f32 %v1689, 1.442695
        %v1881 = vpow.pop %v1880
        %v1882 = vmul.f32 %v1690, 1.442695
        %v1883 = vpow.pop %v1882
        %v1884 = vmul.f32 %v1691, 1.442695
        %v1885 = vpow.pop %v1884
        %v1886 = vmul.f32 %v1692, 1.442695
        %v1887 = vpow.pop %v1886
        %v1888 = vmul.f32 %v1693, 1.442695
        %v1889 = vpow.pop %v1888
        %v1890 = vmul.f32 %v1694, 1.442695
        %v1891 = vpow.pop %v1890
        %v1892 = vmul.f32 %v1695, 1.442695
        %v1893 = vpow.pop %v1892
        %v1894 = vmul.f32 %v1696, 1.442695
        %v1895 = vpow.pop %v1894
        %v1896 = vmul.f32 %v1697, 1.442695
        %v1897 = vpow.pop %v1896
        %v1898 = vmul.f32 %v1698, 1.442695
        %v1899 = vpow.pop %v1898
        %v1900 = vmul.f32 %v1699, 1.442695
        %v1901 = vpow.pop %v1900
        %v1902 = vmul.f32 %v1700, 1.442695
        %v1903 = vpow.pop %v1902
        %v1904 = vmul.f32 %v1701, 1.442695
        %v1905 = vpow.pop %v1904
        %v1906 = vmul.f32 %v1702, 1.442695
        %v1907 = vpow.pop %v1906
        %v1908 = vmul.f32 %v1703, 1.442695
        %v1909 = vpow.pop %v1908
        %v1910 = vmul.f32 %v1704, 1.442695
        %v1911 = vpow.pop %v1910
        %v1912 = vmul.f32 %v1705, 1.442695
        %v1913 = vpow.pop %v1912
        %v1914 = vmul.f32 %v1706, 1.442695
        %v1915 = vpow.pop %v1914
        %v1916 = vmul.f32 %v1707, 1.442695
        %v1917 = vpow.pop %v1916
        %v1918 = vmul.f32 %v1708, 1.442695
        %v1919 = vpow.pop %v1918
        %v1920 = vmul.f32 %v1709, 1.442695
        %v1921 = vpow.pop %v1920
        %v1922 = vmul.f32 %v1710, 1.442695
        %v1923 = vpow.pop %v1922
        %v1924 = vmul.f32 %v1711, 1.442695
        %v1925 = vpow.pop %v1924
        %v1926 = vmul.f32 %v1712, 1.442695
        %v1927 = vpow.pop %v1926
        %v1928 = vmul.f32 %v1713, 1.442695
        %v1929 = vpow.pop %v1928
        %v1930 = vmul.f32 %v1714, 1.442695
        %v1931 = vpow.pop %v1930
        %v1932 = vmul.f32 %v1715, 1.442695
        %v1933 = vpow.pop %v1932
        %v1934 = vmul.f32 %v1716, 1.442695
        %v1935 = vpow.pop %v1934
        %v1936 = vmul.f32 %v1717, 1.442695
        %v1937 = vpow.pop %v1936
        %v1938 = vmul.f32 %v1718, 1.442695
        %v1939 = vpow.pop %v1938
        %v1940 = vmul.f32 %v1719, 1.442695
        %v1941 = vpow.pop %v1940
        %v1942 = vmul.f32 %v1720, 1.442695
        %v1943 = vpow.pop %v1942
        %v1944 = vmul.f32 %v1721, 1.442695
        %v1945 = vpow.pop %v1944
        %v1946 = vmul.f32 %v1722, 1.442695
        %v1947 = vpow.pop %v1946
        %v1948 = vmul.f32 %v1723, 1.442695
        %v1949 = vpow.pop %v1948
        %v1950 = vmul.f32 %v1724, 1.442695
        %v1951 = vpow.pop %v1950
        %v1952 = vmul.f32 %v1725, 1.442695
        %v1953 = vpow.pop %v1952
        %v1954 = vmul.f32 %v1726, 1.442695
        %v1955 = vpow.pop %v1954
        %v1956 = vmul.f32 %v1727, 1.442695
        %v1957 = vpow.pop %v1956
        %v1958 = vmul.f32 %v1728, 1.442695
        %v1959 = vpow.pop %v1958
        %v1960 = vmul.f32 %v1729, 1.442695
        %v1961 = vpow.pop %v1960
        %v1962 = vmul.f32 %v1730, 1.442695
        %v1963 = vpow.pop %v1962
        %v1964 = vmul.f32 %v1731, 1.442695
        %v1965 = vpow.pop %v1964
        %v1966 = vmul.f32 %v1732, 1.442695
        %v1967 = vpow.pop %v1966
        %v1968 = vmul.f32 %v1733, 1.442695
        %v1969 = vpow.pop %v1968
        %v1970 = vmul.f32 %v1734, 1.442695
        %v1971 = vpow.pop %v1970
        %v1972 = vmul.f32 %v1735, 1.442695
        %v1973 = vpow.pop %v1972
        %v1974 = vmul.f32 %v1736, 1.442695
        %v1975 = vpow.pop %v1974
        %v1976 = vmul.f32 %v1737, 1.442695
        %v1977 = vpow.pop %v1976
        %v1978 = vmul.f32 %v1738, 1.442695
        %v1979 = vpow.pop %v1978
        %v1980 = vmul.f32 %v1739, 1.442695
        %v1981 = vpow.pop %v1980
        %v1982 = vmul.f32 %v1740, 1.442695
        %v1983 = vpow.pop %v1982
        %v1984 = vmul.f32 %v1741, 1.442695
        %v1985 = vpow.pop %v1984
        %v1986 = vmul.f32 %v1742, 1.442695
        %v1987 = vpow.pop %v1986
        %v1988 = vmul.f32 %v1743, 1.442695
        %v1989 = vpow.pop %v1988
        %v1990 = vmul.f32 %v1744, 1.442695
        %v1991 = vpow.pop %v1990
        %v1992 = vmul.f32 %v1745, 1.442695
        %v1993 = vpow.pop %v1992
        %v1994 = vmul.f32 %v1746, 1.442695
        %v1995 = vpow.pop %v1994
        %v1996 = vmul.f32 %v1747, 1.442695
        %v1997 = vpow.pop %v1996
        %v1998 = vmul.f32 %v1748, 1.442695
        %v1999 = vpow.pop %v1998
        %v2000 = vmul.f32 %v1749, 1.442695
        %v2001 = vpow.pop %v2000
        %v2002 = vmul.f32 %v1750, 1.442695
        %v2003 = vpow.pop %v2002
        %v2004 = vmul.f32 %v1751, 1.442695
        %v2005 = vpow.pop %v2004
        %v2006 = vmul.f32 %v1752, 1.442695
        %v2007 = vpow.pop %v2006
        %v2008 = vmul.f32 %v1753, 1.442695
        %v2009 = vpow.pop %v2008
        %v2010 = vadd.f32 %v1755, %v1757
        %v2011 = vadd.f32 %v2010, %v1759
        %v2012 = vadd.f32 %v2011, %v1761
        %2013 = vadd.xlane.f32.xlu0 %v2012
        %v2014 = vpop.xlane.xlu0 %2013
        %v2015 = vadd.f32 %v1763, %v1765
        %v2016 = vadd.f32 %v2015, %v1767
        %v2017 = vadd.f32 %v2016, %v1769
        %2018 = vadd.xlane.f32.xlu0 %v2017
        %v2019 = vpop.xlane.xlu0 %2018
        %v2020 = vadd.f32 %v1771, %v1773
        %v2021 = vadd.f32 %v2020, %v1775
        %v2022 = vadd.f32 %v2021, %v1777
        %2023 = vadd.xlane.f32.xlu0 %v2022
        %v2024 = vpop.xlane.xlu0 %2023
        %v2025 = vadd.f32 %v1779, %v1781
        %v2026 = vadd.f32 %v2025, %v1783
        %v2027 = vadd.f32 %v2026, %v1785
        %2028 = vadd.xlane.f32.xlu0 %v2027
        %v2029 = vpop.xlane.xlu0 %2028
        %v2030 = vadd.f32 %v1787, %v1789
        %v2031 = vadd.f32 %v2030, %v1791
        %v2032 = vadd.f32 %v2031, %v1793
        %2033 = vadd.xlane.f32.xlu0 %v2032
        %v2034 = vpop.xlane.xlu0 %2033
        %v2035 = vadd.f32 %v1795, %v1797
        %v2036 = vadd.f32 %v2035, %v1799
        %v2037 = vadd.f32 %v2036, %v1801
        %2038 = vadd.xlane.f32.xlu0 %v2037
        %v2039 = vpop.xlane.xlu0 %2038
        %v2040 = vadd.f32 %v1803, %v1805
        %v2041 = vadd.f32 %v2040, %v1807
        %v2042 = vadd.f32 %v2041, %v1809
        %2043 = vadd.xlane.f32.xlu0 %v2042
        %v2044 = vpop.xlane.xlu0 %2043
        %v2045 = vadd.f32 %v1811, %v1813
        %v2046 = vadd.f32 %v2045, %v1815
        %v2047 = vadd.f32 %v2046, %v1817
        %2048 = vadd.xlane.f32.xlu0 %v2047
        %v2049 = vpop.xlane.xlu0 %2048
        %v2050 = vadd.f32 %v1819, %v1821
        %v2051 = vadd.f32 %v2050, %v1823
        %v2052 = vadd.f32 %v2051, %v1825
        %2053 = vadd.xlane.f32.xlu0 %v2052
        %v2054 = vpop.xlane.xlu0 %2053
        %v2055 = vadd.f32 %v1827, %v1829
        %v2056 = vadd.f32 %v2055, %v1831
        %v2057 = vadd.f32 %v2056, %v1833
        %2058 = vadd.xlane.f32.xlu0 %v2057
        %v2059 = vpop.xlane.xlu0 %2058
        %v2060 = vadd.f32 %v1835, %v1837
        %v2061 = vadd.f32 %v2060, %v1839
        %v2062 = vadd.f32 %v2061, %v1841
        %2063 = vadd.xlane.f32.xlu0 %v2062
        %v2064 = vpop.xlane.xlu0 %2063
        %v2065 = vadd.f32 %v1843, %v1845
        %v2066 = vadd.f32 %v2065, %v1847
        %v2067 = vadd.f32 %v2066, %v1849
        %2068 = vadd.xlane.f32.xlu0 %v2067
        %v2069 = vpop.xlane.xlu0 %2068
        %v2070 = vadd.f32 %v1851, %v1853
        %v2071 = vadd.f32 %v2070, %v1855
        %v2072 = vadd.f32 %v2071, %v1857
        %2073 = vadd.xlane.f32.xlu0 %v2072
        %v2074 = vpop.xlane.xlu0 %2073
        %v2075 = vadd.f32 %v1859, %v1861
        %v2076 = vadd.f32 %v2075, %v1863
        %v2077 = vadd.f32 %v2076, %v1865
        %2078 = vadd.xlane.f32.xlu0 %v2077
        %v2079 = vpop.xlane.xlu0 %2078
        %v2080 = vadd.f32 %v1867, %v1869
        %v2081 = vadd.f32 %v2080, %v1871
        %v2082 = vadd.f32 %v2081, %v1873
        %2083 = vadd.xlane.f32.xlu0 %v2082
        %v2084 = vpop.xlane.xlu0 %2083
        %v2085 = vadd.f32 %v1875, %v1877
        %v2086 = vadd.f32 %v2085, %v1879
        %v2087 = vadd.f32 %v2086, %v1881
        %2088 = vadd.xlane.f32.xlu0 %v2087
        %v2089 = vpop.xlane.xlu0 %2088
        %v2090 = vadd.f32 %v1883, %v1885
        %v2091 = vadd.f32 %v2090, %v1887
        %v2092 = vadd.f32 %v2091, %v1889
        %2093 = vadd.xlane.f32.xlu0 %v2092
        %v2094 = vpop.xlane.xlu0 %2093
        %v2095 = vadd.f32 %v1891, %v1893
        %v2096 = vadd.f32 %v2095, %v1895
        %v2097 = vadd.f32 %v2096, %v1897
        %2098 = vadd.xlane.f32.xlu0 %v2097
        %v2099 = vpop.xlane.xlu0 %2098
        %v2100 = vadd.f32 %v1899, %v1901
        %v2101 = vadd.f32 %v2100, %v1903
        %v2102 = vadd.f32 %v2101, %v1905
        %2103 = vadd.xlane.f32.xlu0 %v2102
        %v2104 = vpop.xlane.xlu0 %2103
        %v2105 = vadd.f32 %v1907, %v1909
        %v2106 = vadd.f32 %v2105, %v1911
        %v2107 = vadd.f32 %v2106, %v1913
        %2108 = vadd.xlane.f32.xlu0 %v2107
        %v2109 = vpop.xlane.xlu0 %2108
        %v2110 = vadd.f32 %v1915, %v1917
        %v2111 = vadd.f32 %v2110, %v1919
        %v2112 = vadd.f32 %v2111, %v1921
        %2113 = vadd.xlane.f32.xlu0 %v2112
        %v2114 = vpop.xlane.xlu0 %2113
        %v2115 = vadd.f32 %v1923, %v1925
        %v2116 = vadd.f32 %v2115, %v1927
        %v2117 = vadd.f32 %v2116, %v1929
        %2118 = vadd.xlane.f32.xlu0 %v2117
        %v2119 = vpop.xlane.xlu0 %2118
        %v2120 = vadd.f32 %v1931, %v1933
        %v2121 = vadd.f32 %v2120, %v1935
        %v2122 = vadd.f32 %v2121, %v1937
        %2123 = vadd.xlane.f32.xlu0 %v2122
        %v2124 = vpop.xlane.xlu0 %2123
        %v2125 = vadd.f32 %v1939, %v1941
        %v2126 = vadd.f32 %v2125, %v1943
        %v2127 = vadd.f32 %v2126, %v1945
        %2128 = vadd.xlane.f32.xlu0 %v2127
        %v2129 = vpop.xlane.xlu0 %2128
        %v2130 = vadd.f32 %v1947, %v1949
        %v2131 = vadd.f32 %v2130, %v1951
        %v2132 = vadd.f32 %v2131, %v1953
        %2133 = vadd.xlane.f32.xlu0 %v2132
        %v2134 = vpop.xlane.xlu0 %2133
        %v2135 = vadd.f32 %v1955, %v1957
        %v2136 = vadd.f32 %v2135, %v1959
        %v2137 = vadd.f32 %v2136, %v1961
        %2138 = vadd.xlane.f32.xlu0 %v2137
        %v2139 = vpop.xlane.xlu0 %2138
        %v2140 = vadd.f32 %v1963, %v1965
        %v2141 = vadd.f32 %v2140, %v1967
        %v2142 = vadd.f32 %v2141, %v1969
        %2143 = vadd.xlane.f32.xlu0 %v2142
        %v2144 = vpop.xlane.xlu0 %2143
        %v2145 = vadd.f32 %v1971, %v1973
        %v2146 = vadd.f32 %v2145, %v1975
        %v2147 = vadd.f32 %v2146, %v1977
        %2148 = vadd.xlane.f32.xlu0 %v2147
        %v2149 = vpop.xlane.xlu0 %2148
        %v2150 = vadd.f32 %v1979, %v1981
        %v2151 = vadd.f32 %v2150, %v1983
        %v2152 = vadd.f32 %v2151, %v1985
        %2153 = vadd.xlane.f32.xlu0 %v2152
        %v2154 = vpop.xlane.xlu0 %2153
        %v2155 = vadd.f32 %v1987, %v1989
        %v2156 = vadd.f32 %v2155, %v1991
        %v2157 = vadd.f32 %v2156, %v1993
        %2158 = vadd.xlane.f32.xlu0 %v2157
        %v2159 = vpop.xlane.xlu0 %2158
        %v2160 = vadd.f32 %v1995, %v1997
        %v2161 = vadd.f32 %v2160, %v1999
        %v2162 = vadd.f32 %v2161, %v2001
        %2163 = vadd.xlane.f32.xlu0 %v2162
        %v2164 = vpop.xlane.xlu0 %2163
        %v2165 = vadd.f32 %v2003, %v2005
        %v2166 = vadd.f32 %v2165, %v2007
        %v2167 = vadd.f32 %v2166, %v2009
        %2168 = vadd.xlane.f32.xlu0 %v2167
        %v2169 = vpop.xlane.xlu0 %2168
        %v2170 = vadd.f32 %v1434, %v2014
        %v2171 = vadd.f32 %v1435, %v2019
        %v2172 = vadd.f32 %v1436, %v2024
        %v2173 = vadd.f32 %v1437, %v2029
        %v2174 = vadd.f32 %v1438, %v2034
        %v2175 = vadd.f32 %v1439, %v2039
        %v2176 = vadd.f32 %v1440, %v2044
        %v2177 = vadd.f32 %v1441, %v2049
        %v2178 = vadd.f32 %v1442, %v2054
        %v2179 = vadd.f32 %v1443, %v2059
        %v2180 = vadd.f32 %v1444, %v2064
        %v2181 = vadd.f32 %v1445, %v2069
        %v2182 = vadd.f32 %v1446, %v2074
        %v2183 = vadd.f32 %v1447, %v2079
        %v2184 = vadd.f32 %v1448, %v2084
        %v2185 = vadd.f32 %v1449, %v2089
        %v2186 = vadd.f32 %v1450, %v2094
        %v2187 = vadd.f32 %v1451, %v2099
        %v2188 = vadd.f32 %v1452, %v2104
        %v2189 = vadd.f32 %v1453, %v2109
        %v2190 = vadd.f32 %v1454, %v2114
        %v2191 = vadd.f32 %v1455, %v2119
        %v2192 = vadd.f32 %v1456, %v2124
        %v2193 = vadd.f32 %v1457, %v2129
        %v2194 = vadd.f32 %v1458, %v2134
        %v2195 = vadd.f32 %v1459, %v2139
        %v2196 = vadd.f32 %v1460, %v2144
        %v2197 = vadd.f32 %v1461, %v2149
        %v2198 = vadd.f32 %v1462, %v2154
        %v2199 = vadd.f32 %v1463, %v2159
        %v2200 = vadd.f32 %v1464, %v2164
        %v2201 = vadd.f32 %v1465, %v2169
        %vm2202 = vcmask 7168
        %2203 = vst.msk [vmem:[#allocation3] sm:$0xff] %vm2202, %v2170
        %2204 = vst.msk [vmem:[#allocation3 + $0x8] sm:$0xff] %vm2202, %v2171
        %2205 = vst.msk [vmem:[#allocation3 + $0x10] sm:$0xff] %vm2202, %v2172
        %2206 = vst.msk [vmem:[#allocation3 + $0x18] sm:$0xff] %vm2202, %v2173
        %2207 = vst.msk [vmem:[#allocation3 + $0x20] sm:$0xff] %vm2202, %v2174
        %2208 = vst.msk [vmem:[#allocation3 + $0x28] sm:$0xff] %vm2202, %v2175
        %2209 = vst.msk [vmem:[#allocation3 + $0x30] sm:$0xff] %vm2202, %v2176
        %2210 = vst.msk [vmem:[#allocation3 + $0x38] sm:$0xff] %vm2202, %v2177
        %2211 = vst.msk [vmem:[#allocation3 + $0x40] sm:$0xff] %vm2202, %v2178
        %2212 = vst.msk [vmem:[#allocation3 + $0x48] sm:$0xff] %vm2202, %v2179
        %2213 = vst.msk [vmem:[#allocation3 + $0x50] sm:$0xff] %vm2202, %v2180
        %2214 = vst.msk [vmem:[#allocation3 + $0x58] sm:$0xff] %vm2202, %v2181
        %2215 = vst.msk [vmem:[#allocation3 + $0x60] sm:$0xff] %vm2202, %v2182
        %2216 = vst.msk [vmem:[#allocation3 + $0x68] sm:$0xff] %vm2202, %v2183
        %2217 = vst.msk [vmem:[#allocation3 + $0x70] sm:$0xff] %vm2202, %v2184
        %2218 = vst.msk [vmem:[#allocation3 + $0x78] sm:$0xff] %vm2202, %v2185
        %2219 = vst.msk [vmem:[#allocation3 + $0x80] sm:$0xff] %vm2202, %v2186
        %2220 = vst.msk [vmem:[#allocation3 + $0x88] sm:$0xff] %vm2202, %v2187
        %2221 = vst.msk [vmem:[#allocation3 + $0x90] sm:$0xff] %vm2202, %v2188
        %2222 = vst.msk [vmem:[#allocation3 + $0x98] sm:$0xff] %vm2202, %v2189
        %2223 = vst.msk [vmem:[#allocation3 + $0xa0] sm:$0xff] %vm2202, %v2190
        %2224 = vst.msk [vmem:[#allocation3 + $0xa8] sm:$0xff] %vm2202, %v2191
        %2225 = vst.msk [vmem:[#allocation3 + $0xb0] sm:$0xff] %vm2202, %v2192
        %2226 = vst.msk [vmem:[#allocation3 + $0xb8] sm:$0xff] %vm2202, %v2193
        %2227 = vst.msk [vmem:[#allocation3 + $0xc0] sm:$0xff] %vm2202, %v2194
        %2228 = vst.msk [vmem:[#allocation3 + $0xc8] sm:$0xff] %vm2202, %v2195
        %2229 = vst.msk [vmem:[#allocation3 + $0xd0] sm:$0xff] %vm2202, %v2196
        %2230 = vst.msk [vmem:[#allocation3 + $0xd8] sm:$0xff] %vm2202, %v2197
        %2231 = vst.msk [vmem:[#allocation3 + $0xe0] sm:$0xff] %vm2202, %v2198
        %2232 = vst.msk [vmem:[#allocation3 + $0xe8] sm:$0xff] %vm2202, %v2199
        %2233 = vst.msk [vmem:[#allocation3 + $0xf0] sm:$0xff] %vm2202, %v2200
        %2234 = vst.msk [vmem:[#allocation3 + $0xf8] sm:$0xff] %vm2202, %v2201
        %2235 = vst.msk [vmem:[#allocation2] sm:$0xff] %vm2202, %v1274
        %2236 = vst.msk [vmem:[#allocation2 + $0x8] sm:$0xff] %vm2202, %v1275
        %2237 = vst.msk [vmem:[#allocation2 + $0x10] sm:$0xff] %vm2202, %v1276
        %2238 = vst.msk [vmem:[#allocation2 + $0x18] sm:$0xff] %vm2202, %v1277
        %2239 = vst.msk [vmem:[#allocation2 + $0x20] sm:$0xff] %vm2202, %v1278
        %2240 = vst.msk [vmem:[#allocation2 + $0x28] sm:$0xff] %vm2202, %v1279
        %2241 = vst.msk [vmem:[#allocation2 + $0x30] sm:$0xff] %vm2202, %v1280
        %2242 = vst.msk [vmem:[#allocation2 + $0x38] sm:$0xff] %vm2202, %v1281
        %2243 = vst.msk [vmem:[#allocation2 + $0x40] sm:$0xff] %vm2202, %v1282
        %2244 = vst.msk [vmem:[#allocation2 + $0x48] sm:$0xff] %vm2202, %v1283
        %2245 = vst.msk [vmem:[#allocation2 + $0x50] sm:$0xff] %vm2202, %v1284
        %2246 = vst.msk [vmem:[#allocation2 + $0x58] sm:$0xff] %vm2202, %v1285
        %2247 = vst.msk [vmem:[#allocation2 + $0x60] sm:$0xff] %vm2202, %v1286
        %2248 = vst.msk [vmem:[#allocation2 + $0x68] sm:$0xff] %vm2202, %v1287
        %2249 = vst.msk [vmem:[#allocation2 + $0x70] sm:$0xff] %vm2202, %v1288
        %2250 = vst.msk [vmem:[#allocation2 + $0x78] sm:$0xff] %vm2202, %v1289
        %2251 = vst.msk [vmem:[#allocation2 + $0x80] sm:$0xff] %vm2202, %v1290
        %2252 = vst.msk [vmem:[#allocation2 + $0x88] sm:$0xff] %vm2202, %v1291
        %2253 = vst.msk [vmem:[#allocation2 + $0x90] sm:$0xff] %vm2202, %v1292
        %2254 = vst.msk [vmem:[#allocation2 + $0x98] sm:$0xff] %vm2202, %v1293
        %2255 = vst.msk [vmem:[#allocation2 + $0xa0] sm:$0xff] %vm2202, %v1294
        %2256 = vst.msk [vmem:[#allocation2 + $0xa8] sm:$0xff] %vm2202, %v1295
        %2257 = vst.msk [vmem:[#allocation2 + $0xb0] sm:$0xff] %vm2202, %v1296
        %2258 = vst.msk [vmem:[#allocation2 + $0xb8] sm:$0xff] %vm2202, %v1297
        %2259 = vst.msk [vmem:[#allocation2 + $0xc0] sm:$0xff] %vm2202, %v1298
        %2260 = vst.msk [vmem:[#allocation2 + $0xc8] sm:$0xff] %vm2202, %v1299
        %2261 = vst.msk [vmem:[#allocation2 + $0xd0] sm:$0xff] %vm2202, %v1300
        %2262 = vst.msk [vmem:[#allocation2 + $0xd8] sm:$0xff] %vm2202, %v1301
        %2263 = vst.msk [vmem:[#allocation2 + $0xe0] sm:$0xff] %vm2202, %v1302
        %2264 = vst.msk [vmem:[#allocation2 + $0xe8] sm:$0xff] %vm2202, %v1303
        %2265 = vst.msk [vmem:[#allocation2 + $0xf0] sm:$0xff] %vm2202, %v1304
        %2266 = vst.msk [vmem:[#allocation2 + $0xf8] sm:$0xff] %vm2202, %v1305
        %v2267 = vld [vmem:[%s260] sm:$0xff]
        %v2268 = vld [vmem:[%s260 + $0x8] sm:$0xff]
        %v2269 = vld [vmem:[%s260 + $0x10] sm:$0xff]
        %v2270 = vld [vmem:[%s260 + $0x18] sm:$0xff]
        %v2271 = vld [vmem:[%s260 + $0x20] sm:$0xff]
        %v2272 = vld [vmem:[%s260 + $0x28] sm:$0xff]
        %v2273 = vld [vmem:[%s260 + $0x30] sm:$0xff]
        %v2274 = vld [vmem:[%s260 + $0x38] sm:$0xff]
        %v2275 = vld [vmem:[%s260 + $0x40] sm:$0xff]
        %v2276 = vld [vmem:[%s260 + $0x48] sm:$0xff]
        %v2277 = vld [vmem:[%s260 + $0x50] sm:$0xff]
        %v2278 = vld [vmem:[%s260 + $0x58] sm:$0xff]
        %v2279 = vld [vmem:[%s260 + $0x60] sm:$0xff]
        %v2280 = vld [vmem:[%s260 + $0x68] sm:$0xff]
        %v2281 = vld [vmem:[%s260 + $0x70] sm:$0xff]
        %v2282 = vld [vmem:[%s260 + $0x78] sm:$0xff]
        %v2283 = vld [vmem:[%s260 + $0x80] sm:$0xff]
        %v2284 = vld [vmem:[%s260 + $0x88] sm:$0xff]
        %v2285 = vld [vmem:[%s260 + $0x90] sm:$0xff]
        %v2286 = vld [vmem:[%s260 + $0x98] sm:$0xff]
        %v2287 = vld [vmem:[%s260 + $0xa0] sm:$0xff]
        %v2288 = vld [vmem:[%s260 + $0xa8] sm:$0xff]
        %v2289 = vld [vmem:[%s260 + $0xb0] sm:$0xff]
        %v2290 = vld [vmem:[%s260 + $0xb8] sm:$0xff]
        %v2291 = vld [vmem:[%s260 + $0xc0] sm:$0xff]
        %v2292 = vld [vmem:[%s260 + $0xc8] sm:$0xff]
        %v2293 = vld [vmem:[%s260 + $0xd0] sm:$0xff]
        %v2294 = vld [vmem:[%s260 + $0xd8] sm:$0xff]
        %v2295 = vld [vmem:[%s260 + $0xe0] sm:$0xff]
        %v2296 = vld [vmem:[%s260 + $0xe8] sm:$0xff]
        %v2297 = vld [vmem:[%s260 + $0xf0] sm:$0xff]
        %v2298 = vld [vmem:[%s260 + $0xf8] sm:$0xff]
        %s2299 = smul.u32 %s25, 512
        %v2300 = vstv %s2299
        %v2301 = vsub.s32 %v2267, %v2300
        %v2302 = vsub.s32 %v2268, %v2300
        %v2303 = vsub.s32 %v2269, %v2300
        %v2304 = vsub.s32 %v2270, %v2300
        %v2305 = vsub.s32 %v2271, %v2300
        %v2306 = vsub.s32 %v2272, %v2300
        %v2307 = vsub.s32 %v2273, %v2300
        %v2308 = vsub.s32 %v2274, %v2300
        %v2309 = vsub.s32 %v2275, %v2300
        %v2310 = vsub.s32 %v2276, %v2300
        %v2311 = vsub.s32 %v2277, %v2300
        %v2312 = vsub.s32 %v2278, %v2300
        %v2313 = vsub.s32 %v2279, %v2300
        %v2314 = vsub.s32 %v2280, %v2300
        %v2315 = vsub.s32 %v2281, %v2300
        %v2316 = vsub.s32 %v2282, %v2300
        %v2317 = vsub.s32 %v2283, %v2300
        %v2318 = vsub.s32 %v2284, %v2300
        %v2319 = vsub.s32 %v2285, %v2300
        %v2320 = vsub.s32 %v2286, %v2300
        %v2321 = vsub.s32 %v2287, %v2300
        %v2322 = vsub.s32 %v2288, %v2300
        %v2323 = vsub.s32 %v2289, %v2300
        %v2324 = vsub.s32 %v2290, %v2300
        %v2325 = vsub.s32 %v2291, %v2300
        %v2326 = vsub.s32 %v2292, %v2300
        %v2327 = vsub.s32 %v2293, %v2300
        %v2328 = vsub.s32 %v2294, %v2300
        %v2329 = vsub.s32 %v2295, %v2300
        %v2330 = vsub.s32 %v2296, %v2300
        %v2331 = vsub.s32 %v2297, %v2300
        %v2332 = vsub.s32 %v2298, %v2300
        %v2333 = vld [vmem:[#allocation4] sm:$0xff]
        %v2334 = vld [vmem:[#allocation4 + $0x8] sm:$0xff]
        %v2335 = vld [vmem:[#allocation4 + $0x10] sm:$0xff]
        %v2336 = vld [vmem:[#allocation4 + $0x18] sm:$0xff]
        %v2337 = vld [vmem:[#allocation4 + $0x20] sm:$0xff]
        %v2338 = vld [vmem:[#allocation4 + $0x28] sm:$0xff]
        %v2339 = vld [vmem:[#allocation4 + $0x30] sm:$0xff]
        %v2340 = vld [vmem:[#allocation4 + $0x38] sm:$0xff]
        %v2341 = vld [vmem:[#allocation4 + $0x40] sm:$0xff]
        %v2342 = vld [vmem:[#allocation4 + $0x48] sm:$0xff]
        %v2343 = vld [vmem:[#allocation4 + $0x50] sm:$0xff]
        %v2344 = vld [vmem:[#allocation4 + $0x58] sm:$0xff]
        %v2345 = vld [vmem:[#allocation4 + $0x60] sm:$0xff]
        %v2346 = vld [vmem:[#allocation4 + $0x68] sm:$0xff]
        %v2347 = vld [vmem:[#allocation4 + $0x70] sm:$0xff]
        %v2348 = vld [vmem:[#allocation4 + $0x78] sm:$0xff]
        %v2349 = vld [vmem:[#allocation4 + $0x80] sm:$0xff]
        %v2350 = vld [vmem:[#allocation4 + $0x88] sm:$0xff]
        %v2351 = vld [vmem:[#allocation4 + $0x90] sm:$0xff]
        %v2352 = vld [vmem:[#allocation4 + $0x98] sm:$0xff]
        %v2353 = vld [vmem:[#allocation4 + $0xa0] sm:$0xff]
        %v2354 = vld [vmem:[#allocation4 + $0xa8] sm:$0xff]
        %v2355 = vld [vmem:[#allocation4 + $0xb0] sm:$0xff]
        %v2356 = vld [vmem:[#allocation4 + $0xb8] sm:$0xff]
        %v2357 = vld [vmem:[#allocation4 + $0xc0] sm:$0xff]
        %v2358 = vld [vmem:[#allocation4 + $0xc8] sm:$0xff]
        %v2359 = vld [vmem:[#allocation4 + $0xd0] sm:$0xff]
        %v2360 = vld [vmem:[#allocation4 + $0xd8] sm:$0xff]
        %v2361 = vld [vmem:[#allocation4 + $0xe0] sm:$0xff]
        %v2362 = vld [vmem:[#allocation4 + $0xe8] sm:$0xff]
        %v2363 = vld [vmem:[#allocation4 + $0xf0] sm:$0xff]
        %v2364 = vld [vmem:[#allocation4 + $0xf8] sm:$0xff]
        %2365 = vset.pattern.permute.xlu0 0
        %2366 = vperm.xlu0 %2365, %v2301
        %v2367 = vpop.permute.xlu0 %2366
        %2368 = vset.pattern.permute.xlu0 0
        %2369 = vperm.xlu0 %2368, %v2302
        %v2370 = vpop.permute.xlu0 %2369
        %2371 = vset.pattern.permute.xlu0 0
        %2372 = vperm.xlu0 %2371, %v2303
        %v2373 = vpop.permute.xlu0 %2372
        %2374 = vset.pattern.permute.xlu0 0
        %2375 = vperm.xlu0 %2374, %v2304
        %v2376 = vpop.permute.xlu0 %2375
        %2377 = vset.pattern.permute.xlu0 0
        %2378 = vperm.xlu0 %2377, %v2305
        %v2379 = vpop.permute.xlu0 %2378
        %2380 = vset.pattern.permute.xlu0 0
        %2381 = vperm.xlu0 %2380, %v2306
        %v2382 = vpop.permute.xlu0 %2381
        %2383 = vset.pattern.permute.xlu0 0
        %2384 = vperm.xlu0 %2383, %v2307
        %v2385 = vpop.permute.xlu0 %2384
        %2386 = vset.pattern.permute.xlu0 0
        %2387 = vperm.xlu0 %2386, %v2308
        %v2388 = vpop.permute.xlu0 %2387
        %2389 = vset.pattern.permute.xlu0 0
        %2390 = vperm.xlu0 %2389, %v2309
        %v2391 = vpop.permute.xlu0 %2390
        %2392 = vset.pattern.permute.xlu0 0
        %2393 = vperm.xlu0 %2392, %v2310
        %v2394 = vpop.permute.xlu0 %2393
        %2395 = vset.pattern.permute.xlu0 0
        %2396 = vperm.xlu0 %2395, %v2311
        %v2397 = vpop.permute.xlu0 %2396
        %2398 = vset.pattern.permute.xlu0 0
        %2399 = vperm.xlu0 %2398, %v2312
        %v2400 = vpop.permute.xlu0 %2399
        %2401 = vset.pattern.permute.xlu0 0
        %2402 = vperm.xlu0 %2401, %v2313
        %v2403 = vpop.permute.xlu0 %2402
        %2404 = vset.pattern.permute.xlu0 0
        %2405 = vperm.xlu0 %2404, %v2314
        %v2406 = vpop.permute.xlu0 %2405
        %2407 = vset.pattern.permute.xlu0 0
        %2408 = vperm.xlu0 %2407, %v2315
        %v2409 = vpop.permute.xlu0 %2408
        %2410 = vset.pattern.permute.xlu0 0
        %2411 = vperm.xlu0 %2410, %v2316
        %v2412 = vpop.permute.xlu0 %2411
        %2413 = vset.pattern.permute.xlu0 0
        %2414 = vperm.xlu0 %2413, %v2317
        %v2415 = vpop.permute.xlu0 %2414
        %2416 = vset.pattern.permute.xlu0 0
        %2417 = vperm.xlu0 %2416, %v2318
        %v2418 = vpop.permute.xlu0 %2417
        %2419 = vset.pattern.permute.xlu0 0
        %2420 = vperm.xlu0 %2419, %v2319
        %v2421 = vpop.permute.xlu0 %2420
        %2422 = vset.pattern.permute.xlu0 0
        %2423 = vperm.xlu0 %2422, %v2320
        %v2424 = vpop.permute.xlu0 %2423
        %2425 = vset.pattern.permute.xlu0 0
        %2426 = vperm.xlu0 %2425, %v2321
        %v2427 = vpop.permute.xlu0 %2426
        %2428 = vset.pattern.permute.xlu0 0
        %2429 = vperm.xlu0 %2428, %v2322
        %v2430 = vpop.permute.xlu0 %2429
        %2431 = vset.pattern.permute.xlu0 0
        %2432 = vperm.xlu0 %2431, %v2323
        %v2433 = vpop.permute.xlu0 %2432
        %2434 = vset.pattern.permute.xlu0 0
        %2435 = vperm.xlu0 %2434, %v2324
        %v2436 = vpop.permute.xlu0 %2435
        %2437 = vset.pattern.permute.xlu0 0
        %2438 = vperm.xlu0 %2437, %v2325
        %v2439 = vpop.permute.xlu0 %2438
        %2440 = vset.pattern.permute.xlu0 0
        %2441 = vperm.xlu0 %2440, %v2326
        %v2442 = vpop.permute.xlu0 %2441
        %2443 = vset.pattern.permute.xlu0 0
        %2444 = vperm.xlu0 %2443, %v2327
        %v2445 = vpop.permute.xlu0 %2444
        %2446 = vset.pattern.permute.xlu0 0
        %2447 = vperm.xlu0 %2446, %v2328
        %v2448 = vpop.permute.xlu0 %2447
        %2449 = vset.pattern.permute.xlu0 0
        %2450 = vperm.xlu0 %2449, %v2329
        %v2451 = vpop.permute.xlu0 %2450
        %2452 = vset.pattern.permute.xlu0 0
        %2453 = vperm.xlu0 %2452, %v2330
        %v2454 = vpop.permute.xlu0 %2453
        %2455 = vset.pattern.permute.xlu0 0
        %2456 = vperm.xlu0 %2455, %v2331
        %v2457 = vpop.permute.xlu0 %2456
        %2458 = vset.pattern.permute.xlu0 0
        %2459 = vperm.xlu0 %2458, %v2332
        %v2460 = vpop.permute.xlu0 %2459
        %vm2461 = vcmp.eq.s32.totalorder %v1078, %v2367
        %vm2462 = vcmp.eq.s32.totalorder %v1079, %v2367
        %vm2463 = vcmp.eq.s32.totalorder %v1080, %v2367
        %vm2464 = vcmp.eq.s32.totalorder %v1081, %v2367
        %vm2465 = vcmp.eq.s32.totalorder %v1078, %v2370
        %vm2466 = vcmp.eq.s32.totalorder %v1079, %v2370
        %vm2467 = vcmp.eq.s32.totalorder %v1080, %v2370
        %vm2468 = vcmp.eq.s32.totalorder %v1081, %v2370
        %vm2469 = vcmp.eq.s32.totalorder %v1078, %v2373
        %vm2470 = vcmp.eq.s32.totalorder %v1079, %v2373
        %vm2471 = vcmp.eq.s32.totalorder %v1080, %v2373
        %vm2472 = vcmp.eq.s32.totalorder %v1081, %v2373
        %vm2473 = vcmp.eq.s32.totalorder %v1078, %v2376
        %vm2474 = vcmp.eq.s32.totalorder %v1079, %v2376
        %vm2475 = vcmp.eq.s32.totalorder %v1080, %v2376
        %vm2476 = vcmp.eq.s32.totalorder %v1081, %v2376
        %vm2477 = vcmp.eq.s32.totalorder %v1078, %v2379
        %vm2478 = vcmp.eq.s32.totalorder %v1079, %v2379
        %vm2479 = vcmp.eq.s32.totalorder %v1080, %v2379
        %vm2480 = vcmp.eq.s32.totalorder %v1081, %v2379
        %vm2481 = vcmp.eq.s32.totalorder %v1078, %v2382
        %vm2482 = vcmp.eq.s32.totalorder %v1079, %v2382
        %vm2483 = vcmp.eq.s32.totalorder %v1080, %v2382
        %vm2484 = vcmp.eq.s32.totalorder %v1081, %v2382
        %vm2485 = vcmp.eq.s32.totalorder %v1078, %v2385
        %vm2486 = vcmp.eq.s32.totalorder %v1079, %v2385
        %vm2487 = vcmp.eq.s32.totalorder %v1080, %v2385
        %vm2488 = vcmp.eq.s32.totalorder %v1081, %v2385
        %vm2489 = vcmp.eq.s32.totalorder %v1078, %v2388
        %vm2490 = vcmp.eq.s32.totalorder %v1079, %v2388
        %vm2491 = vcmp.eq.s32.totalorder %v1080, %v2388
        %vm2492 = vcmp.eq.s32.totalorder %v1081, %v2388
        %vm2493 = vcmp.eq.s32.totalorder %v1078, %v2391
        %vm2494 = vcmp.eq.s32.totalorder %v1079, %v2391
        %vm2495 = vcmp.eq.s32.totalorder %v1080, %v2391
        %vm2496 = vcmp.eq.s32.totalorder %v1081, %v2391
        %vm2497 = vcmp.eq.s32.totalorder %v1078, %v2394
        %vm2498 = vcmp.eq.s32.totalorder %v1079, %v2394
        %vm2499 = vcmp.eq.s32.totalorder %v1080, %v2394
        %vm2500 = vcmp.eq.s32.totalorder %v1081, %v2394
        %vm2501 = vcmp.eq.s32.totalorder %v1078, %v2397
        %vm2502 = vcmp.eq.s32.totalorder %v1079, %v2397
        %vm2503 = vcmp.eq.s32.totalorder %v1080, %v2397
        %vm2504 = vcmp.eq.s32.totalorder %v1081, %v2397
        %vm2505 = vcmp.eq.s32.totalorder %v1078, %v2400
        %vm2506 = vcmp.eq.s32.totalorder %v1079, %v2400
        %vm2507 = vcmp.eq.s32.totalorder %v1080, %v2400
        %vm2508 = vcmp.eq.s32.totalorder %v1081, %v2400
        %vm2509 = vcmp.eq.s32.totalorder %v1078, %v2403
        %vm2510 = vcmp.eq.s32.totalorder %v1079, %v2403
        %vm2511 = vcmp.eq.s32.totalorder %v1080, %v2403
        %vm2512 = vcmp.eq.s32.totalorder %v1081, %v2403
        %vm2513 = vcmp.eq.s32.totalorder %v1078, %v2406
        %vm2514 = vcmp.eq.s32.totalorder %v1079, %v2406
        %vm2515 = vcmp.eq.s32.totalorder %v1080, %v2406
        %vm2516 = vcmp.eq.s32.totalorder %v1081, %v2406
        %vm2517 = vcmp.eq.s32.totalorder %v1078, %v2409
        %vm2518 = vcmp.eq.s32.totalorder %v1079, %v2409
        %vm2519 = vcmp.eq.s32.totalorder %v1080, %v2409
        %vm2520 = vcmp.eq.s32.totalorder %v1081, %v2409
        %vm2521 = vcmp.eq.s32.totalorder %v1078, %v2412
        %vm2522 = vcmp.eq.s32.totalorder %v1079, %v2412
        %vm2523 = vcmp.eq.s32.totalorder %v1080, %v2412
        %vm2524 = vcmp.eq.s32.totalorder %v1081, %v2412
        %vm2525 = vcmp.eq.s32.totalorder %v1078, %v2415
        %vm2526 = vcmp.eq.s32.totalorder %v1079, %v2415
        %vm2527 = vcmp.eq.s32.totalorder %v1080, %v2415
        %vm2528 = vcmp.eq.s32.totalorder %v1081, %v2415
        %vm2529 = vcmp.eq.s32.totalorder %v1078, %v2418
        %vm2530 = vcmp.eq.s32.totalorder %v1079, %v2418
        %vm2531 = vcmp.eq.s32.totalorder %v1080, %v2418
        %vm2532 = vcmp.eq.s32.totalorder %v1081, %v2418
        %vm2533 = vcmp.eq.s32.totalorder %v1078, %v2421
        %vm2534 = vcmp.eq.s32.totalorder %v1079, %v2421
        %vm2535 = vcmp.eq.s32.totalorder %v1080, %v2421
        %vm2536 = vcmp.eq.s32.totalorder %v1081, %v2421
        %vm2537 = vcmp.eq.s32.totalorder %v1078, %v2424
        %vm2538 = vcmp.eq.s32.totalorder %v1079, %v2424
        %vm2539 = vcmp.eq.s32.totalorder %v1080, %v2424
        %vm2540 = vcmp.eq.s32.totalorder %v1081, %v2424
        %vm2541 = vcmp.eq.s32.totalorder %v1078, %v2427
        %vm2542 = vcmp.eq.s32.totalorder %v1079, %v2427
        %vm2543 = vcmp.eq.s32.totalorder %v1080, %v2427
        %vm2544 = vcmp.eq.s32.totalorder %v1081, %v2427
        %vm2545 = vcmp.eq.s32.totalorder %v1078, %v2430
        %vm2546 = vcmp.eq.s32.totalorder %v1079, %v2430
        %vm2547 = vcmp.eq.s32.totalorder %v1080, %v2430
        %vm2548 = vcmp.eq.s32.totalorder %v1081, %v2430
        %vm2549 = vcmp.eq.s32.totalorder %v1078, %v2433
        %vm2550 = vcmp.eq.s32.totalorder %v1079, %v2433
        %vm2551 = vcmp.eq.s32.totalorder %v1080, %v2433
        %vm2552 = vcmp.eq.s32.totalorder %v1081, %v2433
        %vm2553 = vcmp.eq.s32.totalorder %v1078, %v2436
        %vm2554 = vcmp.eq.s32.totalorder %v1079, %v2436
        %vm2555 = vcmp.eq.s32.totalorder %v1080, %v2436
        %vm2556 = vcmp.eq.s32.totalorder %v1081, %v2436
        %vm2557 = vcmp.eq.s32.totalorder %v1078, %v2439
        %vm2558 = vcmp.eq.s32.totalorder %v1079, %v2439
        %vm2559 = vcmp.eq.s32.totalorder %v1080, %v2439
        %vm2560 = vcmp.eq.s32.totalorder %v1081, %v2439
        %vm2561 = vcmp.eq.s32.totalorder %v1078, %v2442
        %vm2562 = vcmp.eq.s32.totalorder %v1079, %v2442
        %vm2563 = vcmp.eq.s32.totalorder %v1080, %v2442
        %vm2564 = vcmp.eq.s32.totalorder %v1081, %v2442
        %vm2565 = vcmp.eq.s32.totalorder %v1078, %v2445
        %vm2566 = vcmp.eq.s32.totalorder %v1079, %v2445
        %vm2567 = vcmp.eq.s32.totalorder %v1080, %v2445
        %vm2568 = vcmp.eq.s32.totalorder %v1081, %v2445
        %vm2569 = vcmp.eq.s32.totalorder %v1078, %v2448
        %vm2570 = vcmp.eq.s32.totalorder %v1079, %v2448
        %vm2571 = vcmp.eq.s32.totalorder %v1080, %v2448
        %vm2572 = vcmp.eq.s32.totalorder %v1081, %v2448
        %vm2573 = vcmp.eq.s32.totalorder %v1078, %v2451
        %vm2574 = vcmp.eq.s32.totalorder %v1079, %v2451
        %vm2575 = vcmp.eq.s32.totalorder %v1080, %v2451
        %vm2576 = vcmp.eq.s32.totalorder %v1081, %v2451
        %vm2577 = vcmp.eq.s32.totalorder %v1078, %v2454
        %vm2578 = vcmp.eq.s32.totalorder %v1079, %v2454
        %vm2579 = vcmp.eq.s32.totalorder %v1080, %v2454
        %vm2580 = vcmp.eq.s32.totalorder %v1081, %v2454
        %vm2581 = vcmp.eq.s32.totalorder %v1078, %v2457
        %vm2582 = vcmp.eq.s32.totalorder %v1079, %v2457
        %vm2583 = vcmp.eq.s32.totalorder %v1080, %v2457
        %vm2584 = vcmp.eq.s32.totalorder %v1081, %v2457
        %vm2585 = vcmp.eq.s32.totalorder %v1078, %v2460
        %vm2586 = vcmp.eq.s32.totalorder %v1079, %v2460
        %vm2587 = vcmp.eq.s32.totalorder %v1080, %v2460
        %vm2588 = vcmp.eq.s32.totalorder %v1081, %v2460
        %v2589 = vsel %vm2461, %v630, 0.0
        %v2590 = vsel %vm2462, %v632, 0.0
        %v2591 = vsel %vm2463, %v887, 0.0
        %v2592 = vsel %vm2464, %v889, 0.0
        %v2593 = vsel %vm2465, %v636, 0.0
        %v2594 = vsel %vm2466, %v638, 0.0
        %v2595 = vsel %vm2467, %v893, 0.0
        %v2596 = vsel %vm2468, %v895, 0.0
        %v2597 = vsel %vm2469, %v642, 0.0
        %v2598 = vsel %vm2470, %v644, 0.0
        %v2599 = vsel %vm2471, %v899, 0.0
        %v2600 = vsel %vm2472, %v901, 0.0
        %v2601 = vsel %vm2473, %v648, 0.0
        %v2602 = vsel %vm2474, %v650, 0.0
        %v2603 = vsel %vm2475, %v905, 0.0
        %v2604 = vsel %vm2476, %v907, 0.0
        %v2605 = vsel %vm2477, %v654, 0.0
        %v2606 = vsel %vm2478, %v656, 0.0
        %v2607 = vsel %vm2479, %v911, 0.0
        %v2608 = vsel %vm2480, %v913, 0.0
        %v2609 = vsel %vm2481, %v660, 0.0
        %v2610 = vsel %vm2482, %v662, 0.0
        %v2611 = vsel %vm2483, %v917, 0.0
        %v2612 = vsel %vm2484, %v919, 0.0
        %v2613 = vsel %vm2485, %v666, 0.0
        %v2614 = vsel %vm2486, %v668, 0.0
        %v2615 = vsel %vm2487, %v923, 0.0
        %v2616 = vsel %vm2488, %v925, 0.0
        %v2617 = vsel %vm2489, %v672, 0.0
        %v2618 = vsel %vm2490, %v674, 0.0
        %v2619 = vsel %vm2491, %v929, 0.0
        %v2620 = vsel %vm2492, %v931, 0.0
        %v2621 = vsel %vm2493, %v678, 0.0
        %v2622 = vsel %vm2494, %v680, 0.0
        %v2623 = vsel %vm2495, %v935, 0.0
        %v2624 = vsel %vm2496, %v937, 0.0
        %v2625 = vsel %vm2497, %v684, 0.0
        %v2626 = vsel %vm2498, %v686, 0.0
        %v2627 = vsel %vm2499, %v941, 0.0
        %v2628 = vsel %vm2500, %v943, 0.0
        %v2629 = vsel %vm2501, %v690, 0.0
        %v2630 = vsel %vm2502, %v692, 0.0
        %v2631 = vsel %vm2503, %v947, 0.0
        %v2632 = vsel %vm2504, %v949, 0.0
        %v2633 = vsel %vm2505, %v696, 0.0
        %v2634 = vsel %vm2506, %v698, 0.0
        %v2635 = vsel %vm2507, %v953, 0.0
        %v2636 = vsel %vm2508, %v955, 0.0
        %v2637 = vsel %vm2509, %v702, 0.0
        %v2638 = vsel %vm2510, %v704, 0.0
        %v2639 = vsel %vm2511, %v959, 0.0
        %v2640 = vsel %vm2512, %v961, 0.0
        %v2641 = vsel %vm2513, %v708, 0.0
        %v2642 = vsel %vm2514, %v710, 0.0
        %v2643 = vsel %vm2515, %v965, 0.0
        %v2644 = vsel %vm2516, %v967, 0.0
        %v2645 = vsel %vm2517, %v714, 0.0
        %v2646 = vsel %vm2518, %v716, 0.0
        %v2647 = vsel %vm2519, %v971, 0.0
        %v2648 = vsel %vm2520, %v973, 0.0
        %v2649 = vsel %vm2521, %v720, 0.0
        %v2650 = vsel %vm2522, %v722, 0.0
        %v2651 = vsel %vm2523, %v977, 0.0
        %v2652 = vsel %vm2524, %v979, 0.0
        %v2653 = vsel %vm2525, %v726, 0.0
        %v2654 = vsel %vm2526, %v728, 0.0
        %v2655 = vsel %vm2527, %v983, 0.0
        %v2656 = vsel %vm2528, %v985, 0.0
        %v2657 = vsel %vm2529, %v732, 0.0
        %v2658 = vsel %vm2530, %v734, 0.0
        %v2659 = vsel %vm2531, %v989, 0.0
        %v2660 = vsel %vm2532, %v991, 0.0
        %v2661 = vsel %vm2533, %v738, 0.0
        %v2662 = vsel %vm2534, %v740, 0.0
        %v2663 = vsel %vm2535, %v995, 0.0
        %v2664 = vsel %vm2536, %v997, 0.0
        %v2665 = vsel %vm2537, %v744, 0.0
        %v2666 = vsel %vm2538, %v746, 0.0
        %v2667 = vsel %vm2539, %v1001, 0.0
        %v2668 = vsel %vm2540, %v1003, 0.0
        %v2669 = vsel %vm2541, %v750, 0.0
        %v2670 = vsel %vm2542, %v752, 0.0
        %v2671 = vsel %vm2543, %v1007, 0.0
        %v2672 = vsel %vm2544, %v1009, 0.0
        %v2673 = vsel %vm2545, %v756, 0.0
        %v2674 = vsel %vm2546, %v758, 0.0
        %v2675 = vsel %vm2547, %v1013, 0.0
        %v2676 = vsel %vm2548, %v1015, 0.0
        %v2677 = vsel %vm2549, %v762, 0.0
        %v2678 = vsel %vm2550, %v764, 0.0
        %v2679 = vsel %vm2551, %v1019, 0.0
        %v2680 = vsel %vm2552, %v1021, 0.0
        %v2681 = vsel %vm2553, %v768, 0.0
        %v2682 = vsel %vm2554, %v770, 0.0
        %v2683 = vsel %vm2555, %v1025, 0.0
        %v2684 = vsel %vm2556, %v1027, 0.0
        %v2685 = vsel %vm2557, %v774, 0.0
        %v2686 = vsel %vm2558, %v776, 0.0
        %v2687 = vsel %vm2559, %v1031, 0.0
        %v2688 = vsel %vm2560, %v1033, 0.0
        %v2689 = vsel %vm2561, %v780, 0.0
        %v2690 = vsel %vm2562, %v782, 0.0
        %v2691 = vsel %vm2563, %v1037, 0.0
        %v2692 = vsel %vm2564, %v1039, 0.0
        %v2693 = vsel %vm2565, %v786, 0.0
        %v2694 = vsel %vm2566, %v788, 0.0
        %v2695 = vsel %vm2567, %v1043, 0.0
        %v2696 = vsel %vm2568, %v1045, 0.0
        %v2697 = vsel %vm2569, %v792, 0.0
        %v2698 = vsel %vm2570, %v794, 0.0
        %v2699 = vsel %vm2571, %v1049, 0.0
        %v2700 = vsel %vm2572, %v1051, 0.0
        %v2701 = vsel %vm2573, %v798, 0.0
        %v2702 = vsel %vm2574, %v800, 0.0
        %v2703 = vsel %vm2575, %v1055, 0.0
        %v2704 = vsel %vm2576, %v1057, 0.0
        %v2705 = vsel %vm2577, %v804, 0.0
        %v2706 = vsel %vm2578, %v806, 0.0
        %v2707 = vsel %vm2579, %v1061, 0.0
        %v2708 = vsel %vm2580, %v1063, 0.0
        %v2709 = vsel %vm2581, %v810, 0.0
        %v2710 = vsel %vm2582, %v812, 0.0
        %v2711 = vsel %vm2583, %v1067, 0.0
        %v2712 = vsel %vm2584, %v1069, 0.0
        %v2713 = vsel %vm2585, %v816, 0.0
        %v2714 = vsel %vm2586, %v818, 0.0
        %v2715 = vsel %vm2587, %v1073, 0.0
        %v2716 = vsel %vm2588, %v1075, 0.0
        %v2717 = vadd.f32 %v2589, %v2590
        %v2718 = vadd.f32 %v2717, %v2591
        %v2719 = vadd.f32 %v2718, %v2592
        %2720 = vadd.xlane.f32.xlu0 %v2719
        %v2721 = vpop.xlane.xlu0 %2720
        %v2722 = vadd.f32 %v2593, %v2594
        %v2723 = vadd.f32 %v2722, %v2595
        %v2724 = vadd.f32 %v2723, %v2596
        %2725 = vadd.xlane.f32.xlu0 %v2724
        %v2726 = vpop.xlane.xlu0 %2725
        %v2727 = vadd.f32 %v2597, %v2598
        %v2728 = vadd.f32 %v2727, %v2599
        %v2729 = vadd.f32 %v2728, %v2600
        %2730 = vadd.xlane.f32.xlu0 %v2729
        %v2731 = vpop.xlane.xlu0 %2730
        %v2732 = vadd.f32 %v2601, %v2602
        %v2733 = vadd.f32 %v2732, %v2603
        %v2734 = vadd.f32 %v2733, %v2604
        %2735 = vadd.xlane.f32.xlu0 %v2734
        %v2736 = vpop.xlane.xlu0 %2735
        %v2737 = vadd.f32 %v2605, %v2606
        %v2738 = vadd.f32 %v2737, %v2607
        %v2739 = vadd.f32 %v2738, %v2608
        %2740 = vadd.xlane.f32.xlu0 %v2739
        %v2741 = vpop.xlane.xlu0 %2740
        %v2742 = vadd.f32 %v2609, %v2610
        %v2743 = vadd.f32 %v2742, %v2611
        %v2744 = vadd.f32 %v2743, %v2612
        %2745 = vadd.xlane.f32.xlu0 %v2744
        %v2746 = vpop.xlane.xlu0 %2745
        %v2747 = vadd.f32 %v2613, %v2614
        %v2748 = vadd.f32 %v2747, %v2615
        %v2749 = vadd.f32 %v2748, %v2616
        %2750 = vadd.xlane.f32.xlu0 %v2749
        %v2751 = vpop.xlane.xlu0 %2750
        %v2752 = vadd.f32 %v2617, %v2618
        %v2753 = vadd.f32 %v2752, %v2619
        %v2754 = vadd.f32 %v2753, %v2620
        %2755 = vadd.xlane.f32.xlu0 %v2754
        %v2756 = vpop.xlane.xlu0 %2755
        %v2757 = vadd.f32 %v2621, %v2622
        %v2758 = vadd.f32 %v2757, %v2623
        %v2759 = vadd.f32 %v2758, %v2624
        %2760 = vadd.xlane.f32.xlu0 %v2759
        %v2761 = vpop.xlane.xlu0 %2760
        %v2762 = vadd.f32 %v2625, %v2626
        %v2763 = vadd.f32 %v2762, %v2627
        %v2764 = vadd.f32 %v2763, %v2628
        %2765 = vadd.xlane.f32.xlu0 %v2764
        %v2766 = vpop.xlane.xlu0 %2765
        %v2767 = vadd.f32 %v2629, %v2630
        %v2768 = vadd.f32 %v2767, %v2631
        %v2769 = vadd.f32 %v2768, %v2632
        %2770 = vadd.xlane.f32.xlu0 %v2769
        %v2771 = vpop.xlane.xlu0 %2770
        %v2772 = vadd.f32 %v2633, %v2634
        %v2773 = vadd.f32 %v2772, %v2635
        %v2774 = vadd.f32 %v2773, %v2636
        %2775 = vadd.xlane.f32.xlu0 %v2774
        %v2776 = vpop.xlane.xlu0 %2775
        %v2777 = vadd.f32 %v2637, %v2638
        %v2778 = vadd.f32 %v2777, %v2639
        %v2779 = vadd.f32 %v2778, %v2640
        %2780 = vadd.xlane.f32.xlu0 %v2779
        %v2781 = vpop.xlane.xlu0 %2780
        %v2782 = vadd.f32 %v2641, %v2642
        %v2783 = vadd.f32 %v2782, %v2643
        %v2784 = vadd.f32 %v2783, %v2644
        %2785 = vadd.xlane.f32.xlu0 %v2784
        %v2786 = vpop.xlane.xlu0 %2785
        %v2787 = vadd.f32 %v2645, %v2646
        %v2788 = vadd.f32 %v2787, %v2647
        %v2789 = vadd.f32 %v2788, %v2648
        %2790 = vadd.xlane.f32.xlu0 %v2789
        %v2791 = vpop.xlane.xlu0 %2790
        %v2792 = vadd.f32 %v2649, %v2650
        %v2793 = vadd.f32 %v2792, %v2651
        %v2794 = vadd.f32 %v2793, %v2652
        %2795 = vadd.xlane.f32.xlu0 %v2794
        %v2796 = vpop.xlane.xlu0 %2795
        %v2797 = vadd.f32 %v2653, %v2654
        %v2798 = vadd.f32 %v2797, %v2655
        %v2799 = vadd.f32 %v2798, %v2656
        %2800 = vadd.xlane.f32.xlu0 %v2799
        %v2801 = vpop.xlane.xlu0 %2800
        %v2802 = vadd.f32 %v2657, %v2658
        %v2803 = vadd.f32 %v2802, %v2659
        %v2804 = vadd.f32 %v2803, %v2660
        %2805 = vadd.xlane.f32.xlu0 %v2804
        %v2806 = vpop.xlane.xlu0 %2805
        %v2807 = vadd.f32 %v2661, %v2662
        %v2808 = vadd.f32 %v2807, %v2663
        %v2809 = vadd.f32 %v2808, %v2664
        %2810 = vadd.xlane.f32.xlu0 %v2809
        %v2811 = vpop.xlane.xlu0 %2810
        %v2812 = vadd.f32 %v2665, %v2666
        %v2813 = vadd.f32 %v2812, %v2667
        %v2814 = vadd.f32 %v2813, %v2668
        %2815 = vadd.xlane.f32.xlu0 %v2814
        %v2816 = vpop.xlane.xlu0 %2815
        %v2817 = vadd.f32 %v2669, %v2670
        %v2818 = vadd.f32 %v2817, %v2671
        %v2819 = vadd.f32 %v2818, %v2672
        %2820 = vadd.xlane.f32.xlu0 %v2819
        %v2821 = vpop.xlane.xlu0 %2820
        %v2822 = vadd.f32 %v2673, %v2674
        %v2823 = vadd.f32 %v2822, %v2675
        %v2824 = vadd.f32 %v2823, %v2676
        %2825 = vadd.xlane.f32.xlu0 %v2824
        %v2826 = vpop.xlane.xlu0 %2825
        %v2827 = vadd.f32 %v2677, %v2678
        %v2828 = vadd.f32 %v2827, %v2679
        %v2829 = vadd.f32 %v2828, %v2680
        %2830 = vadd.xlane.f32.xlu0 %v2829
        %v2831 = vpop.xlane.xlu0 %2830
        %v2832 = vadd.f32 %v2681, %v2682
        %v2833 = vadd.f32 %v2832, %v2683
        %v2834 = vadd.f32 %v2833, %v2684
        %2835 = vadd.xlane.f32.xlu0 %v2834
        %v2836 = vpop.xlane.xlu0 %2835
        %v2837 = vadd.f32 %v2685, %v2686
        %v2838 = vadd.f32 %v2837, %v2687
        %v2839 = vadd.f32 %v2838, %v2688
        %2840 = vadd.xlane.f32.xlu0 %v2839
        %v2841 = vpop.xlane.xlu0 %2840
        %v2842 = vadd.f32 %v2689, %v2690
        %v2843 = vadd.f32 %v2842, %v2691
        %v2844 = vadd.f32 %v2843, %v2692
        %2845 = vadd.xlane.f32.xlu0 %v2844
        %v2846 = vpop.xlane.xlu0 %2845
        %v2847 = vadd.f32 %v2693, %v2694
        %v2848 = vadd.f32 %v2847, %v2695
        %v2849 = vadd.f32 %v2848, %v2696
        %2850 = vadd.xlane.f32.xlu0 %v2849
        %v2851 = vpop.xlane.xlu0 %2850
        %v2852 = vadd.f32 %v2697, %v2698
        %v2853 = vadd.f32 %v2852, %v2699
        %v2854 = vadd.f32 %v2853, %v2700
        %2855 = vadd.xlane.f32.xlu0 %v2854
        %v2856 = vpop.xlane.xlu0 %2855
        %v2857 = vadd.f32 %v2701, %v2702
        %v2858 = vadd.f32 %v2857, %v2703
        %v2859 = vadd.f32 %v2858, %v2704
        %2860 = vadd.xlane.f32.xlu0 %v2859
        %v2861 = vpop.xlane.xlu0 %2860
        %v2862 = vadd.f32 %v2705, %v2706
        %v2863 = vadd.f32 %v2862, %v2707
        %v2864 = vadd.f32 %v2863, %v2708
        %2865 = vadd.xlane.f32.xlu0 %v2864
        %v2866 = vpop.xlane.xlu0 %2865
        %v2867 = vadd.f32 %v2709, %v2710
        %v2868 = vadd.f32 %v2867, %v2711
        %v2869 = vadd.f32 %v2868, %v2712
        %2870 = vadd.xlane.f32.xlu0 %v2869
        %v2871 = vpop.xlane.xlu0 %2870
        %v2872 = vadd.f32 %v2713, %v2714
        %v2873 = vadd.f32 %v2872, %v2715
        %v2874 = vadd.f32 %v2873, %v2716
        %2875 = vadd.xlane.f32.xlu0 %v2874
        %v2876 = vpop.xlane.xlu0 %2875
        %v2877 = vadd.f32 %v2333, %v2721
        %v2878 = vadd.f32 %v2334, %v2726
        %v2879 = vadd.f32 %v2335, %v2731
        %v2880 = vadd.f32 %v2336, %v2736
        %v2881 = vadd.f32 %v2337, %v2741
        %v2882 = vadd.f32 %v2338, %v2746
        %v2883 = vadd.f32 %v2339, %v2751
        %v2884 = vadd.f32 %v2340, %v2756
        %v2885 = vadd.f32 %v2341, %v2761
        %v2886 = vadd.f32 %v2342, %v2766
        %v2887 = vadd.f32 %v2343, %v2771
        %v2888 = vadd.f32 %v2344, %v2776
        %v2889 = vadd.f32 %v2345, %v2781
        %v2890 = vadd.f32 %v2346, %v2786
        %v2891 = vadd.f32 %v2347, %v2791
        %v2892 = vadd.f32 %v2348, %v2796
        %v2893 = vadd.f32 %v2349, %v2801
        %v2894 = vadd.f32 %v2350, %v2806
        %v2895 = vadd.f32 %v2351, %v2811
        %v2896 = vadd.f32 %v2352, %v2816
        %v2897 = vadd.f32 %v2353, %v2821
        %v2898 = vadd.f32 %v2354, %v2826
        %v2899 = vadd.f32 %v2355, %v2831
        %v2900 = vadd.f32 %v2356, %v2836
        %v2901 = vadd.f32 %v2357, %v2841
        %v2902 = vadd.f32 %v2358, %v2846
        %v2903 = vadd.f32 %v2359, %v2851
        %v2904 = vadd.f32 %v2360, %v2856
        %v2905 = vadd.f32 %v2361, %v2861
        %v2906 = vadd.f32 %v2362, %v2866
        %v2907 = vadd.f32 %v2363, %v2871
        %v2908 = vadd.f32 %v2364, %v2876
        %2909 = vst.msk [vmem:[#allocation4] sm:$0xff] %vm2202, %v2877
        %2910 = vst.msk [vmem:[#allocation4 + $0x8] sm:$0xff] %vm2202, %v2878
        %2911 = vst.msk [vmem:[#allocation4 + $0x10] sm:$0xff] %vm2202, %v2879
        %2912 = vst.msk [vmem:[#allocation4 + $0x18] sm:$0xff] %vm2202, %v2880
        %2913 = vst.msk [vmem:[#allocation4 + $0x20] sm:$0xff] %vm2202, %v2881
        %2914 = vst.msk [vmem:[#allocation4 + $0x28] sm:$0xff] %vm2202, %v2882
        %2915 = vst.msk [vmem:[#allocation4 + $0x30] sm:$0xff] %vm2202, %v2883
        %2916 = vst.msk [vmem:[#allocation4 + $0x38] sm:$0xff] %vm2202, %v2884
        %2917 = vst.msk [vmem:[#allocation4 + $0x40] sm:$0xff] %vm2202, %v2885
        %2918 = vst.msk [vmem:[#allocation4 + $0x48] sm:$0xff] %vm2202, %v2886
        %2919 = vst.msk [vmem:[#allocation4 + $0x50] sm:$0xff] %vm2202, %v2887
        %2920 = vst.msk [vmem:[#allocation4 + $0x58] sm:$0xff] %vm2202, %v2888
        %2921 = vst.msk [vmem:[#allocation4 + $0x60] sm:$0xff] %vm2202, %v2889
        %2922 = vst.msk [vmem:[#allocation4 + $0x68] sm:$0xff] %vm2202, %v2890
        %2923 = vst.msk [vmem:[#allocation4 + $0x70] sm:$0xff] %vm2202, %v2891
        %2924 = vst.msk [vmem:[#allocation4 + $0x78] sm:$0xff] %vm2202, %v2892
        %2925 = vst.msk [vmem:[#allocation4 + $0x80] sm:$0xff] %vm2202, %v2893
        %2926 = vst.msk [vmem:[#allocation4 + $0x88] sm:$0xff] %vm2202, %v2894
        %2927 = vst.msk [vmem:[#allocation4 + $0x90] sm:$0xff] %vm2202, %v2895
        %2928 = vst.msk [vmem:[#allocation4 + $0x98] sm:$0xff] %vm2202, %v2896
        %2929 = vst.msk [vmem:[#allocation4 + $0xa0] sm:$0xff] %vm2202, %v2897
        %2930 = vst.msk [vmem:[#allocation4 + $0xa8] sm:$0xff] %vm2202, %v2898
        %2931 = vst.msk [vmem:[#allocation4 + $0xb0] sm:$0xff] %vm2202, %v2899
        %2932 = vst.msk [vmem:[#allocation4 + $0xb8] sm:$0xff] %vm2202, %v2900
        %2933 = vst.msk [vmem:[#allocation4 + $0xc0] sm:$0xff] %vm2202, %v2901
        %2934 = vst.msk [vmem:[#allocation4 + $0xc8] sm:$0xff] %vm2202, %v2902
        %2935 = vst.msk [vmem:[#allocation4 + $0xd0] sm:$0xff] %vm2202, %v2903
        %2936 = vst.msk [vmem:[#allocation4 + $0xd8] sm:$0xff] %vm2202, %v2904
        %2937 = vst.msk [vmem:[#allocation4 + $0xe0] sm:$0xff] %vm2202, %v2905
        %2938 = vst.msk [vmem:[#allocation4 + $0xe8] sm:$0xff] %vm2202, %v2906
        %2939 = vst.msk [vmem:[#allocation4 + $0xf0] sm:$0xff] %vm2202, %v2907
        %2940 = vst.msk [vmem:[#allocation4 + $0xf8] sm:$0xff] %vm2202, %v2908
        %p2941 = scmp.eq.s32.totalorder %s25, 3
        // Predicated region
        $region45: #{tpu_custom_call.1} parent=31 // pred_check
          %p2942 = pneg %p2941
        $region46: #{tpu_custom_call.1} parent=31 // pred_check_branch
          %2944 = sbr.rel (%p2942) target = $region48
        $region47: #{tpu_custom_call.1} parent=31 // pred_region
          %v2945 = vld [vmem:[#allocation2] sm:$0xff]
          %v2946 = vld [vmem:[#allocation2 + $0x8] sm:$0xff]
          %v2947 = vld [vmem:[#allocation2 + $0x10] sm:$0xff]
          %v2948 = vld [vmem:[#allocation2 + $0x18] sm:$0xff]
          %v2949 = vld [vmem:[#allocation2 + $0x20] sm:$0xff]
          %v2950 = vld [vmem:[#allocation2 + $0x28] sm:$0xff]
          %v2951 = vld [vmem:[#allocation2 + $0x30] sm:$0xff]
          %v2952 = vld [vmem:[#allocation2 + $0x38] sm:$0xff]
          %v2953 = vld [vmem:[#allocation2 + $0x40] sm:$0xff]
          %v2954 = vld [vmem:[#allocation2 + $0x48] sm:$0xff]
          %v2955 = vld [vmem:[#allocation2 + $0x50] sm:$0xff]
          %v2956 = vld [vmem:[#allocation2 + $0x58] sm:$0xff]
          %v2957 = vld [vmem:[#allocation2 + $0x60] sm:$0xff]
          %v2958 = vld [vmem:[#allocation2 + $0x68] sm:$0xff]
          %v2959 = vld [vmem:[#allocation2 + $0x70] sm:$0xff]
          %v2960 = vld [vmem:[#allocation2 + $0x78] sm:$0xff]
          %v2961 = vld [vmem:[#allocation2 + $0x80] sm:$0xff]
          %v2962 = vld [vmem:[#allocation2 + $0x88] sm:$0xff]
          %v2963 = vld [vmem:[#allocation2 + $0x90] sm:$0xff]
          %v2964 = vld [vmem:[#allocation2 + $0x98] sm:$0xff]
          %v2965 = vld [vmem:[#allocation2 + $0xa0] sm:$0xff]
          %v2966 = vld [vmem:[#allocation2 + $0xa8] sm:$0xff]
          %v2967 = vld [vmem:[#allocation2 + $0xb0] sm:$0xff]
          %v2968 = vld [vmem:[#allocation2 + $0xb8] sm:$0xff]
          %v2969 = vld [vmem:[#allocation2 + $0xc0] sm:$0xff]
          %v2970 = vld [vmem:[#allocation2 + $0xc8] sm:$0xff]
          %v2971 = vld [vmem:[#allocation2 + $0xd0] sm:$0xff]
          %v2972 = vld [vmem:[#allocation2 + $0xd8] sm:$0xff]
          %v2973 = vld [vmem:[#allocation2 + $0xe0] sm:$0xff]
          %v2974 = vld [vmem:[#allocation2 + $0xe8] sm:$0xff]
          %v2975 = vld [vmem:[#allocation2 + $0xf0] sm:$0xff]
          %v2976 = vld [vmem:[#allocation2 + $0xf8] sm:$0xff]
          %v2977 = vld [vmem:[#allocation3] sm:$0xff]
          %v2978 = vld [vmem:[#allocation3 + $0x8] sm:$0xff]
          %v2979 = vld [vmem:[#allocation3 + $0x10] sm:$0xff]
          %v2980 = vld [vmem:[#allocation3 + $0x18] sm:$0xff]
          %v2981 = vld [vmem:[#allocation3 + $0x20] sm:$0xff]
          %v2982 = vld [vmem:[#allocation3 + $0x28] sm:$0xff]
          %v2983 = vld [vmem:[#allocation3 + $0x30] sm:$0xff]
          %v2984 = vld [vmem:[#allocation3 + $0x38] sm:$0xff]
          %v2985 = vld [vmem:[#allocation3 + $0x40] sm:$0xff]
          %v2986 = vld [vmem:[#allocation3 + $0x48] sm:$0xff]
          %v2987 = vld [vmem:[#allocation3 + $0x50] sm:$0xff]
          %v2988 = vld [vmem:[#allocation3 + $0x58] sm:$0xff]
          %v2989 = vld [vmem:[#allocation3 + $0x60] sm:$0xff]
          %v2990 = vld [vmem:[#allocation3 + $0x68] sm:$0xff]
          %v2991 = vld [vmem:[#allocation3 + $0x70] sm:$0xff]
          %v2992 = vld [vmem:[#allocation3 + $0x78] sm:$0xff]
          %v2993 = vld [vmem:[#allocation3 + $0x80] sm:$0xff]
          %v2994 = vld [vmem:[#allocation3 + $0x88] sm:$0xff]
          %v2995 = vld [vmem:[#allocation3 + $0x90] sm:$0xff]
          %v2996 = vld [vmem:[#allocation3 + $0x98] sm:$0xff]
          %v2997 = vld [vmem:[#allocation3 + $0xa0] sm:$0xff]
          %v2998 = vld [vmem:[#allocation3 + $0xa8] sm:$0xff]
          %v2999 = vld [vmem:[#allocation3 + $0xb0] sm:$0xff]
          %v3000 = vld [vmem:[#allocation3 + $0xb8] sm:$0xff]
          %v3001 = vld [vmem:[#allocation3 + $0xc0] sm:$0xff]
          %v3002 = vld [vmem:[#allocation3 + $0xc8] sm:$0xff]
          %v3003 = vld [vmem:[#allocation3 + $0xd0] sm:$0xff]
          %v3004 = vld [vmem:[#allocation3 + $0xd8] sm:$0xff]
          %v3005 = vld [vmem:[#allocation3 + $0xe0] sm:$0xff]
          %v3006 = vld [vmem:[#allocation3 + $0xe8] sm:$0xff]
          %v3007 = vld [vmem:[#allocation3 + $0xf0] sm:$0xff]
          %v3008 = vld [vmem:[#allocation3 + $0xf8] sm:$0xff]
          %v3009 = vlog2.pop %v2977
          %v3010 = vmul.f32 %v3009, 0.6931472
          %v3011 = vlog2.pop %v2978
          %v3012 = vmul.f32 %v3011, 0.6931472
          %v3013 = vlog2.pop %v2979
          %v3014 = vmul.f32 %v3013, 0.6931472
          %v3015 = vlog2.pop %v2980
          %v3016 = vmul.f32 %v3015, 0.6931472
          %v3017 = vlog2.pop %v2981
          %v3018 = vmul.f32 %v3017, 0.6931472
          %v3019 = vlog2.pop %v2982
          %v3020 = vmul.f32 %v3019, 0.6931472
          %v3021 = vlog2.pop %v2983
          %v3022 = vmul.f32 %v3021, 0.6931472
          %v3023 = vlog2.pop %v2984
          %v3024 = vmul.f32 %v3023, 0.6931472
          %v3025 = vlog2.pop %v2985
          %v3026 = vmul.f32 %v3025, 0.6931472
          %v3027 = vlog2.pop %v2986
          %v3028 = vmul.f32 %v3027, 0.6931472
          %v3029 = vlog2.pop %v2987
          %v3030 = vmul.f32 %v3029, 0.6931472
          %v3031 = vlog2.pop %v2988
          %v3032 = vmul.f32 %v3031, 0.6931472
          %v3033 = vlog2.pop %v2989
          %v3034 = vmul.f32 %v3033, 0.6931472
          %v3035 = vlog2.pop %v2990
          %v3036 = vmul.f32 %v3035, 0.6931472
          %v3037 = vlog2.pop %v2991
          %v3038 = vmul.f32 %v3037, 0.6931472
          %v3039 = vlog2.pop %v2992
          %v3040 = vmul.f32 %v3039, 0.6931472
          %v3041 = vlog2.pop %v2993
          %v3042 = vmul.f32 %v3041, 0.6931472
          %v3043 = vlog2.pop %v2994
          %v3044 = vmul.f32 %v3043, 0.6931472
          %v3045 = vlog2.pop %v2995
          %v3046 = vmul.f32 %v3045, 0.6931472
          %v3047 = vlog2.pop %v2996
          %v3048 = vmul.f32 %v3047, 0.6931472
          %v3049 = vlog2.pop %v2997
          %v3050 = vmul.f32 %v3049, 0.6931472
          %v3051 = vlog2.pop %v2998
          %v3052 = vmul.f32 %v3051, 0.6931472
          %v3053 = vlog2.pop %v2999
          %v3054 = vmul.f32 %v3053, 0.6931472
          %v3055 = vlog2.pop %v3000
          %v3056 = vmul.f32 %v3055, 0.6931472
          %v3057 = vlog2.pop %v3001
          %v3058 = vmul.f32 %v3057, 0.6931472
          %v3059 = vlog2.pop %v3002
          %v3060 = vmul.f32 %v3059, 0.6931472
          %v3061 = vlog2.pop %v3003
          %v3062 = vmul.f32 %v3061, 0.6931472
          %v3063 = vlog2.pop %v3004
          %v3064 = vmul.f32 %v3063, 0.6931472
          %v3065 = vlog2.pop %v3005
          %v3066 = vmul.f32 %v3065, 0.6931472
          %v3067 = vlog2.pop %v3006
          %v3068 = vmul.f32 %v3067, 0.6931472
          %v3069 = vlog2.pop %v3007
          %v3070 = vmul.f32 %v3069, 0.6931472
          %v3071 = vlog2.pop %v3008
          %v3072 = vmul.f32 %v3071, 0.6931472
          %v3073 = vadd.f32 %v2945, %v3010
          %v3074 = vadd.f32 %v2946, %v3012
          %v3075 = vadd.f32 %v2947, %v3014
          %v3076 = vadd.f32 %v2948, %v3016
          %v3077 = vadd.f32 %v2949, %v3018
          %v3078 = vadd.f32 %v2950, %v3020
          %v3079 = vadd.f32 %v2951, %v3022
          %v3080 = vadd.f32 %v2952, %v3024
          %v3081 = vadd.f32 %v2953, %v3026
          %v3082 = vadd.f32 %v2954, %v3028
          %v3083 = vadd.f32 %v2955, %v3030
          %v3084 = vadd.f32 %v2956, %v3032
          %v3085 = vadd.f32 %v2957, %v3034
          %v3086 = vadd.f32 %v2958, %v3036
          %v3087 = vadd.f32 %v2959, %v3038
          %v3088 = vadd.f32 %v2960, %v3040
          %v3089 = vadd.f32 %v2961, %v3042
          %v3090 = vadd.f32 %v2962, %v3044
          %v3091 = vadd.f32 %v2963, %v3046
          %v3092 = vadd.f32 %v2964, %v3048
          %v3093 = vadd.f32 %v2965, %v3050
          %v3094 = vadd.f32 %v2966, %v3052
          %v3095 = vadd.f32 %v2967, %v3054
          %v3096 = vadd.f32 %v2968, %v3056
          %v3097 = vadd.f32 %v2969, %v3058
          %v3098 = vadd.f32 %v2970, %v3060
          %v3099 = vadd.f32 %v2971, %v3062
          %v3100 = vadd.f32 %v2972, %v3064
          %v3101 = vadd.f32 %v2973, %v3066
          %v3102 = vadd.f32 %v2974, %v3068
          %v3103 = vadd.f32 %v2975, %v3070
          %v3104 = vadd.f32 %v2976, %v3072
          %v3105 = vld [vmem:[%s260] sm:$0xff]
          %v3106 = vld [vmem:[%s260 + $0x8] sm:$0xff]
          %v3107 = vld [vmem:[%s260 + $0x10] sm:$0xff]
          %v3108 = vld [vmem:[%s260 + $0x18] sm:$0xff]
          %v3109 = vld [vmem:[%s260 + $0x20] sm:$0xff]
          %v3110 = vld [vmem:[%s260 + $0x28] sm:$0xff]
          %v3111 = vld [vmem:[%s260 + $0x30] sm:$0xff]
          %v3112 = vld [vmem:[%s260 + $0x38] sm:$0xff]
          %v3113 = vld [vmem:[%s260 + $0x40] sm:$0xff]
          %v3114 = vld [vmem:[%s260 + $0x48] sm:$0xff]
          %v3115 = vld [vmem:[%s260 + $0x50] sm:$0xff]
          %v3116 = vld [vmem:[%s260 + $0x58] sm:$0xff]
          %v3117 = vld [vmem:[%s260 + $0x60] sm:$0xff]
          %v3118 = vld [vmem:[%s260 + $0x68] sm:$0xff]
          %v3119 = vld [vmem:[%s260 + $0x70] sm:$0xff]
          %v3120 = vld [vmem:[%s260 + $0x78] sm:$0xff]
          %v3121 = vld [vmem:[%s260 + $0x80] sm:$0xff]
          %v3122 = vld [vmem:[%s260 + $0x88] sm:$0xff]
          %v3123 = vld [vmem:[%s260 + $0x90] sm:$0xff]
          %v3124 = vld [vmem:[%s260 + $0x98] sm:$0xff]
          %v3125 = vld [vmem:[%s260 + $0xa0] sm:$0xff]
          %v3126 = vld [vmem:[%s260 + $0xa8] sm:$0xff]
          %v3127 = vld [vmem:[%s260 + $0xb0] sm:$0xff]
          %v3128 = vld [vmem:[%s260 + $0xb8] sm:$0xff]
          %v3129 = vld [vmem:[%s260 + $0xc0] sm:$0xff]
          %v3130 = vld [vmem:[%s260 + $0xc8] sm:$0xff]
          %v3131 = vld [vmem:[%s260 + $0xd0] sm:$0xff]
          %v3132 = vld [vmem:[%s260 + $0xd8] sm:$0xff]
          %v3133 = vld [vmem:[%s260 + $0xe0] sm:$0xff]
          %v3134 = vld [vmem:[%s260 + $0xe8] sm:$0xff]
          %v3135 = vld [vmem:[%s260 + $0xf0] sm:$0xff]
          %v3136 = vld [vmem:[%s260 + $0xf8] sm:$0xff]
          %vm3137 = vcmp.ne.s32.totalorder %v3105, 4294967196
          %vm3138 = vcmp.ne.s32.totalorder %v3106, 4294967196
          %vm3139 = vcmp.ne.s32.totalorder %v3107, 4294967196
          %vm3140 = vcmp.ne.s32.totalorder %v3108, 4294967196
          %vm3141 = vcmp.ne.s32.totalorder %v3109, 4294967196
          %vm3142 = vcmp.ne.s32.totalorder %v3110, 4294967196
          %vm3143 = vcmp.ne.s32.totalorder %v3111, 4294967196
          %vm3144 = vcmp.ne.s32.totalorder %v3112, 4294967196
          %vm3145 = vcmp.ne.s32.totalorder %v3113, 4294967196
          %vm3146 = vcmp.ne.s32.totalorder %v3114, 4294967196
          %vm3147 = vcmp.ne.s32.totalorder %v3115, 4294967196
          %vm3148 = vcmp.ne.s32.totalorder %v3116, 4294967196
          %vm3149 = vcmp.ne.s32.totalorder %v3117, 4294967196
          %vm3150 = vcmp.ne.s32.totalorder %v3118, 4294967196
          %vm3151 = vcmp.ne.s32.totalorder %v3119, 4294967196
          %vm3152 = vcmp.ne.s32.totalorder %v3120, 4294967196
          %vm3153 = vcmp.ne.s32.totalorder %v3121, 4294967196
          %vm3154 = vcmp.ne.s32.totalorder %v3122, 4294967196
          %vm3155 = vcmp.ne.s32.totalorder %v3123, 4294967196
          %vm3156 = vcmp.ne.s32.totalorder %v3124, 4294967196
          %vm3157 = vcmp.ne.s32.totalorder %v3125, 4294967196
          %vm3158 = vcmp.ne.s32.totalorder %v3126, 4294967196
          %vm3159 = vcmp.ne.s32.totalorder %v3127, 4294967196
          %vm3160 = vcmp.ne.s32.totalorder %v3128, 4294967196
          %vm3161 = vcmp.ne.s32.totalorder %v3129, 4294967196
          %vm3162 = vcmp.ne.s32.totalorder %v3130, 4294967196
          %vm3163 = vcmp.ne.s32.totalorder %v3131, 4294967196
          %vm3164 = vcmp.ne.s32.totalorder %v3132, 4294967196
          %vm3165 = vcmp.ne.s32.totalorder %v3133, 4294967196
          %vm3166 = vcmp.ne.s32.totalorder %v3134, 4294967196
          %vm3167 = vcmp.ne.s32.totalorder %v3135, 4294967196
          %vm3168 = vcmp.ne.s32.totalorder %v3136, 4294967196
          %v3169 = vld [vmem:[#allocation4] sm:$0xff]
          %v3170 = vld [vmem:[#allocation4 + $0x8] sm:$0xff]
          %v3171 = vld [vmem:[#allocation4 + $0x10] sm:$0xff]
          %v3172 = vld [vmem:[#allocation4 + $0x18] sm:$0xff]
          %v3173 = vld [vmem:[#allocation4 + $0x20] sm:$0xff]
          %v3174 = vld [vmem:[#allocation4 + $0x28] sm:$0xff]
          %v3175 = vld [vmem:[#allocation4 + $0x30] sm:$0xff]
          %v3176 = vld [vmem:[#allocation4 + $0x38] sm:$0xff]
          %v3177 = vld [vmem:[#allocation4 + $0x40] sm:$0xff]
          %v3178 = vld [vmem:[#allocation4 + $0x48] sm:$0xff]
          %v3179 = vld [vmem:[#allocation4 + $0x50] sm:$0xff]
          %v3180 = vld [vmem:[#allocation4 + $0x58] sm:$0xff]
          %v3181 = vld [vmem:[#allocation4 + $0x60] sm:$0xff]
          %v3182 = vld [vmem:[#allocation4 + $0x68] sm:$0xff]
          %v3183 = vld [vmem:[#allocation4 + $0x70] sm:$0xff]
          %v3184 = vld [vmem:[#allocation4 + $0x78] sm:$0xff]
          %v3185 = vld [vmem:[#allocation4 + $0x80] sm:$0xff]
          %v3186 = vld [vmem:[#allocation4 + $0x88] sm:$0xff]
          %v3187 = vld [vmem:[#allocation4 + $0x90] sm:$0xff]
          %v3188 = vld [vmem:[#allocation4 + $0x98] sm:$0xff]
          %v3189 = vld [vmem:[#allocation4 + $0xa0] sm:$0xff]
          %v3190 = vld [vmem:[#allocation4 + $0xa8] sm:$0xff]
          %v3191 = vld [vmem:[#allocation4 + $0xb0] sm:$0xff]
          %v3192 = vld [vmem:[#allocation4 + $0xb8] sm:$0xff]
          %v3193 = vld [vmem:[#allocation4 + $0xc0] sm:$0xff]
          %v3194 = vld [vmem:[#allocation4 + $0xc8] sm:$0xff]
          %v3195 = vld [vmem:[#allocation4 + $0xd0] sm:$0xff]
          %v3196 = vld [vmem:[#allocation4 + $0xd8] sm:$0xff]
          %v3197 = vld [vmem:[#allocation4 + $0xe0] sm:$0xff]
          %v3198 = vld [vmem:[#allocation4 + $0xe8] sm:$0xff]
          %v3199 = vld [vmem:[#allocation4 + $0xf0] sm:$0xff]
          %v3200 = vld [vmem:[#allocation4 + $0xf8] sm:$0xff]
          %v3201 = vsub.f32 %v3073, %v3169
          %v3202 = vsub.f32 %v3074, %v3170
          %v3203 = vsub.f32 %v3075, %v3171
          %v3204 = vsub.f32 %v3076, %v3172
          %v3205 = vsub.f32 %v3077, %v3173
          %v3206 = vsub.f32 %v3078, %v3174
          %v3207 = vsub.f32 %v3079, %v3175
          %v3208 = vsub.f32 %v3080, %v3176
          %v3209 = vsub.f32 %v3081, %v3177
          %v3210 = vsub.f32 %v3082, %v3178
          %v3211 = vsub.f32 %v3083, %v3179
          %v3212 = vsub.f32 %v3084, %v3180
          %v3213 = vsub.f32 %v3085, %v3181
          %v3214 = vsub.f32 %v3086, %v3182
          %v3215 = vsub.f32 %v3087, %v3183
          %v3216 = vsub.f32 %v3088, %v3184
          %v3217 = vsub.f32 %v3089, %v3185
          %v3218 = vsub.f32 %v3090, %v3186
          %v3219 = vsub.f32 %v3091, %v3187
          %v3220 = vsub.f32 %v3092, %v3188
          %v3221 = vsub.f32 %v3093, %v3189
          %v3222 = vsub.f32 %v3094, %v3190
          %v3223 = vsub.f32 %v3095, %v3191
          %v3224 = vsub.f32 %v3096, %v3192
          %v3225 = vsub.f32 %v3097, %v3193
          %v3226 = vsub.f32 %v3098, %v3194
          %v3227 = vsub.f32 %v3099, %v3195
          %v3228 = vsub.f32 %v3100, %v3196
          %v3229 = vsub.f32 %v3101, %v3197
          %v3230 = vsub.f32 %v3102, %v3198
          %v3231 = vsub.f32 %v3103, %v3199
          %v3232 = vsub.f32 %v3104, %v3200
          %v3233 = vsel %vm3137, %v3201, 0.0
          %v3234 = vsel %vm3138, %v3202, 0.0
          %v3235 = vsel %vm3139, %v3203, 0.0
          %v3236 = vsel %vm3140, %v3204, 0.0
          %v3237 = vsel %vm3141, %v3205, 0.0
          %v3238 = vsel %vm3142, %v3206, 0.0
          %v3239 = vsel %vm3143, %v3207, 0.0
          %v3240 = vsel %vm3144, %v3208, 0.0
          %v3241 = vsel %vm3145, %v3209, 0.0
          %v3242 = vsel %vm3146, %v3210, 0.0
          %v3243 = vsel %vm3147, %v3211, 0.0
          %v3244 = vsel %vm3148, %v3212, 0.0
          %v3245 = vsel %vm3149, %v3213, 0.0
          %v3246 = vsel %vm3150, %v3214, 0.0
          %v3247 = vsel %vm3151, %v3215, 0.0
          %v3248 = vsel %vm3152, %v3216, 0.0
          %v3249 = vsel %vm3153, %v3217, 0.0
          %v3250 = vsel %vm3154, %v3218, 0.0
          %v3251 = vsel %vm3155, %v3219, 0.0
          %v3252 = vsel %vm3156, %v3220, 0.0
          %v3253 = vsel %vm3157, %v3221, 0.0
          %v3254 = vsel %vm3158, %v3222, 0.0
          %v3255 = vsel %vm3159, %v3223, 0.0
          %v3256 = vsel %vm3160, %v3224, 0.0
          %v3257 = vsel %vm3161, %v3225, 0.0
          %v3258 = vsel %vm3162, %v3226, 0.0
          %v3259 = vsel %vm3163, %v3227, 0.0
          %v3260 = vsel %vm3164, %v3228, 0.0
          %v3261 = vsel %vm3165, %v3229, 0.0
          %v3262 = vsel %vm3166, %v3230, 0.0
          %v3263 = vsel %vm3167, %v3231, 0.0
          %v3264 = vsel %vm3168, %v3232, 0.0
          %3265 = vst.msk [vmem:[%s268] sm:$0xff] %vm2202, %v3233
          %3266 = vst.msk [vmem:[%s268 + $0x8] sm:$0xff] %vm2202, %v3234
          %3267 = vst.msk [vmem:[%s268 + $0x10] sm:$0xff] %vm2202, %v3235
          %3268 = vst.msk [vmem:[%s268 + $0x18] sm:$0xff] %vm2202, %v3236
          %3269 = vst.msk [vmem:[%s268 + $0x20] sm:$0xff] %vm2202, %v3237
          %3270 = vst.msk [vmem:[%s268 + $0x28] sm:$0xff] %vm2202, %v3238
          %3271 = vst.msk [vmem:[%s268 + $0x30] sm:$0xff] %vm2202, %v3239
          %3272 = vst.msk [vmem:[%s268 + $0x38] sm:$0xff] %vm2202, %v3240
          %3273 = vst.msk [vmem:[%s268 + $0x40] sm:$0xff] %vm2202, %v3241
          %3274 = vst.msk [vmem:[%s268 + $0x48] sm:$0xff] %vm2202, %v3242
          %3275 = vst.msk [vmem:[%s268 + $0x50] sm:$0xff] %vm2202, %v3243
          %3276 = vst.msk [vmem:[%s268 + $0x58] sm:$0xff] %vm2202, %v3244
          %3277 = vst.msk [vmem:[%s268 + $0x60] sm:$0xff] %vm2202, %v3245
          %3278 = vst.msk [vmem:[%s268 + $0x68] sm:$0xff] %vm2202, %v3246
          %3279 = vst.msk [vmem:[%s268 + $0x70] sm:$0xff] %vm2202, %v3247
          %3280 = vst.msk [vmem:[%s268 + $0x78] sm:$0xff] %vm2202, %v3248
          %3281 = vst.msk [vmem:[%s268 + $0x80] sm:$0xff] %vm2202, %v3249
          %3282 = vst.msk [vmem:[%s268 + $0x88] sm:$0xff] %vm2202, %v3250
          %3283 = vst.msk [vmem:[%s268 + $0x90] sm:$0xff] %vm2202, %v3251
          %3284 = vst.msk [vmem:[%s268 + $0x98] sm:$0xff] %vm2202, %v3252
          %3285 = vst.msk [vmem:[%s268 + $0xa0] sm:$0xff] %vm2202, %v3253
          %3286 = vst.msk [vmem:[%s268 + $0xa8] sm:$0xff] %vm2202, %v3254
          %3287 = vst.msk [vmem:[%s268 + $0xb0] sm:$0xff] %vm2202, %v3255
          %3288 = vst.msk [vmem:[%s268 + $0xb8] sm:$0xff] %vm2202, %v3256
          %3289 = vst.msk [vmem:[%s268 + $0xc0] sm:$0xff] %vm2202, %v3257
          %3290 = vst.msk [vmem:[%s268 + $0xc8] sm:$0xff] %vm2202, %v3258
          %3291 = vst.msk [vmem:[%s268 + $0xd0] sm:$0xff] %vm2202, %v3259
          %3292 = vst.msk [vmem:[%s268 + $0xd8] sm:$0xff] %vm2202, %v3260
          %3293 = vst.msk [vmem:[%s268 + $0xe0] sm:$0xff] %vm2202, %v3261
          %3294 = vst.msk [vmem:[%s268 + $0xe8] sm:$0xff] %vm2202, %v3262
          %3295 = vst.msk [vmem:[%s268 + $0xf0] sm:$0xff] %vm2202, %v3263
          %3296 = vst.msk [vmem:[%s268 + $0xf8] sm:$0xff] %vm2202, %v3264
        $region48: #{tpu_custom_call.1} parent=31 // pred_fallthru
          _
        %s3297 = smul.u32 32, %s24
        %p3298 = scmp.lt.s32.totalorder %s3297, 63
        %s3299 = scalar_select %p3298, %s3297, 63
        %s3300 = smul.addr %s3299, 8
        %s3301 = scalar_lea.vmem %s3, %s3300
        // Predicated region
        $region49: #{tpu_custom_call.1} parent=31 // pred_check
          %p3302 = pneg %p128
        $region50: #{tpu_custom_call.1} parent=31 // pred_check_branch
          %3304 = sbr.rel (%p3302) target = $region52
        $region51: #{tpu_custom_call.1} parent=31 // pred_region
          %s3305 = smul.u32 32, %s24
        $region52: #{tpu_custom_call.1} parent=31 // pred_fallthru
          _
      $region32: #{tpu_custom_call.1} parent=5 // pred_fallthru
        _
      %p3306 = scmp.le.s32.totalorder 2, %s15
      // Predicated region
      $region53: #{tpu_custom_call.1} parent=5 // pred_check
        %p3307 = pneg %p3306
      $region54: #{tpu_custom_call.1} parent=5 // pred_check_branch
        %3309 = sbr.rel (%p3307) target = $region56
      $region55: #{tpu_custom_call.1} parent=5 // pred_region
        %s3310 = ssub.s32 %s15, 2
        // Predicated region
        $region57: #{tpu_custom_call.1} parent=55 // pred_check
          %p3311 = pneg %p134
        $region58: #{tpu_custom_call.1} parent=55 // pred_check_branch
          %3313 = sbr.rel (%p3311) target = $region60
        $region59: #{tpu_custom_call.1} parent=55 // pred_region
          %s3314 = smul.u32 32, %s26
          %p3315 = scmp.lt.s32.totalorder %s3314, 63
          %s3316 = scalar_select %p3315, %s3314, 63
          %s3317 = smul.addr %s3316, 8
          %s3318 = scalar_lea.vmem %s3, %s3317
        $region60: #{tpu_custom_call.1} parent=55 // pred_fallthru
          _
      $region56: #{tpu_custom_call.1} parent=5 // pred_fallthru
        _
    $region6: #{tpu_custom_call.1} parent=1 // loop_footer
      %s19 = sadd.s32 1, %s15
    $region7: #{tpu_custom_call.1} parent=1 // loop_footer_branch
      %14 = sbr.rel target = $region3
    $region8: #{tpu_custom_call.1} parent=1 // loop_exit
      _
    %3319 = vsyncpa [#allocation6], 1
    %s3320 = scalar_lea.sflag [#allocation6], 1
    %3321 = vsyncpa %s3320, 1
    %3322 = vsyncpa [#allocation8], 1
    %s3323 = scalar_lea.sflag [#allocation8], 1
    %3324 = vsyncpa %s3323, 1

</llo_original>
